<compile_context>
chip_gen: v6e
topology: v6e:2x2x1
jax: 0.10.0
libtpu: 0.0.40
codegen_flags: <defaults>
</compile_context>

<pallas_src>
import math
from functools import partial

import jax
import jax.numpy as jnp
import numpy as np
from jax.experimental import pallas as pl
from jax.experimental.pallas import tpu as pltpu

EPS = 1e-5


# ----------------------------- small helpers ---------------------------------
def _row_align(dtype):
    # bf16 native VMEM tile is (16, 128); keep every slab section 16-row aligned
    # so static row slices never straddle a packed sublane tile.
    return 16 if jnp.dtype(dtype).itemsize < 4 else 8


def _wslab_offsets(cin, cout, cond_dim, align):
    def up(n):
        return -(-n // align) * align
    o_wa = 0
    o_wb = o_wa + up(cin)
    o_wc = o_wb + up(2 * cout)
    o_w3 = o_wc + up(cond_dim)
    o_w4 = o_w3 + up(cout)
    total = o_w4 + up(cout)
    return o_wa, o_wb, o_wc, o_w3, o_w4, total


# ----------------------------- math helpers (kernel & reference) -------------
def _mish(x):
    # x * tanh(softplus(x)), numerically-stable softplus
    sp = jnp.where(x > 20.0, x, jnp.log1p(jnp.exp(jnp.minimum(x, 20.0))))
    return x * jnp.tanh(sp)


def _layernorm(h, gamma, beta):
    # Two-pass LayerNorm (mean, then variance of centered values).
    mu = jnp.mean(h, axis=-1, keepdims=True)
    d = h - mu
    var = jnp.mean(d * d, axis=-1, keepdims=True)
    return d * jax.lax.rsqrt(var + EPS) * gamma + beta


def _seg_layernorm2(t, gamma, beta, left, cseg):
    # Independent LayerNorm over t[:, :cseg] and t[:, cseg:] while staying in the
    # fused (tb, 2*cseg) lane layout.  `left` is a hoisted (1, 2*cseg) bool mask.
    # Two-pass statistics per half (numerically robust).
    inv = 1.0 / cseg
    tl = jnp.where(left, t, 0.0)          # left half, zeros elsewhere
    tr = t - tl                           # right half, zeros elsewhere (exact in f32)
    mu = jnp.where(left,
                   jnp.sum(tl, axis=-1, keepdims=True) * inv,
                   jnp.sum(tr, axis=-1, keepdims=True) * inv)
    d = t - mu
    dl = jnp.where(left, d, 0.0)
    dr = d - dl
    var = jnp.where(left,
                    jnp.sum(dl * dl, axis=-1, keepdims=True) * inv,
                    jnp.sum(dr * dr, axis=-1, keepdims=True) * inv)
    return d * jax.lax.rsqrt(var + EPS) * gamma + beta


# ----------------------------- the Pallas kernel ------------------------------
def film_kernel(x_ref, cond_ref, w_ref, v_ref, o_ref, *,
                cin, cout, cond_dim, row_align, mm_dtype):
    f32 = jnp.float32
    C2 = 2 * cout
    o_wa, o_wb, o_wc, o_w3, o_w4, _ = _wslab_offsets(cin, cout, cond_dim, row_align)

    # ---- static slices of the packed weight slab (already in mm_dtype) -------
    wa = w_ref[o_wa:o_wa + cin, :]            # [w1 | wr1]           (cin, 2C)
    wb = w_ref[o_wb:o_wb + C2, :]             # blockdiag(w2, wr2)   (2C, 2C)
    wc = w_ref[o_wc:o_wc + cond_dim, :]       # FiLM [scale | bias]  (cd, 2C)
    w3 = w_ref[o_w3:o_w3 + cout, :cout]       # blocks[1].layer1     (C, C)
    w4 = w_ref[o_w4:o_w4 + cout, :cout]       # blocks[1].layer2     (C, C)

    # ---- static slices of the packed per-feature vector slab (f32) -----------
    b_a, g_a, be_a = v_ref[0:1, :], v_ref[1:2, :], v_ref[2:3, :]
    b_b, g_b, be_b = v_ref[3:4, :], v_ref[4:5, :], v_ref[5:6, :]
    bc = v_ref[6:7, :]
    b3, g3, be3 = v_ref[7:8, :cout], v_ref[8:9, :cout], v_ref[9:10, :cout]
    b4, g4, be4 = v_ref[10:11, :cout], v_ref[11:12, :cout], v_ref[12:13, :cout]

    # Hoisted (1, 2C) segment mask, reused by both fused LayerNorms.
    left = jax.lax.broadcasted_iota(jnp.int32, (1, C2), 1) < cout

    xb = x_ref[...].astype(mm_dtype)          # x only feeds the MXU
    cond = cond_ref[...].astype(f32)          # Mish stays in f32

    # ---- fused stage A: blocks[0].layer1 || residual_conv.layer1 -------------
    t = jnp.dot(xb, wa, preferred_element_type=f32) + b_a
    t = jnp.maximum(_seg_layernorm2(t, g_a, be_a, left, cout), 0.0)

    # ---- fused stage B: blocks[0].layer2 || residual_conv.layer2 -------------
    u = jnp.dot(t.astype(mm_dtype), wb, preferred_element_type=f32) + b_b
    u = _seg_layernorm2(u, g_b, be_b, left, cout)

    h = jnp.maximum(u[:, :cout], 0.0)         # blocks[0] output (ReLU)
    res = u[:, cout:]                         # residual branch output (no ReLU)

    # ---- FiLM (cond_predict_scale=True): one fused (cd, 2C) matmul -----------
    cm = _mish(cond).astype(mm_dtype)
    embed = jnp.dot(cm, wc, preferred_element_type=f32) + bc
    h = embed[:, :cout] * h + embed[:, cout:]

    # ---- blocks[1] ------------------------------------------------------------
    h = jnp.dot(h.astype(mm_dtype), w3, preferred_element_type=f32) + b3
    h = jnp.maximum(_layernorm(h, g3, be3), 0.0)
    h = jnp.dot(h.astype(mm_dtype), w4, preferred_element_type=f32) + b4
    h = jnp.maximum(_layernorm(h, g4, be4), 0.0)

    # cout=32 (<128) output store is masked; acceptable per profile.
    o_ref[...] = (h + res).astype(o_ref.dtype)


# ----------------------------- parameter packing ------------------------------
def pack_film_params(params, cin, cout, cond_dim, mm_dtype=jnp.bfloat16):
    """Pack the 26 module parameters into one mm_dtype weight slab + one f32
    vector slab.  Weight sections are aligned so static bf16 row slices never
    straddle a packed sublane tile."""
    (w1, b1, g1, be1, w2, b2, g2, be2,
     wc, bc,
     w3, b3, g3, be3, w4, b4, g4, be4,
     wr1, br1, gr1, ber1, wr2, br2, gr2, ber2) = params
    C2 = 2 * cout
    align = _row_align(mm_dtype)

    def pad_rows(a):
        return jnp.pad(a, ((0, (-a.shape[0]) % align), (0, 0)))

    def pad_cols(a):
        return jnp.pad(a, ((0, 0), (0, C2 - a.shape[1])))

    zc = jnp.zeros((cout, cout), jnp.float32)
    sections = [
        jnp.concatenate([w1, wr1], axis=1),          # (cin, 2C)
        jnp.block([[w2, zc], [zc, wr2]]),            # (2C, 2C)
        wc,                                          # (cond_dim, 2C): [scale | bias]
        pad_cols(w3),                                # (cout, 2C)
        pad_cols(w4),                                # (cout, 2C)
    ]
    wslab = jnp.concatenate([pad_rows(s) for s in sections], axis=0).astype(mm_dtype)

    def wide(a, b):
        return jnp.concatenate([a, b], axis=1)       # (1, 2C)

    rows = [wide(b1, br1), wide(g1, gr1), wide(be1, ber1),
            wide(b2, br2), wide(g2, gr2), wide(be2, ber2),
            bc,
            pad_cols(b3), pad_cols(g3), pad_cols(be3),
            pad_cols(b4), pad_cols(g4), pad_cols(be4)]
    vslab = jnp.concatenate(rows, axis=0).astype(jnp.float32)     # (13, 2C)
    vslab = jnp.pad(vslab, ((0, (-vslab.shape[0]) % 8), (0, 0)))  # sublane-align rows
    return wslab, vslab


# ----------------------------- tile heuristic ---------------------------------
def _default_tb(B):
    # Per-step fixed cost is ~0.35us, so amortize with big tiles; VMEM is never
    # the binding constraint for this kernel (a few MB even at tb=4096).
    cap = 4096
    kind = ""
    try:
        kind = jax.devices()[0].device_kind.lower()
    except Exception:
        pass
    if "v7" in kind or "7x" in kind:
        # 2 TensorCores/chip: always use an even number (>=2) of parallel steps.
        n_tiles = max(2, 2 * (-(-B // (2 * cap))))
    else:
        # 1 TensorCore: fewest tiles that respect the cap (grid=1 when B fits).
        n_tiles = max(1, -(-B // cap))
    tb = -(-B // n_tiles)
    return max(8, -(-tb // 8) * 8)


# ----------------------------- wrapper ----------------------------------------
def film_block(x, cond, wslab, vslab, *, cin, cout, cond_dim,
               tb=None, out_dtype=jnp.float32):
    B = x.shape[0]
    mm_dtype = wslab.dtype                    # matmul dtype is fixed by the packed slab
    row_align = _row_align(mm_dtype)

    if tb is None:
        tb = _default_tb(B)
    tb = max(8, -(-tb // 8) * 8)              # multiple of 8 sublanes
    Bp = -(-B // tb) * tb                     # pad ragged batches instead of asserting
    if Bp != B:
        x = jnp.pad(x, ((0, Bp - B), (0, 0)))
        cond = jnp.pad(cond, ((0, Bp - B), (0, 0)))

    kernel = partial(film_kernel, cin=cin, cout=cout, cond_dim=cond_dim,
                     row_align=row_align, mm_dtype=mm_dtype)

    out = pl.pallas_call(
        kernel,
        out_shape=jax.ShapeDtypeStruct((Bp, cout), out_dtype),
        grid=(Bp // tb,),
        in_specs=[
            pl.BlockSpec((tb, cin), lambda i: (i, 0)),
            pl.BlockSpec((tb, cond_dim), lambda i: (i, 0)),
            pl.BlockSpec(wslab.shape, lambda i: (0, 0)),   # params: resident blocks
            pl.BlockSpec(vslab.shape, lambda i: (0, 0)),
        ],
        out_specs=pl.BlockSpec((tb, cout), lambda i: (i, 0)),
        compiler_params=pltpu.CompilerParams(
            dimension_semantics=("parallel",),
            vmem_limit_bytes=48 * 1024 * 1024),
    )(x, cond, wslab, vslab)
    return out[:B]


# ----------------------------- pure-JAX reference (module semantics, f32) -----
def film_block_ref(x, cond, params):
    (w1, b1, g1, be1, w2, b2, g2, be2,
     wc, bc,
     w3, b3, g3, be3, w4, b4, g4, be4,
     wr1, br1, gr1, ber1, wr2, br2, gr2, ber2) = params
    dot = partial(jnp.dot, precision=jax.lax.Precision.HIGHEST)

    def ln(h, g, b):
        mu = jnp.mean(h, axis=-1, keepdims=True)
        var = jnp.mean((h - mu) ** 2, axis=-1, keepdims=True)
        return (h - mu) * jax.lax.rsqrt(var + EPS) * g + b

    cout = w2.shape[1]
    h = jnp.maximum(ln(dot(x, w1) + b1, g1, be1), 0.0)
    h = jnp.maximum(ln(dot(h, w2) + b2, g2, be2), 0.0)
    embed = dot(_mish(cond), wc) + bc
    h = embed[:, :cout] * h + embed[:, cout:]
    h = jnp.maximum(ln(dot(h, w3) + b3, g3, be3), 0.0)
    h = jnp.maximum(ln(dot(h, w4) + b4, g4, be4), 0.0)
    r = jnp.maximum(ln(dot(x, wr1) + br1, gr1, ber1), 0.0)
    r = ln(dot(r, wr2) + br2, gr2, ber2)
    return h + r


# ----------------------------- deterministic param init -----------------------
def init_params(key, cin, cout, cond_dim):
    def linear_p(key, fi, fo):
        k1, k2 = jax.random.split(key)
        bound = 1.0 / math.sqrt(fi)
        w = jax.random.uniform(k1, (fi, fo), jnp.float32, -bound, bound)
        b = jax.random.uniform(k2, (1, fo), jnp.float32, -bound, bound)
        return w, b

    def ln_p(c):
        return jnp.ones((1, c), jnp.float32), jnp.zeros((1, c), jnp.float32)

    keys = jax.random.split(key, 7)
    w1, b1 = linear_p(keys[0], cin, cout);    g1, be1 = ln_p(cout)
    w2, b2 = linear_p(keys[1], cout, cout);   g2, be2 = ln_p(cout)
    wc, bc = linear_p(keys[2], cond_dim, 2 * cout)       # cond_predict_scale=True
    w3, b3 = linear_p(keys[3], cout, cout);   g3, be3 = ln_p(cout)
    w4, b4 = linear_p(keys[4], cout, cout);   g4, be4 = ln_p(cout)
    wr1, br1 = linear_p(keys[5], cin, cout);  gr1, ber1 = ln_p(cout)
    wr2, br2 = linear_p(keys[6], cout, cout); gr2, ber2 = ln_p(cout)
    return (w1, b1, g1, be1, w2, b2, g2, be2,
            wc, bc,
            w3, b3, g3, be3, w4, b4, g4, be4,
            wr1, br1, gr1, ber1, wr2, br2, gr2, ber2)


if __name__ == "__main__":
    B, CIN, COUT, CDIM = 500, 16, 32, 8       # ragged B also exercises batch padding

    key = jax.random.PRNGKey(0)
    kx, kc, kp = jax.random.split(key, 3)
    x = jax.random.normal(kx, (B, CIN), jnp.float32)
    cond = jax.random.normal(kc, (B, CDIM), jnp.float32)
    params = init_params(kp, CIN, COUT, CDIM)
    # The kernel feeds the MXU in bf16 (v6e/v7x fast path); keep the master
    # params bf16-representable so the f32 reference comparison only sees
    # activation-rounding error.
    params = jax.tree_util.tree_map(
        lambda p: p.astype(jnp.bfloat16).astype(jnp.float32), params)

    wslab, vslab = pack_film_params(params, CIN, COUT, CDIM, mm_dtype=jnp.bfloat16)

    out = film_block(x, cond, wslab, vslab, cin=CIN, cout=COUT, cond_dim=CDIM)
    out = jax.block_until_ready(out)

    ref = jax.block_until_ready(film_block_ref(x, cond, params))
    # Tolerance covers bf16 rounding of activations at the 5 matmul stages
    # (intentional perf choice); LN / FiLM math is f32 in both implementations.
    np.testing.assert_allclose(np.asarray(out), np.asarray(ref), rtol=5e-2, atol=5e-2)
    assert out.shape == (B, COUT)

    print("KERNEL_OK")
</pallas_src>

<mosaic_0001>
module attributes {stable_mosaic.version = 11 : i64} {
  func.func @film_kernel(%arg0: i32, %arg1: memref<504x16xf32, #tpu.memory_space<vmem>>, %arg2: memref<504x8xf32, #tpu.memory_space<vmem>>, %arg3: memref<160x64xbf16, #tpu.memory_space<vmem>>, %arg4: memref<16x64xf32, #tpu.memory_space<vmem>>, %arg5: memref<504x32xf32, #tpu.memory_space<vmem>>) attributes {dimension_semantics = [#tpu.dimension_semantics<parallel>], iteration_bounds = array<i64: 1>, scalar_prefetch = 0 : i64, scratch_operands = 0 : i64, tpu.core_type = #tpu.core_type<tc>, window_params = [{transform_indices = @transform_0, window_bounds = array<i64: 504, 16>}, {transform_indices = @transform_1, window_bounds = array<i64: 504, 8>}, {pipeline_mode = #tpu.pipeline_mode<synchronous>, transform_indices = @transform_2, window_bounds = array<i64: 160, 64>}, {pipeline_mode = #tpu.pipeline_mode<synchronous>, transform_indices = @transform_3, window_bounds = array<i64: 16, 64>}, {transform_indices = @transform_4, window_bounds = array<i64: 504, 32>}]} {
    %c0 = arith.constant 0 : index
    %c0_0 = arith.constant 0 : index
    %0 = vector.load %arg3[%c0, %c0_0] : memref<160x64xbf16, #tpu.memory_space<vmem>>, vector<16x64xbf16>
    %c16 = arith.constant 16 : index
    %c0_1 = arith.constant 0 : index
    %1 = vector.load %arg3[%c16, %c0_1] : memref<160x64xbf16, #tpu.memory_space<vmem>>, vector<64x64xbf16>
    %c80 = arith.constant 80 : index
    %c0_2 = arith.constant 0 : index
    %2 = vector.load %arg3[%c80, %c0_2] : memref<160x64xbf16, #tpu.memory_space<vmem>>, vector<8x64xbf16>
    %c96 = arith.constant 96 : index
    %c0_3 = arith.constant 0 : index
    %3 = vector.load %arg3[%c96, %c0_3] : memref<160x64xbf16, #tpu.memory_space<vmem>>, vector<32x32xbf16>
    %c128 = arith.constant 128 : index
    %c0_4 = arith.constant 0 : index
    %4 = vector.load %arg3[%c128, %c0_4] : memref<160x64xbf16, #tpu.memory_space<vmem>>, vector<32x32xbf16>
    %c0_5 = arith.constant 0 : index
    %c0_6 = arith.constant 0 : index
    %5 = vector.load %arg4[%c0_5, %c0_6] : memref<16x64xf32, #tpu.memory_space<vmem>>, vector<1x64xf32>
    %c1 = arith.constant 1 : index
    %c0_7 = arith.constant 0 : index
    %6 = vector.load %arg4[%c1, %c0_7] : memref<16x64xf32, #tpu.memory_space<vmem>>, vector<1x64xf32>
    %c2 = arith.constant 2 : index
    %c0_8 = arith.constant 0 : index
    %7 = vector.load %arg4[%c2, %c0_8] : memref<16x64xf32, #tpu.memory_space<vmem>>, vector<1x64xf32>
    %c3 = arith.constant 3 : index
    %c0_9 = arith.constant 0 : index
    %8 = vector.load %arg4[%c3, %c0_9] : memref<16x64xf32, #tpu.memory_space<vmem>>, vector<1x64xf32>
    %c4 = arith.constant 4 : index
    %c0_10 = arith.constant 0 : index
    %9 = vector.load %arg4[%c4, %c0_10] : memref<16x64xf32, #tpu.memory_space<vmem>>, vector<1x64xf32>
    %c5 = arith.constant 5 : index
    %c0_11 = arith.constant 0 : index
    %10 = vector.load %arg4[%c5, %c0_11] : memref<16x64xf32, #tpu.memory_space<vmem>>, vector<1x64xf32>
    %c6 = arith.constant 6 : index
    %c0_12 = arith.constant 0 : index
    %11 = vector.load %arg4[%c6, %c0_12] : memref<16x64xf32, #tpu.memory_space<vmem>>, vector<1x64xf32>
    %c7 = arith.constant 7 : index
    %c0_13 = arith.constant 0 : index
    %12 = vector.load %arg4[%c7, %c0_13] : memref<16x64xf32, #tpu.memory_space<vmem>>, vector<1x32xf32>
    %c8 = arith.constant 8 : index
    %c0_14 = arith.constant 0 : index
    %13 = vector.load %arg4[%c8, %c0_14] : memref<16x64xf32, #tpu.memory_space<vmem>>, vector<1x32xf32>
    %c9 = arith.constant 9 : index
    %c0_15 = arith.constant 0 : index
    %14 = vector.load %arg4[%c9, %c0_15] : memref<16x64xf32, #tpu.memory_space<vmem>>, vector<1x32xf32>
    %c10 = arith.constant 10 : index
    %c0_16 = arith.constant 0 : index
    %15 = vector.load %arg4[%c10, %c0_16] : memref<16x64xf32, #tpu.memory_space<vmem>>, vector<1x32xf32>
    %c11 = arith.constant 11 : index
    %c0_17 = arith.constant 0 : index
    %16 = vector.load %arg4[%c11, %c0_17] : memref<16x64xf32, #tpu.memory_space<vmem>>, vector<1x32xf32>
    %c12 = arith.constant 12 : index
    %c0_18 = arith.constant 0 : index
    %17 = vector.load %arg4[%c12, %c0_18] : memref<16x64xf32, #tpu.memory_space<vmem>>, vector<1x32xf32>
    %18 = tpu.iota {dimensions = array<i32: 1>} : vector<1x64xi32>
    %c32_i32 = arith.constant 32 : i32
    %19 = vector.broadcast %c32_i32 : i32 to vector<1x64xi32>
    %20 = arith.cmpi slt, %18, %19 : vector<1x64xi32>
    %c0_19 = arith.constant 0 : index
    %c0_20 = arith.constant 0 : index
    %21 = vector.load %arg1[%c0_19, %c0_20] : memref<504x16xf32, #tpu.memory_space<vmem>>, vector<504x16xf32>
    %22 = arith.truncf %21 : vector<504x16xf32> to vector<504x16xbf16>
    %c0_21 = arith.constant 0 : index
    %c0_22 = arith.constant 0 : index
    %23 = vector.load %arg2[%c0_21, %c0_22] : memref<504x8xf32, #tpu.memory_space<vmem>>, vector<504x8xf32>
    %cst = arith.constant dense<0.000000e+00> : vector<504x64xf32>
    %24 = tpu.matmul %22, %0, %cst {dimension_numbers = #tpu.dot_dimension_numbers<[1], [0], [0], [1], [0, 0, 1, 1], [], []>} : vector<504x16xbf16>, vector<16x64xbf16>, vector<504x64xf32> -> vector<504x64xf32>
    %25 = vector.broadcast %5 : vector<1x64xf32> to vector<504x64xf32>
    %26 = arith.addf %24, %25 : vector<504x64xf32>
    %cst_23 = arith.constant 0.000000e+00 : f32
    %27 = vector.shape_cast %20 : vector<1x64xi1> to vector<1x64xi1>
    %28 = vector.broadcast %27 : vector<1x64xi1> to vector<504x64xi1>
    %29 = vector.broadcast %cst_23 : f32 to vector<504x64xf32>
    %30 = arith.select %28, %26, %29 : vector<504x64xi1>, vector<504x64xf32>
    %31 = arith.subf %26, %30 : vector<504x64xf32>
    %cst_24 = arith.constant dense<0.000000e+00> : vector<504xf32>
    %32 = vector.multi_reduction <add>, %30, %cst_24 [1] : vector<504x64xf32> to vector<504xf32>
    %33 = vector.shape_cast %32 : vector<504xf32> to vector<504x1xf32>
    %cst_25 = arith.constant 3.125000e-02 : f32
    %34 = vector.broadcast %cst_25 : f32 to vector<504x1xf32>
    %35 = arith.mulf %33, %34 : vector<504x1xf32>
    %cst_26 = arith.constant dense<0.000000e+00> : vector<504xf32>
    %36 = vector.multi_reduction <add>, %31, %cst_26 [1] : vector<504x64xf32> to vector<504xf32>
    %37 = vector.shape_cast %36 : vector<504xf32> to vector<504x1xf32>
    %cst_27 = arith.constant 3.125000e-02 : f32
    %38 = vector.broadcast %cst_27 : f32 to vector<504x1xf32>
    %39 = arith.mulf %37, %38 : vector<504x1xf32>
    %40 = vector.shape_cast %20 : vector<1x64xi1> to vector<1x64xi1>
    %41 = vector.broadcast %40 : vector<1x64xi1> to vector<504x64xi1>
    %42 = vector.shape_cast %35 : vector<504x1xf32> to vector<504x1xf32>
    %43 = vector.broadcast %42 : vector<504x1xf32> to vector<504x64xf32>
    %44 = vector.shape_cast %39 : vector<504x1xf32> to vector<504x1xf32>
    %45 = vector.broadcast %44 : vector<504x1xf32> to vector<504x64xf32>
    %46 = arith.select %41, %43, %45 : vector<504x64xi1>, vector<504x64xf32>
    %47 = arith.subf %26, %46 : vector<504x64xf32>
    %cst_28 = arith.constant 0.000000e+00 : f32
    %48 = vector.shape_cast %20 : vector<1x64xi1> to vector<1x64xi1>
    %49 = vector.broadcast %48 : vector<1x64xi1> to vector<504x64xi1>
    %50 = vector.broadcast %cst_28 : f32 to vector<504x64xf32>
    %51 = arith.select %49, %47, %50 : vector<504x64xi1>, vector<504x64xf32>
    %52 = arith.subf %47, %51 : vector<504x64xf32>
    %53 = arith.mulf %51, %51 : vector<504x64xf32>
    %cst_29 = arith.constant dense<0.000000e+00> : vector<504xf32>
    %54 = vector.multi_reduction <add>, %53, %cst_29 [1] : vector<504x64xf32> to vector<504xf32>
    %55 = vector.shape_cast %54 : vector<504xf32> to vector<504x1xf32>
    %cst_30 = arith.constant 3.125000e-02 : f32
    %56 = vector.broadcast %cst_30 : f32 to vector<504x1xf32>
    %57 = arith.mulf %55, %56 : vector<504x1xf32>
    %58 = arith.mulf %52, %52 : vector<504x64xf32>
    %cst_31 = arith.constant dense<0.000000e+00> : vector<504xf32>
    %59 = vector.multi_reduction <add>, %58, %cst_31 [1] : vector<504x64xf32> to vector<504xf32>
    %60 = vector.shape_cast %59 : vector<504xf32> to vector<504x1xf32>
    %cst_32 = arith.constant 3.125000e-02 : f32
    %61 = vector.broadcast %cst_32 : f32 to vector<504x1xf32>
    %62 = arith.mulf %60, %61 : vector<504x1xf32>
    %63 = vector.shape_cast %20 : vector<1x64xi1> to vector<1x64xi1>
    %64 = vector.broadcast %63 : vector<1x64xi1> to vector<504x64xi1>
    %65 = vector.shape_cast %57 : vector<504x1xf32> to vector<504x1xf32>
    %66 = vector.broadcast %65 : vector<504x1xf32> to vector<504x64xf32>
    %67 = vector.shape_cast %62 : vector<504x1xf32> to vector<504x1xf32>
    %68 = vector.broadcast %67 : vector<504x1xf32> to vector<504x64xf32>
    %69 = arith.select %64, %66, %68 : vector<504x64xi1>, vector<504x64xf32>
    %cst_33 = arith.constant 9.99999974E-6 : f32
    %70 = vector.broadcast %cst_33 : f32 to vector<504x64xf32>
    %71 = arith.addf %69, %70 : vector<504x64xf32>
    %72 = math.rsqrt %71 : vector<504x64xf32>
    %73 = arith.mulf %47, %72 : vector<504x64xf32>
    %74 = vector.broadcast %6 : vector<1x64xf32> to vector<504x64xf32>
    %75 = arith.mulf %73, %74 : vector<504x64xf32>
    %76 = vector.broadcast %7 : vector<1x64xf32> to vector<504x64xf32>
    %77 = arith.addf %75, %76 : vector<504x64xf32>
    %cst_34 = arith.constant 0.000000e+00 : f32
    %78 = vector.broadcast %cst_34 : f32 to vector<504x64xf32>
    %79 = arith.maximumf %77, %78 : vector<504x64xf32>
    %80 = arith.truncf %79 : vector<504x64xf32> to vector<504x64xbf16>
    %cst_35 = arith.constant dense<0.000000e+00> : vector<504x64xf32>
    %81 = tpu.matmul %80, %1, %cst_35 {dimension_numbers = #tpu.dot_dimension_numbers<[1], [0], [0], [1], [0, 0, 1, 1], [], []>} : vector<504x64xbf16>, vector<64x64xbf16>, vector<504x64xf32> -> vector<504x64xf32>
    %82 = vector.broadcast %8 : vector<1x64xf32> to vector<504x64xf32>
    %83 = arith.addf %81, %82 : vector<504x64xf32>
    %cst_36 = arith.constant 0.000000e+00 : f32
    %84 = vector.shape_cast %20 : vector<1x64xi1> to vector<1x64xi1>
    %85 = vector.broadcast %84 : vector<1x64xi1> to vector<504x64xi1>
    %86 = vector.broadcast %cst_36 : f32 to vector<504x64xf32>
    %87 = arith.select %85, %83, %86 : vector<504x64xi1>, vector<504x64xf32>
    %88 = arith.subf %83, %87 : vector<504x64xf32>
    %cst_37 = arith.constant dense<0.000000e+00> : vector<504xf32>
    %89 = vector.multi_reduction <add>, %87, %cst_37 [1] : vector<504x64xf32> to vector<504xf32>
    %90 = vector.shape_cast %89 : vector<504xf32> to vector<504x1xf32>
    %cst_38 = arith.constant 3.125000e-02 : f32
    %91 = vector.broadcast %cst_38 : f32 to vector<504x1xf32>
    %92 = arith.mulf %90, %91 : vector<504x1xf32>
    %cst_39 = arith.constant dense<0.000000e+00> : vector<504xf32>
    %93 = vector.multi_reduction <add>, %88, %cst_39 [1] : vector<504x64xf32> to vector<504xf32>
    %94 = vector.shape_cast %93 : vector<504xf32> to vector<504x1xf32>
    %cst_40 = arith.constant 3.125000e-02 : f32
    %95 = vector.broadcast %cst_40 : f32 to vector<504x1xf32>
    %96 = arith.mulf %94, %95 : vector<504x1xf32>
    %97 = vector.shape_cast %20 : vector<1x64xi1> to vector<1x64xi1>
    %98 = vector.broadcast %97 : vector<1x64xi1> to vector<504x64xi1>
    %99 = vector.shape_cast %92 : vector<504x1xf32> to vector<504x1xf32>
    %100 = vector.broadcast %99 : vector<504x1xf32> to vector<504x64xf32>
    %101 = vector.shape_cast %96 : vector<504x1xf32> to vector<504x1xf32>
    %102 = vector.broadcast %101 : vector<504x1xf32> to vector<504x64xf32>
    %103 = arith.select %98, %100, %102 : vector<504x64xi1>, vector<504x64xf32>
    %104 = arith.subf %83, %103 : vector<504x64xf32>
    %cst_41 = arith.constant 0.000000e+00 : f32
    %105 = vector.shape_cast %20 : vector<1x64xi1> to vector<1x64xi1>
    %106 = vector.broadcast %105 : vector<1x64xi1> to vector<504x64xi1>
    %107 = vector.broadcast %cst_41 : f32 to vector<504x64xf32>
    %108 = arith.select %106, %104, %107 : vector<504x64xi1>, vector<504x64xf32>
    %109 = arith.subf %104, %108 : vector<504x64xf32>
    %110 = arith.mulf %108, %108 : vector<504x64xf32>
    %cst_42 = arith.constant dense<0.000000e+00> : vector<504xf32>
    %111 = vector.multi_reduction <add>, %110, %cst_42 [1] : vector<504x64xf32> to vector<504xf32>
    %112 = vector.shape_cast %111 : vector<504xf32> to vector<504x1xf32>
    %cst_43 = arith.constant 3.125000e-02 : f32
    %113 = vector.broadcast %cst_43 : f32 to vector<504x1xf32>
    %114 = arith.mulf %112, %113 : vector<504x1xf32>
    %115 = arith.mulf %109, %109 : vector<504x64xf32>
    %cst_44 = arith.constant dense<0.000000e+00> : vector<504xf32>
    %116 = vector.multi_reduction <add>, %115, %cst_44 [1] : vector<504x64xf32> to vector<504xf32>
    %117 = vector.shape_cast %116 : vector<504xf32> to vector<504x1xf32>
    %cst_45 = arith.constant 3.125000e-02 : f32
    %118 = vector.broadcast %cst_45 : f32 to vector<504x1xf32>
    %119 = arith.mulf %117, %118 : vector<504x1xf32>
    %120 = vector.shape_cast %20 : vector<1x64xi1> to vector<1x64xi1>
    %121 = vector.broadcast %120 : vector<1x64xi1> to vector<504x64xi1>
    %122 = vector.shape_cast %114 : vector<504x1xf32> to vector<504x1xf32>
    %123 = vector.broadcast %122 : vector<504x1xf32> to vector<504x64xf32>
    %124 = vector.shape_cast %119 : vector<504x1xf32> to vector<504x1xf32>
    %125 = vector.broadcast %124 : vector<504x1xf32> to vector<504x64xf32>
    %126 = arith.select %121, %123, %125 : vector<504x64xi1>, vector<504x64xf32>
    %cst_46 = arith.constant 9.99999974E-6 : f32
    %127 = vector.broadcast %cst_46 : f32 to vector<504x64xf32>
    %128 = arith.addf %126, %127 : vector<504x64xf32>
    %129 = math.rsqrt %128 : vector<504x64xf32>
    %130 = arith.mulf %104, %129 : vector<504x64xf32>
    %131 = vector.broadcast %9 : vector<1x64xf32> to vector<504x64xf32>
    %132 = arith.mulf %130, %131 : vector<504x64xf32>
    %133 = vector.broadcast %10 : vector<1x64xf32> to vector<504x64xf32>
    %134 = arith.addf %132, %133 : vector<504x64xf32>
    %135 = vector.extract_strided_slice %134 {offsets = [0, 0], sizes = [504, 32], strides = [1, 1]} : vector<504x64xf32> to vector<504x32xf32>
    %cst_47 = arith.constant 0.000000e+00 : f32
    %136 = vector.broadcast %cst_47 : f32 to vector<504x32xf32>
    %137 = arith.maximumf %135, %136 : vector<504x32xf32>
    %138 = vector.extract_strided_slice %134 {offsets = [0, 32], sizes = [504, 32], strides = [1, 1]} : vector<504x64xf32> to vector<504x32xf32>
    %cst_48 = arith.constant 2.000000e+01 : f32
    %139 = vector.broadcast %cst_48 : f32 to vector<504x8xf32>
    %140 = arith.cmpf ogt, %23, %139 : vector<504x8xf32>
    %cst_49 = arith.constant 2.000000e+01 : f32
    %141 = vector.broadcast %cst_49 : f32 to vector<504x8xf32>
    %142 = arith.minimumf %23, %141 : vector<504x8xf32>
    %143 = math.exp %142 : vector<504x8xf32>
    %144 = math.log1p %143 : vector<504x8xf32>
    %145 = arith.select %140, %23, %144 : vector<504x8xi1>, vector<504x8xf32>
    %146 = math.tanh %145 : vector<504x8xf32>
    %147 = arith.mulf %23, %146 : vector<504x8xf32>
    %148 = arith.truncf %147 : vector<504x8xf32> to vector<504x8xbf16>
    %cst_50 = arith.constant dense<0.000000e+00> : vector<504x64xf32>
    %149 = tpu.matmul %148, %2, %cst_50 {dimension_numbers = #tpu.dot_dimension_numbers<[1], [0], [0], [1], [0, 0, 1, 1], [], []>} : vector<504x8xbf16>, vector<8x64xbf16>, vector<504x64xf32> -> vector<504x64xf32>
    %150 = vector.broadcast %11 : vector<1x64xf32> to vector<504x64xf32>
    %151 = arith.addf %149, %150 : vector<504x64xf32>
    %152 = vector.extract_strided_slice %151 {offsets = [0, 0], sizes = [504, 32], strides = [1, 1]} : vector<504x64xf32> to vector<504x32xf32>
    %153 = arith.mulf %152, %137 : vector<504x32xf32>
    %154 = vector.extract_strided_slice %151 {offsets = [0, 32], sizes = [504, 32], strides = [1, 1]} : vector<504x64xf32> to vector<504x32xf32>
    %155 = arith.addf %153, %154 : vector<504x32xf32>
    %156 = arith.truncf %155 : vector<504x32xf32> to vector<504x32xbf16>
    %cst_51 = arith.constant dense<0.000000e+00> : vector<504x32xf32>
    %157 = tpu.matmul %156, %3, %cst_51 {dimension_numbers = #tpu.dot_dimension_numbers<[1], [0], [0], [1], [0, 0, 1, 1], [], []>} : vector<504x32xbf16>, vector<32x32xbf16>, vector<504x32xf32> -> vector<504x32xf32>
    %158 = vector.broadcast %12 : vector<1x32xf32> to vector<504x32xf32>
    %159 = arith.addf %157, %158 : vector<504x32xf32>
    %cst_52 = arith.constant dense<0.000000e+00> : vector<504xf32>
    %160 = vector.multi_reduction <add>, %159, %cst_52 [1] : vector<504x32xf32> to vector<504xf32>
    %161 = vector.shape_cast %160 : vector<504xf32> to vector<504x1xf32>
    %cst_53 = arith.constant 3.200000e+01 : f32
    %162 = vector.broadcast %cst_53 : f32 to vector<504x1xf32>
    %163 = arith.divf %161, %162 : vector<504x1xf32>
    %164 = vector.broadcast %163 : vector<504x1xf32> to vector<504x32xf32>
    %165 = arith.subf %159, %164 : vector<504x32xf32>
    %166 = arith.mulf %165, %165 : vector<504x32xf32>
    %cst_54 = arith.constant dense<0.000000e+00> : vector<504xf32>
    %167 = vector.multi_reduction <add>, %166, %cst_54 [1] : vector<504x32xf32> to vector<504xf32>
    %168 = vector.shape_cast %167 : vector<504xf32> to vector<504x1xf32>
    %cst_55 = arith.constant 3.200000e+01 : f32
    %169 = vector.broadcast %cst_55 : f32 to vector<504x1xf32>
    %170 = arith.divf %168, %169 : vector<504x1xf32>
    %cst_56 = arith.constant 9.99999974E-6 : f32
    %171 = vector.broadcast %cst_56 : f32 to vector<504x1xf32>
    %172 = arith.addf %170, %171 : vector<504x1xf32>
    %173 = math.rsqrt %172 : vector<504x1xf32>
    %174 = vector.broadcast %173 : vector<504x1xf32> to vector<504x32xf32>
    %175 = arith.mulf %165, %174 : vector<504x32xf32>
    %176 = vector.broadcast %13 : vector<1x32xf32> to vector<504x32xf32>
    %177 = arith.mulf %175, %176 : vector<504x32xf32>
    %178 = vector.broadcast %14 : vector<1x32xf32> to vector<504x32xf32>
    %179 = arith.addf %177, %178 : vector<504x32xf32>
    %cst_57 = arith.constant 0.000000e+00 : f32
    %180 = vector.broadcast %cst_57 : f32 to vector<504x32xf32>
    %181 = arith.maximumf %179, %180 : vector<504x32xf32>
    %182 = arith.truncf %181 : vector<504x32xf32> to vector<504x32xbf16>
    %cst_58 = arith.constant dense<0.000000e+00> : vector<504x32xf32>
    %183 = tpu.matmul %182, %4, %cst_58 {dimension_numbers = #tpu.dot_dimension_numbers<[1], [0], [0], [1], [0, 0, 1, 1], [], []>} : vector<504x32xbf16>, vector<32x32xbf16>, vector<504x32xf32> -> vector<504x32xf32>
    %184 = vector.broadcast %15 : vector<1x32xf32> to vector<504x32xf32>
    %185 = arith.addf %183, %184 : vector<504x32xf32>
    %cst_59 = arith.constant dense<0.000000e+00> : vector<504xf32>
    %186 = vector.multi_reduction <add>, %185, %cst_59 [1] : vector<504x32xf32> to vector<504xf32>
    %187 = vector.shape_cast %186 : vector<504xf32> to vector<504x1xf32>
    %cst_60 = arith.constant 3.200000e+01 : f32
    %188 = vector.broadcast %cst_60 : f32 to vector<504x1xf32>
    %189 = arith.divf %187, %188 : vector<504x1xf32>
    %190 = vector.broadcast %189 : vector<504x1xf32> to vector<504x32xf32>
    %191 = arith.subf %185, %190 : vector<504x32xf32>
    %192 = arith.mulf %191, %191 : vector<504x32xf32>
    %cst_61 = arith.constant dense<0.000000e+00> : vector<504xf32>
    %193 = vector.multi_reduction <add>, %192, %cst_61 [1] : vector<504x32xf32> to vector<504xf32>
    %194 = vector.shape_cast %193 : vector<504xf32> to vector<504x1xf32>
    %cst_62 = arith.constant 3.200000e+01 : f32
    %195 = vector.broadcast %cst_62 : f32 to vector<504x1xf32>
    %196 = arith.divf %194, %195 : vector<504x1xf32>
    %cst_63 = arith.constant 9.99999974E-6 : f32
    %197 = vector.broadcast %cst_63 : f32 to vector<504x1xf32>
    %198 = arith.addf %196, %197 : vector<504x1xf32>
    %199 = math.rsqrt %198 : vector<504x1xf32>
    %200 = vector.broadcast %199 : vector<504x1xf32> to vector<504x32xf32>
    %201 = arith.mulf %191, %200 : vector<504x32xf32>
    %202 = vector.broadcast %16 : vector<1x32xf32> to vector<504x32xf32>
    %203 = arith.mulf %201, %202 : vector<504x32xf32>
    %204 = vector.broadcast %17 : vector<1x32xf32> to vector<504x32xf32>
    %205 = arith.addf %203, %204 : vector<504x32xf32>
    %cst_64 = arith.constant 0.000000e+00 : f32
    %206 = vector.broadcast %cst_64 : f32 to vector<504x32xf32>
    %207 = arith.maximumf %205, %206 : vector<504x32xf32>
    %208 = arith.addf %207, %138 : vector<504x32xf32>
    %c0_65 = arith.constant 0 : index
    %c0_66 = arith.constant 0 : index
    %209 = vector.load %arg5[%c0_65, %c0_66] : memref<504x32xf32, #tpu.memory_space<vmem>>, vector<504x32xf32>
    tpu.vector_store %arg5[%c0_65, %c0_66], %208 {strides = array<i32>} : memref<504x32xf32, #tpu.memory_space<vmem>>, vector<504x32xf32>,
    return
  }
  func.func @transform_0(%arg0: i32) -> (i32, i32) {
    %c0_i32 = arith.constant 0 : i32
    %c0_i32_0 = arith.constant 0 : i32
    return %arg0, %c0_i32 : i32, i32
  }
  func.func @transform_1(%arg0: i32) -> (i32, i32) {
    %c0_i32 = arith.constant 0 : i32
    %c0_i32_0 = arith.constant 0 : i32
    return %arg0, %c0_i32 : i32, i32
  }
  func.func @transform_2(%arg0: i32) -> (i32, i32) {
    %c0_i32 = arith.constant 0 : i32
    %c0_i32_0 = arith.constant 0 : i32
    %c0_i32_1 = arith.constant 0 : i32
    return %c0_i32, %c0_i32_0 : i32, i32
  }
  func.func @transform_3(%arg0: i32) -> (i32, i32) {
    %c0_i32 = arith.constant 0 : i32
    %c0_i32_0 = arith.constant 0 : i32
    %c0_i32_1 = arith.constant 0 : i32
    return %c0_i32, %c0_i32_0 : i32, i32
  }
  func.func @transform_4(%arg0: i32) -> (i32, i32) {
    %c0_i32 = arith.constant 0 : i32
    %c0_i32_0 = arith.constant 0 : i32
    return %arg0, %c0_i32 : i32, i32
  }
}

</mosaic_0001>

<llo_original>
// kernel: tpu_custom_call.1
$region0: #{tpu_custom_call.1}
  #allocation0 [shape = 'u32[]', space=smem, size = 0x4, offset = 0x4, fixed_abs, tag = 'smem constant byte address 0x4 - core index']
  #allocation1 [shape = 'u32[144,128]{1,0:T(1,128)}', space=vmem, size = 0x12000, scoped, tag = 'internal scratch']
  %s0 = inlined_call_operand.vmem [shape: f32[504,16], index: 0, kind: input, shape index: {}]
  %s1 = inlined_call_operand.vmem [shape: f32[504,8], index: 1, kind: input, shape index: {}]
  %s2 = inlined_call_operand.vmem [shape: bf16[160,64], index: 2, kind: input, shape index: {}]
  %s3 = inlined_call_operand.vmem [shape: f32[16,64], index: 3, kind: input, shape index: {}]
  %s4 = inlined_call_operand.vmem [shape: f32[504,32], index: 4, kind: output, shape index: {}]
  %s5 = sld [smem:[#allocation0]]
  $region26: #{tpu_custom_call.1} parent=0
    _
  %s7 = ssub.s32 1, %s5
  %s8 = scalar_select 0, %s7, %s5
  // Predicated region
  $region2: #{tpu_custom_call.1} parent=0 // pred_check
    _
  $region3: #{tpu_custom_call.1} parent=0 // pred_check_branch
    %10 = sbr.rel (0) target = $region5
  $region4: #{tpu_custom_call.1} parent=0 // pred_region
    _
  $region5: #{tpu_custom_call.1} parent=0 // pred_fallthru
    _
  // Predicated region
  $region6: #{tpu_custom_call.1} parent=0 // pred_check
    _
  $region7: #{tpu_custom_call.1} parent=0 // pred_check_branch
    %12 = sbr.rel (0) target = $region9
  $region8: #{tpu_custom_call.1} parent=0 // pred_region
    _
  $region9: #{tpu_custom_call.1} parent=0 // pred_fallthru
    _
  // Predicated region
  $region10: #{tpu_custom_call.1} parent=0 // pred_check
    _
  $region11: #{tpu_custom_call.1} parent=0 // pred_check_branch
    %14 = sbr.rel (0) target = $region13
  $region12: #{tpu_custom_call.1} parent=0 // pred_region
    _
  $region13: #{tpu_custom_call.1} parent=0 // pred_fallthru
    _
  // Predicated region
  $region14: #{tpu_custom_call.1} parent=0 // pred_check
    _
  $region15: #{tpu_custom_call.1} parent=0 // pred_check_branch
    %16 = sbr.rel (0) target = $region17
  $region16: #{tpu_custom_call.1} parent=0 // pred_region
    _
  $region17: #{tpu_custom_call.1} parent=0 // pred_fallthru
    _
  %v18 = vld [vmem:[%s2] sm:$0xf]
  %v19 = vld [vmem:[%s2 + $0x4] sm:$0xf]
  %v20 = vld [vmem:[%s2 + $0x8] sm:$0xf]
  %v21 = vld [vmem:[%s2 + $0xc] sm:$0xf]
  %v22 = vld [vmem:[%s2 + $0x10] sm:$0xf]
  %v23 = vld [vmem:[%s2 + $0x14] sm:$0xf]
  %v24 = vld [vmem:[%s2 + $0x18] sm:$0xf]
  %v25 = vld [vmem:[%s2 + $0x1c] sm:$0xf]
  %v26 = vld [vmem:[%s2 + $0x20] sm:$0xf]
  %v27 = vld [vmem:[%s2 + $0x24] sm:$0xf]
  %v28 = vld [vmem:[%s2 + $0x28] sm:$0xf]
  %v29 = vld [vmem:[%s2 + $0x30] sm:$0xf]
  %v30 = vld [vmem:[%s2 + $0x34] sm:$0xf]
  %v31 = vld [vmem:[%s2 + $0x38] sm:$0xf]
  %v32 = vld [vmem:[%s2 + $0x3c] sm:$0xf]
  %v33 = vld [vmem:[%s2 + $0x40] sm:$0xf]
  %v34 = vld [vmem:[%s2 + $0x44] sm:$0xf]
  %v35 = vld [vmem:[%s2 + $0x48] sm:$0xf]
  %v36 = vld [vmem:[%s2 + $0x4c] sm:$0xf]
  %v37 = vld [vmem:[%s3] sm:$0x1]
  %v38 = vld [vmem:[%s3 + $0x1] sm:$0x1]
  %v39 = vld [vmem:[%s3 + $0x2] sm:$0x1]
  %v40 = vld [vmem:[%s3 + $0x3] sm:$0x1]
  %v41 = vld [vmem:[%s3 + $0x4] sm:$0x1]
  %v42 = vld [vmem:[%s3 + $0x5] sm:$0x1]
  %v43 = vld [vmem:[%s3 + $0x6] sm:$0x1]
  %v44 = vld [vmem:[%s3 + $0x7] sm:$0x1]
  %v45 = vld [vmem:[%s3 + $0x8] sm:$0x1]
  %v46 = vld [vmem:[%s3 + $0x9] sm:$0x1]
  %v47 = vld [vmem:[%s3 + $0xa] sm:$0x1]
  %v48 = vld [vmem:[%s3 + $0xb] sm:$0x1]
  %v49 = vld [vmem:[%s3 + $0xc] sm:$0x1]
  %v50 = vlaneseq
  %v51 = vand.u32 %v50, 127
  %vm52 = vcmp.lt.s32.totalorder %v51, 32
  %v53 = vld [vmem:[%s0] sm:$0xff]
  %v54 = vld [vmem:[%s0 + $0x8] sm:$0xff]
  %v55 = vld [vmem:[%s0 + $0x10] sm:$0xff]
  %v56 = vld [vmem:[%s0 + $0x18] sm:$0xff]
  %v57 = vld [vmem:[%s0 + $0x20] sm:$0xff]
  %v58 = vld [vmem:[%s0 + $0x28] sm:$0xff]
  %v59 = vld [vmem:[%s0 + $0x30] sm:$0xff]
  %v60 = vld [vmem:[%s0 + $0x38] sm:$0xff]
  %v61 = vld [vmem:[%s0 + $0x40] sm:$0xff]
  %v62 = vld [vmem:[%s0 + $0x48] sm:$0xff]
  %v63 = vld [vmem:[%s0 + $0x50] sm:$0xff]
  %v64 = vld [vmem:[%s0 + $0x58] sm:$0xff]
  %v65 = vld [vmem:[%s0 + $0x60] sm:$0xff]
  %v66 = vld [vmem:[%s0 + $0x68] sm:$0xff]
  %v67 = vld [vmem:[%s0 + $0x70] sm:$0xff]
  %v68 = vld [vmem:[%s0 + $0x78] sm:$0xff]
  %v69 = vld [vmem:[%s0 + $0x80] sm:$0xff]
  %v70 = vld [vmem:[%s0 + $0x88] sm:$0xff]
  %v71 = vld [vmem:[%s0 + $0x90] sm:$0xff]
  %v72 = vld [vmem:[%s0 + $0x98] sm:$0xff]
  %v73 = vld [vmem:[%s0 + $0xa0] sm:$0xff]
  %v74 = vld [vmem:[%s0 + $0xa8] sm:$0xff]
  %v75 = vld [vmem:[%s0 + $0xb0] sm:$0xff]
  %v76 = vld [vmem:[%s0 + $0xb8] sm:$0xff]
  %v77 = vld [vmem:[%s0 + $0xc0] sm:$0xff]
  %v78 = vld [vmem:[%s0 + $0xc8] sm:$0xff]
  %v79 = vld [vmem:[%s0 + $0xd0] sm:$0xff]
  %v80 = vld [vmem:[%s0 + $0xd8] sm:$0xff]
  %v81 = vld [vmem:[%s0 + $0xe0] sm:$0xff]
  %v82 = vld [vmem:[%s0 + $0xe8] sm:$0xff]
  %v83 = vld [vmem:[%s0 + $0xf0] sm:$0xff]
  %v84 = vld [vmem:[%s0 + $0xf8] sm:$0xff]
  %v85 = vld [vmem:[%s0 + $0x100] sm:$0xff]
  %v86 = vld [vmem:[%s0 + $0x108] sm:$0xff]
  %v87 = vld [vmem:[%s0 + $0x110] sm:$0xff]
  %v88 = vld [vmem:[%s0 + $0x118] sm:$0xff]
  %v89 = vld [vmem:[%s0 + $0x120] sm:$0xff]
  %v90 = vld [vmem:[%s0 + $0x128] sm:$0xff]
  %v91 = vld [vmem:[%s0 + $0x130] sm:$0xff]
  %v92 = vld [vmem:[%s0 + $0x138] sm:$0xff]
  %v93 = vld [vmem:[%s0 + $0x140] sm:$0xff]
  %v94 = vld [vmem:[%s0 + $0x148] sm:$0xff]
  %v95 = vld [vmem:[%s0 + $0x150] sm:$0xff]
  %v96 = vld [vmem:[%s0 + $0x158] sm:$0xff]
  %v97 = vld [vmem:[%s0 + $0x160] sm:$0xff]
  %v98 = vld [vmem:[%s0 + $0x168] sm:$0xff]
  %v99 = vld [vmem:[%s0 + $0x170] sm:$0xff]
  %v100 = vld [vmem:[%s0 + $0x178] sm:$0xff]
  %v101 = vld [vmem:[%s0 + $0x180] sm:$0xff]
  %v102 = vld [vmem:[%s0 + $0x188] sm:$0xff]
  %v103 = vld [vmem:[%s0 + $0x190] sm:$0xff]
  %v104 = vld [vmem:[%s0 + $0x198] sm:$0xff]
  %v105 = vld [vmem:[%s0 + $0x1a0] sm:$0xff]
  %v106 = vld [vmem:[%s0 + $0x1a8] sm:$0xff]
  %v107 = vld [vmem:[%s0 + $0x1b0] sm:$0xff]
  %v108 = vld [vmem:[%s0 + $0x1b8] sm:$0xff]
  %v109 = vld [vmem:[%s0 + $0x1c0] sm:$0xff]
  %v110 = vld [vmem:[%s0 + $0x1c8] sm:$0xff]
  %v111 = vld [vmem:[%s0 + $0x1d0] sm:$0xff]
  %v112 = vld [vmem:[%s0 + $0x1d8] sm:$0xff]
  %v113 = vld [vmem:[%s0 + $0x1e0] sm:$0xff]
  %v114 = vld [vmem:[%s0 + $0x1e8] sm:$0xff]
  %v115 = vld [vmem:[%s0 + $0x1f0] sm:$0xff]
  %v116 = vpack.c.bf16 %v54, %v53
  %v117 = vpack.c.bf16 %v56, %v55
  %v118 = vpack.c.bf16 %v58, %v57
  %v119 = vpack.c.bf16 %v60, %v59
  %v120 = vpack.c.bf16 %v62, %v61
  %v121 = vpack.c.bf16 %v64, %v63
  %v122 = vpack.c.bf16 %v66, %v65
  %v123 = vpack.c.bf16 %v68, %v67
  %v124 = vpack.c.bf16 %v70, %v69
  %v125 = vpack.c.bf16 %v72, %v71
  %v126 = vpack.c.bf16 %v74, %v73
  %v127 = vpack.c.bf16 %v76, %v75
  %v128 = vpack.c.bf16 %v78, %v77
  %v129 = vpack.c.bf16 %v80, %v79
  %v130 = vpack.c.bf16 %v82, %v81
  %v131 = vpack.c.bf16 %v84, %v83
  %v132 = vpack.c.bf16 %v86, %v85
  %v133 = vpack.c.bf16 %v88, %v87
  %v134 = vpack.c.bf16 %v90, %v89
  %v135 = vpack.c.bf16 %v92, %v91
  %v136 = vpack.c.bf16 %v94, %v93
  %v137 = vpack.c.bf16 %v96, %v95
  %v138 = vpack.c.bf16 %v98, %v97
  %v139 = vpack.c.bf16 %v100, %v99
  %v140 = vpack.c.bf16 %v102, %v101
  %v141 = vpack.c.bf16 %v104, %v103
  %v142 = vpack.c.bf16 %v106, %v105
  %v143 = vpack.c.bf16 %v108, %v107
  %v144 = vpack.c.bf16 %v110, %v109
  %v145 = vpack.c.bf16 %v112, %v111
  %v146 = vpack.c.bf16 %v114, %v113
  %v147 = vpack.c.bf16 %v115, %v115
  %v148 = vld [vmem:[%s1] sm:$0xff]
  %v149 = vld [vmem:[%s1 + $0x8] sm:$0xff]
  %v150 = vld [vmem:[%s1 + $0x10] sm:$0xff]
  %v151 = vld [vmem:[%s1 + $0x18] sm:$0xff]
  %v152 = vld [vmem:[%s1 + $0x20] sm:$0xff]
  %v153 = vld [vmem:[%s1 + $0x28] sm:$0xff]
  %v154 = vld [vmem:[%s1 + $0x30] sm:$0xff]
  %v155 = vld [vmem:[%s1 + $0x38] sm:$0xff]
  %v156 = vld [vmem:[%s1 + $0x40] sm:$0xff]
  %v157 = vld [vmem:[%s1 + $0x48] sm:$0xff]
  %v158 = vld [vmem:[%s1 + $0x50] sm:$0xff]
  %v159 = vld [vmem:[%s1 + $0x58] sm:$0xff]
  %v160 = vld [vmem:[%s1 + $0x60] sm:$0xff]
  %v161 = vld [vmem:[%s1 + $0x68] sm:$0xff]
  %v162 = vld [vmem:[%s1 + $0x70] sm:$0xff]
  %v163 = vld [vmem:[%s1 + $0x78] sm:$0xff]
  %v164 = vld [vmem:[%s1 + $0x80] sm:$0xff]
  %v165 = vld [vmem:[%s1 + $0x88] sm:$0xff]
  %v166 = vld [vmem:[%s1 + $0x90] sm:$0xff]
  %v167 = vld [vmem:[%s1 + $0x98] sm:$0xff]
  %v168 = vld [vmem:[%s1 + $0xa0] sm:$0xff]
  %v169 = vld [vmem:[%s1 + $0xa8] sm:$0xff]
  %v170 = vld [vmem:[%s1 + $0xb0] sm:$0xff]
  %v171 = vld [vmem:[%s1 + $0xb8] sm:$0xff]
  %v172 = vld [vmem:[%s1 + $0xc0] sm:$0xff]
  %v173 = vld [vmem:[%s1 + $0xc8] sm:$0xff]
  %v174 = vld [vmem:[%s1 + $0xd0] sm:$0xff]
  %v175 = vld [vmem:[%s1 + $0xd8] sm:$0xff]
  %v176 = vld [vmem:[%s1 + $0xe0] sm:$0xff]
  %v177 = vld [vmem:[%s1 + $0xe8] sm:$0xff]
  %v178 = vld [vmem:[%s1 + $0xf0] sm:$0xff]
  %v179 = vld [vmem:[%s1 + $0xf8] sm:$0xff]
  %v180 = vld [vmem:[%s1 + $0x100] sm:$0xff]
  %v181 = vld [vmem:[%s1 + $0x108] sm:$0xff]
  %v182 = vld [vmem:[%s1 + $0x110] sm:$0xff]
  %v183 = vld [vmem:[%s1 + $0x118] sm:$0xff]
  %v184 = vld [vmem:[%s1 + $0x120] sm:$0xff]
  %v185 = vld [vmem:[%s1 + $0x128] sm:$0xff]
  %v186 = vld [vmem:[%s1 + $0x130] sm:$0xff]
  %v187 = vld [vmem:[%s1 + $0x138] sm:$0xff]
  %v188 = vld [vmem:[%s1 + $0x140] sm:$0xff]
  %v189 = vld [vmem:[%s1 + $0x148] sm:$0xff]
  %v190 = vld [vmem:[%s1 + $0x150] sm:$0xff]
  %v191 = vld [vmem:[%s1 + $0x158] sm:$0xff]
  %v192 = vld [vmem:[%s1 + $0x160] sm:$0xff]
  %v193 = vld [vmem:[%s1 + $0x168] sm:$0xff]
  %v194 = vld [vmem:[%s1 + $0x170] sm:$0xff]
  %v195 = vld [vmem:[%s1 + $0x178] sm:$0xff]
  %v196 = vld [vmem:[%s1 + $0x180] sm:$0xff]
  %v197 = vld [vmem:[%s1 + $0x188] sm:$0xff]
  %v198 = vld [vmem:[%s1 + $0x190] sm:$0xff]
  %v199 = vld [vmem:[%s1 + $0x198] sm:$0xff]
  %v200 = vld [vmem:[%s1 + $0x1a0] sm:$0xff]
  %v201 = vld [vmem:[%s1 + $0x1a8] sm:$0xff]
  %v202 = vld [vmem:[%s1 + $0x1b0] sm:$0xff]
  %v203 = vld [vmem:[%s1 + $0x1b8] sm:$0xff]
  %v204 = vld [vmem:[%s1 + $0x1c0] sm:$0xff]
  %v205 = vld [vmem:[%s1 + $0x1c8] sm:$0xff]
  %v206 = vld [vmem:[%s1 + $0x1d0] sm:$0xff]
  %v207 = vld [vmem:[%s1 + $0x1d8] sm:$0xff]
  %v208 = vld [vmem:[%s1 + $0x1e0] sm:$0xff]
  %v209 = vld [vmem:[%s1 + $0x1e8] sm:$0xff]
  %v210 = vld [vmem:[%s1 + $0x1f0] sm:$0xff]
  %v211 = vlaneseq
  %v212 = vshrl.u32 %v211, 7
  %v213 = vsub.s32 0, %v212
  %v214 = vrot.slane %v37, %v213
  %v217 = vunpack.c.l.b16 %v18
  %v218 = vunpack.c.l.b16 %v19
  %v219 = vpack.c.b16 %v218, %v217
  %vm221 = vcmask 130048
  %v223 = vsel %vm221, %v116, 0
  %v226 = vsel %vm221, %v117, 0
  %v229 = vsel %vm221, %v118, 0
  %v232 = vsel %vm221, %v119, 0
  %v235 = vsel %vm221, %v120, 0
  %v238 = vsel %vm221, %v121, 0
  %v241 = vsel %vm221, %v122, 0
  %v244 = vsel %vm221, %v123, 0
  %v247 = vsel %vm221, %v124, 0
  %v250 = vsel %vm221, %v125, 0
  %v253 = vsel %vm221, %v126, 0
  %v256 = vsel %vm221, %v127, 0
  %v259 = vsel %vm221, %v128, 0
  %v262 = vsel %vm221, %v129, 0
  %v265 = vsel %vm221, %v130, 0
  %v268 = vsel %vm221, %v131, 0
  %v271 = vsel %vm221, %v132, 0
  %v274 = vsel %vm221, %v133, 0
  %v277 = vsel %vm221, %v134, 0
  %v280 = vsel %vm221, %v135, 0
  %v283 = vsel %vm221, %v136, 0
  %v286 = vsel %vm221, %v137, 0
  %v289 = vsel %vm221, %v138, 0
  %v292 = vsel %vm221, %v139, 0
  %v295 = vsel %vm221, %v140, 0
  %v298 = vsel %vm221, %v141, 0
  %v301 = vsel %vm221, %v142, 0
  %v304 = vsel %vm221, %v143, 0
  %v307 = vsel %vm221, %v144, 0
  %v310 = vsel %vm221, %v145, 0
  %v313 = vsel %vm221, %v146, 0
  %v316 = vsel %vm221, %v147, 0
  %318 = vmatprep.subr.bf16.mxu0 0
  %319 = vmatpush1.bf16.msra.mxu0 0
  %320 = vmatprep.subr.bf16.mxu0 0
  %321 = vmatpush1.bf16.msra.mxu0 0
  %322 = vmatprep.subr.bf16.mxu0 0
  %323 = vmatpush1.bf16.msra.mxu0 0
  %324 = vmatprep.subr.bf16.mxu0 0
  %325 = vmatpush1.bf16.msra.mxu0 0
  %326 = vmatprep.subr.bf16.mxu0 0
  %327 = vmatpush1.bf16.msra.mxu0 0
  %328 = vmatprep.subr.bf16.mxu0 0
  %329 = vmatpush1.bf16.msra.mxu0 0
  %330 = vmatprep.subr.bf16.mxu0 0
  %331 = vmatpush1.bf16.msra.mxu0 0
  %332 = vmatprep.subr.bf16.mxu0 0
  %333 = vmatpush1.bf16.msra.mxu0 %v219
  %334 = vmatprep.subr.bf16.mxu0 0
  %335 = vmatpush2.bf16.msra.mxu0 0
  %336 = vmatprep.subr.bf16.mxu0 0
  %337 = vmatpush2.bf16.msra.mxu0 0
  %338 = vmatprep.subr.bf16.mxu0 0
  %339 = vmatpush2.bf16.msra.mxu0 0
  %340 = vmatprep.subr.bf16.mxu0 0
  %341 = vmatpush2.bf16.msra.mxu0 0
  %342 = vmatprep.subr.bf16.mxu0 0
  %343 = vmatpush2.bf16.msra.mxu0 0
  %344 = vmatprep.subr.bf16.mxu0 0
  %345 = vmatpush2.bf16.msra.mxu0 0
  %346 = vmatprep.subr.bf16.mxu0 0
  %347 = vmatpush2.bf16.msra.mxu0 0
  %348 = vmatprep.subr.bf16.mxu0 0
  %349 = vmatpush2.bf16.msra.mxu0 0
  %350 = vmatprep.mubr.bf16.mxu0 0
  %351 = vmatmul.mubr.bf16.gmra.mxu0 %v223
  %v352 = vpop.f32.mrf.mxu0
  %v353 = vadd.f32 %v214, %v352
  %v354 = vpop.f32.mrf.mxu0
  %v355 = vpop.f32.mrf.mxu0
  %v356 = vadd.f32 %v214, %v355
  %v357 = vpop.f32.mrf.mxu0
  %358 = vmatprep.mubr.bf16.mxu0 0
  %359 = vmatmul.mubr.bf16.gmra.mxu0 %v226
  %v360 = vpop.f32.mrf.mxu0
  %v361 = vadd.f32 %v214, %v360
  %v362 = vpop.f32.mrf.mxu0
  %v363 = vpop.f32.mrf.mxu0
  %v364 = vadd.f32 %v214, %v363
  %v365 = vpop.f32.mrf.mxu0
  %366 = vmatprep.mubr.bf16.mxu0 0
  %367 = vmatmul.mubr.bf16.gmra.mxu0 %v229
  %v368 = vpop.f32.mrf.mxu0
  %v369 = vadd.f32 %v214, %v368
  %v370 = vpop.f32.mrf.mxu0
  %v371 = vpop.f32.mrf.mxu0
  %v372 = vadd.f32 %v214, %v371
  %v373 = vpop.f32.mrf.mxu0
  %374 = vmatprep.mubr.bf16.mxu0 0
  %375 = vmatmul.mubr.bf16.gmra.mxu0 %v232
  %v376 = vpop.f32.mrf.mxu0
  %v377 = vadd.f32 %v214, %v376
  %v378 = vpop.f32.mrf.mxu0
  %v379 = vpop.f32.mrf.mxu0
  %v380 = vadd.f32 %v214, %v379
  %v381 = vpop.f32.mrf.mxu0
  %382 = vmatprep.mubr.bf16.mxu0 0
  %383 = vmatmul.mubr.bf16.gmra.mxu0 %v235
  %v384 = vpop.f32.mrf.mxu0
  %v385 = vadd.f32 %v214, %v384
  %v386 = vpop.f32.mrf.mxu0
  %v387 = vpop.f32.mrf.mxu0
  %v388 = vadd.f32 %v214, %v387
  %v389 = vpop.f32.mrf.mxu0
  %390 = vmatprep.mubr.bf16.mxu0 0
  %391 = vmatmul.mubr.bf16.gmra.mxu0 %v238
  %v392 = vpop.f32.mrf.mxu0
  %v393 = vadd.f32 %v214, %v392
  %v394 = vpop.f32.mrf.mxu0
  %v395 = vpop.f32.mrf.mxu0
  %v396 = vadd.f32 %v214, %v395
  %v397 = vpop.f32.mrf.mxu0
  %398 = vmatprep.mubr.bf16.mxu0 0
  %399 = vmatmul.mubr.bf16.gmra.mxu0 %v241
  %v400 = vpop.f32.mrf.mxu0
  %v401 = vadd.f32 %v214, %v400
  %v402 = vpop.f32.mrf.mxu0
  %v403 = vpop.f32.mrf.mxu0
  %v404 = vadd.f32 %v214, %v403
  %v405 = vpop.f32.mrf.mxu0
  %406 = vmatprep.mubr.bf16.mxu0 0
  %407 = vmatmul.mubr.bf16.gmra.mxu0 %v244
  %v408 = vpop.f32.mrf.mxu0
  %v409 = vadd.f32 %v214, %v408
  %v410 = vpop.f32.mrf.mxu0
  %v411 = vpop.f32.mrf.mxu0
  %v412 = vadd.f32 %v214, %v411
  %v413 = vpop.f32.mrf.mxu0
  %414 = vmatprep.mubr.bf16.mxu0 0
  %415 = vmatmul.mubr.bf16.gmra.mxu0 %v247
  %v416 = vpop.f32.mrf.mxu0
  %v417 = vadd.f32 %v214, %v416
  %v418 = vpop.f32.mrf.mxu0
  %v419 = vpop.f32.mrf.mxu0
  %v420 = vadd.f32 %v214, %v419
  %v421 = vpop.f32.mrf.mxu0
  %422 = vmatprep.mubr.bf16.mxu0 0
  %423 = vmatmul.mubr.bf16.gmra.mxu0 %v250
  %v424 = vpop.f32.mrf.mxu0
  %v425 = vadd.f32 %v214, %v424
  %v426 = vpop.f32.mrf.mxu0
  %v427 = vpop.f32.mrf.mxu0
  %v428 = vadd.f32 %v214, %v427
  %v429 = vpop.f32.mrf.mxu0
  %430 = vmatprep.mubr.bf16.mxu0 0
  %431 = vmatmul.mubr.bf16.gmra.mxu0 %v253
  %v432 = vpop.f32.mrf.mxu0
  %v433 = vadd.f32 %v214, %v432
  %v434 = vpop.f32.mrf.mxu0
  %v435 = vpop.f32.mrf.mxu0
  %v436 = vadd.f32 %v214, %v435
  %v437 = vpop.f32.mrf.mxu0
  %438 = vmatprep.mubr.bf16.mxu0 0
  %439 = vmatmul.mubr.bf16.gmra.mxu0 %v256
  %v440 = vpop.f32.mrf.mxu0
  %v441 = vadd.f32 %v214, %v440
  %v442 = vpop.f32.mrf.mxu0
  %v443 = vpop.f32.mrf.mxu0
  %v444 = vadd.f32 %v214, %v443
  %v445 = vpop.f32.mrf.mxu0
  %446 = vmatprep.mubr.bf16.mxu0 0
  %447 = vmatmul.mubr.bf16.gmra.mxu0 %v259
  %v448 = vpop.f32.mrf.mxu0
  %v449 = vadd.f32 %v214, %v448
  %v450 = vpop.f32.mrf.mxu0
  %v451 = vpop.f32.mrf.mxu0
  %v452 = vadd.f32 %v214, %v451
  %v453 = vpop.f32.mrf.mxu0
  %454 = vmatprep.mubr.bf16.mxu0 0
  %455 = vmatmul.mubr.bf16.gmra.mxu0 %v262
  %v456 = vpop.f32.mrf.mxu0
  %v457 = vadd.f32 %v214, %v456
  %v458 = vpop.f32.mrf.mxu0
  %v459 = vpop.f32.mrf.mxu0
  %v460 = vadd.f32 %v214, %v459
  %v461 = vpop.f32.mrf.mxu0
  %462 = vmatprep.mubr.bf16.mxu0 0
  %463 = vmatmul.mubr.bf16.gmra.mxu0 %v265
  %v464 = vpop.f32.mrf.mxu0
  %v465 = vadd.f32 %v214, %v464
  %v466 = vpop.f32.mrf.mxu0
  %v467 = vpop.f32.mrf.mxu0
  %v468 = vadd.f32 %v214, %v467
  %v469 = vpop.f32.mrf.mxu0
  %470 = vmatprep.mubr.bf16.mxu0 0
  %471 = vmatmul.mubr.bf16.gmra.mxu0 %v268
  %v472 = vpop.f32.mrf.mxu0
  %v473 = vadd.f32 %v214, %v472
  %v474 = vpop.f32.mrf.mxu0
  %v475 = vpop.f32.mrf.mxu0
  %v476 = vadd.f32 %v214, %v475
  %v477 = vpop.f32.mrf.mxu0
  %478 = vmatprep.mubr.bf16.mxu0 0
  %479 = vmatmul.mubr.bf16.gmra.mxu0 %v271
  %v480 = vpop.f32.mrf.mxu0
  %v481 = vadd.f32 %v214, %v480
  %v482 = vpop.f32.mrf.mxu0
  %v483 = vpop.f32.mrf.mxu0
  %v484 = vadd.f32 %v214, %v483
  %v485 = vpop.f32.mrf.mxu0
  %486 = vmatprep.mubr.bf16.mxu0 0
  %487 = vmatmul.mubr.bf16.gmra.mxu0 %v274
  %v488 = vpop.f32.mrf.mxu0
  %v489 = vadd.f32 %v214, %v488
  %v490 = vpop.f32.mrf.mxu0
  %v491 = vpop.f32.mrf.mxu0
  %v492 = vadd.f32 %v214, %v491
  %v493 = vpop.f32.mrf.mxu0
  %494 = vmatprep.mubr.bf16.mxu0 0
  %495 = vmatmul.mubr.bf16.gmra.mxu0 %v277
  %v496 = vpop.f32.mrf.mxu0
  %v497 = vadd.f32 %v214, %v496
  %v498 = vpop.f32.mrf.mxu0
  %v499 = vpop.f32.mrf.mxu0
  %v500 = vadd.f32 %v214, %v499
  %v501 = vpop.f32.mrf.mxu0
  %502 = vmatprep.mubr.bf16.mxu0 0
  %503 = vmatmul.mubr.bf16.gmra.mxu0 %v280
  %v504 = vpop.f32.mrf.mxu0
  %v505 = vadd.f32 %v214, %v504
  %v506 = vpop.f32.mrf.mxu0
  %v507 = vpop.f32.mrf.mxu0
  %v508 = vadd.f32 %v214, %v507
  %v509 = vpop.f32.mrf.mxu0
  %510 = vmatprep.mubr.bf16.mxu0 0
  %511 = vmatmul.mubr.bf16.gmra.mxu0 %v283
  %v512 = vpop.f32.mrf.mxu0
  %v513 = vadd.f32 %v214, %v512
  %v514 = vpop.f32.mrf.mxu0
  %v515 = vpop.f32.mrf.mxu0
  %v516 = vadd.f32 %v214, %v515
  %v517 = vpop.f32.mrf.mxu0
  %518 = vmatprep.mubr.bf16.mxu0 0
  %519 = vmatmul.mubr.bf16.gmra.mxu0 %v286
  %v520 = vpop.f32.mrf.mxu0
  %v521 = vadd.f32 %v214, %v520
  %v522 = vpop.f32.mrf.mxu0
  %v523 = vpop.f32.mrf.mxu0
  %v524 = vadd.f32 %v214, %v523
  %v525 = vpop.f32.mrf.mxu0
  %526 = vmatprep.mubr.bf16.mxu0 0
  %527 = vmatmul.mubr.bf16.gmra.mxu0 %v289
  %v528 = vpop.f32.mrf.mxu0
  %v529 = vadd.f32 %v214, %v528
  %v530 = vpop.f32.mrf.mxu0
  %v531 = vpop.f32.mrf.mxu0
  %v532 = vadd.f32 %v214, %v531
  %v533 = vpop.f32.mrf.mxu0
  %534 = vmatprep.mubr.bf16.mxu0 0
  %535 = vmatmul.mubr.bf16.gmra.mxu0 %v292
  %v536 = vpop.f32.mrf.mxu0
  %v537 = vadd.f32 %v214, %v536
  %v538 = vpop.f32.mrf.mxu0
  %v539 = vpop.f32.mrf.mxu0
  %v540 = vadd.f32 %v214, %v539
  %v541 = vpop.f32.mrf.mxu0
  %542 = vmatprep.mubr.bf16.mxu0 0
  %543 = vmatmul.mubr.bf16.gmra.mxu0 %v295
  %v544 = vpop.f32.mrf.mxu0
  %v545 = vadd.f32 %v214, %v544
  %v546 = vpop.f32.mrf.mxu0
  %v547 = vpop.f32.mrf.mxu0
  %v548 = vadd.f32 %v214, %v547
  %v549 = vpop.f32.mrf.mxu0
  %550 = vmatprep.mubr.bf16.mxu0 0
  %551 = vmatmul.mubr.bf16.gmra.mxu0 %v298
  %v552 = vpop.f32.mrf.mxu0
  %v553 = vadd.f32 %v214, %v552
  %v554 = vpop.f32.mrf.mxu0
  %v555 = vpop.f32.mrf.mxu0
  %v556 = vadd.f32 %v214, %v555
  %v557 = vpop.f32.mrf.mxu0
  %558 = vmatprep.mubr.bf16.mxu0 0
  %559 = vmatmul.mubr.bf16.gmra.mxu0 %v301
  %v560 = vpop.f32.mrf.mxu0
  %v561 = vadd.f32 %v214, %v560
  %v562 = vpop.f32.mrf.mxu0
  %v563 = vpop.f32.mrf.mxu0
  %v564 = vadd.f32 %v214, %v563
  %v565 = vpop.f32.mrf.mxu0
  %566 = vmatprep.mubr.bf16.mxu0 0
  %567 = vmatmul.mubr.bf16.gmra.mxu0 %v304
  %v568 = vpop.f32.mrf.mxu0
  %v569 = vadd.f32 %v214, %v568
  %v570 = vpop.f32.mrf.mxu0
  %v571 = vpop.f32.mrf.mxu0
  %v572 = vadd.f32 %v214, %v571
  %v573 = vpop.f32.mrf.mxu0
  %574 = vmatprep.mubr.bf16.mxu0 0
  %575 = vmatmul.mubr.bf16.gmra.mxu0 %v307
  %v576 = vpop.f32.mrf.mxu0
  %v577 = vadd.f32 %v214, %v576
  %v578 = vpop.f32.mrf.mxu0
  %v579 = vpop.f32.mrf.mxu0
  %v580 = vadd.f32 %v214, %v579
  %v581 = vpop.f32.mrf.mxu0
  %582 = vmatprep.mubr.bf16.mxu0 0
  %583 = vmatmul.mubr.bf16.gmra.mxu0 %v310
  %v584 = vpop.f32.mrf.mxu0
  %v585 = vadd.f32 %v214, %v584
  %v586 = vpop.f32.mrf.mxu0
  %v587 = vpop.f32.mrf.mxu0
  %v588 = vadd.f32 %v214, %v587
  %v589 = vpop.f32.mrf.mxu0
  %590 = vmatprep.mubr.bf16.mxu0 0
  %591 = vmatmul.mubr.bf16.gmra.mxu0 %v313
  %v592 = vpop.f32.mrf.mxu0
  %v593 = vadd.f32 %v214, %v592
  %v594 = vpop.f32.mrf.mxu0
  %v595 = vpop.f32.mrf.mxu0
  %v596 = vadd.f32 %v214, %v595
  %v597 = vpop.f32.mrf.mxu0
  %598 = vmatprep.mubr.bf16.mxu0 0
  %599 = vmatmul.mubr.bf16.gmra.mxu0 %v316
  %v600 = vpop.f32.mrf.mxu0
  %v601 = vadd.f32 %v214, %v600
  %v602 = vpop.f32.mrf.mxu0
  %v603 = vpop.f32.mrf.mxu0
  %v604 = vpop.f32.mrf.mxu0
  %605 = vdwg.mxu0
  %v606 = vsel %vm52, 1, 0
  %vm607 = vcmp.eq.s32.totalorder %v606, 1
  %v608 = vsel %vm607, %v353, 0.0
  %v609 = vsel %vm607, %v356, 0.0
  %v610 = vsel %vm607, %v361, 0.0
  %v611 = vsel %vm607, %v364, 0.0
  %v612 = vsel %vm607, %v369, 0.0
  %v613 = vsel %vm607, %v372, 0.0
  %v614 = vsel %vm607, %v377, 0.0
  %v615 = vsel %vm607, %v380, 0.0
  %v616 = vsel %vm607, %v385, 0.0
  %v617 = vsel %vm607, %v388, 0.0
  %v618 = vsel %vm607, %v393, 0.0
  %v619 = vsel %vm607, %v396, 0.0
  %v620 = vsel %vm607, %v401, 0.0
  %v621 = vsel %vm607, %v404, 0.0
  %v622 = vsel %vm607, %v409, 0.0
  %v623 = vsel %vm607, %v412, 0.0
  %v624 = vsel %vm607, %v417, 0.0
  %v625 = vsel %vm607, %v420, 0.0
  %v626 = vsel %vm607, %v425, 0.0
  %v627 = vsel %vm607, %v428, 0.0
  %v628 = vsel %vm607, %v433, 0.0
  %v629 = vsel %vm607, %v436, 0.0
  %v630 = vsel %vm607, %v441, 0.0
  %v631 = vsel %vm607, %v444, 0.0
  %v632 = vsel %vm607, %v449, 0.0
  %v633 = vsel %vm607, %v452, 0.0
  %v634 = vsel %vm607, %v457, 0.0
  %v635 = vsel %vm607, %v460, 0.0
  %v636 = vsel %vm607, %v465, 0.0
  %v637 = vsel %vm607, %v468, 0.0
  %v638 = vsel %vm607, %v473, 0.0
  %v639 = vsel %vm607, %v476, 0.0
  %v640 = vsel %vm607, %v481, 0.0
  %v641 = vsel %vm607, %v484, 0.0
  %v642 = vsel %vm607, %v489, 0.0
  %v643 = vsel %vm607, %v492, 0.0
  %v644 = vsel %vm607, %v497, 0.0
  %v645 = vsel %vm607, %v500, 0.0
  %v646 = vsel %vm607, %v505, 0.0
  %v647 = vsel %vm607, %v508, 0.0
  %v648 = vsel %vm607, %v513, 0.0
  %v649 = vsel %vm607, %v516, 0.0
  %v650 = vsel %vm607, %v521, 0.0
  %v651 = vsel %vm607, %v524, 0.0
  %v652 = vsel %vm607, %v529, 0.0
  %v653 = vsel %vm607, %v532, 0.0
  %v654 = vsel %vm607, %v537, 0.0
  %v655 = vsel %vm607, %v540, 0.0
  %v656 = vsel %vm607, %v545, 0.0
  %v657 = vsel %vm607, %v548, 0.0
  %v658 = vsel %vm607, %v553, 0.0
  %v659 = vsel %vm607, %v556, 0.0
  %v660 = vsel %vm607, %v561, 0.0
  %v661 = vsel %vm607, %v564, 0.0
  %v662 = vsel %vm607, %v569, 0.0
  %v663 = vsel %vm607, %v572, 0.0
  %v664 = vsel %vm607, %v577, 0.0
  %v665 = vsel %vm607, %v580, 0.0
  %v666 = vsel %vm607, %v585, 0.0
  %v667 = vsel %vm607, %v588, 0.0
  %v668 = vsel %vm607, %v593, 0.0
  %v669 = vsel %vm607, %v596, 0.0
  %v670 = vsel %vm607, %v601, 0.0
  %v671 = vsub.f32 %v353, %v608
  %v672 = vsub.f32 %v356, %v609
  %v673 = vsub.f32 %v361, %v610
  %v674 = vsub.f32 %v364, %v611
  %v675 = vsub.f32 %v369, %v612
  %v676 = vsub.f32 %v372, %v613
  %v677 = vsub.f32 %v377, %v614
  %v678 = vsub.f32 %v380, %v615
  %v679 = vsub.f32 %v385, %v616
  %v680 = vsub.f32 %v388, %v617
  %v681 = vsub.f32 %v393, %v618
  %v682 = vsub.f32 %v396, %v619
  %v683 = vsub.f32 %v401, %v620
  %v684 = vsub.f32 %v404, %v621
  %v685 = vsub.f32 %v409, %v622
  %v686 = vsub.f32 %v412, %v623
  %v687 = vsub.f32 %v417, %v624
  %v688 = vsub.f32 %v420, %v625
  %v689 = vsub.f32 %v425, %v626
  %v690 = vsub.f32 %v428, %v627
  %v691 = vsub.f32 %v433, %v628
  %v692 = vsub.f32 %v436, %v629
  %v693 = vsub.f32 %v441, %v630
  %v694 = vsub.f32 %v444, %v631
  %v695 = vsub.f32 %v449, %v632
  %v696 = vsub.f32 %v452, %v633
  %v697 = vsub.f32 %v457, %v634
  %v698 = vsub.f32 %v460, %v635
  %v699 = vsub.f32 %v465, %v636
  %v700 = vsub.f32 %v468, %v637
  %v701 = vsub.f32 %v473, %v638
  %v702 = vsub.f32 %v476, %v639
  %v703 = vsub.f32 %v481, %v640
  %v704 = vsub.f32 %v484, %v641
  %v705 = vsub.f32 %v489, %v642
  %v706 = vsub.f32 %v492, %v643
  %v707 = vsub.f32 %v497, %v644
  %v708 = vsub.f32 %v500, %v645
  %v709 = vsub.f32 %v505, %v646
  %v710 = vsub.f32 %v508, %v647
  %v711 = vsub.f32 %v513, %v648
  %v712 = vsub.f32 %v516, %v649
  %v713 = vsub.f32 %v521, %v650
  %v714 = vsub.f32 %v524, %v651
  %v715 = vsub.f32 %v529, %v652
  %v716 = vsub.f32 %v532, %v653
  %v717 = vsub.f32 %v537, %v654
  %v718 = vsub.f32 %v540, %v655
  %v719 = vsub.f32 %v545, %v656
  %v720 = vsub.f32 %v548, %v657
  %v721 = vsub.f32 %v553, %v658
  %v722 = vsub.f32 %v556, %v659
  %v723 = vsub.f32 %v561, %v660
  %v724 = vsub.f32 %v564, %v661
  %v725 = vsub.f32 %v569, %v662
  %v726 = vsub.f32 %v572, %v663
  %v727 = vsub.f32 %v577, %v664
  %v728 = vsub.f32 %v580, %v665
  %v729 = vsub.f32 %v585, %v666
  %v730 = vsub.f32 %v588, %v667
  %v731 = vsub.f32 %v593, %v668
  %v732 = vsub.f32 %v596, %v669
  %v733 = vsub.f32 %v601, %v670
  %vm734 = vcmask 523264
  %v735 = vsel %vm734, %v608, 0.0
  %736 = vadd.xlane.f32.xlu0 %v735
  %v737 = vpop.xlane.xlu0 %736
  %v738 = vsel %vm734, %v609, 0.0
  %739 = vadd.xlane.f32.xlu0 %v738
  %v740 = vpop.xlane.xlu0 %739
  %v741 = vsel %vm734, %v610, 0.0
  %742 = vadd.xlane.f32.xlu0 %v741
  %v743 = vpop.xlane.xlu0 %742
  %v744 = vsel %vm734, %v611, 0.0
  %745 = vadd.xlane.f32.xlu0 %v744
  %v746 = vpop.xlane.xlu0 %745
  %v747 = vsel %vm734, %v612, 0.0
  %748 = vadd.xlane.f32.xlu0 %v747
  %v749 = vpop.xlane.xlu0 %748
  %v750 = vsel %vm734, %v613, 0.0
  %751 = vadd.xlane.f32.xlu0 %v750
  %v752 = vpop.xlane.xlu0 %751
  %v753 = vsel %vm734, %v614, 0.0
  %754 = vadd.xlane.f32.xlu0 %v753
  %v755 = vpop.xlane.xlu0 %754
  %v756 = vsel %vm734, %v615, 0.0
  %757 = vadd.xlane.f32.xlu0 %v756
  %v758 = vpop.xlane.xlu0 %757
  %v759 = vsel %vm734, %v616, 0.0
  %760 = vadd.xlane.f32.xlu0 %v759
  %v761 = vpop.xlane.xlu0 %760
  %v762 = vsel %vm734, %v617, 0.0
  %763 = vadd.xlane.f32.xlu0 %v762
  %v764 = vpop.xlane.xlu0 %763
  %v765 = vsel %vm734, %v618, 0.0
  %766 = vadd.xlane.f32.xlu0 %v765
  %v767 = vpop.xlane.xlu0 %766
  %v768 = vsel %vm734, %v619, 0.0
  %769 = vadd.xlane.f32.xlu0 %v768
  %v770 = vpop.xlane.xlu0 %769
  %v771 = vsel %vm734, %v620, 0.0
  %772 = vadd.xlane.f32.xlu0 %v771
  %v773 = vpop.xlane.xlu0 %772
  %v774 = vsel %vm734, %v621, 0.0
  %775 = vadd.xlane.f32.xlu0 %v774
  %v776 = vpop.xlane.xlu0 %775
  %v777 = vsel %vm734, %v622, 0.0
  %778 = vadd.xlane.f32.xlu0 %v777
  %v779 = vpop.xlane.xlu0 %778
  %v780 = vsel %vm734, %v623, 0.0
  %781 = vadd.xlane.f32.xlu0 %v780
  %v782 = vpop.xlane.xlu0 %781
  %v783 = vsel %vm734, %v624, 0.0
  %784 = vadd.xlane.f32.xlu0 %v783
  %v785 = vpop.xlane.xlu0 %784
  %v786 = vsel %vm734, %v625, 0.0
  %787 = vadd.xlane.f32.xlu0 %v786
  %v788 = vpop.xlane.xlu0 %787
  %v789 = vsel %vm734, %v626, 0.0
  %790 = vadd.xlane.f32.xlu0 %v789
  %v791 = vpop.xlane.xlu0 %790
  %v792 = vsel %vm734, %v627, 0.0
  %793 = vadd.xlane.f32.xlu0 %v792
  %v794 = vpop.xlane.xlu0 %793
  %v795 = vsel %vm734, %v628, 0.0
  %796 = vadd.xlane.f32.xlu0 %v795
  %v797 = vpop.xlane.xlu0 %796
  %v798 = vsel %vm734, %v629, 0.0
  %799 = vadd.xlane.f32.xlu0 %v798
  %v800 = vpop.xlane.xlu0 %799
  %v801 = vsel %vm734, %v630, 0.0
  %802 = vadd.xlane.f32.xlu0 %v801
  %v803 = vpop.xlane.xlu0 %802
  %v804 = vsel %vm734, %v631, 0.0
  %805 = vadd.xlane.f32.xlu0 %v804
  %v806 = vpop.xlane.xlu0 %805
  %v807 = vsel %vm734, %v632, 0.0
  %808 = vadd.xlane.f32.xlu0 %v807
  %v809 = vpop.xlane.xlu0 %808
  %v810 = vsel %vm734, %v633, 0.0
  %811 = vadd.xlane.f32.xlu0 %v810
  %v812 = vpop.xlane.xlu0 %811
  %v813 = vsel %vm734, %v634, 0.0
  %814 = vadd.xlane.f32.xlu0 %v813
  %v815 = vpop.xlane.xlu0 %814
  %v816 = vsel %vm734, %v635, 0.0
  %817 = vadd.xlane.f32.xlu0 %v816
  %v818 = vpop.xlane.xlu0 %817
  %v819 = vsel %vm734, %v636, 0.0
  %820 = vadd.xlane.f32.xlu0 %v819
  %v821 = vpop.xlane.xlu0 %820
  %v822 = vsel %vm734, %v637, 0.0
  %823 = vadd.xlane.f32.xlu0 %v822
  %v824 = vpop.xlane.xlu0 %823
  %v825 = vsel %vm734, %v638, 0.0
  %826 = vadd.xlane.f32.xlu0 %v825
  %v827 = vpop.xlane.xlu0 %826
  %v828 = vsel %vm734, %v639, 0.0
  %829 = vadd.xlane.f32.xlu0 %v828
  %v830 = vpop.xlane.xlu0 %829
  %v831 = vsel %vm734, %v640, 0.0
  %832 = vadd.xlane.f32.xlu0 %v831
  %v833 = vpop.xlane.xlu0 %832
  %v834 = vsel %vm734, %v641, 0.0
  %835 = vadd.xlane.f32.xlu0 %v834
  %v836 = vpop.xlane.xlu0 %835
  %v837 = vsel %vm734, %v642, 0.0
  %838 = vadd.xlane.f32.xlu0 %v837
  %v839 = vpop.xlane.xlu0 %838
  %v840 = vsel %vm734, %v643, 0.0
  %841 = vadd.xlane.f32.xlu0 %v840
  %v842 = vpop.xlane.xlu0 %841
  %v843 = vsel %vm734, %v644, 0.0
  %844 = vadd.xlane.f32.xlu0 %v843
  %v845 = vpop.xlane.xlu0 %844
  %v846 = vsel %vm734, %v645, 0.0
  %847 = vadd.xlane.f32.xlu0 %v846
  %v848 = vpop.xlane.xlu0 %847
  %v849 = vsel %vm734, %v646, 0.0
  %850 = vadd.xlane.f32.xlu0 %v849
  %v851 = vpop.xlane.xlu0 %850
  %v852 = vsel %vm734, %v647, 0.0
  %853 = vadd.xlane.f32.xlu0 %v852
  %v854 = vpop.xlane.xlu0 %853
  %v855 = vsel %vm734, %v648, 0.0
  %856 = vadd.xlane.f32.xlu0 %v855
  %v857 = vpop.xlane.xlu0 %856
  %v858 = vsel %vm734, %v649, 0.0
  %859 = vadd.xlane.f32.xlu0 %v858
  %v860 = vpop.xlane.xlu0 %859
  %v861 = vsel %vm734, %v650, 0.0
  %862 = vadd.xlane.f32.xlu0 %v861
  %v863 = vpop.xlane.xlu0 %862
  %v864 = vsel %vm734, %v651, 0.0
  %865 = vadd.xlane.f32.xlu0 %v864
  %v866 = vpop.xlane.xlu0 %865
  %v867 = vsel %vm734, %v652, 0.0
  %868 = vadd.xlane.f32.xlu0 %v867
  %v869 = vpop.xlane.xlu0 %868
  %v870 = vsel %vm734, %v653, 0.0
  %871 = vadd.xlane.f32.xlu0 %v870
  %v872 = vpop.xlane.xlu0 %871
  %v873 = vsel %vm734, %v654, 0.0
  %874 = vadd.xlane.f32.xlu0 %v873
  %v875 = vpop.xlane.xlu0 %874
  %v876 = vsel %vm734, %v655, 0.0
  %877 = vadd.xlane.f32.xlu0 %v876
  %v878 = vpop.xlane.xlu0 %877
  %v879 = vsel %vm734, %v656, 0.0
  %880 = vadd.xlane.f32.xlu0 %v879
  %v881 = vpop.xlane.xlu0 %880
  %v882 = vsel %vm734, %v657, 0.0
  %883 = vadd.xlane.f32.xlu0 %v882
  %v884 = vpop.xlane.xlu0 %883
  %v885 = vsel %vm734, %v658, 0.0
  %886 = vadd.xlane.f32.xlu0 %v885
  %v887 = vpop.xlane.xlu0 %886
  %v888 = vsel %vm734, %v659, 0.0
  %889 = vadd.xlane.f32.xlu0 %v888
  %v890 = vpop.xlane.xlu0 %889
  %v891 = vsel %vm734, %v660, 0.0
  %892 = vadd.xlane.f32.xlu0 %v891
  %v893 = vpop.xlane.xlu0 %892
  %v894 = vsel %vm734, %v661, 0.0
  %895 = vadd.xlane.f32.xlu0 %v894
  %v896 = vpop.xlane.xlu0 %895
  %v897 = vsel %vm734, %v662, 0.0
  %898 = vadd.xlane.f32.xlu0 %v897
  %v899 = vpop.xlane.xlu0 %898
  %v900 = vsel %vm734, %v663, 0.0
  %901 = vadd.xlane.f32.xlu0 %v900
  %v902 = vpop.xlane.xlu0 %901
  %v903 = vsel %vm734, %v664, 0.0
  %904 = vadd.xlane.f32.xlu0 %v903
  %v905 = vpop.xlane.xlu0 %904
  %v906 = vsel %vm734, %v665, 0.0
  %907 = vadd.xlane.f32.xlu0 %v906
  %v908 = vpop.xlane.xlu0 %907
  %v909 = vsel %vm734, %v666, 0.0
  %910 = vadd.xlane.f32.xlu0 %v909
  %v911 = vpop.xlane.xlu0 %910
  %v912 = vsel %vm734, %v667, 0.0
  %913 = vadd.xlane.f32.xlu0 %v912
  %v914 = vpop.xlane.xlu0 %913
  %v915 = vsel %vm734, %v668, 0.0
  %916 = vadd.xlane.f32.xlu0 %v915
  %v917 = vpop.xlane.xlu0 %916
  %v918 = vsel %vm734, %v669, 0.0
  %919 = vadd.xlane.f32.xlu0 %v918
  %v920 = vpop.xlane.xlu0 %919
  %v921 = vsel %vm734, %v670, 0.0
  %922 = vadd.xlane.f32.xlu0 %v921
  %v923 = vpop.xlane.xlu0 %922
  %v924 = vmul.f32 %v737, 0.03125
  %v925 = vmul.f32 %v740, 0.03125
  %v926 = vmul.f32 %v743, 0.03125
  %v927 = vmul.f32 %v746, 0.03125
  %v928 = vmul.f32 %v749, 0.03125
  %v929 = vmul.f32 %v752, 0.03125
  %v930 = vmul.f32 %v755, 0.03125
  %v931 = vmul.f32 %v758, 0.03125
  %v932 = vmul.f32 %v761, 0.03125
  %v933 = vmul.f32 %v764, 0.03125
  %v934 = vmul.f32 %v767, 0.03125
  %v935 = vmul.f32 %v770, 0.03125
  %v936 = vmul.f32 %v773, 0.03125
  %v937 = vmul.f32 %v776, 0.03125
  %v938 = vmul.f32 %v779, 0.03125
  %v939 = vmul.f32 %v782, 0.03125
  %v940 = vmul.f32 %v785, 0.03125
  %v941 = vmul.f32 %v788, 0.03125
  %v942 = vmul.f32 %v791, 0.03125
  %v943 = vmul.f32 %v794, 0.03125
  %v944 = vmul.f32 %v797, 0.03125
  %v945 = vmul.f32 %v800, 0.03125
  %v946 = vmul.f32 %v803, 0.03125
  %v947 = vmul.f32 %v806, 0.03125
  %v948 = vmul.f32 %v809, 0.03125
  %v949 = vmul.f32 %v812, 0.03125
  %v950 = vmul.f32 %v815, 0.03125
  %v951 = vmul.f32 %v818, 0.03125
  %v952 = vmul.f32 %v821, 0.03125
  %v953 = vmul.f32 %v824, 0.03125
  %v954 = vmul.f32 %v827, 0.03125
  %v955 = vmul.f32 %v830, 0.03125
  %v956 = vmul.f32 %v833, 0.03125
  %v957 = vmul.f32 %v836, 0.03125
  %v958 = vmul.f32 %v839, 0.03125
  %v959 = vmul.f32 %v842, 0.03125
  %v960 = vmul.f32 %v845, 0.03125
  %v961 = vmul.f32 %v848, 0.03125
  %v962 = vmul.f32 %v851, 0.03125
  %v963 = vmul.f32 %v854, 0.03125
  %v964 = vmul.f32 %v857, 0.03125
  %v965 = vmul.f32 %v860, 0.03125
  %v966 = vmul.f32 %v863, 0.03125
  %v967 = vmul.f32 %v866, 0.03125
  %v968 = vmul.f32 %v869, 0.03125
  %v969 = vmul.f32 %v872, 0.03125
  %v970 = vmul.f32 %v875, 0.03125
  %v971 = vmul.f32 %v878, 0.03125
  %v972 = vmul.f32 %v881, 0.03125
  %v973 = vmul.f32 %v884, 0.03125
  %v974 = vmul.f32 %v887, 0.03125
  %v975 = vmul.f32 %v890, 0.03125
  %v976 = vmul.f32 %v893, 0.03125
  %v977 = vmul.f32 %v896, 0.03125
  %v978 = vmul.f32 %v899, 0.03125
  %v979 = vmul.f32 %v902, 0.03125
  %v980 = vmul.f32 %v905, 0.03125
  %v981 = vmul.f32 %v908, 0.03125
  %v982 = vmul.f32 %v911, 0.03125
  %v983 = vmul.f32 %v914, 0.03125
  %v984 = vmul.f32 %v917, 0.03125
  %v985 = vmul.f32 %v920, 0.03125
  %v986 = vmul.f32 %v923, 0.03125
  %v987 = vsel %vm734, %v671, 0.0
  %988 = vadd.xlane.f32.xlu0 %v987
  %v989 = vpop.xlane.xlu0 %988
  %v990 = vsel %vm734, %v672, 0.0
  %991 = vadd.xlane.f32.xlu0 %v990
  %v992 = vpop.xlane.xlu0 %991
  %v993 = vsel %vm734, %v673, 0.0
  %994 = vadd.xlane.f32.xlu0 %v993
  %v995 = vpop.xlane.xlu0 %994
  %v996 = vsel %vm734, %v674, 0.0
  %997 = vadd.xlane.f32.xlu0 %v996
  %v998 = vpop.xlane.xlu0 %997
  %v999 = vsel %vm734, %v675, 0.0
  %1000 = vadd.xlane.f32.xlu0 %v999
  %v1001 = vpop.xlane.xlu0 %1000
  %v1002 = vsel %vm734, %v676, 0.0
  %1003 = vadd.xlane.f32.xlu0 %v1002
  %v1004 = vpop.xlane.xlu0 %1003
  %v1005 = vsel %vm734, %v677, 0.0
  %1006 = vadd.xlane.f32.xlu0 %v1005
  %v1007 = vpop.xlane.xlu0 %1006
  %v1008 = vsel %vm734, %v678, 0.0
  %1009 = vadd.xlane.f32.xlu0 %v1008
  %v1010 = vpop.xlane.xlu0 %1009
  %v1011 = vsel %vm734, %v679, 0.0
  %1012 = vadd.xlane.f32.xlu0 %v1011
  %v1013 = vpop.xlane.xlu0 %1012
  %v1014 = vsel %vm734, %v680, 0.0
  %1015 = vadd.xlane.f32.xlu0 %v1014
  %v1016 = vpop.xlane.xlu0 %1015
  %v1017 = vsel %vm734, %v681, 0.0
  %1018 = vadd.xlane.f32.xlu0 %v1017
  %v1019 = vpop.xlane.xlu0 %1018
  %v1020 = vsel %vm734, %v682, 0.0
  %1021 = vadd.xlane.f32.xlu0 %v1020
  %v1022 = vpop.xlane.xlu0 %1021
  %v1023 = vsel %vm734, %v683, 0.0
  %1024 = vadd.xlane.f32.xlu0 %v1023
  %v1025 = vpop.xlane.xlu0 %1024
  %v1026 = vsel %vm734, %v684, 0.0
  %1027 = vadd.xlane.f32.xlu0 %v1026
  %v1028 = vpop.xlane.xlu0 %1027
  %v1029 = vsel %vm734, %v685, 0.0
  %1030 = vadd.xlane.f32.xlu0 %v1029
  %v1031 = vpop.xlane.xlu0 %1030
  %v1032 = vsel %vm734, %v686, 0.0
  %1033 = vadd.xlane.f32.xlu0 %v1032
  %v1034 = vpop.xlane.xlu0 %1033
  %v1035 = vsel %vm734, %v687, 0.0
  %1036 = vadd.xlane.f32.xlu0 %v1035
  %v1037 = vpop.xlane.xlu0 %1036
  %v1038 = vsel %vm734, %v688, 0.0
  %1039 = vadd.xlane.f32.xlu0 %v1038
  %v1040 = vpop.xlane.xlu0 %1039
  %v1041 = vsel %vm734, %v689, 0.0
  %1042 = vadd.xlane.f32.xlu0 %v1041
  %v1043 = vpop.xlane.xlu0 %1042
  %v1044 = vsel %vm734, %v690, 0.0
  %1045 = vadd.xlane.f32.xlu0 %v1044
  %v1046 = vpop.xlane.xlu0 %1045
  %v1047 = vsel %vm734, %v691, 0.0
  %1048 = vadd.xlane.f32.xlu0 %v1047
  %v1049 = vpop.xlane.xlu0 %1048
  %v1050 = vsel %vm734, %v692, 0.0
  %1051 = vadd.xlane.f32.xlu0 %v1050
  %v1052 = vpop.xlane.xlu0 %1051
  %v1053 = vsel %vm734, %v693, 0.0
  %1054 = vadd.xlane.f32.xlu0 %v1053
  %v1055 = vpop.xlane.xlu0 %1054
  %v1056 = vsel %vm734, %v694, 0.0
  %1057 = vadd.xlane.f32.xlu0 %v1056
  %v1058 = vpop.xlane.xlu0 %1057
  %v1059 = vsel %vm734, %v695, 0.0
  %1060 = vadd.xlane.f32.xlu0 %v1059
  %v1061 = vpop.xlane.xlu0 %1060
  %v1062 = vsel %vm734, %v696, 0.0
  %1063 = vadd.xlane.f32.xlu0 %v1062
  %v1064 = vpop.xlane.xlu0 %1063
  %v1065 = vsel %vm734, %v697, 0.0
  %1066 = vadd.xlane.f32.xlu0 %v1065
  %v1067 = vpop.xlane.xlu0 %1066
  %v1068 = vsel %vm734, %v698, 0.0
  %1069 = vadd.xlane.f32.xlu0 %v1068
  %v1070 = vpop.xlane.xlu0 %1069
  %v1071 = vsel %vm734, %v699, 0.0
  %1072 = vadd.xlane.f32.xlu0 %v1071
  %v1073 = vpop.xlane.xlu0 %1072
  %v1074 = vsel %vm734, %v700, 0.0
  %1075 = vadd.xlane.f32.xlu0 %v1074
  %v1076 = vpop.xlane.xlu0 %1075
  %v1077 = vsel %vm734, %v701, 0.0
  %1078 = vadd.xlane.f32.xlu0 %v1077
  %v1079 = vpop.xlane.xlu0 %1078
  %v1080 = vsel %vm734, %v702, 0.0
  %1081 = vadd.xlane.f32.xlu0 %v1080
  %v1082 = vpop.xlane.xlu0 %1081
  %v1083 = vsel %vm734, %v703, 0.0
  %1084 = vadd.xlane.f32.xlu0 %v1083
  %v1085 = vpop.xlane.xlu0 %1084
  %v1086 = vsel %vm734, %v704, 0.0
  %1087 = vadd.xlane.f32.xlu0 %v1086
  %v1088 = vpop.xlane.xlu0 %1087
  %v1089 = vsel %vm734, %v705, 0.0
  %1090 = vadd.xlane.f32.xlu0 %v1089
  %v1091 = vpop.xlane.xlu0 %1090
  %v1092 = vsel %vm734, %v706, 0.0
  %1093 = vadd.xlane.f32.xlu0 %v1092
  %v1094 = vpop.xlane.xlu0 %1093
  %v1095 = vsel %vm734, %v707, 0.0
  %1096 = vadd.xlane.f32.xlu0 %v1095
  %v1097 = vpop.xlane.xlu0 %1096
  %v1098 = vsel %vm734, %v708, 0.0
  %1099 = vadd.xlane.f32.xlu0 %v1098
  %v1100 = vpop.xlane.xlu0 %1099
  %v1101 = vsel %vm734, %v709, 0.0
  %1102 = vadd.xlane.f32.xlu0 %v1101
  %v1103 = vpop.xlane.xlu0 %1102
  %v1104 = vsel %vm734, %v710, 0.0
  %1105 = vadd.xlane.f32.xlu0 %v1104
  %v1106 = vpop.xlane.xlu0 %1105
  %v1107 = vsel %vm734, %v711, 0.0
  %1108 = vadd.xlane.f32.xlu0 %v1107
  %v1109 = vpop.xlane.xlu0 %1108
  %v1110 = vsel %vm734, %v712, 0.0
  %1111 = vadd.xlane.f32.xlu0 %v1110
  %v1112 = vpop.xlane.xlu0 %1111
  %v1113 = vsel %vm734, %v713, 0.0
  %1114 = vadd.xlane.f32.xlu0 %v1113
  %v1115 = vpop.xlane.xlu0 %1114
  %v1116 = vsel %vm734, %v714, 0.0
  %1117 = vadd.xlane.f32.xlu0 %v1116
  %v1118 = vpop.xlane.xlu0 %1117
  %v1119 = vsel %vm734, %v715, 0.0
  %1120 = vadd.xlane.f32.xlu0 %v1119
  %v1121 = vpop.xlane.xlu0 %1120
  %v1122 = vsel %vm734, %v716, 0.0
  %1123 = vadd.xlane.f32.xlu0 %v1122
  %v1124 = vpop.xlane.xlu0 %1123
  %v1125 = vsel %vm734, %v717, 0.0
  %1126 = vadd.xlane.f32.xlu0 %v1125
  %v1127 = vpop.xlane.xlu0 %1126
  %v1128 = vsel %vm734, %v718, 0.0
  %1129 = vadd.xlane.f32.xlu0 %v1128
  %v1130 = vpop.xlane.xlu0 %1129
  %v1131 = vsel %vm734, %v719, 0.0
  %1132 = vadd.xlane.f32.xlu0 %v1131
  %v1133 = vpop.xlane.xlu0 %1132
  %v1134 = vsel %vm734, %v720, 0.0
  %1135 = vadd.xlane.f32.xlu0 %v1134
  %v1136 = vpop.xlane.xlu0 %1135
  %v1137 = vsel %vm734, %v721, 0.0
  %1138 = vadd.xlane.f32.xlu0 %v1137
  %v1139 = vpop.xlane.xlu0 %1138
  %v1140 = vsel %vm734, %v722, 0.0
  %1141 = vadd.xlane.f32.xlu0 %v1140
  %v1142 = vpop.xlane.xlu0 %1141
  %v1143 = vsel %vm734, %v723, 0.0
  %1144 = vadd.xlane.f32.xlu0 %v1143
  %v1145 = vpop.xlane.xlu0 %1144
  %v1146 = vsel %vm734, %v724, 0.0
  %1147 = vadd.xlane.f32.xlu0 %v1146
  %v1148 = vpop.xlane.xlu0 %1147
  %v1149 = vsel %vm734, %v725, 0.0
  %1150 = vadd.xlane.f32.xlu0 %v1149
  %v1151 = vpop.xlane.xlu0 %1150
  %v1152 = vsel %vm734, %v726, 0.0
  %1153 = vadd.xlane.f32.xlu0 %v1152
  %v1154 = vpop.xlane.xlu0 %1153
  %v1155 = vsel %vm734, %v727, 0.0
  %1156 = vadd.xlane.f32.xlu0 %v1155
  %v1157 = vpop.xlane.xlu0 %1156
  %v1158 = vsel %vm734, %v728, 0.0
  %1159 = vadd.xlane.f32.xlu0 %v1158
  %v1160 = vpop.xlane.xlu0 %1159
  %v1161 = vsel %vm734, %v729, 0.0
  %1162 = vadd.xlane.f32.xlu0 %v1161
  %v1163 = vpop.xlane.xlu0 %1162
  %v1164 = vsel %vm734, %v730, 0.0
  %1165 = vadd.xlane.f32.xlu0 %v1164
  %v1166 = vpop.xlane.xlu0 %1165
  %v1167 = vsel %vm734, %v731, 0.0
  %1168 = vadd.xlane.f32.xlu0 %v1167
  %v1169 = vpop.xlane.xlu0 %1168
  %v1170 = vsel %vm734, %v732, 0.0
  %1171 = vadd.xlane.f32.xlu0 %v1170
  %v1172 = vpop.xlane.xlu0 %1171
  %v1173 = vsel %vm734, %v733, 0.0
  %1174 = vadd.xlane.f32.xlu0 %v1173
  %v1175 = vpop.xlane.xlu0 %1174
  %v1176 = vmul.f32 %v989, 0.03125
  %v1177 = vmul.f32 %v992, 0.03125
  %v1178 = vmul.f32 %v995, 0.03125
  %v1179 = vmul.f32 %v998, 0.03125
  %v1180 = vmul.f32 %v1001, 0.03125
  %v1181 = vmul.f32 %v1004, 0.03125
  %v1182 = vmul.f32 %v1007, 0.03125
  %v1183 = vmul.f32 %v1010, 0.03125
  %v1184 = vmul.f32 %v1013, 0.03125
  %v1185 = vmul.f32 %v1016, 0.03125
  %v1186 = vmul.f32 %v1019, 0.03125
  %v1187 = vmul.f32 %v1022, 0.03125
  %v1188 = vmul.f32 %v1025, 0.03125
  %v1189 = vmul.f32 %v1028, 0.03125
  %v1190 = vmul.f32 %v1031, 0.03125
  %v1191 = vmul.f32 %v1034, 0.03125
  %v1192 = vmul.f32 %v1037, 0.03125
  %v1193 = vmul.f32 %v1040, 0.03125
  %v1194 = vmul.f32 %v1043, 0.03125
  %v1195 = vmul.f32 %v1046, 0.03125
  %v1196 = vmul.f32 %v1049, 0.03125
  %v1197 = vmul.f32 %v1052, 0.03125
  %v1198 = vmul.f32 %v1055, 0.03125
  %v1199 = vmul.f32 %v1058, 0.03125
  %v1200 = vmul.f32 %v1061, 0.03125
  %v1201 = vmul.f32 %v1064, 0.03125
  %v1202 = vmul.f32 %v1067, 0.03125
  %v1203 = vmul.f32 %v1070, 0.03125
  %v1204 = vmul.f32 %v1073, 0.03125
  %v1205 = vmul.f32 %v1076, 0.03125
  %v1206 = vmul.f32 %v1079, 0.03125
  %v1207 = vmul.f32 %v1082, 0.03125
  %v1208 = vmul.f32 %v1085, 0.03125
  %v1209 = vmul.f32 %v1088, 0.03125
  %v1210 = vmul.f32 %v1091, 0.03125
  %v1211 = vmul.f32 %v1094, 0.03125
  %v1212 = vmul.f32 %v1097, 0.03125
  %v1213 = vmul.f32 %v1100, 0.03125
  %v1214 = vmul.f32 %v1103, 0.03125
  %v1215 = vmul.f32 %v1106, 0.03125
  %v1216 = vmul.f32 %v1109, 0.03125
  %v1217 = vmul.f32 %v1112, 0.03125
  %v1218 = vmul.f32 %v1115, 0.03125
  %v1219 = vmul.f32 %v1118, 0.03125
  %v1220 = vmul.f32 %v1121, 0.03125
  %v1221 = vmul.f32 %v1124, 0.03125
  %v1222 = vmul.f32 %v1127, 0.03125
  %v1223 = vmul.f32 %v1130, 0.03125
  %v1224 = vmul.f32 %v1133, 0.03125
  %v1225 = vmul.f32 %v1136, 0.03125
  %v1226 = vmul.f32 %v1139, 0.03125
  %v1227 = vmul.f32 %v1142, 0.03125
  %v1228 = vmul.f32 %v1145, 0.03125
  %v1229 = vmul.f32 %v1148, 0.03125
  %v1230 = vmul.f32 %v1151, 0.03125
  %v1231 = vmul.f32 %v1154, 0.03125
  %v1232 = vmul.f32 %v1157, 0.03125
  %v1233 = vmul.f32 %v1160, 0.03125
  %v1234 = vmul.f32 %v1163, 0.03125
  %v1235 = vmul.f32 %v1166, 0.03125
  %v1236 = vmul.f32 %v1169, 0.03125
  %v1237 = vmul.f32 %v1172, 0.03125
  %v1238 = vmul.f32 %v1175, 0.03125
  %v1239 = vsel %vm607, %v924, %v1176
  %v1240 = vsel %vm607, %v925, %v1177
  %v1241 = vsel %vm607, %v926, %v1178
  %v1242 = vsel %vm607, %v927, %v1179
  %v1243 = vsel %vm607, %v928, %v1180
  %v1244 = vsel %vm607, %v929, %v1181
  %v1245 = vsel %vm607, %v930, %v1182
  %v1246 = vsel %vm607, %v931, %v1183
  %v1247 = vsel %vm607, %v932, %v1184
  %v1248 = vsel %vm607, %v933, %v1185
  %v1249 = vsel %vm607, %v934, %v1186
  %v1250 = vsel %vm607, %v935, %v1187
  %v1251 = vsel %vm607, %v936, %v1188
  %v1252 = vsel %vm607, %v937, %v1189
  %v1253 = vsel %vm607, %v938, %v1190
  %v1254 = vsel %vm607, %v939, %v1191
  %v1255 = vsel %vm607, %v940, %v1192
  %v1256 = vsel %vm607, %v941, %v1193
  %v1257 = vsel %vm607, %v942, %v1194
  %v1258 = vsel %vm607, %v943, %v1195
  %v1259 = vsel %vm607, %v944, %v1196
  %v1260 = vsel %vm607, %v945, %v1197
  %v1261 = vsel %vm607, %v946, %v1198
  %v1262 = vsel %vm607, %v947, %v1199
  %v1263 = vsel %vm607, %v948, %v1200
  %v1264 = vsel %vm607, %v949, %v1201
  %v1265 = vsel %vm607, %v950, %v1202
  %v1266 = vsel %vm607, %v951, %v1203
  %v1267 = vsel %vm607, %v952, %v1204
  %v1268 = vsel %vm607, %v953, %v1205
  %v1269 = vsel %vm607, %v954, %v1206
  %v1270 = vsel %vm607, %v955, %v1207
  %v1271 = vsel %vm607, %v956, %v1208
  %v1272 = vsel %vm607, %v957, %v1209
  %v1273 = vsel %vm607, %v958, %v1210
  %v1274 = vsel %vm607, %v959, %v1211
  %v1275 = vsel %vm607, %v960, %v1212
  %v1276 = vsel %vm607, %v961, %v1213
  %v1277 = vsel %vm607, %v962, %v1214
  %v1278 = vsel %vm607, %v963, %v1215
  %v1279 = vsel %vm607, %v964, %v1216
  %v1280 = vsel %vm607, %v965, %v1217
  %v1281 = vsel %vm607, %v966, %v1218
  %v1282 = vsel %vm607, %v967, %v1219
  %v1283 = vsel %vm607, %v968, %v1220
  %v1284 = vsel %vm607, %v969, %v1221
  %v1285 = vsel %vm607, %v970, %v1222
  %v1286 = vsel %vm607, %v971, %v1223
  %v1287 = vsel %vm607, %v972, %v1224
  %v1288 = vsel %vm607, %v973, %v1225
  %v1289 = vsel %vm607, %v974, %v1226
  %v1290 = vsel %vm607, %v975, %v1227
  %v1291 = vsel %vm607, %v976, %v1228
  %v1292 = vsel %vm607, %v977, %v1229
  %v1293 = vsel %vm607, %v978, %v1230
  %v1294 = vsel %vm607, %v979, %v1231
  %v1295 = vsel %vm607, %v980, %v1232
  %v1296 = vsel %vm607, %v981, %v1233
  %v1297 = vsel %vm607, %v982, %v1234
  %v1298 = vsel %vm607, %v983, %v1235
  %v1299 = vsel %vm607, %v984, %v1236
  %v1300 = vsel %vm607, %v985, %v1237
  %v1301 = vsel %vm607, %v986, %v1238
  %v1302 = vsub.f32 %v353, %v1239
  %v1303 = vsub.f32 %v356, %v1240
  %v1304 = vsub.f32 %v361, %v1241
  %v1305 = vsub.f32 %v364, %v1242
  %v1306 = vsub.f32 %v369, %v1243
  %v1307 = vsub.f32 %v372, %v1244
  %v1308 = vsub.f32 %v377, %v1245
  %v1309 = vsub.f32 %v380, %v1246
  %v1310 = vsub.f32 %v385, %v1247
  %v1311 = vsub.f32 %v388, %v1248
  %v1312 = vsub.f32 %v393, %v1249
  %v1313 = vsub.f32 %v396, %v1250
  %v1314 = vsub.f32 %v401, %v1251
  %v1315 = vsub.f32 %v404, %v1252
  %v1316 = vsub.f32 %v409, %v1253
  %v1317 = vsub.f32 %v412, %v1254
  %v1318 = vsub.f32 %v417, %v1255
  %v1319 = vsub.f32 %v420, %v1256
  %v1320 = vsub.f32 %v425, %v1257
  %v1321 = vsub.f32 %v428, %v1258
  %v1322 = vsub.f32 %v433, %v1259
  %v1323 = vsub.f32 %v436, %v1260
  %v1324 = vsub.f32 %v441, %v1261
  %v1325 = vsub.f32 %v444, %v1262
  %v1326 = vsub.f32 %v449, %v1263
  %v1327 = vsub.f32 %v452, %v1264
  %v1328 = vsub.f32 %v457, %v1265
  %v1329 = vsub.f32 %v460, %v1266
  %v1330 = vsub.f32 %v465, %v1267
  %v1331 = vsub.f32 %v468, %v1268
  %v1332 = vsub.f32 %v473, %v1269
  %v1333 = vsub.f32 %v476, %v1270
  %v1334 = vsub.f32 %v481, %v1271
  %v1335 = vsub.f32 %v484, %v1272
  %v1336 = vsub.f32 %v489, %v1273
  %v1337 = vsub.f32 %v492, %v1274
  %v1338 = vsub.f32 %v497, %v1275
  %v1339 = vsub.f32 %v500, %v1276
  %v1340 = vsub.f32 %v505, %v1277
  %v1341 = vsub.f32 %v508, %v1278
  %v1342 = vsub.f32 %v513, %v1279
  %v1343 = vsub.f32 %v516, %v1280
  %v1344 = vsub.f32 %v521, %v1281
  %v1345 = vsub.f32 %v524, %v1282
  %v1346 = vsub.f32 %v529, %v1283
  %v1347 = vsub.f32 %v532, %v1284
  %v1348 = vsub.f32 %v537, %v1285
  %v1349 = vsub.f32 %v540, %v1286
  %v1350 = vsub.f32 %v545, %v1287
  %v1351 = vsub.f32 %v548, %v1288
  %v1352 = vsub.f32 %v553, %v1289
  %v1353 = vsub.f32 %v556, %v1290
  %v1354 = vsub.f32 %v561, %v1291
  %v1355 = vsub.f32 %v564, %v1292
  %v1356 = vsub.f32 %v569, %v1293
  %v1357 = vsub.f32 %v572, %v1294
  %v1358 = vsub.f32 %v577, %v1295
  %v1359 = vsub.f32 %v580, %v1296
  %v1360 = vsub.f32 %v585, %v1297
  %v1361 = vsub.f32 %v588, %v1298
  %v1362 = vsub.f32 %v593, %v1299
  %v1363 = vsub.f32 %v596, %v1300
  %v1364 = vsub.f32 %v601, %v1301
  %v1365 = vsel %vm607, %v1302, 0.0
  %v1366 = vsel %vm607, %v1303, 0.0
  %v1367 = vsel %vm607, %v1304, 0.0
  %v1368 = vsel %vm607, %v1305, 0.0
  %v1369 = vsel %vm607, %v1306, 0.0
  %v1370 = vsel %vm607, %v1307, 0.0
  %v1371 = vsel %vm607, %v1308, 0.0
  %v1372 = vsel %vm607, %v1309, 0.0
  %v1373 = vsel %vm607, %v1310, 0.0
  %v1374 = vsel %vm607, %v1311, 0.0
  %v1375 = vsel %vm607, %v1312, 0.0
  %v1376 = vsel %vm607, %v1313, 0.0
  %v1377 = vsel %vm607, %v1314, 0.0
  %v1378 = vsel %vm607, %v1315, 0.0
  %v1379 = vsel %vm607, %v1316, 0.0
  %v1380 = vsel %vm607, %v1317, 0.0
  %v1381 = vsel %vm607, %v1318, 0.0
  %v1382 = vsel %vm607, %v1319, 0.0
  %v1383 = vsel %vm607, %v1320, 0.0
  %v1384 = vsel %vm607, %v1321, 0.0
  %v1385 = vsel %vm607, %v1322, 0.0
  %v1386 = vsel %vm607, %v1323, 0.0
  %v1387 = vsel %vm607, %v1324, 0.0
  %v1388 = vsel %vm607, %v1325, 0.0
  %v1389 = vsel %vm607, %v1326, 0.0
  %v1390 = vsel %vm607, %v1327, 0.0
  %v1391 = vsel %vm607, %v1328, 0.0
  %v1392 = vsel %vm607, %v1329, 0.0
  %v1393 = vsel %vm607, %v1330, 0.0
  %v1394 = vsel %vm607, %v1331, 0.0
  %v1395 = vsel %vm607, %v1332, 0.0
  %v1396 = vsel %vm607, %v1333, 0.0
  %v1397 = vsel %vm607, %v1334, 0.0
  %v1398 = vsel %vm607, %v1335, 0.0
  %v1399 = vsel %vm607, %v1336, 0.0
  %v1400 = vsel %vm607, %v1337, 0.0
  %v1401 = vsel %vm607, %v1338, 0.0
  %v1402 = vsel %vm607, %v1339, 0.0
  %v1403 = vsel %vm607, %v1340, 0.0
  %v1404 = vsel %vm607, %v1341, 0.0
  %v1405 = vsel %vm607, %v1342, 0.0
  %v1406 = vsel %vm607, %v1343, 0.0
  %v1407 = vsel %vm607, %v1344, 0.0
  %v1408 = vsel %vm607, %v1345, 0.0
  %v1409 = vsel %vm607, %v1346, 0.0
  %v1410 = vsel %vm607, %v1347, 0.0
  %v1411 = vsel %vm607, %v1348, 0.0
  %v1412 = vsel %vm607, %v1349, 0.0
  %v1413 = vsel %vm607, %v1350, 0.0
  %v1414 = vsel %vm607, %v1351, 0.0
  %v1415 = vsel %vm607, %v1352, 0.0
  %v1416 = vsel %vm607, %v1353, 0.0
  %v1417 = vsel %vm607, %v1354, 0.0
  %v1418 = vsel %vm607, %v1355, 0.0
  %v1419 = vsel %vm607, %v1356, 0.0
  %v1420 = vsel %vm607, %v1357, 0.0
  %v1421 = vsel %vm607, %v1358, 0.0
  %v1422 = vsel %vm607, %v1359, 0.0
  %v1423 = vsel %vm607, %v1360, 0.0
  %v1424 = vsel %vm607, %v1361, 0.0
  %v1425 = vsel %vm607, %v1362, 0.0
  %v1426 = vsel %vm607, %v1363, 0.0
  %v1427 = vsel %vm607, %v1364, 0.0
  %v1428 = vsub.f32 %v1302, %v1365
  %v1429 = vsub.f32 %v1303, %v1366
  %v1430 = vsub.f32 %v1304, %v1367
  %v1431 = vsub.f32 %v1305, %v1368
  %v1432 = vsub.f32 %v1306, %v1369
  %v1433 = vsub.f32 %v1307, %v1370
  %v1434 = vsub.f32 %v1308, %v1371
  %v1435 = vsub.f32 %v1309, %v1372
  %v1436 = vsub.f32 %v1310, %v1373
  %v1437 = vsub.f32 %v1311, %v1374
  %v1438 = vsub.f32 %v1312, %v1375
  %v1439 = vsub.f32 %v1313, %v1376
  %v1440 = vsub.f32 %v1314, %v1377
  %v1441 = vsub.f32 %v1315, %v1378
  %v1442 = vsub.f32 %v1316, %v1379
  %v1443 = vsub.f32 %v1317, %v1380
  %v1444 = vsub.f32 %v1318, %v1381
  %v1445 = vsub.f32 %v1319, %v1382
  %v1446 = vsub.f32 %v1320, %v1383
  %v1447 = vsub.f32 %v1321, %v1384
  %v1448 = vsub.f32 %v1322, %v1385
  %v1449 = vsub.f32 %v1323, %v1386
  %v1450 = vsub.f32 %v1324, %v1387
  %v1451 = vsub.f32 %v1325, %v1388
  %v1452 = vsub.f32 %v1326, %v1389
  %v1453 = vsub.f32 %v1327, %v1390
  %v1454 = vsub.f32 %v1328, %v1391
  %v1455 = vsub.f32 %v1329, %v1392
  %v1456 = vsub.f32 %v1330, %v1393
  %v1457 = vsub.f32 %v1331, %v1394
  %v1458 = vsub.f32 %v1332, %v1395
  %v1459 = vsub.f32 %v1333, %v1396
  %v1460 = vsub.f32 %v1334, %v1397
  %v1461 = vsub.f32 %v1335, %v1398
  %v1462 = vsub.f32 %v1336, %v1399
  %v1463 = vsub.f32 %v1337, %v1400
  %v1464 = vsub.f32 %v1338, %v1401
  %v1465 = vsub.f32 %v1339, %v1402
  %v1466 = vsub.f32 %v1340, %v1403
  %v1467 = vsub.f32 %v1341, %v1404
  %v1468 = vsub.f32 %v1342, %v1405
  %v1469 = vsub.f32 %v1343, %v1406
  %v1470 = vsub.f32 %v1344, %v1407
  %v1471 = vsub.f32 %v1345, %v1408
  %v1472 = vsub.f32 %v1346, %v1409
  %v1473 = vsub.f32 %v1347, %v1410
  %v1474 = vsub.f32 %v1348, %v1411
  %v1475 = vsub.f32 %v1349, %v1412
  %v1476 = vsub.f32 %v1350, %v1413
  %v1477 = vsub.f32 %v1351, %v1414
  %v1478 = vsub.f32 %v1352, %v1415
  %v1479 = vsub.f32 %v1353, %v1416
  %v1480 = vsub.f32 %v1354, %v1417
  %v1481 = vsub.f32 %v1355, %v1418
  %v1482 = vsub.f32 %v1356, %v1419
  %v1483 = vsub.f32 %v1357, %v1420
  %v1484 = vsub.f32 %v1358, %v1421
  %v1485 = vsub.f32 %v1359, %v1422
  %v1486 = vsub.f32 %v1360, %v1423
  %v1487 = vsub.f32 %v1361, %v1424
  %v1488 = vsub.f32 %v1362, %v1425
  %v1489 = vsub.f32 %v1363, %v1426
  %v1490 = vsub.f32 %v1364, %v1427
  %v1491 = vmul.f32 %v1365, %v1365
  %v1492 = vmul.f32 %v1366, %v1366
  %v1493 = vmul.f32 %v1367, %v1367
  %v1494 = vmul.f32 %v1368, %v1368
  %v1495 = vmul.f32 %v1369, %v1369
  %v1496 = vmul.f32 %v1370, %v1370
  %v1497 = vmul.f32 %v1371, %v1371
  %v1498 = vmul.f32 %v1372, %v1372
  %v1499 = vmul.f32 %v1373, %v1373
  %v1500 = vmul.f32 %v1374, %v1374
  %v1501 = vmul.f32 %v1375, %v1375
  %v1502 = vmul.f32 %v1376, %v1376
  %v1503 = vmul.f32 %v1377, %v1377
  %v1504 = vmul.f32 %v1378, %v1378
  %v1505 = vmul.f32 %v1379, %v1379
  %v1506 = vmul.f32 %v1380, %v1380
  %v1507 = vmul.f32 %v1381, %v1381
  %v1508 = vmul.f32 %v1382, %v1382
  %v1509 = vmul.f32 %v1383, %v1383
  %v1510 = vmul.f32 %v1384, %v1384
  %v1511 = vmul.f32 %v1385, %v1385
  %v1512 = vmul.f32 %v1386, %v1386
  %v1513 = vmul.f32 %v1387, %v1387
  %v1514 = vmul.f32 %v1388, %v1388
  %v1515 = vmul.f32 %v1389, %v1389
  %v1516 = vmul.f32 %v1390, %v1390
  %v1517 = vmul.f32 %v1391, %v1391
  %v1518 = vmul.f32 %v1392, %v1392
  %v1519 = vmul.f32 %v1393, %v1393
  %v1520 = vmul.f32 %v1394, %v1394
  %v1521 = vmul.f32 %v1395, %v1395
  %v1522 = vmul.f32 %v1396, %v1396
  %v1523 = vmul.f32 %v1397, %v1397
  %v1524 = vmul.f32 %v1398, %v1398
  %v1525 = vmul.f32 %v1399, %v1399
  %v1526 = vmul.f32 %v1400, %v1400
  %v1527 = vmul.f32 %v1401, %v1401
  %v1528 = vmul.f32 %v1402, %v1402
  %v1529 = vmul.f32 %v1403, %v1403
  %v1530 = vmul.f32 %v1404, %v1404
  %v1531 = vmul.f32 %v1405, %v1405
  %v1532 = vmul.f32 %v1406, %v1406
  %v1533 = vmul.f32 %v1407, %v1407
  %v1534 = vmul.f32 %v1408, %v1408
  %v1535 = vmul.f32 %v1409, %v1409
  %v1536 = vmul.f32 %v1410, %v1410
  %v1537 = vmul.f32 %v1411, %v1411
  %v1538 = vmul.f32 %v1412, %v1412
  %v1539 = vmul.f32 %v1413, %v1413
  %v1540 = vmul.f32 %v1414, %v1414
  %v1541 = vmul.f32 %v1415, %v1415
  %v1542 = vmul.f32 %v1416, %v1416
  %v1543 = vmul.f32 %v1417, %v1417
  %v1544 = vmul.f32 %v1418, %v1418
  %v1545 = vmul.f32 %v1419, %v1419
  %v1546 = vmul.f32 %v1420, %v1420
  %v1547 = vmul.f32 %v1421, %v1421
  %v1548 = vmul.f32 %v1422, %v1422
  %v1549 = vmul.f32 %v1423, %v1423
  %v1550 = vmul.f32 %v1424, %v1424
  %v1551 = vmul.f32 %v1425, %v1425
  %v1552 = vmul.f32 %v1426, %v1426
  %v1553 = vmul.f32 %v1427, %v1427
  %v1554 = vsel %vm734, %v1491, 0.0
  %1555 = vadd.xlane.f32.xlu0 %v1554
  %v1556 = vpop.xlane.xlu0 %1555
  %v1557 = vsel %vm734, %v1492, 0.0
  %1558 = vadd.xlane.f32.xlu0 %v1557
  %v1559 = vpop.xlane.xlu0 %1558
  %v1560 = vsel %vm734, %v1493, 0.0
  %1561 = vadd.xlane.f32.xlu0 %v1560
  %v1562 = vpop.xlane.xlu0 %1561
  %v1563 = vsel %vm734, %v1494, 0.0
  %1564 = vadd.xlane.f32.xlu0 %v1563
  %v1565 = vpop.xlane.xlu0 %1564
  %v1566 = vsel %vm734, %v1495, 0.0
  %1567 = vadd.xlane.f32.xlu0 %v1566
  %v1568 = vpop.xlane.xlu0 %1567
  %v1569 = vsel %vm734, %v1496, 0.0
  %1570 = vadd.xlane.f32.xlu0 %v1569
  %v1571 = vpop.xlane.xlu0 %1570
  %v1572 = vsel %vm734, %v1497, 0.0
  %1573 = vadd.xlane.f32.xlu0 %v1572
  %v1574 = vpop.xlane.xlu0 %1573
  %v1575 = vsel %vm734, %v1498, 0.0
  %1576 = vadd.xlane.f32.xlu0 %v1575
  %v1577 = vpop.xlane.xlu0 %1576
  %v1578 = vsel %vm734, %v1499, 0.0
  %1579 = vadd.xlane.f32.xlu0 %v1578
  %v1580 = vpop.xlane.xlu0 %1579
  %v1581 = vsel %vm734, %v1500, 0.0
  %1582 = vadd.xlane.f32.xlu0 %v1581
  %v1583 = vpop.xlane.xlu0 %1582
  %v1584 = vsel %vm734, %v1501, 0.0
  %1585 = vadd.xlane.f32.xlu0 %v1584
  %v1586 = vpop.xlane.xlu0 %1585
  %v1587 = vsel %vm734, %v1502, 0.0
  %1588 = vadd.xlane.f32.xlu0 %v1587
  %v1589 = vpop.xlane.xlu0 %1588
  %v1590 = vsel %vm734, %v1503, 0.0
  %1591 = vadd.xlane.f32.xlu0 %v1590
  %v1592 = vpop.xlane.xlu0 %1591
  %v1593 = vsel %vm734, %v1504, 0.0
  %1594 = vadd.xlane.f32.xlu0 %v1593
  %v1595 = vpop.xlane.xlu0 %1594
  %v1596 = vsel %vm734, %v1505, 0.0
  %1597 = vadd.xlane.f32.xlu0 %v1596
  %v1598 = vpop.xlane.xlu0 %1597
  %v1599 = vsel %vm734, %v1506, 0.0
  %1600 = vadd.xlane.f32.xlu0 %v1599
  %v1601 = vpop.xlane.xlu0 %1600
  %v1602 = vsel %vm734, %v1507, 0.0
  %1603 = vadd.xlane.f32.xlu0 %v1602
  %v1604 = vpop.xlane.xlu0 %1603
  %v1605 = vsel %vm734, %v1508, 0.0
  %1606 = vadd.xlane.f32.xlu0 %v1605
  %v1607 = vpop.xlane.xlu0 %1606
  %v1608 = vsel %vm734, %v1509, 0.0
  %1609 = vadd.xlane.f32.xlu0 %v1608
  %v1610 = vpop.xlane.xlu0 %1609
  %v1611 = vsel %vm734, %v1510, 0.0
  %1612 = vadd.xlane.f32.xlu0 %v1611
  %v1613 = vpop.xlane.xlu0 %1612
  %v1614 = vsel %vm734, %v1511, 0.0
  %1615 = vadd.xlane.f32.xlu0 %v1614
  %v1616 = vpop.xlane.xlu0 %1615
  %v1617 = vsel %vm734, %v1512, 0.0
  %1618 = vadd.xlane.f32.xlu0 %v1617
  %v1619 = vpop.xlane.xlu0 %1618
  %v1620 = vsel %vm734, %v1513, 0.0
  %1621 = vadd.xlane.f32.xlu0 %v1620
  %v1622 = vpop.xlane.xlu0 %1621
  %v1623 = vsel %vm734, %v1514, 0.0
  %1624 = vadd.xlane.f32.xlu0 %v1623
  %v1625 = vpop.xlane.xlu0 %1624
  %v1626 = vsel %vm734, %v1515, 0.0
  %1627 = vadd.xlane.f32.xlu0 %v1626
  %v1628 = vpop.xlane.xlu0 %1627
  %v1629 = vsel %vm734, %v1516, 0.0
  %1630 = vadd.xlane.f32.xlu0 %v1629
  %v1631 = vpop.xlane.xlu0 %1630
  %v1632 = vsel %vm734, %v1517, 0.0
  %1633 = vadd.xlane.f32.xlu0 %v1632
  %v1634 = vpop.xlane.xlu0 %1633
  %v1635 = vsel %vm734, %v1518, 0.0
  %1636 = vadd.xlane.f32.xlu0 %v1635
  %v1637 = vpop.xlane.xlu0 %1636
  %v1638 = vsel %vm734, %v1519, 0.0
  %1639 = vadd.xlane.f32.xlu0 %v1638
  %v1640 = vpop.xlane.xlu0 %1639
  %v1641 = vsel %vm734, %v1520, 0.0
  %1642 = vadd.xlane.f32.xlu0 %v1641
  %v1643 = vpop.xlane.xlu0 %1642
  %v1644 = vsel %vm734, %v1521, 0.0
  %1645 = vadd.xlane.f32.xlu0 %v1644
  %v1646 = vpop.xlane.xlu0 %1645
  %v1647 = vsel %vm734, %v1522, 0.0
  %1648 = vadd.xlane.f32.xlu0 %v1647
  %v1649 = vpop.xlane.xlu0 %1648
  %v1650 = vsel %vm734, %v1523, 0.0
  %1651 = vadd.xlane.f32.xlu0 %v1650
  %v1652 = vpop.xlane.xlu0 %1651
  %v1653 = vsel %vm734, %v1524, 0.0
  %1654 = vadd.xlane.f32.xlu0 %v1653
  %v1655 = vpop.xlane.xlu0 %1654
  %v1656 = vsel %vm734, %v1525, 0.0
  %1657 = vadd.xlane.f32.xlu0 %v1656
  %v1658 = vpop.xlane.xlu0 %1657
  %v1659 = vsel %vm734, %v1526, 0.0
  %1660 = vadd.xlane.f32.xlu0 %v1659
  %v1661 = vpop.xlane.xlu0 %1660
  %v1662 = vsel %vm734, %v1527, 0.0
  %1663 = vadd.xlane.f32.xlu0 %v1662
  %v1664 = vpop.xlane.xlu0 %1663
  %v1665 = vsel %vm734, %v1528, 0.0
  %1666 = vadd.xlane.f32.xlu0 %v1665
  %v1667 = vpop.xlane.xlu0 %1666
  %v1668 = vsel %vm734, %v1529, 0.0
  %1669 = vadd.xlane.f32.xlu0 %v1668
  %v1670 = vpop.xlane.xlu0 %1669
  %v1671 = vsel %vm734, %v1530, 0.0
  %1672 = vadd.xlane.f32.xlu0 %v1671
  %v1673 = vpop.xlane.xlu0 %1672
  %v1674 = vsel %vm734, %v1531, 0.0
  %1675 = vadd.xlane.f32.xlu0 %v1674
  %v1676 = vpop.xlane.xlu0 %1675
  %v1677 = vsel %vm734, %v1532, 0.0
  %1678 = vadd.xlane.f32.xlu0 %v1677
  %v1679 = vpop.xlane.xlu0 %1678
  %v1680 = vsel %vm734, %v1533, 0.0
  %1681 = vadd.xlane.f32.xlu0 %v1680
  %v1682 = vpop.xlane.xlu0 %1681
  %v1683 = vsel %vm734, %v1534, 0.0
  %1684 = vadd.xlane.f32.xlu0 %v1683
  %v1685 = vpop.xlane.xlu0 %1684
  %v1686 = vsel %vm734, %v1535, 0.0
  %1687 = vadd.xlane.f32.xlu0 %v1686
  %v1688 = vpop.xlane.xlu0 %1687
  %v1689 = vsel %vm734, %v1536, 0.0
  %1690 = vadd.xlane.f32.xlu0 %v1689
  %v1691 = vpop.xlane.xlu0 %1690
  %v1692 = vsel %vm734, %v1537, 0.0
  %1693 = vadd.xlane.f32.xlu0 %v1692
  %v1694 = vpop.xlane.xlu0 %1693
  %v1695 = vsel %vm734, %v1538, 0.0
  %1696 = vadd.xlane.f32.xlu0 %v1695
  %v1697 = vpop.xlane.xlu0 %1696
  %v1698 = vsel %vm734, %v1539, 0.0
  %1699 = vadd.xlane.f32.xlu0 %v1698
  %v1700 = vpop.xlane.xlu0 %1699
  %v1701 = vsel %vm734, %v1540, 0.0
  %1702 = vadd.xlane.f32.xlu0 %v1701
  %v1703 = vpop.xlane.xlu0 %1702
  %v1704 = vsel %vm734, %v1541, 0.0
  %1705 = vadd.xlane.f32.xlu0 %v1704
  %v1706 = vpop.xlane.xlu0 %1705
  %v1707 = vsel %vm734, %v1542, 0.0
  %1708 = vadd.xlane.f32.xlu0 %v1707
  %v1709 = vpop.xlane.xlu0 %1708
  %v1710 = vsel %vm734, %v1543, 0.0
  %1711 = vadd.xlane.f32.xlu0 %v1710
  %v1712 = vpop.xlane.xlu0 %1711
  %v1713 = vsel %vm734, %v1544, 0.0
  %1714 = vadd.xlane.f32.xlu0 %v1713
  %v1715 = vpop.xlane.xlu0 %1714
  %v1716 = vsel %vm734, %v1545, 0.0
  %1717 = vadd.xlane.f32.xlu0 %v1716
  %v1718 = vpop.xlane.xlu0 %1717
  %v1719 = vsel %vm734, %v1546, 0.0
  %1720 = vadd.xlane.f32.xlu0 %v1719
  %v1721 = vpop.xlane.xlu0 %1720
  %v1722 = vsel %vm734, %v1547, 0.0
  %1723 = vadd.xlane.f32.xlu0 %v1722
  %v1724 = vpop.xlane.xlu0 %1723
  %v1725 = vsel %vm734, %v1548, 0.0
  %1726 = vadd.xlane.f32.xlu0 %v1725
  %v1727 = vpop.xlane.xlu0 %1726
  %v1728 = vsel %vm734, %v1549, 0.0
  %1729 = vadd.xlane.f32.xlu0 %v1728
  %v1730 = vpop.xlane.xlu0 %1729
  %v1731 = vsel %vm734, %v1550, 0.0
  %1732 = vadd.xlane.f32.xlu0 %v1731
  %v1733 = vpop.xlane.xlu0 %1732
  %v1734 = vsel %vm734, %v1551, 0.0
  %1735 = vadd.xlane.f32.xlu0 %v1734
  %v1736 = vpop.xlane.xlu0 %1735
  %v1737 = vsel %vm734, %v1552, 0.0
  %1738 = vadd.xlane.f32.xlu0 %v1737
  %v1739 = vpop.xlane.xlu0 %1738
  %v1740 = vsel %vm734, %v1553, 0.0
  %1741 = vadd.xlane.f32.xlu0 %v1740
  %v1742 = vpop.xlane.xlu0 %1741
  %v1743 = vmul.f32 %v1556, 0.03125
  %v1744 = vmul.f32 %v1559, 0.03125
  %v1745 = vmul.f32 %v1562, 0.03125
  %v1746 = vmul.f32 %v1565, 0.03125
  %v1747 = vmul.f32 %v1568, 0.03125
  %v1748 = vmul.f32 %v1571, 0.03125
  %v1749 = vmul.f32 %v1574, 0.03125
  %v1750 = vmul.f32 %v1577, 0.03125
  %v1751 = vmul.f32 %v1580, 0.03125
  %v1752 = vmul.f32 %v1583, 0.03125
  %v1753 = vmul.f32 %v1586, 0.03125
  %v1754 = vmul.f32 %v1589, 0.03125
  %v1755 = vmul.f32 %v1592, 0.03125
  %v1756 = vmul.f32 %v1595, 0.03125
  %v1757 = vmul.f32 %v1598, 0.03125
  %v1758 = vmul.f32 %v1601, 0.03125
  %v1759 = vmul.f32 %v1604, 0.03125
  %v1760 = vmul.f32 %v1607, 0.03125
  %v1761 = vmul.f32 %v1610, 0.03125
  %v1762 = vmul.f32 %v1613, 0.03125
  %v1763 = vmul.f32 %v1616, 0.03125
  %v1764 = vmul.f32 %v1619, 0.03125
  %v1765 = vmul.f32 %v1622, 0.03125
  %v1766 = vmul.f32 %v1625, 0.03125
  %v1767 = vmul.f32 %v1628, 0.03125
  %v1768 = vmul.f32 %v1631, 0.03125
  %v1769 = vmul.f32 %v1634, 0.03125
  %v1770 = vmul.f32 %v1637, 0.03125
  %v1771 = vmul.f32 %v1640, 0.03125
  %v1772 = vmul.f32 %v1643, 0.03125
  %v1773 = vmul.f32 %v1646, 0.03125
  %v1774 = vmul.f32 %v1649, 0.03125
  %v1775 = vmul.f32 %v1652, 0.03125
  %v1776 = vmul.f32 %v1655, 0.03125
  %v1777 = vmul.f32 %v1658, 0.03125
  %v1778 = vmul.f32 %v1661, 0.03125
  %v1779 = vmul.f32 %v1664, 0.03125
  %v1780 = vmul.f32 %v1667, 0.03125
  %v1781 = vmul.f32 %v1670, 0.03125
  %v1782 = vmul.f32 %v1673, 0.03125
  %v1783 = vmul.f32 %v1676, 0.03125
  %v1784 = vmul.f32 %v1679, 0.03125
  %v1785 = vmul.f32 %v1682, 0.03125
  %v1786 = vmul.f32 %v1685, 0.03125
  %v1787 = vmul.f32 %v1688, 0.03125
  %v1788 = vmul.f32 %v1691, 0.03125
  %v1789 = vmul.f32 %v1694, 0.03125
  %v1790 = vmul.f32 %v1697, 0.03125
  %v1791 = vmul.f32 %v1700, 0.03125
  %v1792 = vmul.f32 %v1703, 0.03125
  %v1793 = vmul.f32 %v1706, 0.03125
  %v1794 = vmul.f32 %v1709, 0.03125
  %v1795 = vmul.f32 %v1712, 0.03125
  %v1796 = vmul.f32 %v1715, 0.03125
  %v1797 = vmul.f32 %v1718, 0.03125
  %v1798 = vmul.f32 %v1721, 0.03125
  %v1799 = vmul.f32 %v1724, 0.03125
  %v1800 = vmul.f32 %v1727, 0.03125
  %v1801 = vmul.f32 %v1730, 0.03125
  %v1802 = vmul.f32 %v1733, 0.03125
  %v1803 = vmul.f32 %v1736, 0.03125
  %v1804 = vmul.f32 %v1739, 0.03125
  %v1805 = vmul.f32 %v1742, 0.03125
  %v1806 = vmul.f32 %v1428, %v1428
  %v1807 = vmul.f32 %v1429, %v1429
  %v1808 = vmul.f32 %v1430, %v1430
  %v1809 = vmul.f32 %v1431, %v1431
  %v1810 = vmul.f32 %v1432, %v1432
  %v1811 = vmul.f32 %v1433, %v1433
  %v1812 = vmul.f32 %v1434, %v1434
  %v1813 = vmul.f32 %v1435, %v1435
  %v1814 = vmul.f32 %v1436, %v1436
  %v1815 = vmul.f32 %v1437, %v1437
  %v1816 = vmul.f32 %v1438, %v1438
  %v1817 = vmul.f32 %v1439, %v1439
  %v1818 = vmul.f32 %v1440, %v1440
  %v1819 = vmul.f32 %v1441, %v1441
  %v1820 = vmul.f32 %v1442, %v1442
  %v1821 = vmul.f32 %v1443, %v1443
  %v1822 = vmul.f32 %v1444, %v1444
  %v1823 = vmul.f32 %v1445, %v1445
  %v1824 = vmul.f32 %v1446, %v1446
  %v1825 = vmul.f32 %v1447, %v1447
  %v1826 = vmul.f32 %v1448, %v1448
  %v1827 = vmul.f32 %v1449, %v1449
  %v1828 = vmul.f32 %v1450, %v1450
  %v1829 = vmul.f32 %v1451, %v1451
  %v1830 = vmul.f32 %v1452, %v1452
  %v1831 = vmul.f32 %v1453, %v1453
  %v1832 = vmul.f32 %v1454, %v1454
  %v1833 = vmul.f32 %v1455, %v1455
  %v1834 = vmul.f32 %v1456, %v1456
  %v1835 = vmul.f32 %v1457, %v1457
  %v1836 = vmul.f32 %v1458, %v1458
  %v1837 = vmul.f32 %v1459, %v1459
  %v1838 = vmul.f32 %v1460, %v1460
  %v1839 = vmul.f32 %v1461, %v1461
  %v1840 = vmul.f32 %v1462, %v1462
  %v1841 = vmul.f32 %v1463, %v1463
  %v1842 = vmul.f32 %v1464, %v1464
  %v1843 = vmul.f32 %v1465, %v1465
  %v1844 = vmul.f32 %v1466, %v1466
  %v1845 = vmul.f32 %v1467, %v1467
  %v1846 = vmul.f32 %v1468, %v1468
  %v1847 = vmul.f32 %v1469, %v1469
  %v1848 = vmul.f32 %v1470, %v1470
  %v1849 = vmul.f32 %v1471, %v1471
  %v1850 = vmul.f32 %v1472, %v1472
  %v1851 = vmul.f32 %v1473, %v1473
  %v1852 = vmul.f32 %v1474, %v1474
  %v1853 = vmul.f32 %v1475, %v1475
  %v1854 = vmul.f32 %v1476, %v1476
  %v1855 = vmul.f32 %v1477, %v1477
  %v1856 = vmul.f32 %v1478, %v1478
  %v1857 = vmul.f32 %v1479, %v1479
  %v1858 = vmul.f32 %v1480, %v1480
  %v1859 = vmul.f32 %v1481, %v1481
  %v1860 = vmul.f32 %v1482, %v1482
  %v1861 = vmul.f32 %v1483, %v1483
  %v1862 = vmul.f32 %v1484, %v1484
  %v1863 = vmul.f32 %v1485, %v1485
  %v1864 = vmul.f32 %v1486, %v1486
  %v1865 = vmul.f32 %v1487, %v1487
  %v1866 = vmul.f32 %v1488, %v1488
  %v1867 = vmul.f32 %v1489, %v1489
  %v1868 = vmul.f32 %v1490, %v1490
  %v1869 = vsel %vm734, %v1806, 0.0
  %1870 = vadd.xlane.f32.xlu0 %v1869
  %v1871 = vpop.xlane.xlu0 %1870
  %v1872 = vsel %vm734, %v1807, 0.0
  %1873 = vadd.xlane.f32.xlu0 %v1872
  %v1874 = vpop.xlane.xlu0 %1873
  %v1875 = vsel %vm734, %v1808, 0.0
  %1876 = vadd.xlane.f32.xlu0 %v1875
  %v1877 = vpop.xlane.xlu0 %1876
  %v1878 = vsel %vm734, %v1809, 0.0
  %1879 = vadd.xlane.f32.xlu0 %v1878
  %v1880 = vpop.xlane.xlu0 %1879
  %v1881 = vsel %vm734, %v1810, 0.0
  %1882 = vadd.xlane.f32.xlu0 %v1881
  %v1883 = vpop.xlane.xlu0 %1882
  %v1884 = vsel %vm734, %v1811, 0.0
  %1885 = vadd.xlane.f32.xlu0 %v1884
  %v1886 = vpop.xlane.xlu0 %1885
  %v1887 = vsel %vm734, %v1812, 0.0
  %1888 = vadd.xlane.f32.xlu0 %v1887
  %v1889 = vpop.xlane.xlu0 %1888
  %v1890 = vsel %vm734, %v1813, 0.0
  %1891 = vadd.xlane.f32.xlu0 %v1890
  %v1892 = vpop.xlane.xlu0 %1891
  %v1893 = vsel %vm734, %v1814, 0.0
  %1894 = vadd.xlane.f32.xlu0 %v1893
  %v1895 = vpop.xlane.xlu0 %1894
  %v1896 = vsel %vm734, %v1815, 0.0
  %1897 = vadd.xlane.f32.xlu0 %v1896
  %v1898 = vpop.xlane.xlu0 %1897
  %v1899 = vsel %vm734, %v1816, 0.0
  %1900 = vadd.xlane.f32.xlu0 %v1899
  %v1901 = vpop.xlane.xlu0 %1900
  %v1902 = vsel %vm734, %v1817, 0.0
  %1903 = vadd.xlane.f32.xlu0 %v1902
  %v1904 = vpop.xlane.xlu0 %1903
  %v1905 = vsel %vm734, %v1818, 0.0
  %1906 = vadd.xlane.f32.xlu0 %v1905
  %v1907 = vpop.xlane.xlu0 %1906
  %v1908 = vsel %vm734, %v1819, 0.0
  %1909 = vadd.xlane.f32.xlu0 %v1908
  %v1910 = vpop.xlane.xlu0 %1909
  %v1911 = vsel %vm734, %v1820, 0.0
  %1912 = vadd.xlane.f32.xlu0 %v1911
  %v1913 = vpop.xlane.xlu0 %1912
  %v1914 = vsel %vm734, %v1821, 0.0
  %1915 = vadd.xlane.f32.xlu0 %v1914
  %v1916 = vpop.xlane.xlu0 %1915
  %v1917 = vsel %vm734, %v1822, 0.0
  %1918 = vadd.xlane.f32.xlu0 %v1917
  %v1919 = vpop.xlane.xlu0 %1918
  %v1920 = vsel %vm734, %v1823, 0.0
  %1921 = vadd.xlane.f32.xlu0 %v1920
  %v1922 = vpop.xlane.xlu0 %1921
  %v1923 = vsel %vm734, %v1824, 0.0
  %1924 = vadd.xlane.f32.xlu0 %v1923
  %v1925 = vpop.xlane.xlu0 %1924
  %v1926 = vsel %vm734, %v1825, 0.0
  %1927 = vadd.xlane.f32.xlu0 %v1926
  %v1928 = vpop.xlane.xlu0 %1927
  %v1929 = vsel %vm734, %v1826, 0.0
  %1930 = vadd.xlane.f32.xlu0 %v1929
  %v1931 = vpop.xlane.xlu0 %1930
  %v1932 = vsel %vm734, %v1827, 0.0
  %1933 = vadd.xlane.f32.xlu0 %v1932
  %v1934 = vpop.xlane.xlu0 %1933
  %v1935 = vsel %vm734, %v1828, 0.0
  %1936 = vadd.xlane.f32.xlu0 %v1935
  %v1937 = vpop.xlane.xlu0 %1936
  %v1938 = vsel %vm734, %v1829, 0.0
  %1939 = vadd.xlane.f32.xlu0 %v1938
  %v1940 = vpop.xlane.xlu0 %1939
  %v1941 = vsel %vm734, %v1830, 0.0
  %1942 = vadd.xlane.f32.xlu0 %v1941
  %v1943 = vpop.xlane.xlu0 %1942
  %v1944 = vsel %vm734, %v1831, 0.0
  %1945 = vadd.xlane.f32.xlu0 %v1944
  %v1946 = vpop.xlane.xlu0 %1945
  %v1947 = vsel %vm734, %v1832, 0.0
  %1948 = vadd.xlane.f32.xlu0 %v1947
  %v1949 = vpop.xlane.xlu0 %1948
  %v1950 = vsel %vm734, %v1833, 0.0
  %1951 = vadd.xlane.f32.xlu0 %v1950
  %v1952 = vpop.xlane.xlu0 %1951
  %v1953 = vsel %vm734, %v1834, 0.0
  %1954 = vadd.xlane.f32.xlu0 %v1953
  %v1955 = vpop.xlane.xlu0 %1954
  %v1956 = vsel %vm734, %v1835, 0.0
  %1957 = vadd.xlane.f32.xlu0 %v1956
  %v1958 = vpop.xlane.xlu0 %1957
  %v1959 = vsel %vm734, %v1836, 0.0
  %1960 = vadd.xlane.f32.xlu0 %v1959
  %v1961 = vpop.xlane.xlu0 %1960
  %v1962 = vsel %vm734, %v1837, 0.0
  %1963 = vadd.xlane.f32.xlu0 %v1962
  %v1964 = vpop.xlane.xlu0 %1963
  %v1965 = vsel %vm734, %v1838, 0.0
  %1966 = vadd.xlane.f32.xlu0 %v1965
  %v1967 = vpop.xlane.xlu0 %1966
  %v1968 = vsel %vm734, %v1839, 0.0
  %1969 = vadd.xlane.f32.xlu0 %v1968
  %v1970 = vpop.xlane.xlu0 %1969
  %v1971 = vsel %vm734, %v1840, 0.0
  %1972 = vadd.xlane.f32.xlu0 %v1971
  %v1973 = vpop.xlane.xlu0 %1972
  %v1974 = vsel %vm734, %v1841, 0.0
  %1975 = vadd.xlane.f32.xlu0 %v1974
  %v1976 = vpop.xlane.xlu0 %1975
  %v1977 = vsel %vm734, %v1842, 0.0
  %1978 = vadd.xlane.f32.xlu0 %v1977
  %v1979 = vpop.xlane.xlu0 %1978
  %v1980 = vsel %vm734, %v1843, 0.0
  %1981 = vadd.xlane.f32.xlu0 %v1980
  %v1982 = vpop.xlane.xlu0 %1981
  %v1983 = vsel %vm734, %v1844, 0.0
  %1984 = vadd.xlane.f32.xlu0 %v1983
  %v1985 = vpop.xlane.xlu0 %1984
  %v1986 = vsel %vm734, %v1845, 0.0
  %1987 = vadd.xlane.f32.xlu0 %v1986
  %v1988 = vpop.xlane.xlu0 %1987
  %v1989 = vsel %vm734, %v1846, 0.0
  %1990 = vadd.xlane.f32.xlu0 %v1989
  %v1991 = vpop.xlane.xlu0 %1990
  %v1992 = vsel %vm734, %v1847, 0.0
  %1993 = vadd.xlane.f32.xlu0 %v1992
  %v1994 = vpop.xlane.xlu0 %1993
  %v1995 = vsel %vm734, %v1848, 0.0
  %1996 = vadd.xlane.f32.xlu0 %v1995
  %v1997 = vpop.xlane.xlu0 %1996
  %v1998 = vsel %vm734, %v1849, 0.0
  %1999 = vadd.xlane.f32.xlu0 %v1998
  %v2000 = vpop.xlane.xlu0 %1999
  %v2001 = vsel %vm734, %v1850, 0.0
  %2002 = vadd.xlane.f32.xlu0 %v2001
  %v2003 = vpop.xlane.xlu0 %2002
  %v2004 = vsel %vm734, %v1851, 0.0
  %2005 = vadd.xlane.f32.xlu0 %v2004
  %v2006 = vpop.xlane.xlu0 %2005
  %v2007 = vsel %vm734, %v1852, 0.0
  %2008 = vadd.xlane.f32.xlu0 %v2007
  %v2009 = vpop.xlane.xlu0 %2008
  %v2010 = vsel %vm734, %v1853, 0.0
  %2011 = vadd.xlane.f32.xlu0 %v2010
  %v2012 = vpop.xlane.xlu0 %2011
  %v2013 = vsel %vm734, %v1854, 0.0
  %2014 = vadd.xlane.f32.xlu0 %v2013
  %v2015 = vpop.xlane.xlu0 %2014
  %v2016 = vsel %vm734, %v1855, 0.0
  %2017 = vadd.xlane.f32.xlu0 %v2016
  %v2018 = vpop.xlane.xlu0 %2017
  %v2019 = vsel %vm734, %v1856, 0.0
  %2020 = vadd.xlane.f32.xlu0 %v2019
  %v2021 = vpop.xlane.xlu0 %2020
  %v2022 = vsel %vm734, %v1857, 0.0
  %2023 = vadd.xlane.f32.xlu0 %v2022
  %v2024 = vpop.xlane.xlu0 %2023
  %v2025 = vsel %vm734, %v1858, 0.0
  %2026 = vadd.xlane.f32.xlu0 %v2025
  %v2027 = vpop.xlane.xlu0 %2026
  %v2028 = vsel %vm734, %v1859, 0.0
  %2029 = vadd.xlane.f32.xlu0 %v2028
  %v2030 = vpop.xlane.xlu0 %2029
  %v2031 = vsel %vm734, %v1860, 0.0
  %2032 = vadd.xlane.f32.xlu0 %v2031
  %v2033 = vpop.xlane.xlu0 %2032
  %v2034 = vsel %vm734, %v1861, 0.0
  %2035 = vadd.xlane.f32.xlu0 %v2034
  %v2036 = vpop.xlane.xlu0 %2035
  %v2037 = vsel %vm734, %v1862, 0.0
  %2038 = vadd.xlane.f32.xlu0 %v2037
  %v2039 = vpop.xlane.xlu0 %2038
  %v2040 = vsel %vm734, %v1863, 0.0
  %2041 = vadd.xlane.f32.xlu0 %v2040
  %v2042 = vpop.xlane.xlu0 %2041
  %v2043 = vsel %vm734, %v1864, 0.0
  %2044 = vadd.xlane.f32.xlu0 %v2043
  %v2045 = vpop.xlane.xlu0 %2044
  %v2046 = vsel %vm734, %v1865, 0.0
  %2047 = vadd.xlane.f32.xlu0 %v2046
  %v2048 = vpop.xlane.xlu0 %2047
  %v2049 = vsel %vm734, %v1866, 0.0
  %2050 = vadd.xlane.f32.xlu0 %v2049
  %v2051 = vpop.xlane.xlu0 %2050
  %v2052 = vsel %vm734, %v1867, 0.0
  %2053 = vadd.xlane.f32.xlu0 %v2052
  %v2054 = vpop.xlane.xlu0 %2053
  %v2055 = vsel %vm734, %v1868, 0.0
  %2056 = vadd.xlane.f32.xlu0 %v2055
  %v2057 = vpop.xlane.xlu0 %2056
  %v2058 = vmul.f32 %v1871, 0.03125
  %v2059 = vmul.f32 %v1874, 0.03125
  %v2060 = vmul.f32 %v1877, 0.03125
  %v2061 = vmul.f32 %v1880, 0.03125
  %v2062 = vmul.f32 %v1883, 0.03125
  %v2063 = vmul.f32 %v1886, 0.03125
  %v2064 = vmul.f32 %v1889, 0.03125
  %v2065 = vmul.f32 %v1892, 0.03125
  %v2066 = vmul.f32 %v1895, 0.03125
  %v2067 = vmul.f32 %v1898, 0.03125
  %v2068 = vmul.f32 %v1901, 0.03125
  %v2069 = vmul.f32 %v1904, 0.03125
  %v2070 = vmul.f32 %v1907, 0.03125
  %v2071 = vmul.f32 %v1910, 0.03125
  %v2072 = vmul.f32 %v1913, 0.03125
  %v2073 = vmul.f32 %v1916, 0.03125
  %v2074 = vmul.f32 %v1919, 0.03125
  %v2075 = vmul.f32 %v1922, 0.03125
  %v2076 = vmul.f32 %v1925, 0.03125
  %v2077 = vmul.f32 %v1928, 0.03125
  %v2078 = vmul.f32 %v1931, 0.03125
  %v2079 = vmul.f32 %v1934, 0.03125
  %v2080 = vmul.f32 %v1937, 0.03125
  %v2081 = vmul.f32 %v1940, 0.03125
  %v2082 = vmul.f32 %v1943, 0.03125
  %v2083 = vmul.f32 %v1946, 0.03125
  %v2084 = vmul.f32 %v1949, 0.03125
  %v2085 = vmul.f32 %v1952, 0.03125
  %v2086 = vmul.f32 %v1955, 0.03125
  %v2087 = vmul.f32 %v1958, 0.03125
  %v2088 = vmul.f32 %v1961, 0.03125
  %v2089 = vmul.f32 %v1964, 0.03125
  %v2090 = vmul.f32 %v1967, 0.03125
  %v2091 = vmul.f32 %v1970, 0.03125
  %v2092 = vmul.f32 %v1973, 0.03125
  %v2093 = vmul.f32 %v1976, 0.03125
  %v2094 = vmul.f32 %v1979, 0.03125
  %v2095 = vmul.f32 %v1982, 0.03125
  %v2096 = vmul.f32 %v1985, 0.03125
  %v2097 = vmul.f32 %v1988, 0.03125
  %v2098 = vmul.f32 %v1991, 0.03125
  %v2099 = vmul.f32 %v1994, 0.03125
  %v2100 = vmul.f32 %v1997, 0.03125
  %v2101 = vmul.f32 %v2000, 0.03125
  %v2102 = vmul.f32 %v2003, 0.03125
  %v2103 = vmul.f32 %v2006, 0.03125
  %v2104 = vmul.f32 %v2009, 0.03125
  %v2105 = vmul.f32 %v2012, 0.03125
  %v2106 = vmul.f32 %v2015, 0.03125
  %v2107 = vmul.f32 %v2018, 0.03125
  %v2108 = vmul.f32 %v2021, 0.03125
  %v2109 = vmul.f32 %v2024, 0.03125
  %v2110 = vmul.f32 %v2027, 0.03125
  %v2111 = vmul.f32 %v2030, 0.03125
  %v2112 = vmul.f32 %v2033, 0.03125
  %v2113 = vmul.f32 %v2036, 0.03125
  %v2114 = vmul.f32 %v2039, 0.03125
  %v2115 = vmul.f32 %v2042, 0.03125
  %v2116 = vmul.f32 %v2045, 0.03125
  %v2117 = vmul.f32 %v2048, 0.03125
  %v2118 = vmul.f32 %v2051, 0.03125
  %v2119 = vmul.f32 %v2054, 0.03125
  %v2120 = vmul.f32 %v2057, 0.03125
  %v2121 = vsel %vm607, %v1743, %v2058
  %v2122 = vsel %vm607, %v1744, %v2059
  %v2123 = vsel %vm607, %v1745, %v2060
  %v2124 = vsel %vm607, %v1746, %v2061
  %v2125 = vsel %vm607, %v1747, %v2062
  %v2126 = vsel %vm607, %v1748, %v2063
  %v2127 = vsel %vm607, %v1749, %v2064
  %v2128 = vsel %vm607, %v1750, %v2065
  %v2129 = vsel %vm607, %v1751, %v2066
  %v2130 = vsel %vm607, %v1752, %v2067
  %v2131 = vsel %vm607, %v1753, %v2068
  %v2132 = vsel %vm607, %v1754, %v2069
  %v2133 = vsel %vm607, %v1755, %v2070
  %v2134 = vsel %vm607, %v1756, %v2071
  %v2135 = vsel %vm607, %v1757, %v2072
  %v2136 = vsel %vm607, %v1758, %v2073
  %v2137 = vsel %vm607, %v1759, %v2074
  %v2138 = vsel %vm607, %v1760, %v2075
  %v2139 = vsel %vm607, %v1761, %v2076
  %v2140 = vsel %vm607, %v1762, %v2077
  %v2141 = vsel %vm607, %v1763, %v2078
  %v2142 = vsel %vm607, %v1764, %v2079
  %v2143 = vsel %vm607, %v1765, %v2080
  %v2144 = vsel %vm607, %v1766, %v2081
  %v2145 = vsel %vm607, %v1767, %v2082
  %v2146 = vsel %vm607, %v1768, %v2083
  %v2147 = vsel %vm607, %v1769, %v2084
  %v2148 = vsel %vm607, %v1770, %v2085
  %v2149 = vsel %vm607, %v1771, %v2086
  %v2150 = vsel %vm607, %v1772, %v2087
  %v2151 = vsel %vm607, %v1773, %v2088
  %v2152 = vsel %vm607, %v1774, %v2089
  %v2153 = vsel %vm607, %v1775, %v2090
  %v2154 = vsel %vm607, %v1776, %v2091
  %v2155 = vsel %vm607, %v1777, %v2092
  %v2156 = vsel %vm607, %v1778, %v2093
  %v2157 = vsel %vm607, %v1779, %v2094
  %v2158 = vsel %vm607, %v1780, %v2095
  %v2159 = vsel %vm607, %v1781, %v2096
  %v2160 = vsel %vm607, %v1782, %v2097
  %v2161 = vsel %vm607, %v1783, %v2098
  %v2162 = vsel %vm607, %v1784, %v2099
  %v2163 = vsel %vm607, %v1785, %v2100
  %v2164 = vsel %vm607, %v1786, %v2101
  %v2165 = vsel %vm607, %v1787, %v2102
  %v2166 = vsel %vm607, %v1788, %v2103
  %v2167 = vsel %vm607, %v1789, %v2104
  %v2168 = vsel %vm607, %v1790, %v2105
  %v2169 = vsel %vm607, %v1791, %v2106
  %v2170 = vsel %vm607, %v1792, %v2107
  %v2171 = vsel %vm607, %v1793, %v2108
  %v2172 = vsel %vm607, %v1794, %v2109
  %v2173 = vsel %vm607, %v1795, %v2110
  %v2174 = vsel %vm607, %v1796, %v2111
  %v2175 = vsel %vm607, %v1797, %v2112
  %v2176 = vsel %vm607, %v1798, %v2113
  %v2177 = vsel %vm607, %v1799, %v2114
  %v2178 = vsel %vm607, %v1800, %v2115
  %v2179 = vsel %vm607, %v1801, %v2116
  %v2180 = vsel %vm607, %v1802, %v2117
  %v2181 = vsel %vm607, %v1803, %v2118
  %v2182 = vsel %vm607, %v1804, %v2119
  %v2183 = vsel %vm607, %v1805, %v2120
  %v2184 = vadd.f32 %v2121, 1e-05
  %v2185 = vadd.f32 %v2122, 1e-05
  %v2186 = vadd.f32 %v2123, 1e-05
  %v2187 = vadd.f32 %v2124, 1e-05
  %v2188 = vadd.f32 %v2125, 1e-05
  %v2189 = vadd.f32 %v2126, 1e-05
  %v2190 = vadd.f32 %v2127, 1e-05
  %v2191 = vadd.f32 %v2128, 1e-05
  %v2192 = vadd.f32 %v2129, 1e-05
  %v2193 = vadd.f32 %v2130, 1e-05
  %v2194 = vadd.f32 %v2131, 1e-05
  %v2195 = vadd.f32 %v2132, 1e-05
  %v2196 = vadd.f32 %v2133, 1e-05
  %v2197 = vadd.f32 %v2134, 1e-05
  %v2198 = vadd.f32 %v2135, 1e-05
  %v2199 = vadd.f32 %v2136, 1e-05
  %v2200 = vadd.f32 %v2137, 1e-05
  %v2201 = vadd.f32 %v2138, 1e-05
  %v2202 = vadd.f32 %v2139, 1e-05
  %v2203 = vadd.f32 %v2140, 1e-05
  %v2204 = vadd.f32 %v2141, 1e-05
  %v2205 = vadd.f32 %v2142, 1e-05
  %v2206 = vadd.f32 %v2143, 1e-05
  %v2207 = vadd.f32 %v2144, 1e-05
  %v2208 = vadd.f32 %v2145, 1e-05
  %v2209 = vadd.f32 %v2146, 1e-05
  %v2210 = vadd.f32 %v2147, 1e-05
  %v2211 = vadd.f32 %v2148, 1e-05
  %v2212 = vadd.f32 %v2149, 1e-05
  %v2213 = vadd.f32 %v2150, 1e-05
  %v2214 = vadd.f32 %v2151, 1e-05
  %v2215 = vadd.f32 %v2152, 1e-05
  %v2216 = vadd.f32 %v2153, 1e-05
  %v2217 = vadd.f32 %v2154, 1e-05
  %v2218 = vadd.f32 %v2155, 1e-05
  %v2219 = vadd.f32 %v2156, 1e-05
  %v2220 = vadd.f32 %v2157, 1e-05
  %v2221 = vadd.f32 %v2158, 1e-05
  %v2222 = vadd.f32 %v2159, 1e-05
  %v2223 = vadd.f32 %v2160, 1e-05
  %v2224 = vadd.f32 %v2161, 1e-05
  %v2225 = vadd.f32 %v2162, 1e-05
  %v2226 = vadd.f32 %v2163, 1e-05
  %v2227 = vadd.f32 %v2164, 1e-05
  %v2228 = vadd.f32 %v2165, 1e-05
  %v2229 = vadd.f32 %v2166, 1e-05
  %v2230 = vadd.f32 %v2167, 1e-05
  %v2231 = vadd.f32 %v2168, 1e-05
  %v2232 = vadd.f32 %v2169, 1e-05
  %v2233 = vadd.f32 %v2170, 1e-05
  %v2234 = vadd.f32 %v2171, 1e-05
  %v2235 = vadd.f32 %v2172, 1e-05
  %v2236 = vadd.f32 %v2173, 1e-05
  %v2237 = vadd.f32 %v2174, 1e-05
  %v2238 = vadd.f32 %v2175, 1e-05
  %v2239 = vadd.f32 %v2176, 1e-05
  %v2240 = vadd.f32 %v2177, 1e-05
  %v2241 = vadd.f32 %v2178, 1e-05
  %v2242 = vadd.f32 %v2179, 1e-05
  %v2243 = vadd.f32 %v2180, 1e-05
  %v2244 = vadd.f32 %v2181, 1e-05
  %v2245 = vadd.f32 %v2182, 1e-05
  %v2246 = vadd.f32 %v2183, 1e-05
  %v2247 = vrsqrt.pop %v2184
  %v2248 = vrsqrt.pop %v2185
  %v2249 = vrsqrt.pop %v2186
  %v2250 = vrsqrt.pop %v2187
  %v2251 = vrsqrt.pop %v2188
  %v2252 = vrsqrt.pop %v2189
  %v2253 = vrsqrt.pop %v2190
  %v2254 = vrsqrt.pop %v2191
  %v2255 = vrsqrt.pop %v2192
  %v2256 = vrsqrt.pop %v2193
  %v2257 = vrsqrt.pop %v2194
  %v2258 = vrsqrt.pop %v2195
  %v2259 = vrsqrt.pop %v2196
  %v2260 = vrsqrt.pop %v2197
  %v2261 = vrsqrt.pop %v2198
  %v2262 = vrsqrt.pop %v2199
  %v2263 = vrsqrt.pop %v2200
  %v2264 = vrsqrt.pop %v2201
  %v2265 = vrsqrt.pop %v2202
  %v2266 = vrsqrt.pop %v2203
  %v2267 = vrsqrt.pop %v2204
  %v2268 = vrsqrt.pop %v2205
  %v2269 = vrsqrt.pop %v2206
  %v2270 = vrsqrt.pop %v2207
  %v2271 = vrsqrt.pop %v2208
  %v2272 = vrsqrt.pop %v2209
  %v2273 = vrsqrt.pop %v2210
  %v2274 = vrsqrt.pop %v2211
  %v2275 = vrsqrt.pop %v2212
  %v2276 = vrsqrt.pop %v2213
  %v2277 = vrsqrt.pop %v2214
  %v2278 = vrsqrt.pop %v2215
  %v2279 = vrsqrt.pop %v2216
  %v2280 = vrsqrt.pop %v2217
  %v2281 = vrsqrt.pop %v2218
  %v2282 = vrsqrt.pop %v2219
  %v2283 = vrsqrt.pop %v2220
  %v2284 = vrsqrt.pop %v2221
  %v2285 = vrsqrt.pop %v2222
  %v2286 = vrsqrt.pop %v2223
  %v2287 = vrsqrt.pop %v2224
  %v2288 = vrsqrt.pop %v2225
  %v2289 = vrsqrt.pop %v2226
  %v2290 = vrsqrt.pop %v2227
  %v2291 = vrsqrt.pop %v2228
  %v2292 = vrsqrt.pop %v2229
  %v2293 = vrsqrt.pop %v2230
  %v2294 = vrsqrt.pop %v2231
  %v2295 = vrsqrt.pop %v2232
  %v2296 = vrsqrt.pop %v2233
  %v2297 = vrsqrt.pop %v2234
  %v2298 = vrsqrt.pop %v2235
  %v2299 = vrsqrt.pop %v2236
  %v2300 = vrsqrt.pop %v2237
  %v2301 = vrsqrt.pop %v2238
  %v2302 = vrsqrt.pop %v2239
  %v2303 = vrsqrt.pop %v2240
  %v2304 = vrsqrt.pop %v2241
  %v2305 = vrsqrt.pop %v2242
  %v2306 = vrsqrt.pop %v2243
  %v2307 = vrsqrt.pop %v2244
  %v2308 = vrsqrt.pop %v2245
  %v2309 = vrsqrt.pop %v2246
  %v2310 = vmul.f32 %v1302, %v2247
  %v2311 = vmul.f32 %v1303, %v2248
  %v2312 = vmul.f32 %v1304, %v2249
  %v2313 = vmul.f32 %v1305, %v2250
  %v2314 = vmul.f32 %v1306, %v2251
  %v2315 = vmul.f32 %v1307, %v2252
  %v2316 = vmul.f32 %v1308, %v2253
  %v2317 = vmul.f32 %v1309, %v2254
  %v2318 = vmul.f32 %v1310, %v2255
  %v2319 = vmul.f32 %v1311, %v2256
  %v2320 = vmul.f32 %v1312, %v2257
  %v2321 = vmul.f32 %v1313, %v2258
  %v2322 = vmul.f32 %v1314, %v2259
  %v2323 = vmul.f32 %v1315, %v2260
  %v2324 = vmul.f32 %v1316, %v2261
  %v2325 = vmul.f32 %v1317, %v2262
  %v2326 = vmul.f32 %v1318, %v2263
  %v2327 = vmul.f32 %v1319, %v2264
  %v2328 = vmul.f32 %v1320, %v2265
  %v2329 = vmul.f32 %v1321, %v2266
  %v2330 = vmul.f32 %v1322, %v2267
  %v2331 = vmul.f32 %v1323, %v2268
  %v2332 = vmul.f32 %v1324, %v2269
  %v2333 = vmul.f32 %v1325, %v2270
  %v2334 = vmul.f32 %v1326, %v2271
  %v2335 = vmul.f32 %v1327, %v2272
  %v2336 = vmul.f32 %v1328, %v2273
  %v2337 = vmul.f32 %v1329, %v2274
  %v2338 = vmul.f32 %v1330, %v2275
  %v2339 = vmul.f32 %v1331, %v2276
  %v2340 = vmul.f32 %v1332, %v2277
  %v2341 = vmul.f32 %v1333, %v2278
  %v2342 = vmul.f32 %v1334, %v2279
  %v2343 = vmul.f32 %v1335, %v2280
  %v2344 = vmul.f32 %v1336, %v2281
  %v2345 = vmul.f32 %v1337, %v2282
  %v2346 = vmul.f32 %v1338, %v2283
  %v2347 = vmul.f32 %v1339, %v2284
  %v2348 = vmul.f32 %v1340, %v2285
  %v2349 = vmul.f32 %v1341, %v2286
  %v2350 = vmul.f32 %v1342, %v2287
  %v2351 = vmul.f32 %v1343, %v2288
  %v2352 = vmul.f32 %v1344, %v2289
  %v2353 = vmul.f32 %v1345, %v2290
  %v2354 = vmul.f32 %v1346, %v2291
  %v2355 = vmul.f32 %v1347, %v2292
  %v2356 = vmul.f32 %v1348, %v2293
  %v2357 = vmul.f32 %v1349, %v2294
  %v2358 = vmul.f32 %v1350, %v2295
  %v2359 = vmul.f32 %v1351, %v2296
  %v2360 = vmul.f32 %v1352, %v2297
  %v2361 = vmul.f32 %v1353, %v2298
  %v2362 = vmul.f32 %v1354, %v2299
  %v2363 = vmul.f32 %v1355, %v2300
  %v2364 = vmul.f32 %v1356, %v2301
  %v2365 = vmul.f32 %v1357, %v2302
  %v2366 = vmul.f32 %v1358, %v2303
  %v2367 = vmul.f32 %v1359, %v2304
  %v2368 = vmul.f32 %v1360, %v2305
  %v2369 = vmul.f32 %v1361, %v2306
  %v2370 = vmul.f32 %v1362, %v2307
  %v2371 = vmul.f32 %v1363, %v2308
  %v2372 = vmul.f32 %v1364, %v2309
  %v2373 = vlaneseq
  %v2374 = vshrl.u32 %v2373, 7
  %v2375 = vsub.s32 0, %v2374
  %v2376 = vrot.slane %v38, %v2375
  %v2377 = vmul.f32 %v2310, %v2376
  %v2378 = vmul.f32 %v2311, %v2376
  %v2379 = vmul.f32 %v2312, %v2376
  %v2380 = vmul.f32 %v2313, %v2376
  %v2381 = vmul.f32 %v2314, %v2376
  %v2382 = vmul.f32 %v2315, %v2376
  %v2383 = vmul.f32 %v2316, %v2376
  %v2384 = vmul.f32 %v2317, %v2376
  %v2385 = vmul.f32 %v2318, %v2376
  %v2386 = vmul.f32 %v2319, %v2376
  %v2387 = vmul.f32 %v2320, %v2376
  %v2388 = vmul.f32 %v2321, %v2376
  %v2389 = vmul.f32 %v2322, %v2376
  %v2390 = vmul.f32 %v2323, %v2376
  %v2391 = vmul.f32 %v2324, %v2376
  %v2392 = vmul.f32 %v2325, %v2376
  %v2393 = vmul.f32 %v2326, %v2376
  %v2394 = vmul.f32 %v2327, %v2376
  %v2395 = vmul.f32 %v2328, %v2376
  %v2396 = vmul.f32 %v2329, %v2376
  %v2397 = vmul.f32 %v2330, %v2376
  %v2398 = vmul.f32 %v2331, %v2376
  %v2399 = vmul.f32 %v2332, %v2376
  %v2400 = vmul.f32 %v2333, %v2376
  %v2401 = vmul.f32 %v2334, %v2376
  %v2402 = vmul.f32 %v2335, %v2376
  %v2403 = vmul.f32 %v2336, %v2376
  %v2404 = vmul.f32 %v2337, %v2376
  %v2405 = vmul.f32 %v2338, %v2376
  %v2406 = vmul.f32 %v2339, %v2376
  %v2407 = vmul.f32 %v2340, %v2376
  %v2408 = vmul.f32 %v2341, %v2376
  %v2409 = vmul.f32 %v2342, %v2376
  %v2410 = vmul.f32 %v2343, %v2376
  %v2411 = vmul.f32 %v2344, %v2376
  %v2412 = vmul.f32 %v2345, %v2376
  %v2413 = vmul.f32 %v2346, %v2376
  %v2414 = vmul.f32 %v2347, %v2376
  %v2415 = vmul.f32 %v2348, %v2376
  %v2416 = vmul.f32 %v2349, %v2376
  %v2417 = vmul.f32 %v2350, %v2376
  %v2418 = vmul.f32 %v2351, %v2376
  %v2419 = vmul.f32 %v2352, %v2376
  %v2420 = vmul.f32 %v2353, %v2376
  %v2421 = vmul.f32 %v2354, %v2376
  %v2422 = vmul.f32 %v2355, %v2376
  %v2423 = vmul.f32 %v2356, %v2376
  %v2424 = vmul.f32 %v2357, %v2376
  %v2425 = vmul.f32 %v2358, %v2376
  %v2426 = vmul.f32 %v2359, %v2376
  %v2427 = vmul.f32 %v2360, %v2376
  %v2428 = vmul.f32 %v2361, %v2376
  %v2429 = vmul.f32 %v2362, %v2376
  %v2430 = vmul.f32 %v2363, %v2376
  %v2431 = vmul.f32 %v2364, %v2376
  %v2432 = vmul.f32 %v2365, %v2376
  %v2433 = vmul.f32 %v2366, %v2376
  %v2434 = vmul.f32 %v2367, %v2376
  %v2435 = vmul.f32 %v2368, %v2376
  %v2436 = vmul.f32 %v2369, %v2376
  %v2437 = vmul.f32 %v2370, %v2376
  %v2438 = vmul.f32 %v2371, %v2376
  %v2439 = vmul.f32 %v2372, %v2376
  %v2440 = vlaneseq
  %v2441 = vshrl.u32 %v2440, 7
  %v2442 = vsub.s32 0, %v2441
  %v2443 = vrot.slane %v39, %v2442
  %v2444 = vadd.f32 %v2377, %v2443
  %v2445 = vadd.f32 %v2378, %v2443
  %v2446 = vadd.f32 %v2379, %v2443
  %v2447 = vadd.f32 %v2380, %v2443
  %v2448 = vadd.f32 %v2381, %v2443
  %v2449 = vadd.f32 %v2382, %v2443
  %v2450 = vadd.f32 %v2383, %v2443
  %v2451 = vadd.f32 %v2384, %v2443
  %v2452 = vadd.f32 %v2385, %v2443
  %v2453 = vadd.f32 %v2386, %v2443
  %v2454 = vadd.f32 %v2387, %v2443
  %v2455 = vadd.f32 %v2388, %v2443
  %v2456 = vadd.f32 %v2389, %v2443
  %v2457 = vadd.f32 %v2390, %v2443
  %v2458 = vadd.f32 %v2391, %v2443
  %v2459 = vadd.f32 %v2392, %v2443
  %v2460 = vadd.f32 %v2393, %v2443
  %v2461 = vadd.f32 %v2394, %v2443
  %v2462 = vadd.f32 %v2395, %v2443
  %v2463 = vadd.f32 %v2396, %v2443
  %v2464 = vadd.f32 %v2397, %v2443
  %v2465 = vadd.f32 %v2398, %v2443
  %v2466 = vadd.f32 %v2399, %v2443
  %v2467 = vadd.f32 %v2400, %v2443
  %v2468 = vadd.f32 %v2401, %v2443
  %v2469 = vadd.f32 %v2402, %v2443
  %v2470 = vadd.f32 %v2403, %v2443
  %v2471 = vadd.f32 %v2404, %v2443
  %v2472 = vadd.f32 %v2405, %v2443
  %v2473 = vadd.f32 %v2406, %v2443
  %v2474 = vadd.f32 %v2407, %v2443
  %v2475 = vadd.f32 %v2408, %v2443
  %v2476 = vadd.f32 %v2409, %v2443
  %v2477 = vadd.f32 %v2410, %v2443
  %v2478 = vadd.f32 %v2411, %v2443
  %v2479 = vadd.f32 %v2412, %v2443
  %v2480 = vadd.f32 %v2413, %v2443
  %v2481 = vadd.f32 %v2414, %v2443
  %v2482 = vadd.f32 %v2415, %v2443
  %v2483 = vadd.f32 %v2416, %v2443
  %v2484 = vadd.f32 %v2417, %v2443
  %v2485 = vadd.f32 %v2418, %v2443
  %v2486 = vadd.f32 %v2419, %v2443
  %v2487 = vadd.f32 %v2420, %v2443
  %v2488 = vadd.f32 %v2421, %v2443
  %v2489 = vadd.f32 %v2422, %v2443
  %v2490 = vadd.f32 %v2423, %v2443
  %v2491 = vadd.f32 %v2424, %v2443
  %v2492 = vadd.f32 %v2425, %v2443
  %v2493 = vadd.f32 %v2426, %v2443
  %v2494 = vadd.f32 %v2427, %v2443
  %v2495 = vadd.f32 %v2428, %v2443
  %v2496 = vadd.f32 %v2429, %v2443
  %v2497 = vadd.f32 %v2430, %v2443
  %v2498 = vadd.f32 %v2431, %v2443
  %v2499 = vadd.f32 %v2432, %v2443
  %v2500 = vadd.f32 %v2433, %v2443
  %v2501 = vadd.f32 %v2434, %v2443
  %v2502 = vadd.f32 %v2435, %v2443
  %v2503 = vadd.f32 %v2436, %v2443
  %v2504 = vadd.f32 %v2437, %v2443
  %v2505 = vadd.f32 %v2438, %v2443
  %v2506 = vadd.f32 %v2439, %v2443
  %v2507 = vmax.f32 %v2444, 0.0
  %v2508 = vmax.f32 %v2445, 0.0
  %v2509 = vmax.f32 %v2446, 0.0
  %v2510 = vmax.f32 %v2447, 0.0
  %v2511 = vmax.f32 %v2448, 0.0
  %v2512 = vmax.f32 %v2449, 0.0
  %v2513 = vmax.f32 %v2450, 0.0
  %v2514 = vmax.f32 %v2451, 0.0
  %v2515 = vmax.f32 %v2452, 0.0
  %v2516 = vmax.f32 %v2453, 0.0
  %v2517 = vmax.f32 %v2454, 0.0
  %v2518 = vmax.f32 %v2455, 0.0
  %v2519 = vmax.f32 %v2456, 0.0
  %v2520 = vmax.f32 %v2457, 0.0
  %v2521 = vmax.f32 %v2458, 0.0
  %v2522 = vmax.f32 %v2459, 0.0
  %v2523 = vmax.f32 %v2460, 0.0
  %v2524 = vmax.f32 %v2461, 0.0
  %v2525 = vmax.f32 %v2462, 0.0
  %v2526 = vmax.f32 %v2463, 0.0
  %v2527 = vmax.f32 %v2464, 0.0
  %v2528 = vmax.f32 %v2465, 0.0
  %v2529 = vmax.f32 %v2466, 0.0
  %v2530 = vmax.f32 %v2467, 0.0
  %v2531 = vmax.f32 %v2468, 0.0
  %v2532 = vmax.f32 %v2469, 0.0
  %v2533 = vmax.f32 %v2470, 0.0
  %v2534 = vmax.f32 %v2471, 0.0
  %v2535 = vmax.f32 %v2472, 0.0
  %v2536 = vmax.f32 %v2473, 0.0
  %v2537 = vmax.f32 %v2474, 0.0
  %v2538 = vmax.f32 %v2475, 0.0
  %v2539 = vmax.f32 %v2476, 0.0
  %v2540 = vmax.f32 %v2477, 0.0
  %v2541 = vmax.f32 %v2478, 0.0
  %v2542 = vmax.f32 %v2479, 0.0
  %v2543 = vmax.f32 %v2480, 0.0
  %v2544 = vmax.f32 %v2481, 0.0
  %v2545 = vmax.f32 %v2482, 0.0
  %v2546 = vmax.f32 %v2483, 0.0
  %v2547 = vmax.f32 %v2484, 0.0
  %v2548 = vmax.f32 %v2485, 0.0
  %v2549 = vmax.f32 %v2486, 0.0
  %v2550 = vmax.f32 %v2487, 0.0
  %v2551 = vmax.f32 %v2488, 0.0
  %v2552 = vmax.f32 %v2489, 0.0
  %v2553 = vmax.f32 %v2490, 0.0
  %v2554 = vmax.f32 %v2491, 0.0
  %v2555 = vmax.f32 %v2492, 0.0
  %v2556 = vmax.f32 %v2493, 0.0
  %v2557 = vmax.f32 %v2494, 0.0
  %v2558 = vmax.f32 %v2495, 0.0
  %v2559 = vmax.f32 %v2496, 0.0
  %v2560 = vmax.f32 %v2497, 0.0
  %v2561 = vmax.f32 %v2498, 0.0
  %v2562 = vmax.f32 %v2499, 0.0
  %v2563 = vmax.f32 %v2500, 0.0
  %v2564 = vmax.f32 %v2501, 0.0
  %v2565 = vmax.f32 %v2502, 0.0
  %v2566 = vmax.f32 %v2503, 0.0
  %v2567 = vmax.f32 %v2504, 0.0
  %v2568 = vmax.f32 %v2505, 0.0
  %v2569 = vmax.f32 %v2506, 0.0
  %v2570 = vpack.c.bf16 %v2508, %v2507
  %v2571 = vpack.c.bf16 %v2510, %v2509
  %v2572 = vpack.c.bf16 %v2512, %v2511
  %v2573 = vpack.c.bf16 %v2514, %v2513
  %v2574 = vpack.c.bf16 %v2516, %v2515
  %v2575 = vpack.c.bf16 %v2518, %v2517
  %v2576 = vpack.c.bf16 %v2520, %v2519
  %v2577 = vpack.c.bf16 %v2522, %v2521
  %v2578 = vpack.c.bf16 %v2524, %v2523
  %v2579 = vpack.c.bf16 %v2526, %v2525
  %v2580 = vpack.c.bf16 %v2528, %v2527
  %v2581 = vpack.c.bf16 %v2530, %v2529
  %v2582 = vpack.c.bf16 %v2532, %v2531
  %v2583 = vpack.c.bf16 %v2534, %v2533
  %v2584 = vpack.c.bf16 %v2536, %v2535
  %v2585 = vpack.c.bf16 %v2538, %v2537
  %v2586 = vpack.c.bf16 %v2540, %v2539
  %v2587 = vpack.c.bf16 %v2542, %v2541
  %v2588 = vpack.c.bf16 %v2544, %v2543
  %v2589 = vpack.c.bf16 %v2546, %v2545
  %v2590 = vpack.c.bf16 %v2548, %v2547
  %v2591 = vpack.c.bf16 %v2550, %v2549
  %v2592 = vpack.c.bf16 %v2552, %v2551
  %v2593 = vpack.c.bf16 %v2554, %v2553
  %v2594 = vpack.c.bf16 %v2556, %v2555
  %v2595 = vpack.c.bf16 %v2558, %v2557
  %v2596 = vpack.c.bf16 %v2560, %v2559
  %v2597 = vpack.c.bf16 %v2562, %v2561
  %v2598 = vpack.c.bf16 %v2564, %v2563
  %v2599 = vpack.c.bf16 %v2566, %v2565
  %v2600 = vpack.c.bf16 %v2568, %v2567
  %v2601 = vpack.c.bf16 %v2569, %v2569
  %v2602 = vlaneseq
  %v2603 = vshrl.u32 %v2602, 7
  %v2604 = vsub.s32 0, %v2603
  %v2605 = vrot.slane %v40, %v2604
  %v2614 = vunpack.c.l.b16 %v20
  %v2615 = vunpack.c.l.b16 %v21
  %v2616 = vunpack.c.l.b16 %v22
  %v2617 = vunpack.c.l.b16 %v23
  %v2618 = vunpack.c.l.b16 %v24
  %v2619 = vunpack.c.l.b16 %v25
  %v2620 = vunpack.c.l.b16 %v26
  %v2621 = vunpack.c.l.b16 %v27
  %v2622 = vpack.c.b16 %v2615, %v2614
  %v2623 = vpack.c.b16 %v2617, %v2616
  %v2624 = vpack.c.b16 %v2619, %v2618
  %v2625 = vpack.c.b16 %v2621, %v2620
  %v2631 = vsel %vm734, %v2570, 0
  %v2634 = vsel %vm734, %v2571, 0
  %v2637 = vsel %vm734, %v2572, 0
  %v2640 = vsel %vm734, %v2573, 0
  %v2643 = vsel %vm734, %v2574, 0
  %v2646 = vsel %vm734, %v2575, 0
  %v2649 = vsel %vm734, %v2576, 0
  %v2652 = vsel %vm734, %v2577, 0
  %v2655 = vsel %vm734, %v2578, 0
  %v2658 = vsel %vm734, %v2579, 0
  %v2661 = vsel %vm734, %v2580, 0
  %v2664 = vsel %vm734, %v2581, 0
  %v2667 = vsel %vm734, %v2582, 0
  %v2670 = vsel %vm734, %v2583, 0
  %v2673 = vsel %vm734, %v2584, 0
  %v2676 = vsel %vm734, %v2585, 0
  %v2679 = vsel %vm734, %v2586, 0
  %v2682 = vsel %vm734, %v2587, 0
  %v2685 = vsel %vm734, %v2588, 0
  %v2688 = vsel %vm734, %v2589, 0
  %v2691 = vsel %vm734, %v2590, 0
  %v2694 = vsel %vm734, %v2591, 0
  %v2697 = vsel %vm734, %v2592, 0
  %v2700 = vsel %vm734, %v2593, 0
  %v2703 = vsel %vm734, %v2594, 0
  %v2706 = vsel %vm734, %v2595, 0
  %v2709 = vsel %vm734, %v2596, 0
  %v2712 = vsel %vm734, %v2597, 0
  %v2715 = vsel %vm734, %v2598, 0
  %v2718 = vsel %vm734, %v2599, 0
  %v2721 = vsel %vm734, %v2600, 0
  %v2724 = vsel %vm734, %v2601, 0
  %2726 = vmatprep.subr.bf16.mxu0 0
  %2727 = vmatpush1.bf16.msra.mxu0 0
  %2728 = vmatprep.subr.bf16.mxu0 0
  %2729 = vmatpush1.bf16.msra.mxu0 0
  %2730 = vmatprep.subr.bf16.mxu0 0
  %2731 = vmatpush1.bf16.msra.mxu0 0
  %2732 = vmatprep.subr.bf16.mxu0 0
  %2733 = vmatpush1.bf16.msra.mxu0 0
  %2734 = vmatprep.subr.bf16.mxu0 0
  %2735 = vmatpush1.bf16.msra.mxu0 %v2625
  %2736 = vmatprep.subr.bf16.mxu0 0
  %2737 = vmatpush1.bf16.msra.mxu0 %v2624
  %2738 = vmatprep.subr.bf16.mxu0 0
  %2739 = vmatpush1.bf16.msra.mxu0 %v2623
  %2740 = vmatprep.subr.bf16.mxu0 0
  %2741 = vmatpush1.bf16.msra.mxu0 %v2622
  %2742 = vmatprep.subr.bf16.mxu0 0
  %2743 = vmatpush2.bf16.msra.mxu0 0
  %2744 = vmatprep.subr.bf16.mxu0 0
  %2745 = vmatpush2.bf16.msra.mxu0 0
  %2746 = vmatprep.subr.bf16.mxu0 0
  %2747 = vmatpush2.bf16.msra.mxu0 0
  %2748 = vmatprep.subr.bf16.mxu0 0
  %2749 = vmatpush2.bf16.msra.mxu0 0
  %2750 = vmatprep.subr.bf16.mxu0 0
  %2751 = vmatpush2.bf16.msra.mxu0 0
  %2752 = vmatprep.subr.bf16.mxu0 0
  %2753 = vmatpush2.bf16.msra.mxu0 0
  %2754 = vmatprep.subr.bf16.mxu0 0
  %2755 = vmatpush2.bf16.msra.mxu0 0
  %2756 = vmatprep.subr.bf16.mxu0 0
  %2757 = vmatpush2.bf16.msra.mxu0 0
  %2758 = vmatprep.mubr.bf16.mxu0 0
  %2759 = vmatmul.mubr.bf16.gmra.mxu0 %v2631
  %v2760 = vpop.f32.mrf.mxu0
  %v2761 = vadd.f32 %v2605, %v2760
  %v2762 = vpop.f32.mrf.mxu0
  %v2763 = vpop.f32.mrf.mxu0
  %v2764 = vadd.f32 %v2605, %v2763
  %v2765 = vpop.f32.mrf.mxu0
  %2766 = vmatprep.mubr.bf16.mxu0 0
  %2767 = vmatmul.mubr.bf16.gmra.mxu0 %v2634
  %v2768 = vpop.f32.mrf.mxu0
  %v2769 = vadd.f32 %v2605, %v2768
  %v2770 = vpop.f32.mrf.mxu0
  %v2771 = vpop.f32.mrf.mxu0
  %v2772 = vadd.f32 %v2605, %v2771
  %v2773 = vpop.f32.mrf.mxu0
  %2774 = vmatprep.mubr.bf16.mxu0 0
  %2775 = vmatmul.mubr.bf16.gmra.mxu0 %v2637
  %v2776 = vpop.f32.mrf.mxu0
  %v2777 = vadd.f32 %v2605, %v2776
  %v2778 = vpop.f32.mrf.mxu0
  %v2779 = vpop.f32.mrf.mxu0
  %v2780 = vadd.f32 %v2605, %v2779
  %v2781 = vpop.f32.mrf.mxu0
  %2782 = vmatprep.mubr.bf16.mxu0 0
  %2783 = vmatmul.mubr.bf16.gmra.mxu0 %v2640
  %v2784 = vpop.f32.mrf.mxu0
  %v2785 = vadd.f32 %v2605, %v2784
  %v2786 = vpop.f32.mrf.mxu0
  %v2787 = vpop.f32.mrf.mxu0
  %v2788 = vadd.f32 %v2605, %v2787
  %v2789 = vpop.f32.mrf.mxu0
  %2790 = vmatprep.mubr.bf16.mxu0 0
  %2791 = vmatmul.mubr.bf16.gmra.mxu0 %v2643
  %v2792 = vpop.f32.mrf.mxu0
  %v2793 = vadd.f32 %v2605, %v2792
  %v2794 = vpop.f32.mrf.mxu0
  %v2795 = vpop.f32.mrf.mxu0
  %v2796 = vadd.f32 %v2605, %v2795
  %v2797 = vpop.f32.mrf.mxu0
  %2798 = vmatprep.mubr.bf16.mxu0 0
  %2799 = vmatmul.mubr.bf16.gmra.mxu0 %v2646
  %v2800 = vpop.f32.mrf.mxu0
  %v2801 = vadd.f32 %v2605, %v2800
  %v2802 = vpop.f32.mrf.mxu0
  %v2803 = vpop.f32.mrf.mxu0
  %v2804 = vadd.f32 %v2605, %v2803
  %v2805 = vpop.f32.mrf.mxu0
  %2806 = vmatprep.mubr.bf16.mxu0 0
  %2807 = vmatmul.mubr.bf16.gmra.mxu0 %v2649
  %v2808 = vpop.f32.mrf.mxu0
  %v2809 = vadd.f32 %v2605, %v2808
  %v2810 = vpop.f32.mrf.mxu0
  %v2811 = vpop.f32.mrf.mxu0
  %v2812 = vadd.f32 %v2605, %v2811
  %v2813 = vpop.f32.mrf.mxu0
  %2814 = vmatprep.mubr.bf16.mxu0 0
  %2815 = vmatmul.mubr.bf16.gmra.mxu0 %v2652
  %v2816 = vpop.f32.mrf.mxu0
  %v2817 = vadd.f32 %v2605, %v2816
  %v2818 = vpop.f32.mrf.mxu0
  %v2819 = vpop.f32.mrf.mxu0
  %v2820 = vadd.f32 %v2605, %v2819
  %v2821 = vpop.f32.mrf.mxu0
  %2822 = vmatprep.mubr.bf16.mxu0 0
  %2823 = vmatmul.mubr.bf16.gmra.mxu0 %v2655
  %v2824 = vpop.f32.mrf.mxu0
  %v2825 = vadd.f32 %v2605, %v2824
  %v2826 = vpop.f32.mrf.mxu0
  %v2827 = vpop.f32.mrf.mxu0
  %v2828 = vadd.f32 %v2605, %v2827
  %v2829 = vpop.f32.mrf.mxu0
  %2830 = vmatprep.mubr.bf16.mxu0 0
  %2831 = vmatmul.mubr.bf16.gmra.mxu0 %v2658
  %v2832 = vpop.f32.mrf.mxu0
  %v2833 = vadd.f32 %v2605, %v2832
  %v2834 = vpop.f32.mrf.mxu0
  %v2835 = vpop.f32.mrf.mxu0
  %v2836 = vadd.f32 %v2605, %v2835
  %v2837 = vpop.f32.mrf.mxu0
  %2838 = vmatprep.mubr.bf16.mxu0 0
  %2839 = vmatmul.mubr.bf16.gmra.mxu0 %v2661
  %v2840 = vpop.f32.mrf.mxu0
  %v2841 = vadd.f32 %v2605, %v2840
  %v2842 = vpop.f32.mrf.mxu0
  %v2843 = vpop.f32.mrf.mxu0
  %v2844 = vadd.f32 %v2605, %v2843
  %v2845 = vpop.f32.mrf.mxu0
  %2846 = vmatprep.mubr.bf16.mxu0 0
  %2847 = vmatmul.mubr.bf16.gmra.mxu0 %v2664
  %v2848 = vpop.f32.mrf.mxu0
  %v2849 = vadd.f32 %v2605, %v2848
  %v2850 = vpop.f32.mrf.mxu0
  %v2851 = vpop.f32.mrf.mxu0
  %v2852 = vadd.f32 %v2605, %v2851
  %v2853 = vpop.f32.mrf.mxu0
  %2854 = vmatprep.mubr.bf16.mxu0 0
  %2855 = vmatmul.mubr.bf16.gmra.mxu0 %v2667
  %v2856 = vpop.f32.mrf.mxu0
  %v2857 = vadd.f32 %v2605, %v2856
  %v2858 = vpop.f32.mrf.mxu0
  %v2859 = vpop.f32.mrf.mxu0
  %v2860 = vadd.f32 %v2605, %v2859
  %v2861 = vpop.f32.mrf.mxu0
  %2862 = vmatprep.mubr.bf16.mxu0 0
  %2863 = vmatmul.mubr.bf16.gmra.mxu0 %v2670
  %v2864 = vpop.f32.mrf.mxu0
  %v2865 = vadd.f32 %v2605, %v2864
  %v2866 = vpop.f32.mrf.mxu0
  %v2867 = vpop.f32.mrf.mxu0
  %v2868 = vadd.f32 %v2605, %v2867
  %v2869 = vpop.f32.mrf.mxu0
  %2870 = vmatprep.mubr.bf16.mxu0 0
  %2871 = vmatmul.mubr.bf16.gmra.mxu0 %v2673
  %v2872 = vpop.f32.mrf.mxu0
  %v2873 = vadd.f32 %v2605, %v2872
  %v2874 = vpop.f32.mrf.mxu0
  %v2875 = vpop.f32.mrf.mxu0
  %v2876 = vadd.f32 %v2605, %v2875
  %v2877 = vpop.f32.mrf.mxu0
  %2878 = vmatprep.mubr.bf16.mxu0 0
  %2879 = vmatmul.mubr.bf16.gmra.mxu0 %v2676
  %v2880 = vpop.f32.mrf.mxu0
  %v2881 = vadd.f32 %v2605, %v2880
  %v2882 = vpop.f32.mrf.mxu0
  %v2883 = vpop.f32.mrf.mxu0
  %v2884 = vadd.f32 %v2605, %v2883
  %v2885 = vpop.f32.mrf.mxu0
  %2886 = vmatprep.mubr.bf16.mxu0 0
  %2887 = vmatmul.mubr.bf16.gmra.mxu0 %v2679
  %v2888 = vpop.f32.mrf.mxu0
  %v2889 = vadd.f32 %v2605, %v2888
  %v2890 = vpop.f32.mrf.mxu0
  %v2891 = vpop.f32.mrf.mxu0
  %v2892 = vadd.f32 %v2605, %v2891
  %v2893 = vpop.f32.mrf.mxu0
  %2894 = vmatprep.mubr.bf16.mxu0 0
  %2895 = vmatmul.mubr.bf16.gmra.mxu0 %v2682
  %v2896 = vpop.f32.mrf.mxu0
  %v2897 = vadd.f32 %v2605, %v2896
  %v2898 = vpop.f32.mrf.mxu0
  %v2899 = vpop.f32.mrf.mxu0
  %v2900 = vadd.f32 %v2605, %v2899
  %v2901 = vpop.f32.mrf.mxu0
  %2902 = vmatprep.mubr.bf16.mxu0 0
  %2903 = vmatmul.mubr.bf16.gmra.mxu0 %v2685
  %v2904 = vpop.f32.mrf.mxu0
  %v2905 = vadd.f32 %v2605, %v2904
  %v2906 = vpop.f32.mrf.mxu0
  %v2907 = vpop.f32.mrf.mxu0
  %v2908 = vadd.f32 %v2605, %v2907
  %v2909 = vpop.f32.mrf.mxu0
  %2910 = vmatprep.mubr.bf16.mxu0 0
  %2911 = vmatmul.mubr.bf16.gmra.mxu0 %v2688
  %v2912 = vpop.f32.mrf.mxu0
  %v2913 = vadd.f32 %v2605, %v2912
  %v2914 = vpop.f32.mrf.mxu0
  %v2915 = vpop.f32.mrf.mxu0
  %v2916 = vadd.f32 %v2605, %v2915
  %v2917 = vpop.f32.mrf.mxu0
  %2918 = vmatprep.mubr.bf16.mxu0 0
  %2919 = vmatmul.mubr.bf16.gmra.mxu0 %v2691
  %v2920 = vpop.f32.mrf.mxu0
  %v2921 = vadd.f32 %v2605, %v2920
  %v2922 = vpop.f32.mrf.mxu0
  %v2923 = vpop.f32.mrf.mxu0
  %v2924 = vadd.f32 %v2605, %v2923
  %v2925 = vpop.f32.mrf.mxu0
  %2926 = vmatprep.mubr.bf16.mxu0 0
  %2927 = vmatmul.mubr.bf16.gmra.mxu0 %v2694
  %v2928 = vpop.f32.mrf.mxu0
  %v2929 = vadd.f32 %v2605, %v2928
  %v2930 = vpop.f32.mrf.mxu0
  %v2931 = vpop.f32.mrf.mxu0
  %v2932 = vadd.f32 %v2605, %v2931
  %v2933 = vpop.f32.mrf.mxu0
  %2934 = vmatprep.mubr.bf16.mxu0 0
  %2935 = vmatmul.mubr.bf16.gmra.mxu0 %v2697
  %v2936 = vpop.f32.mrf.mxu0
  %v2937 = vadd.f32 %v2605, %v2936
  %v2938 = vpop.f32.mrf.mxu0
  %v2939 = vpop.f32.mrf.mxu0
  %v2940 = vadd.f32 %v2605, %v2939
  %v2941 = vpop.f32.mrf.mxu0
  %2942 = vmatprep.mubr.bf16.mxu0 0
  %2943 = vmatmul.mubr.bf16.gmra.mxu0 %v2700
  %v2944 = vpop.f32.mrf.mxu0
  %v2945 = vadd.f32 %v2605, %v2944
  %v2946 = vpop.f32.mrf.mxu0
  %v2947 = vpop.f32.mrf.mxu0
  %v2948 = vadd.f32 %v2605, %v2947
  %v2949 = vpop.f32.mrf.mxu0
  %2950 = vmatprep.mubr.bf16.mxu0 0
  %2951 = vmatmul.mubr.bf16.gmra.mxu0 %v2703
  %v2952 = vpop.f32.mrf.mxu0
  %v2953 = vadd.f32 %v2605, %v2952
  %v2954 = vpop.f32.mrf.mxu0
  %v2955 = vpop.f32.mrf.mxu0
  %v2956 = vadd.f32 %v2605, %v2955
  %v2957 = vpop.f32.mrf.mxu0
  %2958 = vmatprep.mubr.bf16.mxu0 0
  %2959 = vmatmul.mubr.bf16.gmra.mxu0 %v2706
  %v2960 = vpop.f32.mrf.mxu0
  %v2961 = vadd.f32 %v2605, %v2960
  %v2962 = vpop.f32.mrf.mxu0
  %v2963 = vpop.f32.mrf.mxu0
  %v2964 = vadd.f32 %v2605, %v2963
  %v2965 = vpop.f32.mrf.mxu0
  %2966 = vmatprep.mubr.bf16.mxu0 0
  %2967 = vmatmul.mubr.bf16.gmra.mxu0 %v2709
  %v2968 = vpop.f32.mrf.mxu0
  %v2969 = vadd.f32 %v2605, %v2968
  %v2970 = vpop.f32.mrf.mxu0
  %v2971 = vpop.f32.mrf.mxu0
  %v2972 = vadd.f32 %v2605, %v2971
  %v2973 = vpop.f32.mrf.mxu0
  %2974 = vmatprep.mubr.bf16.mxu0 0
  %2975 = vmatmul.mubr.bf16.gmra.mxu0 %v2712
  %v2976 = vpop.f32.mrf.mxu0
  %v2977 = vadd.f32 %v2605, %v2976
  %v2978 = vpop.f32.mrf.mxu0
  %v2979 = vpop.f32.mrf.mxu0
  %v2980 = vadd.f32 %v2605, %v2979
  %v2981 = vpop.f32.mrf.mxu0
  %2982 = vmatprep.mubr.bf16.mxu0 0
  %2983 = vmatmul.mubr.bf16.gmra.mxu0 %v2715
  %v2984 = vpop.f32.mrf.mxu0
  %v2985 = vadd.f32 %v2605, %v2984
  %v2986 = vpop.f32.mrf.mxu0
  %v2987 = vpop.f32.mrf.mxu0
  %v2988 = vadd.f32 %v2605, %v2987
  %v2989 = vpop.f32.mrf.mxu0
  %2990 = vmatprep.mubr.bf16.mxu0 0
  %2991 = vmatmul.mubr.bf16.gmra.mxu0 %v2718
  %v2992 = vpop.f32.mrf.mxu0
  %v2993 = vadd.f32 %v2605, %v2992
  %v2994 = vpop.f32.mrf.mxu0
  %v2995 = vpop.f32.mrf.mxu0
  %v2996 = vadd.f32 %v2605, %v2995
  %v2997 = vpop.f32.mrf.mxu0
  %2998 = vmatprep.mubr.bf16.mxu0 0
  %2999 = vmatmul.mubr.bf16.gmra.mxu0 %v2721
  %v3000 = vpop.f32.mrf.mxu0
  %v3001 = vadd.f32 %v2605, %v3000
  %v3002 = vpop.f32.mrf.mxu0
  %v3003 = vpop.f32.mrf.mxu0
  %v3004 = vadd.f32 %v2605, %v3003
  %v3005 = vpop.f32.mrf.mxu0
  %3006 = vmatprep.mubr.bf16.mxu0 0
  %3007 = vmatmul.mubr.bf16.gmra.mxu0 %v2724
  %v3008 = vpop.f32.mrf.mxu0
  %v3009 = vadd.f32 %v2605, %v3008
  %v3010 = vpop.f32.mrf.mxu0
  %v3011 = vpop.f32.mrf.mxu0
  %v3012 = vpop.f32.mrf.mxu0
  %3013 = vdwg.mxu0
  %v3014 = vsel %vm607, %v2761, 0.0
  %v3015 = vsel %vm607, %v2764, 0.0
  %v3016 = vsel %vm607, %v2769, 0.0
  %v3017 = vsel %vm607, %v2772, 0.0
  %v3018 = vsel %vm607, %v2777, 0.0
  %v3019 = vsel %vm607, %v2780, 0.0
  %v3020 = vsel %vm607, %v2785, 0.0
  %v3021 = vsel %vm607, %v2788, 0.0
  %v3022 = vsel %vm607, %v2793, 0.0
  %v3023 = vsel %vm607, %v2796, 0.0
  %v3024 = vsel %vm607, %v2801, 0.0
  %v3025 = vsel %vm607, %v2804, 0.0
  %v3026 = vsel %vm607, %v2809, 0.0
  %v3027 = vsel %vm607, %v2812, 0.0
  %v3028 = vsel %vm607, %v2817, 0.0
  %v3029 = vsel %vm607, %v2820, 0.0
  %v3030 = vsel %vm607, %v2825, 0.0
  %v3031 = vsel %vm607, %v2828, 0.0
  %v3032 = vsel %vm607, %v2833, 0.0
  %v3033 = vsel %vm607, %v2836, 0.0
  %v3034 = vsel %vm607, %v2841, 0.0
  %v3035 = vsel %vm607, %v2844, 0.0
  %v3036 = vsel %vm607, %v2849, 0.0
  %v3037 = vsel %vm607, %v2852, 0.0
  %v3038 = vsel %vm607, %v2857, 0.0
  %v3039 = vsel %vm607, %v2860, 0.0
  %v3040 = vsel %vm607, %v2865, 0.0
  %v3041 = vsel %vm607, %v2868, 0.0
  %v3042 = vsel %vm607, %v2873, 0.0
  %v3043 = vsel %vm607, %v2876, 0.0
  %v3044 = vsel %vm607, %v2881, 0.0
  %v3045 = vsel %vm607, %v2884, 0.0
  %v3046 = vsel %vm607, %v2889, 0.0
  %v3047 = vsel %vm607, %v2892, 0.0
  %v3048 = vsel %vm607, %v2897, 0.0
  %v3049 = vsel %vm607, %v2900, 0.0
  %v3050 = vsel %vm607, %v2905, 0.0
  %v3051 = vsel %vm607, %v2908, 0.0
  %v3052 = vsel %vm607, %v2913, 0.0
  %v3053 = vsel %vm607, %v2916, 0.0
  %v3054 = vsel %vm607, %v2921, 0.0
  %v3055 = vsel %vm607, %v2924, 0.0
  %v3056 = vsel %vm607, %v2929, 0.0
  %v3057 = vsel %vm607, %v2932, 0.0
  %v3058 = vsel %vm607, %v2937, 0.0
  %v3059 = vsel %vm607, %v2940, 0.0
  %v3060 = vsel %vm607, %v2945, 0.0
  %v3061 = vsel %vm607, %v2948, 0.0
  %v3062 = vsel %vm607, %v2953, 0.0
  %v3063 = vsel %vm607, %v2956, 0.0
  %v3064 = vsel %vm607, %v2961, 0.0
  %v3065 = vsel %vm607, %v2964, 0.0
  %v3066 = vsel %vm607, %v2969, 0.0
  %v3067 = vsel %vm607, %v2972, 0.0
  %v3068 = vsel %vm607, %v2977, 0.0
  %v3069 = vsel %vm607, %v2980, 0.0
  %v3070 = vsel %vm607, %v2985, 0.0
  %v3071 = vsel %vm607, %v2988, 0.0
  %v3072 = vsel %vm607, %v2993, 0.0
  %v3073 = vsel %vm607, %v2996, 0.0
  %v3074 = vsel %vm607, %v3001, 0.0
  %v3075 = vsel %vm607, %v3004, 0.0
  %v3076 = vsel %vm607, %v3009, 0.0
  %v3077 = vsub.f32 %v2761, %v3014
  %v3078 = vsub.f32 %v2764, %v3015
  %v3079 = vsub.f32 %v2769, %v3016
  %v3080 = vsub.f32 %v2772, %v3017
  %v3081 = vsub.f32 %v2777, %v3018
  %v3082 = vsub.f32 %v2780, %v3019
  %v3083 = vsub.f32 %v2785, %v3020
  %v3084 = vsub.f32 %v2788, %v3021
  %v3085 = vsub.f32 %v2793, %v3022
  %v3086 = vsub.f32 %v2796, %v3023
  %v3087 = vsub.f32 %v2801, %v3024
  %v3088 = vsub.f32 %v2804, %v3025
  %v3089 = vsub.f32 %v2809, %v3026
  %v3090 = vsub.f32 %v2812, %v3027
  %v3091 = vsub.f32 %v2817, %v3028
  %v3092 = vsub.f32 %v2820, %v3029
  %v3093 = vsub.f32 %v2825, %v3030
  %v3094 = vsub.f32 %v2828, %v3031
  %v3095 = vsub.f32 %v2833, %v3032
  %v3096 = vsub.f32 %v2836, %v3033
  %v3097 = vsub.f32 %v2841, %v3034
  %v3098 = vsub.f32 %v2844, %v3035
  %v3099 = vsub.f32 %v2849, %v3036
  %v3100 = vsub.f32 %v2852, %v3037
  %v3101 = vsub.f32 %v2857, %v3038
  %v3102 = vsub.f32 %v2860, %v3039
  %v3103 = vsub.f32 %v2865, %v3040
  %v3104 = vsub.f32 %v2868, %v3041
  %v3105 = vsub.f32 %v2873, %v3042
  %v3106 = vsub.f32 %v2876, %v3043
  %v3107 = vsub.f32 %v2881, %v3044
  %v3108 = vsub.f32 %v2884, %v3045
  %v3109 = vsub.f32 %v2889, %v3046
  %v3110 = vsub.f32 %v2892, %v3047
  %v3111 = vsub.f32 %v2897, %v3048
  %v3112 = vsub.f32 %v2900, %v3049
  %v3113 = vsub.f32 %v2905, %v3050
  %v3114 = vsub.f32 %v2908, %v3051
  %v3115 = vsub.f32 %v2913, %v3052
  %v3116 = vsub.f32 %v2916, %v3053
  %v3117 = vsub.f32 %v2921, %v3054
  %v3118 = vsub.f32 %v2924, %v3055
  %v3119 = vsub.f32 %v2929, %v3056
  %v3120 = vsub.f32 %v2932, %v3057
  %v3121 = vsub.f32 %v2937, %v3058
  %v3122 = vsub.f32 %v2940, %v3059
  %v3123 = vsub.f32 %v2945, %v3060
  %v3124 = vsub.f32 %v2948, %v3061
  %v3125 = vsub.f32 %v2953, %v3062
  %v3126 = vsub.f32 %v2956, %v3063
  %v3127 = vsub.f32 %v2961, %v3064
  %v3128 = vsub.f32 %v2964, %v3065
  %v3129 = vsub.f32 %v2969, %v3066
  %v3130 = vsub.f32 %v2972, %v3067
  %v3131 = vsub.f32 %v2977, %v3068
  %v3132 = vsub.f32 %v2980, %v3069
  %v3133 = vsub.f32 %v2985, %v3070
  %v3134 = vsub.f32 %v2988, %v3071
  %v3135 = vsub.f32 %v2993, %v3072
  %v3136 = vsub.f32 %v2996, %v3073
  %v3137 = vsub.f32 %v3001, %v3074
  %v3138 = vsub.f32 %v3004, %v3075
  %v3139 = vsub.f32 %v3009, %v3076
  %v3140 = vsel %vm734, %v3014, 0.0
  %3141 = vadd.xlane.f32.xlu0 %v3140
  %v3142 = vpop.xlane.xlu0 %3141
  %v3143 = vsel %vm734, %v3015, 0.0
  %3144 = vadd.xlane.f32.xlu0 %v3143
  %v3145 = vpop.xlane.xlu0 %3144
  %v3146 = vsel %vm734, %v3016, 0.0
  %3147 = vadd.xlane.f32.xlu0 %v3146
  %v3148 = vpop.xlane.xlu0 %3147
  %v3149 = vsel %vm734, %v3017, 0.0
  %3150 = vadd.xlane.f32.xlu0 %v3149
  %v3151 = vpop.xlane.xlu0 %3150
  %v3152 = vsel %vm734, %v3018, 0.0
  %3153 = vadd.xlane.f32.xlu0 %v3152
  %v3154 = vpop.xlane.xlu0 %3153
  %v3155 = vsel %vm734, %v3019, 0.0
  %3156 = vadd.xlane.f32.xlu0 %v3155
  %v3157 = vpop.xlane.xlu0 %3156
  %v3158 = vsel %vm734, %v3020, 0.0
  %3159 = vadd.xlane.f32.xlu0 %v3158
  %v3160 = vpop.xlane.xlu0 %3159
  %v3161 = vsel %vm734, %v3021, 0.0
  %3162 = vadd.xlane.f32.xlu0 %v3161
  %v3163 = vpop.xlane.xlu0 %3162
  %v3164 = vsel %vm734, %v3022, 0.0
  %3165 = vadd.xlane.f32.xlu0 %v3164
  %v3166 = vpop.xlane.xlu0 %3165
  %v3167 = vsel %vm734, %v3023, 0.0
  %3168 = vadd.xlane.f32.xlu0 %v3167
  %v3169 = vpop.xlane.xlu0 %3168
  %v3170 = vsel %vm734, %v3024, 0.0
  %3171 = vadd.xlane.f32.xlu0 %v3170
  %v3172 = vpop.xlane.xlu0 %3171
  %v3173 = vsel %vm734, %v3025, 0.0
  %3174 = vadd.xlane.f32.xlu0 %v3173
  %v3175 = vpop.xlane.xlu0 %3174
  %v3176 = vsel %vm734, %v3026, 0.0
  %3177 = vadd.xlane.f32.xlu0 %v3176
  %v3178 = vpop.xlane.xlu0 %3177
  %v3179 = vsel %vm734, %v3027, 0.0
  %3180 = vadd.xlane.f32.xlu0 %v3179
  %v3181 = vpop.xlane.xlu0 %3180
  %v3182 = vsel %vm734, %v3028, 0.0
  %3183 = vadd.xlane.f32.xlu0 %v3182
  %v3184 = vpop.xlane.xlu0 %3183
  %v3185 = vsel %vm734, %v3029, 0.0
  %3186 = vadd.xlane.f32.xlu0 %v3185
  %v3187 = vpop.xlane.xlu0 %3186
  %v3188 = vsel %vm734, %v3030, 0.0
  %3189 = vadd.xlane.f32.xlu0 %v3188
  %v3190 = vpop.xlane.xlu0 %3189
  %v3191 = vsel %vm734, %v3031, 0.0
  %3192 = vadd.xlane.f32.xlu0 %v3191
  %v3193 = vpop.xlane.xlu0 %3192
  %v3194 = vsel %vm734, %v3032, 0.0
  %3195 = vadd.xlane.f32.xlu0 %v3194
  %v3196 = vpop.xlane.xlu0 %3195
  %v3197 = vsel %vm734, %v3033, 0.0
  %3198 = vadd.xlane.f32.xlu0 %v3197
  %v3199 = vpop.xlane.xlu0 %3198
  %v3200 = vsel %vm734, %v3034, 0.0
  %3201 = vadd.xlane.f32.xlu0 %v3200
  %v3202 = vpop.xlane.xlu0 %3201
  %v3203 = vsel %vm734, %v3035, 0.0
  %3204 = vadd.xlane.f32.xlu0 %v3203
  %v3205 = vpop.xlane.xlu0 %3204
  %v3206 = vsel %vm734, %v3036, 0.0
  %3207 = vadd.xlane.f32.xlu0 %v3206
  %v3208 = vpop.xlane.xlu0 %3207
  %v3209 = vsel %vm734, %v3037, 0.0
  %3210 = vadd.xlane.f32.xlu0 %v3209
  %v3211 = vpop.xlane.xlu0 %3210
  %v3212 = vsel %vm734, %v3038, 0.0
  %3213 = vadd.xlane.f32.xlu0 %v3212
  %v3214 = vpop.xlane.xlu0 %3213
  %v3215 = vsel %vm734, %v3039, 0.0
  %3216 = vadd.xlane.f32.xlu0 %v3215
  %v3217 = vpop.xlane.xlu0 %3216
  %v3218 = vsel %vm734, %v3040, 0.0
  %3219 = vadd.xlane.f32.xlu0 %v3218
  %v3220 = vpop.xlane.xlu0 %3219
  %v3221 = vsel %vm734, %v3041, 0.0
  %3222 = vadd.xlane.f32.xlu0 %v3221
  %v3223 = vpop.xlane.xlu0 %3222
  %v3224 = vsel %vm734, %v3042, 0.0
  %3225 = vadd.xlane.f32.xlu0 %v3224
  %v3226 = vpop.xlane.xlu0 %3225
  %v3227 = vsel %vm734, %v3043, 0.0
  %3228 = vadd.xlane.f32.xlu0 %v3227
  %v3229 = vpop.xlane.xlu0 %3228
  %v3230 = vsel %vm734, %v3044, 0.0
  %3231 = vadd.xlane.f32.xlu0 %v3230
  %v3232 = vpop.xlane.xlu0 %3231
  %v3233 = vsel %vm734, %v3045, 0.0
  %3234 = vadd.xlane.f32.xlu0 %v3233
  %v3235 = vpop.xlane.xlu0 %3234
  %v3236 = vsel %vm734, %v3046, 0.0
  %3237 = vadd.xlane.f32.xlu0 %v3236
  %v3238 = vpop.xlane.xlu0 %3237
  %v3239 = vsel %vm734, %v3047, 0.0
  %3240 = vadd.xlane.f32.xlu0 %v3239
  %v3241 = vpop.xlane.xlu0 %3240
  %v3242 = vsel %vm734, %v3048, 0.0
  %3243 = vadd.xlane.f32.xlu0 %v3242
  %v3244 = vpop.xlane.xlu0 %3243
  %v3245 = vsel %vm734, %v3049, 0.0
  %3246 = vadd.xlane.f32.xlu0 %v3245
  %v3247 = vpop.xlane.xlu0 %3246
  %v3248 = vsel %vm734, %v3050, 0.0
  %3249 = vadd.xlane.f32.xlu0 %v3248
  %v3250 = vpop.xlane.xlu0 %3249
  %v3251 = vsel %vm734, %v3051, 0.0
  %3252 = vadd.xlane.f32.xlu0 %v3251
  %v3253 = vpop.xlane.xlu0 %3252
  %v3254 = vsel %vm734, %v3052, 0.0
  %3255 = vadd.xlane.f32.xlu0 %v3254
  %v3256 = vpop.xlane.xlu0 %3255
  %v3257 = vsel %vm734, %v3053, 0.0
  %3258 = vadd.xlane.f32.xlu0 %v3257
  %v3259 = vpop.xlane.xlu0 %3258
  %v3260 = vsel %vm734, %v3054, 0.0
  %3261 = vadd.xlane.f32.xlu0 %v3260
  %v3262 = vpop.xlane.xlu0 %3261
  %v3263 = vsel %vm734, %v3055, 0.0
  %3264 = vadd.xlane.f32.xlu0 %v3263
  %v3265 = vpop.xlane.xlu0 %3264
  %v3266 = vsel %vm734, %v3056, 0.0
  %3267 = vadd.xlane.f32.xlu0 %v3266
  %v3268 = vpop.xlane.xlu0 %3267
  %v3269 = vsel %vm734, %v3057, 0.0
  %3270 = vadd.xlane.f32.xlu0 %v3269
  %v3271 = vpop.xlane.xlu0 %3270
  %v3272 = vsel %vm734, %v3058, 0.0
  %3273 = vadd.xlane.f32.xlu0 %v3272
  %v3274 = vpop.xlane.xlu0 %3273
  %v3275 = vsel %vm734, %v3059, 0.0
  %3276 = vadd.xlane.f32.xlu0 %v3275
  %v3277 = vpop.xlane.xlu0 %3276
  %v3278 = vsel %vm734, %v3060, 0.0
  %3279 = vadd.xlane.f32.xlu0 %v3278
  %v3280 = vpop.xlane.xlu0 %3279
  %v3281 = vsel %vm734, %v3061, 0.0
  %3282 = vadd.xlane.f32.xlu0 %v3281
  %v3283 = vpop.xlane.xlu0 %3282
  %v3284 = vsel %vm734, %v3062, 0.0
  %3285 = vadd.xlane.f32.xlu0 %v3284
  %v3286 = vpop.xlane.xlu0 %3285
  %v3287 = vsel %vm734, %v3063, 0.0
  %3288 = vadd.xlane.f32.xlu0 %v3287
  %v3289 = vpop.xlane.xlu0 %3288
  %v3290 = vsel %vm734, %v3064, 0.0
  %3291 = vadd.xlane.f32.xlu0 %v3290
  %v3292 = vpop.xlane.xlu0 %3291
  %v3293 = vsel %vm734, %v3065, 0.0
  %3294 = vadd.xlane.f32.xlu0 %v3293
  %v3295 = vpop.xlane.xlu0 %3294
  %v3296 = vsel %vm734, %v3066, 0.0
  %3297 = vadd.xlane.f32.xlu0 %v3296
  %v3298 = vpop.xlane.xlu0 %3297
  %v3299 = vsel %vm734, %v3067, 0.0
  %3300 = vadd.xlane.f32.xlu0 %v3299
  %v3301 = vpop.xlane.xlu0 %3300
  %v3302 = vsel %vm734, %v3068, 0.0
  %3303 = vadd.xlane.f32.xlu0 %v3302
  %v3304 = vpop.xlane.xlu0 %3303
  %v3305 = vsel %vm734, %v3069, 0.0
  %3306 = vadd.xlane.f32.xlu0 %v3305
  %v3307 = vpop.xlane.xlu0 %3306
  %v3308 = vsel %vm734, %v3070, 0.0
  %3309 = vadd.xlane.f32.xlu0 %v3308
  %v3310 = vpop.xlane.xlu0 %3309
  %v3311 = vsel %vm734, %v3071, 0.0
  %3312 = vadd.xlane.f32.xlu0 %v3311
  %v3313 = vpop.xlane.xlu0 %3312
  %v3314 = vsel %vm734, %v3072, 0.0
  %3315 = vadd.xlane.f32.xlu0 %v3314
  %v3316 = vpop.xlane.xlu0 %3315
  %v3317 = vsel %vm734, %v3073, 0.0
  %3318 = vadd.xlane.f32.xlu0 %v3317
  %v3319 = vpop.xlane.xlu0 %3318
  %v3320 = vsel %vm734, %v3074, 0.0
  %3321 = vadd.xlane.f32.xlu0 %v3320
  %v3322 = vpop.xlane.xlu0 %3321
  %v3323 = vsel %vm734, %v3075, 0.0
  %3324 = vadd.xlane.f32.xlu0 %v3323
  %v3325 = vpop.xlane.xlu0 %3324
  %v3326 = vsel %vm734, %v3076, 0.0
  %3327 = vadd.xlane.f32.xlu0 %v3326
  %v3328 = vpop.xlane.xlu0 %3327
  %v3329 = vmul.f32 %v3142, 0.03125
  %v3330 = vmul.f32 %v3145, 0.03125
  %v3331 = vmul.f32 %v3148, 0.03125
  %v3332 = vmul.f32 %v3151, 0.03125
  %v3333 = vmul.f32 %v3154, 0.03125
  %v3334 = vmul.f32 %v3157, 0.03125
  %v3335 = vmul.f32 %v3160, 0.03125
  %v3336 = vmul.f32 %v3163, 0.03125
  %v3337 = vmul.f32 %v3166, 0.03125
  %v3338 = vmul.f32 %v3169, 0.03125
  %v3339 = vmul.f32 %v3172, 0.03125
  %v3340 = vmul.f32 %v3175, 0.03125
  %v3341 = vmul.f32 %v3178, 0.03125
  %v3342 = vmul.f32 %v3181, 0.03125
  %v3343 = vmul.f32 %v3184, 0.03125
  %v3344 = vmul.f32 %v3187, 0.03125
  %v3345 = vmul.f32 %v3190, 0.03125
  %v3346 = vmul.f32 %v3193, 0.03125
  %v3347 = vmul.f32 %v3196, 0.03125
  %v3348 = vmul.f32 %v3199, 0.03125
  %v3349 = vmul.f32 %v3202, 0.03125
  %v3350 = vmul.f32 %v3205, 0.03125
  %v3351 = vmul.f32 %v3208, 0.03125
  %v3352 = vmul.f32 %v3211, 0.03125
  %v3353 = vmul.f32 %v3214, 0.03125
  %v3354 = vmul.f32 %v3217, 0.03125
  %v3355 = vmul.f32 %v3220, 0.03125
  %v3356 = vmul.f32 %v3223, 0.03125
  %v3357 = vmul.f32 %v3226, 0.03125
  %v3358 = vmul.f32 %v3229, 0.03125
  %v3359 = vmul.f32 %v3232, 0.03125
  %v3360 = vmul.f32 %v3235, 0.03125
  %v3361 = vmul.f32 %v3238, 0.03125
  %v3362 = vmul.f32 %v3241, 0.03125
  %v3363 = vmul.f32 %v3244, 0.03125
  %v3364 = vmul.f32 %v3247, 0.03125
  %v3365 = vmul.f32 %v3250, 0.03125
  %v3366 = vmul.f32 %v3253, 0.03125
  %v3367 = vmul.f32 %v3256, 0.03125
  %v3368 = vmul.f32 %v3259, 0.03125
  %v3369 = vmul.f32 %v3262, 0.03125
  %v3370 = vmul.f32 %v3265, 0.03125
  %v3371 = vmul.f32 %v3268, 0.03125
  %v3372 = vmul.f32 %v3271, 0.03125
  %v3373 = vmul.f32 %v3274, 0.03125
  %v3374 = vmul.f32 %v3277, 0.03125
  %v3375 = vmul.f32 %v3280, 0.03125
  %v3376 = vmul.f32 %v3283, 0.03125
  %v3377 = vmul.f32 %v3286, 0.03125
  %v3378 = vmul.f32 %v3289, 0.03125
  %v3379 = vmul.f32 %v3292, 0.03125
  %v3380 = vmul.f32 %v3295, 0.03125
  %v3381 = vmul.f32 %v3298, 0.03125
  %v3382 = vmul.f32 %v3301, 0.03125
  %v3383 = vmul.f32 %v3304, 0.03125
  %v3384 = vmul.f32 %v3307, 0.03125
  %v3385 = vmul.f32 %v3310, 0.03125
  %v3386 = vmul.f32 %v3313, 0.03125
  %v3387 = vmul.f32 %v3316, 0.03125
  %v3388 = vmul.f32 %v3319, 0.03125
  %v3389 = vmul.f32 %v3322, 0.03125
  %v3390 = vmul.f32 %v3325, 0.03125
  %v3391 = vmul.f32 %v3328, 0.03125
  %v3392 = vsel %vm734, %v3077, 0.0
  %3393 = vadd.xlane.f32.xlu0 %v3392
  %v3394 = vpop.xlane.xlu0 %3393
  %v3395 = vsel %vm734, %v3078, 0.0
  %3396 = vadd.xlane.f32.xlu0 %v3395
  %v3397 = vpop.xlane.xlu0 %3396
  %v3398 = vsel %vm734, %v3079, 0.0
  %3399 = vadd.xlane.f32.xlu0 %v3398
  %v3400 = vpop.xlane.xlu0 %3399
  %v3401 = vsel %vm734, %v3080, 0.0
  %3402 = vadd.xlane.f32.xlu0 %v3401
  %v3403 = vpop.xlane.xlu0 %3402
  %v3404 = vsel %vm734, %v3081, 0.0
  %3405 = vadd.xlane.f32.xlu0 %v3404
  %v3406 = vpop.xlane.xlu0 %3405
  %v3407 = vsel %vm734, %v3082, 0.0
  %3408 = vadd.xlane.f32.xlu0 %v3407
  %v3409 = vpop.xlane.xlu0 %3408
  %v3410 = vsel %vm734, %v3083, 0.0
  %3411 = vadd.xlane.f32.xlu0 %v3410
  %v3412 = vpop.xlane.xlu0 %3411
  %v3413 = vsel %vm734, %v3084, 0.0
  %3414 = vadd.xlane.f32.xlu0 %v3413
  %v3415 = vpop.xlane.xlu0 %3414
  %v3416 = vsel %vm734, %v3085, 0.0
  %3417 = vadd.xlane.f32.xlu0 %v3416
  %v3418 = vpop.xlane.xlu0 %3417
  %v3419 = vsel %vm734, %v3086, 0.0
  %3420 = vadd.xlane.f32.xlu0 %v3419
  %v3421 = vpop.xlane.xlu0 %3420
  %v3422 = vsel %vm734, %v3087, 0.0
  %3423 = vadd.xlane.f32.xlu0 %v3422
  %v3424 = vpop.xlane.xlu0 %3423
  %v3425 = vsel %vm734, %v3088, 0.0
  %3426 = vadd.xlane.f32.xlu0 %v3425
  %v3427 = vpop.xlane.xlu0 %3426
  %v3428 = vsel %vm734, %v3089, 0.0
  %3429 = vadd.xlane.f32.xlu0 %v3428
  %v3430 = vpop.xlane.xlu0 %3429
  %v3431 = vsel %vm734, %v3090, 0.0
  %3432 = vadd.xlane.f32.xlu0 %v3431
  %v3433 = vpop.xlane.xlu0 %3432
  %v3434 = vsel %vm734, %v3091, 0.0
  %3435 = vadd.xlane.f32.xlu0 %v3434
  %v3436 = vpop.xlane.xlu0 %3435
  %v3437 = vsel %vm734, %v3092, 0.0
  %3438 = vadd.xlane.f32.xlu0 %v3437
  %v3439 = vpop.xlane.xlu0 %3438
  %v3440 = vsel %vm734, %v3093, 0.0
  %3441 = vadd.xlane.f32.xlu0 %v3440
  %v3442 = vpop.xlane.xlu0 %3441
  %v3443 = vsel %vm734, %v3094, 0.0
  %3444 = vadd.xlane.f32.xlu0 %v3443
  %v3445 = vpop.xlane.xlu0 %3444
  %v3446 = vsel %vm734, %v3095, 0.0
  %3447 = vadd.xlane.f32.xlu0 %v3446
  %v3448 = vpop.xlane.xlu0 %3447
  %v3449 = vsel %vm734, %v3096, 0.0
  %3450 = vadd.xlane.f32.xlu0 %v3449
  %v3451 = vpop.xlane.xlu0 %3450
  %v3452 = vsel %vm734, %v3097, 0.0
  %3453 = vadd.xlane.f32.xlu0 %v3452
  %v3454 = vpop.xlane.xlu0 %3453
  %v3455 = vsel %vm734, %v3098, 0.0
  %3456 = vadd.xlane.f32.xlu0 %v3455
  %v3457 = vpop.xlane.xlu0 %3456
  %v3458 = vsel %vm734, %v3099, 0.0
  %3459 = vadd.xlane.f32.xlu0 %v3458
  %v3460 = vpop.xlane.xlu0 %3459
  %v3461 = vsel %vm734, %v3100, 0.0
  %3462 = vadd.xlane.f32.xlu0 %v3461
  %v3463 = vpop.xlane.xlu0 %3462
  %v3464 = vsel %vm734, %v3101, 0.0
  %3465 = vadd.xlane.f32.xlu0 %v3464
  %v3466 = vpop.xlane.xlu0 %3465
  %v3467 = vsel %vm734, %v3102, 0.0
  %3468 = vadd.xlane.f32.xlu0 %v3467
  %v3469 = vpop.xlane.xlu0 %3468
  %v3470 = vsel %vm734, %v3103, 0.0
  %3471 = vadd.xlane.f32.xlu0 %v3470
  %v3472 = vpop.xlane.xlu0 %3471
  %v3473 = vsel %vm734, %v3104, 0.0
  %3474 = vadd.xlane.f32.xlu0 %v3473
  %v3475 = vpop.xlane.xlu0 %3474
  %v3476 = vsel %vm734, %v3105, 0.0
  %3477 = vadd.xlane.f32.xlu0 %v3476
  %v3478 = vpop.xlane.xlu0 %3477
  %v3479 = vsel %vm734, %v3106, 0.0
  %3480 = vadd.xlane.f32.xlu0 %v3479
  %v3481 = vpop.xlane.xlu0 %3480
  %v3482 = vsel %vm734, %v3107, 0.0
  %3483 = vadd.xlane.f32.xlu0 %v3482
  %v3484 = vpop.xlane.xlu0 %3483
  %v3485 = vsel %vm734, %v3108, 0.0
  %3486 = vadd.xlane.f32.xlu0 %v3485
  %v3487 = vpop.xlane.xlu0 %3486
  %v3488 = vsel %vm734, %v3109, 0.0
  %3489 = vadd.xlane.f32.xlu0 %v3488
  %v3490 = vpop.xlane.xlu0 %3489
  %v3491 = vsel %vm734, %v3110, 0.0
  %3492 = vadd.xlane.f32.xlu0 %v3491
  %v3493 = vpop.xlane.xlu0 %3492
  %v3494 = vsel %vm734, %v3111, 0.0
  %3495 = vadd.xlane.f32.xlu0 %v3494
  %v3496 = vpop.xlane.xlu0 %3495
  %v3497 = vsel %vm734, %v3112, 0.0
  %3498 = vadd.xlane.f32.xlu0 %v3497
  %v3499 = vpop.xlane.xlu0 %3498
  %v3500 = vsel %vm734, %v3113, 0.0
  %3501 = vadd.xlane.f32.xlu0 %v3500
  %v3502 = vpop.xlane.xlu0 %3501
  %v3503 = vsel %vm734, %v3114, 0.0
  %3504 = vadd.xlane.f32.xlu0 %v3503
  %v3505 = vpop.xlane.xlu0 %3504
  %v3506 = vsel %vm734, %v3115, 0.0
  %3507 = vadd.xlane.f32.xlu0 %v3506
  %v3508 = vpop.xlane.xlu0 %3507
  %v3509 = vsel %vm734, %v3116, 0.0
  %3510 = vadd.xlane.f32.xlu0 %v3509
  %v3511 = vpop.xlane.xlu0 %3510
  %v3512 = vsel %vm734, %v3117, 0.0
  %3513 = vadd.xlane.f32.xlu0 %v3512
  %v3514 = vpop.xlane.xlu0 %3513
  %v3515 = vsel %vm734, %v3118, 0.0
  %3516 = vadd.xlane.f32.xlu0 %v3515
  %v3517 = vpop.xlane.xlu0 %3516
  %v3518 = vsel %vm734, %v3119, 0.0
  %3519 = vadd.xlane.f32.xlu0 %v3518
  %v3520 = vpop.xlane.xlu0 %3519
  %v3521 = vsel %vm734, %v3120, 0.0
  %3522 = vadd.xlane.f32.xlu0 %v3521
  %v3523 = vpop.xlane.xlu0 %3522
  %v3524 = vsel %vm734, %v3121, 0.0
  %3525 = vadd.xlane.f32.xlu0 %v3524
  %v3526 = vpop.xlane.xlu0 %3525
  %v3527 = vsel %vm734, %v3122, 0.0
  %3528 = vadd.xlane.f32.xlu0 %v3527
  %v3529 = vpop.xlane.xlu0 %3528
  %v3530 = vsel %vm734, %v3123, 0.0
  %3531 = vadd.xlane.f32.xlu0 %v3530
  %v3532 = vpop.xlane.xlu0 %3531
  %v3533 = vsel %vm734, %v3124, 0.0
  %3534 = vadd.xlane.f32.xlu0 %v3533
  %v3535 = vpop.xlane.xlu0 %3534
  %v3536 = vsel %vm734, %v3125, 0.0
  %3537 = vadd.xlane.f32.xlu0 %v3536
  %v3538 = vpop.xlane.xlu0 %3537
  %v3539 = vsel %vm734, %v3126, 0.0
  %3540 = vadd.xlane.f32.xlu0 %v3539
  %v3541 = vpop.xlane.xlu0 %3540
  %v3542 = vsel %vm734, %v3127, 0.0
  %3543 = vadd.xlane.f32.xlu0 %v3542
  %v3544 = vpop.xlane.xlu0 %3543
  %v3545 = vsel %vm734, %v3128, 0.0
  %3546 = vadd.xlane.f32.xlu0 %v3545
  %v3547 = vpop.xlane.xlu0 %3546
  %v3548 = vsel %vm734, %v3129, 0.0
  %3549 = vadd.xlane.f32.xlu0 %v3548
  %v3550 = vpop.xlane.xlu0 %3549
  %v3551 = vsel %vm734, %v3130, 0.0
  %3552 = vadd.xlane.f32.xlu0 %v3551
  %v3553 = vpop.xlane.xlu0 %3552
  %v3554 = vsel %vm734, %v3131, 0.0
  %3555 = vadd.xlane.f32.xlu0 %v3554
  %v3556 = vpop.xlane.xlu0 %3555
  %v3557 = vsel %vm734, %v3132, 0.0
  %3558 = vadd.xlane.f32.xlu0 %v3557
  %v3559 = vpop.xlane.xlu0 %3558
  %v3560 = vsel %vm734, %v3133, 0.0
  %3561 = vadd.xlane.f32.xlu0 %v3560
  %v3562 = vpop.xlane.xlu0 %3561
  %v3563 = vsel %vm734, %v3134, 0.0
  %3564 = vadd.xlane.f32.xlu0 %v3563
  %v3565 = vpop.xlane.xlu0 %3564
  %v3566 = vsel %vm734, %v3135, 0.0
  %3567 = vadd.xlane.f32.xlu0 %v3566
  %v3568 = vpop.xlane.xlu0 %3567
  %v3569 = vsel %vm734, %v3136, 0.0
  %3570 = vadd.xlane.f32.xlu0 %v3569
  %v3571 = vpop.xlane.xlu0 %3570
  %v3572 = vsel %vm734, %v3137, 0.0
  %3573 = vadd.xlane.f32.xlu0 %v3572
  %v3574 = vpop.xlane.xlu0 %3573
  %v3575 = vsel %vm734, %v3138, 0.0
  %3576 = vadd.xlane.f32.xlu0 %v3575
  %v3577 = vpop.xlane.xlu0 %3576
  %v3578 = vsel %vm734, %v3139, 0.0
  %3579 = vadd.xlane.f32.xlu0 %v3578
  %v3580 = vpop.xlane.xlu0 %3579
  %v3581 = vmul.f32 %v3394, 0.03125
  %v3582 = vmul.f32 %v3397, 0.03125
  %v3583 = vmul.f32 %v3400, 0.03125
  %v3584 = vmul.f32 %v3403, 0.03125
  %v3585 = vmul.f32 %v3406, 0.03125
  %v3586 = vmul.f32 %v3409, 0.03125
  %v3587 = vmul.f32 %v3412, 0.03125
  %v3588 = vmul.f32 %v3415, 0.03125
  %v3589 = vmul.f32 %v3418, 0.03125
  %v3590 = vmul.f32 %v3421, 0.03125
  %v3591 = vmul.f32 %v3424, 0.03125
  %v3592 = vmul.f32 %v3427, 0.03125
  %v3593 = vmul.f32 %v3430, 0.03125
  %v3594 = vmul.f32 %v3433, 0.03125
  %v3595 = vmul.f32 %v3436, 0.03125
  %v3596 = vmul.f32 %v3439, 0.03125
  %v3597 = vmul.f32 %v3442, 0.03125
  %v3598 = vmul.f32 %v3445, 0.03125
  %v3599 = vmul.f32 %v3448, 0.03125
  %v3600 = vmul.f32 %v3451, 0.03125
  %v3601 = vmul.f32 %v3454, 0.03125
  %v3602 = vmul.f32 %v3457, 0.03125
  %v3603 = vmul.f32 %v3460, 0.03125
  %v3604 = vmul.f32 %v3463, 0.03125
  %v3605 = vmul.f32 %v3466, 0.03125
  %v3606 = vmul.f32 %v3469, 0.03125
  %v3607 = vmul.f32 %v3472, 0.03125
  %v3608 = vmul.f32 %v3475, 0.03125
  %v3609 = vmul.f32 %v3478, 0.03125
  %v3610 = vmul.f32 %v3481, 0.03125
  %v3611 = vmul.f32 %v3484, 0.03125
  %v3612 = vmul.f32 %v3487, 0.03125
  %v3613 = vmul.f32 %v3490, 0.03125
  %v3614 = vmul.f32 %v3493, 0.03125
  %v3615 = vmul.f32 %v3496, 0.03125
  %v3616 = vmul.f32 %v3499, 0.03125
  %v3617 = vmul.f32 %v3502, 0.03125
  %v3618 = vmul.f32 %v3505, 0.03125
  %v3619 = vmul.f32 %v3508, 0.03125
  %v3620 = vmul.f32 %v3511, 0.03125
  %v3621 = vmul.f32 %v3514, 0.03125
  %v3622 = vmul.f32 %v3517, 0.03125
  %v3623 = vmul.f32 %v3520, 0.03125
  %v3624 = vmul.f32 %v3523, 0.03125
  %v3625 = vmul.f32 %v3526, 0.03125
  %v3626 = vmul.f32 %v3529, 0.03125
  %v3627 = vmul.f32 %v3532, 0.03125
  %v3628 = vmul.f32 %v3535, 0.03125
  %v3629 = vmul.f32 %v3538, 0.03125
  %v3630 = vmul.f32 %v3541, 0.03125
  %v3631 = vmul.f32 %v3544, 0.03125
  %v3632 = vmul.f32 %v3547, 0.03125
  %v3633 = vmul.f32 %v3550, 0.03125
  %v3634 = vmul.f32 %v3553, 0.03125
  %v3635 = vmul.f32 %v3556, 0.03125
  %v3636 = vmul.f32 %v3559, 0.03125
  %v3637 = vmul.f32 %v3562, 0.03125
  %v3638 = vmul.f32 %v3565, 0.03125
  %v3639 = vmul.f32 %v3568, 0.03125
  %v3640 = vmul.f32 %v3571, 0.03125
  %v3641 = vmul.f32 %v3574, 0.03125
  %v3642 = vmul.f32 %v3577, 0.03125
  %v3643 = vmul.f32 %v3580, 0.03125
  %v3644 = vsel %vm607, %v3329, %v3581
  %v3645 = vsel %vm607, %v3330, %v3582
  %v3646 = vsel %vm607, %v3331, %v3583
  %v3647 = vsel %vm607, %v3332, %v3584
  %v3648 = vsel %vm607, %v3333, %v3585
  %v3649 = vsel %vm607, %v3334, %v3586
  %v3650 = vsel %vm607, %v3335, %v3587
  %v3651 = vsel %vm607, %v3336, %v3588
  %v3652 = vsel %vm607, %v3337, %v3589
  %v3653 = vsel %vm607, %v3338, %v3590
  %v3654 = vsel %vm607, %v3339, %v3591
  %v3655 = vsel %vm607, %v3340, %v3592
  %v3656 = vsel %vm607, %v3341, %v3593
  %v3657 = vsel %vm607, %v3342, %v3594
  %v3658 = vsel %vm607, %v3343, %v3595
  %v3659 = vsel %vm607, %v3344, %v3596
  %v3660 = vsel %vm607, %v3345, %v3597
  %v3661 = vsel %vm607, %v3346, %v3598
  %v3662 = vsel %vm607, %v3347, %v3599
  %v3663 = vsel %vm607, %v3348, %v3600
  %v3664 = vsel %vm607, %v3349, %v3601
  %v3665 = vsel %vm607, %v3350, %v3602
  %v3666 = vsel %vm607, %v3351, %v3603
  %v3667 = vsel %vm607, %v3352, %v3604
  %v3668 = vsel %vm607, %v3353, %v3605
  %v3669 = vsel %vm607, %v3354, %v3606
  %v3670 = vsel %vm607, %v3355, %v3607
  %v3671 = vsel %vm607, %v3356, %v3608
  %v3672 = vsel %vm607, %v3357, %v3609
  %v3673 = vsel %vm607, %v3358, %v3610
  %v3674 = vsel %vm607, %v3359, %v3611
  %v3675 = vsel %vm607, %v3360, %v3612
  %v3676 = vsel %vm607, %v3361, %v3613
  %v3677 = vsel %vm607, %v3362, %v3614
  %v3678 = vsel %vm607, %v3363, %v3615
  %v3679 = vsel %vm607, %v3364, %v3616
  %v3680 = vsel %vm607, %v3365, %v3617
  %v3681 = vsel %vm607, %v3366, %v3618
  %v3682 = vsel %vm607, %v3367, %v3619
  %v3683 = vsel %vm607, %v3368, %v3620
  %v3684 = vsel %vm607, %v3369, %v3621
  %v3685 = vsel %vm607, %v3370, %v3622
  %v3686 = vsel %vm607, %v3371, %v3623
  %v3687 = vsel %vm607, %v3372, %v3624
  %v3688 = vsel %vm607, %v3373, %v3625
  %v3689 = vsel %vm607, %v3374, %v3626
  %v3690 = vsel %vm607, %v3375, %v3627
  %v3691 = vsel %vm607, %v3376, %v3628
  %v3692 = vsel %vm607, %v3377, %v3629
  %v3693 = vsel %vm607, %v3378, %v3630
  %v3694 = vsel %vm607, %v3379, %v3631
  %v3695 = vsel %vm607, %v3380, %v3632
  %v3696 = vsel %vm607, %v3381, %v3633
  %v3697 = vsel %vm607, %v3382, %v3634
  %v3698 = vsel %vm607, %v3383, %v3635
  %v3699 = vsel %vm607, %v3384, %v3636
  %v3700 = vsel %vm607, %v3385, %v3637
  %v3701 = vsel %vm607, %v3386, %v3638
  %v3702 = vsel %vm607, %v3387, %v3639
  %v3703 = vsel %vm607, %v3388, %v3640
  %v3704 = vsel %vm607, %v3389, %v3641
  %v3705 = vsel %vm607, %v3390, %v3642
  %v3706 = vsel %vm607, %v3391, %v3643
  %v3707 = vsub.f32 %v2761, %v3644
  %v3708 = vsub.f32 %v2764, %v3645
  %v3709 = vsub.f32 %v2769, %v3646
  %v3710 = vsub.f32 %v2772, %v3647
  %v3711 = vsub.f32 %v2777, %v3648
  %v3712 = vsub.f32 %v2780, %v3649
  %v3713 = vsub.f32 %v2785, %v3650
  %v3714 = vsub.f32 %v2788, %v3651
  %v3715 = vsub.f32 %v2793, %v3652
  %v3716 = vsub.f32 %v2796, %v3653
  %v3717 = vsub.f32 %v2801, %v3654
  %v3718 = vsub.f32 %v2804, %v3655
  %v3719 = vsub.f32 %v2809, %v3656
  %v3720 = vsub.f32 %v2812, %v3657
  %v3721 = vsub.f32 %v2817, %v3658
  %v3722 = vsub.f32 %v2820, %v3659
  %v3723 = vsub.f32 %v2825, %v3660
  %v3724 = vsub.f32 %v2828, %v3661
  %v3725 = vsub.f32 %v2833, %v3662
  %v3726 = vsub.f32 %v2836, %v3663
  %v3727 = vsub.f32 %v2841, %v3664
  %v3728 = vsub.f32 %v2844, %v3665
  %v3729 = vsub.f32 %v2849, %v3666
  %v3730 = vsub.f32 %v2852, %v3667
  %v3731 = vsub.f32 %v2857, %v3668
  %v3732 = vsub.f32 %v2860, %v3669
  %v3733 = vsub.f32 %v2865, %v3670
  %v3734 = vsub.f32 %v2868, %v3671
  %v3735 = vsub.f32 %v2873, %v3672
  %v3736 = vsub.f32 %v2876, %v3673
  %v3737 = vsub.f32 %v2881, %v3674
  %v3738 = vsub.f32 %v2884, %v3675
  %v3739 = vsub.f32 %v2889, %v3676
  %v3740 = vsub.f32 %v2892, %v3677
  %v3741 = vsub.f32 %v2897, %v3678
  %v3742 = vsub.f32 %v2900, %v3679
  %v3743 = vsub.f32 %v2905, %v3680
  %v3744 = vsub.f32 %v2908, %v3681
  %v3745 = vsub.f32 %v2913, %v3682
  %v3746 = vsub.f32 %v2916, %v3683
  %v3747 = vsub.f32 %v2921, %v3684
  %v3748 = vsub.f32 %v2924, %v3685
  %v3749 = vsub.f32 %v2929, %v3686
  %v3750 = vsub.f32 %v2932, %v3687
  %v3751 = vsub.f32 %v2937, %v3688
  %v3752 = vsub.f32 %v2940, %v3689
  %v3753 = vsub.f32 %v2945, %v3690
  %v3754 = vsub.f32 %v2948, %v3691
  %v3755 = vsub.f32 %v2953, %v3692
  %v3756 = vsub.f32 %v2956, %v3693
  %v3757 = vsub.f32 %v2961, %v3694
  %v3758 = vsub.f32 %v2964, %v3695
  %v3759 = vsub.f32 %v2969, %v3696
  %v3760 = vsub.f32 %v2972, %v3697
  %v3761 = vsub.f32 %v2977, %v3698
  %v3762 = vsub.f32 %v2980, %v3699
  %v3763 = vsub.f32 %v2985, %v3700
  %v3764 = vsub.f32 %v2988, %v3701
  %v3765 = vsub.f32 %v2993, %v3702
  %v3766 = vsub.f32 %v2996, %v3703
  %v3767 = vsub.f32 %v3001, %v3704
  %v3768 = vsub.f32 %v3004, %v3705
  %v3769 = vsub.f32 %v3009, %v3706
  %v3770 = vsel %vm607, %v3707, 0.0
  %v3771 = vsel %vm607, %v3708, 0.0
  %v3772 = vsel %vm607, %v3709, 0.0
  %v3773 = vsel %vm607, %v3710, 0.0
  %v3774 = vsel %vm607, %v3711, 0.0
  %v3775 = vsel %vm607, %v3712, 0.0
  %v3776 = vsel %vm607, %v3713, 0.0
  %v3777 = vsel %vm607, %v3714, 0.0
  %v3778 = vsel %vm607, %v3715, 0.0
  %v3779 = vsel %vm607, %v3716, 0.0
  %v3780 = vsel %vm607, %v3717, 0.0
  %v3781 = vsel %vm607, %v3718, 0.0
  %v3782 = vsel %vm607, %v3719, 0.0
  %v3783 = vsel %vm607, %v3720, 0.0
  %v3784 = vsel %vm607, %v3721, 0.0
  %v3785 = vsel %vm607, %v3722, 0.0
  %v3786 = vsel %vm607, %v3723, 0.0
  %v3787 = vsel %vm607, %v3724, 0.0
  %v3788 = vsel %vm607, %v3725, 0.0
  %v3789 = vsel %vm607, %v3726, 0.0
  %v3790 = vsel %vm607, %v3727, 0.0
  %v3791 = vsel %vm607, %v3728, 0.0
  %v3792 = vsel %vm607, %v3729, 0.0
  %v3793 = vsel %vm607, %v3730, 0.0
  %v3794 = vsel %vm607, %v3731, 0.0
  %v3795 = vsel %vm607, %v3732, 0.0
  %v3796 = vsel %vm607, %v3733, 0.0
  %v3797 = vsel %vm607, %v3734, 0.0
  %v3798 = vsel %vm607, %v3735, 0.0
  %v3799 = vsel %vm607, %v3736, 0.0
  %v3800 = vsel %vm607, %v3737, 0.0
  %v3801 = vsel %vm607, %v3738, 0.0
  %v3802 = vsel %vm607, %v3739, 0.0
  %v3803 = vsel %vm607, %v3740, 0.0
  %v3804 = vsel %vm607, %v3741, 0.0
  %v3805 = vsel %vm607, %v3742, 0.0
  %v3806 = vsel %vm607, %v3743, 0.0
  %v3807 = vsel %vm607, %v3744, 0.0
  %v3808 = vsel %vm607, %v3745, 0.0
  %v3809 = vsel %vm607, %v3746, 0.0
  %v3810 = vsel %vm607, %v3747, 0.0
  %v3811 = vsel %vm607, %v3748, 0.0
  %v3812 = vsel %vm607, %v3749, 0.0
  %v3813 = vsel %vm607, %v3750, 0.0
  %v3814 = vsel %vm607, %v3751, 0.0
  %v3815 = vsel %vm607, %v3752, 0.0
  %v3816 = vsel %vm607, %v3753, 0.0
  %v3817 = vsel %vm607, %v3754, 0.0
  %v3818 = vsel %vm607, %v3755, 0.0
  %v3819 = vsel %vm607, %v3756, 0.0
  %v3820 = vsel %vm607, %v3757, 0.0
  %v3821 = vsel %vm607, %v3758, 0.0
  %v3822 = vsel %vm607, %v3759, 0.0
  %v3823 = vsel %vm607, %v3760, 0.0
  %v3824 = vsel %vm607, %v3761, 0.0
  %v3825 = vsel %vm607, %v3762, 0.0
  %v3826 = vsel %vm607, %v3763, 0.0
  %v3827 = vsel %vm607, %v3764, 0.0
  %v3828 = vsel %vm607, %v3765, 0.0
  %v3829 = vsel %vm607, %v3766, 0.0
  %v3830 = vsel %vm607, %v3767, 0.0
  %v3831 = vsel %vm607, %v3768, 0.0
  %v3832 = vsel %vm607, %v3769, 0.0
  %v3833 = vsub.f32 %v3707, %v3770
  %v3834 = vsub.f32 %v3708, %v3771
  %v3835 = vsub.f32 %v3709, %v3772
  %v3836 = vsub.f32 %v3710, %v3773
  %v3837 = vsub.f32 %v3711, %v3774
  %v3838 = vsub.f32 %v3712, %v3775
  %v3839 = vsub.f32 %v3713, %v3776
  %v3840 = vsub.f32 %v3714, %v3777
  %v3841 = vsub.f32 %v3715, %v3778
  %v3842 = vsub.f32 %v3716, %v3779
  %v3843 = vsub.f32 %v3717, %v3780
  %v3844 = vsub.f32 %v3718, %v3781
  %v3845 = vsub.f32 %v3719, %v3782
  %v3846 = vsub.f32 %v3720, %v3783
  %v3847 = vsub.f32 %v3721, %v3784
  %v3848 = vsub.f32 %v3722, %v3785
  %v3849 = vsub.f32 %v3723, %v3786
  %v3850 = vsub.f32 %v3724, %v3787
  %v3851 = vsub.f32 %v3725, %v3788
  %v3852 = vsub.f32 %v3726, %v3789
  %v3853 = vsub.f32 %v3727, %v3790
  %v3854 = vsub.f32 %v3728, %v3791
  %v3855 = vsub.f32 %v3729, %v3792
  %v3856 = vsub.f32 %v3730, %v3793
  %v3857 = vsub.f32 %v3731, %v3794
  %v3858 = vsub.f32 %v3732, %v3795
  %v3859 = vsub.f32 %v3733, %v3796
  %v3860 = vsub.f32 %v3734, %v3797
  %v3861 = vsub.f32 %v3735, %v3798
  %v3862 = vsub.f32 %v3736, %v3799
  %v3863 = vsub.f32 %v3737, %v3800
  %v3864 = vsub.f32 %v3738, %v3801
  %v3865 = vsub.f32 %v3739, %v3802
  %v3866 = vsub.f32 %v3740, %v3803
  %v3867 = vsub.f32 %v3741, %v3804
  %v3868 = vsub.f32 %v3742, %v3805
  %v3869 = vsub.f32 %v3743, %v3806
  %v3870 = vsub.f32 %v3744, %v3807
  %v3871 = vsub.f32 %v3745, %v3808
  %v3872 = vsub.f32 %v3746, %v3809
  %v3873 = vsub.f32 %v3747, %v3810
  %v3874 = vsub.f32 %v3748, %v3811
  %v3875 = vsub.f32 %v3749, %v3812
  %v3876 = vsub.f32 %v3750, %v3813
  %v3877 = vsub.f32 %v3751, %v3814
  %v3878 = vsub.f32 %v3752, %v3815
  %v3879 = vsub.f32 %v3753, %v3816
  %v3880 = vsub.f32 %v3754, %v3817
  %v3881 = vsub.f32 %v3755, %v3818
  %v3882 = vsub.f32 %v3756, %v3819
  %v3883 = vsub.f32 %v3757, %v3820
  %v3884 = vsub.f32 %v3758, %v3821
  %v3885 = vsub.f32 %v3759, %v3822
  %v3886 = vsub.f32 %v3760, %v3823
  %v3887 = vsub.f32 %v3761, %v3824
  %v3888 = vsub.f32 %v3762, %v3825
  %v3889 = vsub.f32 %v3763, %v3826
  %v3890 = vsub.f32 %v3764, %v3827
  %v3891 = vsub.f32 %v3765, %v3828
  %v3892 = vsub.f32 %v3766, %v3829
  %v3893 = vsub.f32 %v3767, %v3830
  %v3894 = vsub.f32 %v3768, %v3831
  %v3895 = vsub.f32 %v3769, %v3832
  %v3896 = vmul.f32 %v3770, %v3770
  %v3897 = vmul.f32 %v3771, %v3771
  %v3898 = vmul.f32 %v3772, %v3772
  %v3899 = vmul.f32 %v3773, %v3773
  %v3900 = vmul.f32 %v3774, %v3774
  %v3901 = vmul.f32 %v3775, %v3775
  %v3902 = vmul.f32 %v3776, %v3776
  %v3903 = vmul.f32 %v3777, %v3777
  %v3904 = vmul.f32 %v3778, %v3778
  %v3905 = vmul.f32 %v3779, %v3779
  %v3906 = vmul.f32 %v3780, %v3780
  %v3907 = vmul.f32 %v3781, %v3781
  %v3908 = vmul.f32 %v3782, %v3782
  %v3909 = vmul.f32 %v3783, %v3783
  %v3910 = vmul.f32 %v3784, %v3784
  %v3911 = vmul.f32 %v3785, %v3785
  %v3912 = vmul.f32 %v3786, %v3786
  %v3913 = vmul.f32 %v3787, %v3787
  %v3914 = vmul.f32 %v3788, %v3788
  %v3915 = vmul.f32 %v3789, %v3789
  %v3916 = vmul.f32 %v3790, %v3790
  %v3917 = vmul.f32 %v3791, %v3791
  %v3918 = vmul.f32 %v3792, %v3792
  %v3919 = vmul.f32 %v3793, %v3793
  %v3920 = vmul.f32 %v3794, %v3794
  %v3921 = vmul.f32 %v3795, %v3795
  %v3922 = vmul.f32 %v3796, %v3796
  %v3923 = vmul.f32 %v3797, %v3797
  %v3924 = vmul.f32 %v3798, %v3798
  %v3925 = vmul.f32 %v3799, %v3799
  %v3926 = vmul.f32 %v3800, %v3800
  %v3927 = vmul.f32 %v3801, %v3801
  %v3928 = vmul.f32 %v3802, %v3802
  %v3929 = vmul.f32 %v3803, %v3803
  %v3930 = vmul.f32 %v3804, %v3804
  %v3931 = vmul.f32 %v3805, %v3805
  %v3932 = vmul.f32 %v3806, %v3806
  %v3933 = vmul.f32 %v3807, %v3807
  %v3934 = vmul.f32 %v3808, %v3808
  %v3935 = vmul.f32 %v3809, %v3809
  %v3936 = vmul.f32 %v3810, %v3810
  %v3937 = vmul.f32 %v3811, %v3811
  %v3938 = vmul.f32 %v3812, %v3812
  %v3939 = vmul.f32 %v3813, %v3813
  %v3940 = vmul.f32 %v3814, %v3814
  %v3941 = vmul.f32 %v3815, %v3815
  %v3942 = vmul.f32 %v3816, %v3816
  %v3943 = vmul.f32 %v3817, %v3817
  %v3944 = vmul.f32 %v3818, %v3818
  %v3945 = vmul.f32 %v3819, %v3819
  %v3946 = vmul.f32 %v3820, %v3820
  %v3947 = vmul.f32 %v3821, %v3821
  %v3948 = vmul.f32 %v3822, %v3822
  %v3949 = vmul.f32 %v3823, %v3823
  %v3950 = vmul.f32 %v3824, %v3824
  %v3951 = vmul.f32 %v3825, %v3825
  %v3952 = vmul.f32 %v3826, %v3826
  %v3953 = vmul.f32 %v3827, %v3827
  %v3954 = vmul.f32 %v3828, %v3828
  %v3955 = vmul.f32 %v3829, %v3829
  %v3956 = vmul.f32 %v3830, %v3830
  %v3957 = vmul.f32 %v3831, %v3831
  %v3958 = vmul.f32 %v3832, %v3832
  %v3959 = vsel %vm734, %v3896, 0.0
  %3960 = vadd.xlane.f32.xlu0 %v3959
  %v3961 = vpop.xlane.xlu0 %3960
  %v3962 = vsel %vm734, %v3897, 0.0
  %3963 = vadd.xlane.f32.xlu0 %v3962
  %v3964 = vpop.xlane.xlu0 %3963
  %v3965 = vsel %vm734, %v3898, 0.0
  %3966 = vadd.xlane.f32.xlu0 %v3965
  %v3967 = vpop.xlane.xlu0 %3966
  %v3968 = vsel %vm734, %v3899, 0.0
  %3969 = vadd.xlane.f32.xlu0 %v3968
  %v3970 = vpop.xlane.xlu0 %3969
  %v3971 = vsel %vm734, %v3900, 0.0
  %3972 = vadd.xlane.f32.xlu0 %v3971
  %v3973 = vpop.xlane.xlu0 %3972
  %v3974 = vsel %vm734, %v3901, 0.0
  %3975 = vadd.xlane.f32.xlu0 %v3974
  %v3976 = vpop.xlane.xlu0 %3975
  %v3977 = vsel %vm734, %v3902, 0.0
  %3978 = vadd.xlane.f32.xlu0 %v3977
  %v3979 = vpop.xlane.xlu0 %3978
  %v3980 = vsel %vm734, %v3903, 0.0
  %3981 = vadd.xlane.f32.xlu0 %v3980
  %v3982 = vpop.xlane.xlu0 %3981
  %v3983 = vsel %vm734, %v3904, 0.0
  %3984 = vadd.xlane.f32.xlu0 %v3983
  %v3985 = vpop.xlane.xlu0 %3984
  %v3986 = vsel %vm734, %v3905, 0.0
  %3987 = vadd.xlane.f32.xlu0 %v3986
  %v3988 = vpop.xlane.xlu0 %3987
  %v3989 = vsel %vm734, %v3906, 0.0
  %3990 = vadd.xlane.f32.xlu0 %v3989
  %v3991 = vpop.xlane.xlu0 %3990
  %v3992 = vsel %vm734, %v3907, 0.0
  %3993 = vadd.xlane.f32.xlu0 %v3992
  %v3994 = vpop.xlane.xlu0 %3993
  %v3995 = vsel %vm734, %v3908, 0.0
  %3996 = vadd.xlane.f32.xlu0 %v3995
  %v3997 = vpop.xlane.xlu0 %3996
  %v3998 = vsel %vm734, %v3909, 0.0
  %3999 = vadd.xlane.f32.xlu0 %v3998
  %v4000 = vpop.xlane.xlu0 %3999
  %v4001 = vsel %vm734, %v3910, 0.0
  %4002 = vadd.xlane.f32.xlu0 %v4001
  %v4003 = vpop.xlane.xlu0 %4002
  %v4004 = vsel %vm734, %v3911, 0.0
  %4005 = vadd.xlane.f32.xlu0 %v4004
  %v4006 = vpop.xlane.xlu0 %4005
  %v4007 = vsel %vm734, %v3912, 0.0
  %4008 = vadd.xlane.f32.xlu0 %v4007
  %v4009 = vpop.xlane.xlu0 %4008
  %v4010 = vsel %vm734, %v3913, 0.0
  %4011 = vadd.xlane.f32.xlu0 %v4010
  %v4012 = vpop.xlane.xlu0 %4011
  %v4013 = vsel %vm734, %v3914, 0.0
  %4014 = vadd.xlane.f32.xlu0 %v4013
  %v4015 = vpop.xlane.xlu0 %4014
  %v4016 = vsel %vm734, %v3915, 0.0
  %4017 = vadd.xlane.f32.xlu0 %v4016
  %v4018 = vpop.xlane.xlu0 %4017
  %v4019 = vsel %vm734, %v3916, 0.0
  %4020 = vadd.xlane.f32.xlu0 %v4019
  %v4021 = vpop.xlane.xlu0 %4020
  %v4022 = vsel %vm734, %v3917, 0.0
  %4023 = vadd.xlane.f32.xlu0 %v4022
  %v4024 = vpop.xlane.xlu0 %4023
  %v4025 = vsel %vm734, %v3918, 0.0
  %4026 = vadd.xlane.f32.xlu0 %v4025
  %v4027 = vpop.xlane.xlu0 %4026
  %v4028 = vsel %vm734, %v3919, 0.0
  %4029 = vadd.xlane.f32.xlu0 %v4028
  %v4030 = vpop.xlane.xlu0 %4029
  %v4031 = vsel %vm734, %v3920, 0.0
  %4032 = vadd.xlane.f32.xlu0 %v4031
  %v4033 = vpop.xlane.xlu0 %4032
  %v4034 = vsel %vm734, %v3921, 0.0
  %4035 = vadd.xlane.f32.xlu0 %v4034
  %v4036 = vpop.xlane.xlu0 %4035
  %v4037 = vsel %vm734, %v3922, 0.0
  %4038 = vadd.xlane.f32.xlu0 %v4037
  %v4039 = vpop.xlane.xlu0 %4038
  %v4040 = vsel %vm734, %v3923, 0.0
  %4041 = vadd.xlane.f32.xlu0 %v4040
  %v4042 = vpop.xlane.xlu0 %4041
  %v4043 = vsel %vm734, %v3924, 0.0
  %4044 = vadd.xlane.f32.xlu0 %v4043
  %v4045 = vpop.xlane.xlu0 %4044
  %v4046 = vsel %vm734, %v3925, 0.0
  %4047 = vadd.xlane.f32.xlu0 %v4046
  %v4048 = vpop.xlane.xlu0 %4047
  %v4049 = vsel %vm734, %v3926, 0.0
  %4050 = vadd.xlane.f32.xlu0 %v4049
  %v4051 = vpop.xlane.xlu0 %4050
  %v4052 = vsel %vm734, %v3927, 0.0
  %4053 = vadd.xlane.f32.xlu0 %v4052
  %v4054 = vpop.xlane.xlu0 %4053
  %v4055 = vsel %vm734, %v3928, 0.0
  %4056 = vadd.xlane.f32.xlu0 %v4055
  %v4057 = vpop.xlane.xlu0 %4056
  %v4058 = vsel %vm734, %v3929, 0.0
  %4059 = vadd.xlane.f32.xlu0 %v4058
  %v4060 = vpop.xlane.xlu0 %4059
  %v4061 = vsel %vm734, %v3930, 0.0
  %4062 = vadd.xlane.f32.xlu0 %v4061
  %v4063 = vpop.xlane.xlu0 %4062
  %v4064 = vsel %vm734, %v3931, 0.0
  %4065 = vadd.xlane.f32.xlu0 %v4064
  %v4066 = vpop.xlane.xlu0 %4065
  %v4067 = vsel %vm734, %v3932, 0.0
  %4068 = vadd.xlane.f32.xlu0 %v4067
  %v4069 = vpop.xlane.xlu0 %4068
  %v4070 = vsel %vm734, %v3933, 0.0
  %4071 = vadd.xlane.f32.xlu0 %v4070
  %v4072 = vpop.xlane.xlu0 %4071
  %v4073 = vsel %vm734, %v3934, 0.0
  %4074 = vadd.xlane.f32.xlu0 %v4073
  %v4075 = vpop.xlane.xlu0 %4074
  %v4076 = vsel %vm734, %v3935, 0.0
  %4077 = vadd.xlane.f32.xlu0 %v4076
  %v4078 = vpop.xlane.xlu0 %4077
  %v4079 = vsel %vm734, %v3936, 0.0
  %4080 = vadd.xlane.f32.xlu0 %v4079
  %v4081 = vpop.xlane.xlu0 %4080
  %v4082 = vsel %vm734, %v3937, 0.0
  %4083 = vadd.xlane.f32.xlu0 %v4082
  %v4084 = vpop.xlane.xlu0 %4083
  %v4085 = vsel %vm734, %v3938, 0.0
  %4086 = vadd.xlane.f32.xlu0 %v4085
  %v4087 = vpop.xlane.xlu0 %4086
  %v4088 = vsel %vm734, %v3939, 0.0
  %4089 = vadd.xlane.f32.xlu0 %v4088
  %v4090 = vpop.xlane.xlu0 %4089
  %v4091 = vsel %vm734, %v3940, 0.0
  %4092 = vadd.xlane.f32.xlu0 %v4091
  %v4093 = vpop.xlane.xlu0 %4092
  %v4094 = vsel %vm734, %v3941, 0.0
  %4095 = vadd.xlane.f32.xlu0 %v4094
  %v4096 = vpop.xlane.xlu0 %4095
  %v4097 = vsel %vm734, %v3942, 0.0
  %4098 = vadd.xlane.f32.xlu0 %v4097
  %v4099 = vpop.xlane.xlu0 %4098
  %v4100 = vsel %vm734, %v3943, 0.0
  %4101 = vadd.xlane.f32.xlu0 %v4100
  %v4102 = vpop.xlane.xlu0 %4101
  %v4103 = vsel %vm734, %v3944, 0.0
  %4104 = vadd.xlane.f32.xlu0 %v4103
  %v4105 = vpop.xlane.xlu0 %4104
  %v4106 = vsel %vm734, %v3945, 0.0
  %4107 = vadd.xlane.f32.xlu0 %v4106
  %v4108 = vpop.xlane.xlu0 %4107
  %v4109 = vsel %vm734, %v3946, 0.0
  %4110 = vadd.xlane.f32.xlu0 %v4109
  %v4111 = vpop.xlane.xlu0 %4110
  %v4112 = vsel %vm734, %v3947, 0.0
  %4113 = vadd.xlane.f32.xlu0 %v4112
  %v4114 = vpop.xlane.xlu0 %4113
  %v4115 = vsel %vm734, %v3948, 0.0
  %4116 = vadd.xlane.f32.xlu0 %v4115
  %v4117 = vpop.xlane.xlu0 %4116
  %v4118 = vsel %vm734, %v3949, 0.0
  %4119 = vadd.xlane.f32.xlu0 %v4118
  %v4120 = vpop.xlane.xlu0 %4119
  %v4121 = vsel %vm734, %v3950, 0.0
  %4122 = vadd.xlane.f32.xlu0 %v4121
  %v4123 = vpop.xlane.xlu0 %4122
  %v4124 = vsel %vm734, %v3951, 0.0
  %4125 = vadd.xlane.f32.xlu0 %v4124
  %v4126 = vpop.xlane.xlu0 %4125
  %v4127 = vsel %vm734, %v3952, 0.0
  %4128 = vadd.xlane.f32.xlu0 %v4127
  %v4129 = vpop.xlane.xlu0 %4128
  %v4130 = vsel %vm734, %v3953, 0.0
  %4131 = vadd.xlane.f32.xlu0 %v4130
  %v4132 = vpop.xlane.xlu0 %4131
  %v4133 = vsel %vm734, %v3954, 0.0
  %4134 = vadd.xlane.f32.xlu0 %v4133
  %v4135 = vpop.xlane.xlu0 %4134
  %v4136 = vsel %vm734, %v3955, 0.0
  %4137 = vadd.xlane.f32.xlu0 %v4136
  %v4138 = vpop.xlane.xlu0 %4137
  %v4139 = vsel %vm734, %v3956, 0.0
  %4140 = vadd.xlane.f32.xlu0 %v4139
  %v4141 = vpop.xlane.xlu0 %4140
  %v4142 = vsel %vm734, %v3957, 0.0
  %4143 = vadd.xlane.f32.xlu0 %v4142
  %v4144 = vpop.xlane.xlu0 %4143
  %v4145 = vsel %vm734, %v3958, 0.0
  %4146 = vadd.xlane.f32.xlu0 %v4145
  %v4147 = vpop.xlane.xlu0 %4146
  %v4148 = vmul.f32 %v3961, 0.03125
  %v4149 = vmul.f32 %v3964, 0.03125
  %v4150 = vmul.f32 %v3967, 0.03125
  %v4151 = vmul.f32 %v3970, 0.03125
  %v4152 = vmul.f32 %v3973, 0.03125
  %v4153 = vmul.f32 %v3976, 0.03125
  %v4154 = vmul.f32 %v3979, 0.03125
  %v4155 = vmul.f32 %v3982, 0.03125
  %v4156 = vmul.f32 %v3985, 0.03125
  %v4157 = vmul.f32 %v3988, 0.03125
  %v4158 = vmul.f32 %v3991, 0.03125
  %v4159 = vmul.f32 %v3994, 0.03125
  %v4160 = vmul.f32 %v3997, 0.03125
  %v4161 = vmul.f32 %v4000, 0.03125
  %v4162 = vmul.f32 %v4003, 0.03125
  %v4163 = vmul.f32 %v4006, 0.03125
  %v4164 = vmul.f32 %v4009, 0.03125
  %v4165 = vmul.f32 %v4012, 0.03125
  %v4166 = vmul.f32 %v4015, 0.03125
  %v4167 = vmul.f32 %v4018, 0.03125
  %v4168 = vmul.f32 %v4021, 0.03125
  %v4169 = vmul.f32 %v4024, 0.03125
  %v4170 = vmul.f32 %v4027, 0.03125
  %v4171 = vmul.f32 %v4030, 0.03125
  %v4172 = vmul.f32 %v4033, 0.03125
  %v4173 = vmul.f32 %v4036, 0.03125
  %v4174 = vmul.f32 %v4039, 0.03125
  %v4175 = vmul.f32 %v4042, 0.03125
  %v4176 = vmul.f32 %v4045, 0.03125
  %v4177 = vmul.f32 %v4048, 0.03125
  %v4178 = vmul.f32 %v4051, 0.03125
  %v4179 = vmul.f32 %v4054, 0.03125
  %v4180 = vmul.f32 %v4057, 0.03125
  %v4181 = vmul.f32 %v4060, 0.03125
  %v4182 = vmul.f32 %v4063, 0.03125
  %v4183 = vmul.f32 %v4066, 0.03125
  %v4184 = vmul.f32 %v4069, 0.03125
  %v4185 = vmul.f32 %v4072, 0.03125
  %v4186 = vmul.f32 %v4075, 0.03125
  %v4187 = vmul.f32 %v4078, 0.03125
  %v4188 = vmul.f32 %v4081, 0.03125
  %v4189 = vmul.f32 %v4084, 0.03125
  %v4190 = vmul.f32 %v4087, 0.03125
  %v4191 = vmul.f32 %v4090, 0.03125
  %v4192 = vmul.f32 %v4093, 0.03125
  %v4193 = vmul.f32 %v4096, 0.03125
  %v4194 = vmul.f32 %v4099, 0.03125
  %v4195 = vmul.f32 %v4102, 0.03125
  %v4196 = vmul.f32 %v4105, 0.03125
  %v4197 = vmul.f32 %v4108, 0.03125
  %v4198 = vmul.f32 %v4111, 0.03125
  %v4199 = vmul.f32 %v4114, 0.03125
  %v4200 = vmul.f32 %v4117, 0.03125
  %v4201 = vmul.f32 %v4120, 0.03125
  %v4202 = vmul.f32 %v4123, 0.03125
  %v4203 = vmul.f32 %v4126, 0.03125
  %v4204 = vmul.f32 %v4129, 0.03125
  %v4205 = vmul.f32 %v4132, 0.03125
  %v4206 = vmul.f32 %v4135, 0.03125
  %v4207 = vmul.f32 %v4138, 0.03125
  %v4208 = vmul.f32 %v4141, 0.03125
  %v4209 = vmul.f32 %v4144, 0.03125
  %v4210 = vmul.f32 %v4147, 0.03125
  %v4211 = vmul.f32 %v3833, %v3833
  %v4212 = vmul.f32 %v3834, %v3834
  %v4213 = vmul.f32 %v3835, %v3835
  %v4214 = vmul.f32 %v3836, %v3836
  %v4215 = vmul.f32 %v3837, %v3837
  %v4216 = vmul.f32 %v3838, %v3838
  %v4217 = vmul.f32 %v3839, %v3839
  %v4218 = vmul.f32 %v3840, %v3840
  %v4219 = vmul.f32 %v3841, %v3841
  %v4220 = vmul.f32 %v3842, %v3842
  %v4221 = vmul.f32 %v3843, %v3843
  %v4222 = vmul.f32 %v3844, %v3844
  %v4223 = vmul.f32 %v3845, %v3845
  %v4224 = vmul.f32 %v3846, %v3846
  %v4225 = vmul.f32 %v3847, %v3847
  %v4226 = vmul.f32 %v3848, %v3848
  %v4227 = vmul.f32 %v3849, %v3849
  %v4228 = vmul.f32 %v3850, %v3850
  %v4229 = vmul.f32 %v3851, %v3851
  %v4230 = vmul.f32 %v3852, %v3852
  %v4231 = vmul.f32 %v3853, %v3853
  %v4232 = vmul.f32 %v3854, %v3854
  %v4233 = vmul.f32 %v3855, %v3855
  %v4234 = vmul.f32 %v3856, %v3856
  %v4235 = vmul.f32 %v3857, %v3857
  %v4236 = vmul.f32 %v3858, %v3858
  %v4237 = vmul.f32 %v3859, %v3859
  %v4238 = vmul.f32 %v3860, %v3860
  %v4239 = vmul.f32 %v3861, %v3861
  %v4240 = vmul.f32 %v3862, %v3862
  %v4241 = vmul.f32 %v3863, %v3863
  %v4242 = vmul.f32 %v3864, %v3864
  %v4243 = vmul.f32 %v3865, %v3865
  %v4244 = vmul.f32 %v3866, %v3866
  %v4245 = vmul.f32 %v3867, %v3867
  %v4246 = vmul.f32 %v3868, %v3868
  %v4247 = vmul.f32 %v3869, %v3869
  %v4248 = vmul.f32 %v3870, %v3870
  %v4249 = vmul.f32 %v3871, %v3871
  %v4250 = vmul.f32 %v3872, %v3872
  %v4251 = vmul.f32 %v3873, %v3873
  %v4252 = vmul.f32 %v3874, %v3874
  %v4253 = vmul.f32 %v3875, %v3875
  %v4254 = vmul.f32 %v3876, %v3876
  %v4255 = vmul.f32 %v3877, %v3877
  %v4256 = vmul.f32 %v3878, %v3878
  %v4257 = vmul.f32 %v3879, %v3879
  %v4258 = vmul.f32 %v3880, %v3880
  %v4259 = vmul.f32 %v3881, %v3881
  %v4260 = vmul.f32 %v3882, %v3882
  %v4261 = vmul.f32 %v3883, %v3883
  %v4262 = vmul.f32 %v3884, %v3884
  %v4263 = vmul.f32 %v3885, %v3885
  %v4264 = vmul.f32 %v3886, %v3886
  %v4265 = vmul.f32 %v3887, %v3887
  %v4266 = vmul.f32 %v3888, %v3888
  %v4267 = vmul.f32 %v3889, %v3889
  %v4268 = vmul.f32 %v3890, %v3890
  %v4269 = vmul.f32 %v3891, %v3891
  %v4270 = vmul.f32 %v3892, %v3892
  %v4271 = vmul.f32 %v3893, %v3893
  %v4272 = vmul.f32 %v3894, %v3894
  %v4273 = vmul.f32 %v3895, %v3895
  %v4274 = vsel %vm734, %v4211, 0.0
  %4275 = vadd.xlane.f32.xlu0 %v4274
  %v4276 = vpop.xlane.xlu0 %4275
  %v4277 = vsel %vm734, %v4212, 0.0
  %4278 = vadd.xlane.f32.xlu0 %v4277
  %v4279 = vpop.xlane.xlu0 %4278
  %v4280 = vsel %vm734, %v4213, 0.0
  %4281 = vadd.xlane.f32.xlu0 %v4280
  %v4282 = vpop.xlane.xlu0 %4281
  %v4283 = vsel %vm734, %v4214, 0.0
  %4284 = vadd.xlane.f32.xlu0 %v4283
  %v4285 = vpop.xlane.xlu0 %4284
  %v4286 = vsel %vm734, %v4215, 0.0
  %4287 = vadd.xlane.f32.xlu0 %v4286
  %v4288 = vpop.xlane.xlu0 %4287
  %v4289 = vsel %vm734, %v4216, 0.0
  %4290 = vadd.xlane.f32.xlu0 %v4289
  %v4291 = vpop.xlane.xlu0 %4290
  %v4292 = vsel %vm734, %v4217, 0.0
  %4293 = vadd.xlane.f32.xlu0 %v4292
  %v4294 = vpop.xlane.xlu0 %4293
  %v4295 = vsel %vm734, %v4218, 0.0
  %4296 = vadd.xlane.f32.xlu0 %v4295
  %v4297 = vpop.xlane.xlu0 %4296
  %v4298 = vsel %vm734, %v4219, 0.0
  %4299 = vadd.xlane.f32.xlu0 %v4298
  %v4300 = vpop.xlane.xlu0 %4299
  %v4301 = vsel %vm734, %v4220, 0.0
  %4302 = vadd.xlane.f32.xlu0 %v4301
  %v4303 = vpop.xlane.xlu0 %4302
  %v4304 = vsel %vm734, %v4221, 0.0
  %4305 = vadd.xlane.f32.xlu0 %v4304
  %v4306 = vpop.xlane.xlu0 %4305
  %v4307 = vsel %vm734, %v4222, 0.0
  %4308 = vadd.xlane.f32.xlu0 %v4307
  %v4309 = vpop.xlane.xlu0 %4308
  %v4310 = vsel %vm734, %v4223, 0.0
  %4311 = vadd.xlane.f32.xlu0 %v4310
  %v4312 = vpop.xlane.xlu0 %4311
  %v4313 = vsel %vm734, %v4224, 0.0
  %4314 = vadd.xlane.f32.xlu0 %v4313
  %v4315 = vpop.xlane.xlu0 %4314
  %v4316 = vsel %vm734, %v4225, 0.0
  %4317 = vadd.xlane.f32.xlu0 %v4316
  %v4318 = vpop.xlane.xlu0 %4317
  %v4319 = vsel %vm734, %v4226, 0.0
  %4320 = vadd.xlane.f32.xlu0 %v4319
  %v4321 = vpop.xlane.xlu0 %4320
  %v4322 = vsel %vm734, %v4227, 0.0
  %4323 = vadd.xlane.f32.xlu0 %v4322
  %v4324 = vpop.xlane.xlu0 %4323
  %v4325 = vsel %vm734, %v4228, 0.0
  %4326 = vadd.xlane.f32.xlu0 %v4325
  %v4327 = vpop.xlane.xlu0 %4326
  %v4328 = vsel %vm734, %v4229, 0.0
  %4329 = vadd.xlane.f32.xlu0 %v4328
  %v4330 = vpop.xlane.xlu0 %4329
  %v4331 = vsel %vm734, %v4230, 0.0
  %4332 = vadd.xlane.f32.xlu0 %v4331
  %v4333 = vpop.xlane.xlu0 %4332
  %v4334 = vsel %vm734, %v4231, 0.0
  %4335 = vadd.xlane.f32.xlu0 %v4334
  %v4336 = vpop.xlane.xlu0 %4335
  %v4337 = vsel %vm734, %v4232, 0.0
  %4338 = vadd.xlane.f32.xlu0 %v4337
  %v4339 = vpop.xlane.xlu0 %4338
  %v4340 = vsel %vm734, %v4233, 0.0
  %4341 = vadd.xlane.f32.xlu0 %v4340
  %v4342 = vpop.xlane.xlu0 %4341
  %v4343 = vsel %vm734, %v4234, 0.0
  %4344 = vadd.xlane.f32.xlu0 %v4343
  %v4345 = vpop.xlane.xlu0 %4344
  %v4346 = vsel %vm734, %v4235, 0.0
  %4347 = vadd.xlane.f32.xlu0 %v4346
  %v4348 = vpop.xlane.xlu0 %4347
  %v4349 = vsel %vm734, %v4236, 0.0
  %4350 = vadd.xlane.f32.xlu0 %v4349
  %v4351 = vpop.xlane.xlu0 %4350
  %v4352 = vsel %vm734, %v4237, 0.0
  %4353 = vadd.xlane.f32.xlu0 %v4352
  %v4354 = vpop.xlane.xlu0 %4353
  %v4355 = vsel %vm734, %v4238, 0.0
  %4356 = vadd.xlane.f32.xlu0 %v4355
  %v4357 = vpop.xlane.xlu0 %4356
  %v4358 = vsel %vm734, %v4239, 0.0
  %4359 = vadd.xlane.f32.xlu0 %v4358
  %v4360 = vpop.xlane.xlu0 %4359
  %v4361 = vsel %vm734, %v4240, 0.0
  %4362 = vadd.xlane.f32.xlu0 %v4361
  %v4363 = vpop.xlane.xlu0 %4362
  %v4364 = vsel %vm734, %v4241, 0.0
  %4365 = vadd.xlane.f32.xlu0 %v4364
  %v4366 = vpop.xlane.xlu0 %4365
  %v4367 = vsel %vm734, %v4242, 0.0
  %4368 = vadd.xlane.f32.xlu0 %v4367
  %v4369 = vpop.xlane.xlu0 %4368
  %v4370 = vsel %vm734, %v4243, 0.0
  %4371 = vadd.xlane.f32.xlu0 %v4370
  %v4372 = vpop.xlane.xlu0 %4371
  %v4373 = vsel %vm734, %v4244, 0.0
  %4374 = vadd.xlane.f32.xlu0 %v4373
  %v4375 = vpop.xlane.xlu0 %4374
  %v4376 = vsel %vm734, %v4245, 0.0
  %4377 = vadd.xlane.f32.xlu0 %v4376
  %v4378 = vpop.xlane.xlu0 %4377
  %v4379 = vsel %vm734, %v4246, 0.0
  %4380 = vadd.xlane.f32.xlu0 %v4379
  %v4381 = vpop.xlane.xlu0 %4380
  %v4382 = vsel %vm734, %v4247, 0.0
  %4383 = vadd.xlane.f32.xlu0 %v4382
  %v4384 = vpop.xlane.xlu0 %4383
  %v4385 = vsel %vm734, %v4248, 0.0
  %4386 = vadd.xlane.f32.xlu0 %v4385
  %v4387 = vpop.xlane.xlu0 %4386
  %v4388 = vsel %vm734, %v4249, 0.0
  %4389 = vadd.xlane.f32.xlu0 %v4388
  %v4390 = vpop.xlane.xlu0 %4389
  %v4391 = vsel %vm734, %v4250, 0.0
  %4392 = vadd.xlane.f32.xlu0 %v4391
  %v4393 = vpop.xlane.xlu0 %4392
  %v4394 = vsel %vm734, %v4251, 0.0
  %4395 = vadd.xlane.f32.xlu0 %v4394
  %v4396 = vpop.xlane.xlu0 %4395
  %v4397 = vsel %vm734, %v4252, 0.0
  %4398 = vadd.xlane.f32.xlu0 %v4397
  %v4399 = vpop.xlane.xlu0 %4398
  %v4400 = vsel %vm734, %v4253, 0.0
  %4401 = vadd.xlane.f32.xlu0 %v4400
  %v4402 = vpop.xlane.xlu0 %4401
  %v4403 = vsel %vm734, %v4254, 0.0
  %4404 = vadd.xlane.f32.xlu0 %v4403
  %v4405 = vpop.xlane.xlu0 %4404
  %v4406 = vsel %vm734, %v4255, 0.0
  %4407 = vadd.xlane.f32.xlu0 %v4406
  %v4408 = vpop.xlane.xlu0 %4407
  %v4409 = vsel %vm734, %v4256, 0.0
  %4410 = vadd.xlane.f32.xlu0 %v4409
  %v4411 = vpop.xlane.xlu0 %4410
  %v4412 = vsel %vm734, %v4257, 0.0
  %4413 = vadd.xlane.f32.xlu0 %v4412
  %v4414 = vpop.xlane.xlu0 %4413
  %v4415 = vsel %vm734, %v4258, 0.0
  %4416 = vadd.xlane.f32.xlu0 %v4415
  %v4417 = vpop.xlane.xlu0 %4416
  %v4418 = vsel %vm734, %v4259, 0.0
  %4419 = vadd.xlane.f32.xlu0 %v4418
  %v4420 = vpop.xlane.xlu0 %4419
  %v4421 = vsel %vm734, %v4260, 0.0
  %4422 = vadd.xlane.f32.xlu0 %v4421
  %v4423 = vpop.xlane.xlu0 %4422
  %v4424 = vsel %vm734, %v4261, 0.0
  %4425 = vadd.xlane.f32.xlu0 %v4424
  %v4426 = vpop.xlane.xlu0 %4425
  %v4427 = vsel %vm734, %v4262, 0.0
  %4428 = vadd.xlane.f32.xlu0 %v4427
  %v4429 = vpop.xlane.xlu0 %4428
  %v4430 = vsel %vm734, %v4263, 0.0
  %4431 = vadd.xlane.f32.xlu0 %v4430
  %v4432 = vpop.xlane.xlu0 %4431
  %v4433 = vsel %vm734, %v4264, 0.0
  %4434 = vadd.xlane.f32.xlu0 %v4433
  %v4435 = vpop.xlane.xlu0 %4434
  %v4436 = vsel %vm734, %v4265, 0.0
  %4437 = vadd.xlane.f32.xlu0 %v4436
  %v4438 = vpop.xlane.xlu0 %4437
  %v4439 = vsel %vm734, %v4266, 0.0
  %4440 = vadd.xlane.f32.xlu0 %v4439
  %v4441 = vpop.xlane.xlu0 %4440
  %v4442 = vsel %vm734, %v4267, 0.0
  %4443 = vadd.xlane.f32.xlu0 %v4442
  %v4444 = vpop.xlane.xlu0 %4443
  %v4445 = vsel %vm734, %v4268, 0.0
  %4446 = vadd.xlane.f32.xlu0 %v4445
  %v4447 = vpop.xlane.xlu0 %4446
  %v4448 = vsel %vm734, %v4269, 0.0
  %4449 = vadd.xlane.f32.xlu0 %v4448
  %v4450 = vpop.xlane.xlu0 %4449
  %v4451 = vsel %vm734, %v4270, 0.0
  %4452 = vadd.xlane.f32.xlu0 %v4451
  %v4453 = vpop.xlane.xlu0 %4452
  %v4454 = vsel %vm734, %v4271, 0.0
  %4455 = vadd.xlane.f32.xlu0 %v4454
  %v4456 = vpop.xlane.xlu0 %4455
  %v4457 = vsel %vm734, %v4272, 0.0
  %4458 = vadd.xlane.f32.xlu0 %v4457
  %v4459 = vpop.xlane.xlu0 %4458
  %v4460 = vsel %vm734, %v4273, 0.0
  %4461 = vadd.xlane.f32.xlu0 %v4460
  %v4462 = vpop.xlane.xlu0 %4461
  %v4463 = vmul.f32 %v4276, 0.03125
  %v4464 = vmul.f32 %v4279, 0.03125
  %v4465 = vmul.f32 %v4282, 0.03125
  %v4466 = vmul.f32 %v4285, 0.03125
  %v4467 = vmul.f32 %v4288, 0.03125
  %v4468 = vmul.f32 %v4291, 0.03125
  %v4469 = vmul.f32 %v4294, 0.03125
  %v4470 = vmul.f32 %v4297, 0.03125
  %v4471 = vmul.f32 %v4300, 0.03125
  %v4472 = vmul.f32 %v4303, 0.03125
  %v4473 = vmul.f32 %v4306, 0.03125
  %v4474 = vmul.f32 %v4309, 0.03125
  %v4475 = vmul.f32 %v4312, 0.03125
  %v4476 = vmul.f32 %v4315, 0.03125
  %v4477 = vmul.f32 %v4318, 0.03125
  %v4478 = vmul.f32 %v4321, 0.03125
  %v4479 = vmul.f32 %v4324, 0.03125
  %v4480 = vmul.f32 %v4327, 0.03125
  %v4481 = vmul.f32 %v4330, 0.03125
  %v4482 = vmul.f32 %v4333, 0.03125
  %v4483 = vmul.f32 %v4336, 0.03125
  %v4484 = vmul.f32 %v4339, 0.03125
  %v4485 = vmul.f32 %v4342, 0.03125
  %v4486 = vmul.f32 %v4345, 0.03125
  %v4487 = vmul.f32 %v4348, 0.03125
  %v4488 = vmul.f32 %v4351, 0.03125
  %v4489 = vmul.f32 %v4354, 0.03125
  %v4490 = vmul.f32 %v4357, 0.03125
  %v4491 = vmul.f32 %v4360, 0.03125
  %v4492 = vmul.f32 %v4363, 0.03125
  %v4493 = vmul.f32 %v4366, 0.03125
  %v4494 = vmul.f32 %v4369, 0.03125
  %v4495 = vmul.f32 %v4372, 0.03125
  %v4496 = vmul.f32 %v4375, 0.03125
  %v4497 = vmul.f32 %v4378, 0.03125
  %v4498 = vmul.f32 %v4381, 0.03125
  %v4499 = vmul.f32 %v4384, 0.03125
  %v4500 = vmul.f32 %v4387, 0.03125
  %v4501 = vmul.f32 %v4390, 0.03125
  %v4502 = vmul.f32 %v4393, 0.03125
  %v4503 = vmul.f32 %v4396, 0.03125
  %v4504 = vmul.f32 %v4399, 0.03125
  %v4505 = vmul.f32 %v4402, 0.03125
  %v4506 = vmul.f32 %v4405, 0.03125
  %v4507 = vmul.f32 %v4408, 0.03125
  %v4508 = vmul.f32 %v4411, 0.03125
  %v4509 = vmul.f32 %v4414, 0.03125
  %v4510 = vmul.f32 %v4417, 0.03125
  %v4511 = vmul.f32 %v4420, 0.03125
  %v4512 = vmul.f32 %v4423, 0.03125
  %v4513 = vmul.f32 %v4426, 0.03125
  %v4514 = vmul.f32 %v4429, 0.03125
  %v4515 = vmul.f32 %v4432, 0.03125
  %v4516 = vmul.f32 %v4435, 0.03125
  %v4517 = vmul.f32 %v4438, 0.03125
  %v4518 = vmul.f32 %v4441, 0.03125
  %v4519 = vmul.f32 %v4444, 0.03125
  %v4520 = vmul.f32 %v4447, 0.03125
  %v4521 = vmul.f32 %v4450, 0.03125
  %v4522 = vmul.f32 %v4453, 0.03125
  %v4523 = vmul.f32 %v4456, 0.03125
  %v4524 = vmul.f32 %v4459, 0.03125
  %v4525 = vmul.f32 %v4462, 0.03125
  %v4526 = vsel %vm607, %v4148, %v4463
  %v4527 = vsel %vm607, %v4149, %v4464
  %v4528 = vsel %vm607, %v4150, %v4465
  %v4529 = vsel %vm607, %v4151, %v4466
  %v4530 = vsel %vm607, %v4152, %v4467
  %v4531 = vsel %vm607, %v4153, %v4468
  %v4532 = vsel %vm607, %v4154, %v4469
  %v4533 = vsel %vm607, %v4155, %v4470
  %v4534 = vsel %vm607, %v4156, %v4471
  %v4535 = vsel %vm607, %v4157, %v4472
  %v4536 = vsel %vm607, %v4158, %v4473
  %v4537 = vsel %vm607, %v4159, %v4474
  %v4538 = vsel %vm607, %v4160, %v4475
  %v4539 = vsel %vm607, %v4161, %v4476
  %v4540 = vsel %vm607, %v4162, %v4477
  %v4541 = vsel %vm607, %v4163, %v4478
  %v4542 = vsel %vm607, %v4164, %v4479
  %v4543 = vsel %vm607, %v4165, %v4480
  %v4544 = vsel %vm607, %v4166, %v4481
  %v4545 = vsel %vm607, %v4167, %v4482
  %v4546 = vsel %vm607, %v4168, %v4483
  %v4547 = vsel %vm607, %v4169, %v4484
  %v4548 = vsel %vm607, %v4170, %v4485
  %v4549 = vsel %vm607, %v4171, %v4486
  %v4550 = vsel %vm607, %v4172, %v4487
  %v4551 = vsel %vm607, %v4173, %v4488
  %v4552 = vsel %vm607, %v4174, %v4489
  %v4553 = vsel %vm607, %v4175, %v4490
  %v4554 = vsel %vm607, %v4176, %v4491
  %v4555 = vsel %vm607, %v4177, %v4492
  %v4556 = vsel %vm607, %v4178, %v4493
  %v4557 = vsel %vm607, %v4179, %v4494
  %v4558 = vsel %vm607, %v4180, %v4495
  %v4559 = vsel %vm607, %v4181, %v4496
  %v4560 = vsel %vm607, %v4182, %v4497
  %v4561 = vsel %vm607, %v4183, %v4498
  %v4562 = vsel %vm607, %v4184, %v4499
  %v4563 = vsel %vm607, %v4185, %v4500
  %v4564 = vsel %vm607, %v4186, %v4501
  %v4565 = vsel %vm607, %v4187, %v4502
  %v4566 = vsel %vm607, %v4188, %v4503
  %v4567 = vsel %vm607, %v4189, %v4504
  %v4568 = vsel %vm607, %v4190, %v4505
  %v4569 = vsel %vm607, %v4191, %v4506
  %v4570 = vsel %vm607, %v4192, %v4507
  %v4571 = vsel %vm607, %v4193, %v4508
  %v4572 = vsel %vm607, %v4194, %v4509
  %v4573 = vsel %vm607, %v4195, %v4510
  %v4574 = vsel %vm607, %v4196, %v4511
  %v4575 = vsel %vm607, %v4197, %v4512
  %v4576 = vsel %vm607, %v4198, %v4513
  %v4577 = vsel %vm607, %v4199, %v4514
  %v4578 = vsel %vm607, %v4200, %v4515
  %v4579 = vsel %vm607, %v4201, %v4516
  %v4580 = vsel %vm607, %v4202, %v4517
  %v4581 = vsel %vm607, %v4203, %v4518
  %v4582 = vsel %vm607, %v4204, %v4519
  %v4583 = vsel %vm607, %v4205, %v4520
  %v4584 = vsel %vm607, %v4206, %v4521
  %v4585 = vsel %vm607, %v4207, %v4522
  %v4586 = vsel %vm607, %v4208, %v4523
  %v4587 = vsel %vm607, %v4209, %v4524
  %v4588 = vsel %vm607, %v4210, %v4525
  %v4589 = vadd.f32 %v4526, 1e-05
  %v4590 = vadd.f32 %v4527, 1e-05
  %v4591 = vadd.f32 %v4528, 1e-05
  %v4592 = vadd.f32 %v4529, 1e-05
  %v4593 = vadd.f32 %v4530, 1e-05
  %v4594 = vadd.f32 %v4531, 1e-05
  %v4595 = vadd.f32 %v4532, 1e-05
  %v4596 = vadd.f32 %v4533, 1e-05
  %v4597 = vadd.f32 %v4534, 1e-05
  %v4598 = vadd.f32 %v4535, 1e-05
  %v4599 = vadd.f32 %v4536, 1e-05
  %v4600 = vadd.f32 %v4537, 1e-05
  %v4601 = vadd.f32 %v4538, 1e-05
  %v4602 = vadd.f32 %v4539, 1e-05
  %v4603 = vadd.f32 %v4540, 1e-05
  %v4604 = vadd.f32 %v4541, 1e-05
  %v4605 = vadd.f32 %v4542, 1e-05
  %v4606 = vadd.f32 %v4543, 1e-05
  %v4607 = vadd.f32 %v4544, 1e-05
  %v4608 = vadd.f32 %v4545, 1e-05
  %v4609 = vadd.f32 %v4546, 1e-05
  %v4610 = vadd.f32 %v4547, 1e-05
  %v4611 = vadd.f32 %v4548, 1e-05
  %v4612 = vadd.f32 %v4549, 1e-05
  %v4613 = vadd.f32 %v4550, 1e-05
  %v4614 = vadd.f32 %v4551, 1e-05
  %v4615 = vadd.f32 %v4552, 1e-05
  %v4616 = vadd.f32 %v4553, 1e-05
  %v4617 = vadd.f32 %v4554, 1e-05
  %v4618 = vadd.f32 %v4555, 1e-05
  %v4619 = vadd.f32 %v4556, 1e-05
  %v4620 = vadd.f32 %v4557, 1e-05
  %v4621 = vadd.f32 %v4558, 1e-05
  %v4622 = vadd.f32 %v4559, 1e-05
  %v4623 = vadd.f32 %v4560, 1e-05
  %v4624 = vadd.f32 %v4561, 1e-05
  %v4625 = vadd.f32 %v4562, 1e-05
  %v4626 = vadd.f32 %v4563, 1e-05
  %v4627 = vadd.f32 %v4564, 1e-05
  %v4628 = vadd.f32 %v4565, 1e-05
  %v4629 = vadd.f32 %v4566, 1e-05
  %v4630 = vadd.f32 %v4567, 1e-05
  %v4631 = vadd.f32 %v4568, 1e-05
  %v4632 = vadd.f32 %v4569, 1e-05
  %v4633 = vadd.f32 %v4570, 1e-05
  %v4634 = vadd.f32 %v4571, 1e-05
  %v4635 = vadd.f32 %v4572, 1e-05
  %v4636 = vadd.f32 %v4573, 1e-05
  %v4637 = vadd.f32 %v4574, 1e-05
  %v4638 = vadd.f32 %v4575, 1e-05
  %v4639 = vadd.f32 %v4576, 1e-05
  %v4640 = vadd.f32 %v4577, 1e-05
  %v4641 = vadd.f32 %v4578, 1e-05
  %v4642 = vadd.f32 %v4579, 1e-05
  %v4643 = vadd.f32 %v4580, 1e-05
  %v4644 = vadd.f32 %v4581, 1e-05
  %v4645 = vadd.f32 %v4582, 1e-05
  %v4646 = vadd.f32 %v4583, 1e-05
  %v4647 = vadd.f32 %v4584, 1e-05
  %v4648 = vadd.f32 %v4585, 1e-05
  %v4649 = vadd.f32 %v4586, 1e-05
  %v4650 = vadd.f32 %v4587, 1e-05
  %v4651 = vadd.f32 %v4588, 1e-05
  %v4652 = vrsqrt.pop %v4589
  %v4653 = vrsqrt.pop %v4590
  %v4654 = vrsqrt.pop %v4591
  %v4655 = vrsqrt.pop %v4592
  %v4656 = vrsqrt.pop %v4593
  %v4657 = vrsqrt.pop %v4594
  %v4658 = vrsqrt.pop %v4595
  %v4659 = vrsqrt.pop %v4596
  %v4660 = vrsqrt.pop %v4597
  %v4661 = vrsqrt.pop %v4598
  %v4662 = vrsqrt.pop %v4599
  %v4663 = vrsqrt.pop %v4600
  %v4664 = vrsqrt.pop %v4601
  %v4665 = vrsqrt.pop %v4602
  %v4666 = vrsqrt.pop %v4603
  %v4667 = vrsqrt.pop %v4604
  %v4668 = vrsqrt.pop %v4605
  %v4669 = vrsqrt.pop %v4606
  %v4670 = vrsqrt.pop %v4607
  %v4671 = vrsqrt.pop %v4608
  %v4672 = vrsqrt.pop %v4609
  %v4673 = vrsqrt.pop %v4610
  %v4674 = vrsqrt.pop %v4611
  %v4675 = vrsqrt.pop %v4612
  %v4676 = vrsqrt.pop %v4613
  %v4677 = vrsqrt.pop %v4614
  %v4678 = vrsqrt.pop %v4615
  %v4679 = vrsqrt.pop %v4616
  %v4680 = vrsqrt.pop %v4617
  %v4681 = vrsqrt.pop %v4618
  %v4682 = vrsqrt.pop %v4619
  %v4683 = vrsqrt.pop %v4620
  %v4684 = vrsqrt.pop %v4621
  %v4685 = vrsqrt.pop %v4622
  %v4686 = vrsqrt.pop %v4623
  %v4687 = vrsqrt.pop %v4624
  %v4688 = vrsqrt.pop %v4625
  %v4689 = vrsqrt.pop %v4626
  %v4690 = vrsqrt.pop %v4627
  %v4691 = vrsqrt.pop %v4628
  %v4692 = vrsqrt.pop %v4629
  %v4693 = vrsqrt.pop %v4630
  %v4694 = vrsqrt.pop %v4631
  %v4695 = vrsqrt.pop %v4632
  %v4696 = vrsqrt.pop %v4633
  %v4697 = vrsqrt.pop %v4634
  %v4698 = vrsqrt.pop %v4635
  %v4699 = vrsqrt.pop %v4636
  %v4700 = vrsqrt.pop %v4637
  %v4701 = vrsqrt.pop %v4638
  %v4702 = vrsqrt.pop %v4639
  %v4703 = vrsqrt.pop %v4640
  %v4704 = vrsqrt.pop %v4641
  %v4705 = vrsqrt.pop %v4642
  %v4706 = vrsqrt.pop %v4643
  %v4707 = vrsqrt.pop %v4644
  %v4708 = vrsqrt.pop %v4645
  %v4709 = vrsqrt.pop %v4646
  %v4710 = vrsqrt.pop %v4647
  %v4711 = vrsqrt.pop %v4648
  %v4712 = vrsqrt.pop %v4649
  %v4713 = vrsqrt.pop %v4650
  %v4714 = vrsqrt.pop %v4651
  %v4715 = vmul.f32 %v3707, %v4652
  %v4716 = vmul.f32 %v3708, %v4653
  %v4717 = vmul.f32 %v3709, %v4654
  %v4718 = vmul.f32 %v3710, %v4655
  %v4719 = vmul.f32 %v3711, %v4656
  %v4720 = vmul.f32 %v3712, %v4657
  %v4721 = vmul.f32 %v3713, %v4658
  %v4722 = vmul.f32 %v3714, %v4659
  %v4723 = vmul.f32 %v3715, %v4660
  %v4724 = vmul.f32 %v3716, %v4661
  %v4725 = vmul.f32 %v3717, %v4662
  %v4726 = vmul.f32 %v3718, %v4663
  %v4727 = vmul.f32 %v3719, %v4664
  %v4728 = vmul.f32 %v3720, %v4665
  %v4729 = vmul.f32 %v3721, %v4666
  %v4730 = vmul.f32 %v3722, %v4667
  %v4731 = vmul.f32 %v3723, %v4668
  %v4732 = vmul.f32 %v3724, %v4669
  %v4733 = vmul.f32 %v3725, %v4670
  %v4734 = vmul.f32 %v3726, %v4671
  %v4735 = vmul.f32 %v3727, %v4672
  %v4736 = vmul.f32 %v3728, %v4673
  %v4737 = vmul.f32 %v3729, %v4674
  %v4738 = vmul.f32 %v3730, %v4675
  %v4739 = vmul.f32 %v3731, %v4676
  %v4740 = vmul.f32 %v3732, %v4677
  %v4741 = vmul.f32 %v3733, %v4678
  %v4742 = vmul.f32 %v3734, %v4679
  %v4743 = vmul.f32 %v3735, %v4680
  %v4744 = vmul.f32 %v3736, %v4681
  %v4745 = vmul.f32 %v3737, %v4682
  %v4746 = vmul.f32 %v3738, %v4683
  %v4747 = vmul.f32 %v3739, %v4684
  %v4748 = vmul.f32 %v3740, %v4685
  %v4749 = vmul.f32 %v3741, %v4686
  %v4750 = vmul.f32 %v3742, %v4687
  %v4751 = vmul.f32 %v3743, %v4688
  %v4752 = vmul.f32 %v3744, %v4689
  %v4753 = vmul.f32 %v3745, %v4690
  %v4754 = vmul.f32 %v3746, %v4691
  %v4755 = vmul.f32 %v3747, %v4692
  %v4756 = vmul.f32 %v3748, %v4693
  %v4757 = vmul.f32 %v3749, %v4694
  %v4758 = vmul.f32 %v3750, %v4695
  %v4759 = vmul.f32 %v3751, %v4696
  %v4760 = vmul.f32 %v3752, %v4697
  %v4761 = vmul.f32 %v3753, %v4698
  %v4762 = vmul.f32 %v3754, %v4699
  %v4763 = vmul.f32 %v3755, %v4700
  %v4764 = vmul.f32 %v3756, %v4701
  %v4765 = vmul.f32 %v3757, %v4702
  %v4766 = vmul.f32 %v3758, %v4703
  %v4767 = vmul.f32 %v3759, %v4704
  %v4768 = vmul.f32 %v3760, %v4705
  %v4769 = vmul.f32 %v3761, %v4706
  %v4770 = vmul.f32 %v3762, %v4707
  %v4771 = vmul.f32 %v3763, %v4708
  %v4772 = vmul.f32 %v3764, %v4709
  %v4773 = vmul.f32 %v3765, %v4710
  %v4774 = vmul.f32 %v3766, %v4711
  %v4775 = vmul.f32 %v3767, %v4712
  %v4776 = vmul.f32 %v3768, %v4713
  %v4777 = vmul.f32 %v3769, %v4714
  %v4778 = vlaneseq
  %v4779 = vshrl.u32 %v4778, 7
  %v4780 = vsub.s32 0, %v4779
  %v4781 = vrot.slane %v41, %v4780
  %v4782 = vmul.f32 %v4715, %v4781
  %v4783 = vmul.f32 %v4716, %v4781
  %v4784 = vmul.f32 %v4717, %v4781
  %v4785 = vmul.f32 %v4718, %v4781
  %v4786 = vmul.f32 %v4719, %v4781
  %v4787 = vmul.f32 %v4720, %v4781
  %v4788 = vmul.f32 %v4721, %v4781
  %v4789 = vmul.f32 %v4722, %v4781
  %v4790 = vmul.f32 %v4723, %v4781
  %v4791 = vmul.f32 %v4724, %v4781
  %v4792 = vmul.f32 %v4725, %v4781
  %v4793 = vmul.f32 %v4726, %v4781
  %v4794 = vmul.f32 %v4727, %v4781
  %v4795 = vmul.f32 %v4728, %v4781
  %v4796 = vmul.f32 %v4729, %v4781
  %v4797 = vmul.f32 %v4730, %v4781
  %v4798 = vmul.f32 %v4731, %v4781
  %v4799 = vmul.f32 %v4732, %v4781
  %v4800 = vmul.f32 %v4733, %v4781
  %v4801 = vmul.f32 %v4734, %v4781
  %v4802 = vmul.f32 %v4735, %v4781
  %v4803 = vmul.f32 %v4736, %v4781
  %v4804 = vmul.f32 %v4737, %v4781
  %v4805 = vmul.f32 %v4738, %v4781
  %v4806 = vmul.f32 %v4739, %v4781
  %v4807 = vmul.f32 %v4740, %v4781
  %v4808 = vmul.f32 %v4741, %v4781
  %v4809 = vmul.f32 %v4742, %v4781
  %v4810 = vmul.f32 %v4743, %v4781
  %v4811 = vmul.f32 %v4744, %v4781
  %v4812 = vmul.f32 %v4745, %v4781
  %v4813 = vmul.f32 %v4746, %v4781
  %v4814 = vmul.f32 %v4747, %v4781
  %v4815 = vmul.f32 %v4748, %v4781
  %v4816 = vmul.f32 %v4749, %v4781
  %v4817 = vmul.f32 %v4750, %v4781
  %v4818 = vmul.f32 %v4751, %v4781
  %v4819 = vmul.f32 %v4752, %v4781
  %v4820 = vmul.f32 %v4753, %v4781
  %v4821 = vmul.f32 %v4754, %v4781
  %v4822 = vmul.f32 %v4755, %v4781
  %v4823 = vmul.f32 %v4756, %v4781
  %v4824 = vmul.f32 %v4757, %v4781
  %v4825 = vmul.f32 %v4758, %v4781
  %v4826 = vmul.f32 %v4759, %v4781
  %v4827 = vmul.f32 %v4760, %v4781
  %v4828 = vmul.f32 %v4761, %v4781
  %v4829 = vmul.f32 %v4762, %v4781
  %v4830 = vmul.f32 %v4763, %v4781
  %v4831 = vmul.f32 %v4764, %v4781
  %v4832 = vmul.f32 %v4765, %v4781
  %v4833 = vmul.f32 %v4766, %v4781
  %v4834 = vmul.f32 %v4767, %v4781
  %v4835 = vmul.f32 %v4768, %v4781
  %v4836 = vmul.f32 %v4769, %v4781
  %v4837 = vmul.f32 %v4770, %v4781
  %v4838 = vmul.f32 %v4771, %v4781
  %v4839 = vmul.f32 %v4772, %v4781
  %v4840 = vmul.f32 %v4773, %v4781
  %v4841 = vmul.f32 %v4774, %v4781
  %v4842 = vmul.f32 %v4775, %v4781
  %v4843 = vmul.f32 %v4776, %v4781
  %v4844 = vmul.f32 %v4777, %v4781
  %v4845 = vlaneseq
  %v4846 = vshrl.u32 %v4845, 7
  %v4847 = vsub.s32 0, %v4846
  %v4848 = vrot.slane %v42, %v4847
  %v4849 = vadd.f32 %v4782, %v4848
  %v4850 = vadd.f32 %v4783, %v4848
  %v4851 = vadd.f32 %v4784, %v4848
  %v4852 = vadd.f32 %v4785, %v4848
  %v4853 = vadd.f32 %v4786, %v4848
  %v4854 = vadd.f32 %v4787, %v4848
  %v4855 = vadd.f32 %v4788, %v4848
  %v4856 = vadd.f32 %v4789, %v4848
  %v4857 = vadd.f32 %v4790, %v4848
  %v4858 = vadd.f32 %v4791, %v4848
  %v4859 = vadd.f32 %v4792, %v4848
  %v4860 = vadd.f32 %v4793, %v4848
  %v4861 = vadd.f32 %v4794, %v4848
  %v4862 = vadd.f32 %v4795, %v4848
  %v4863 = vadd.f32 %v4796, %v4848
  %v4864 = vadd.f32 %v4797, %v4848
  %v4865 = vadd.f32 %v4798, %v4848
  %v4866 = vadd.f32 %v4799, %v4848
  %v4867 = vadd.f32 %v4800, %v4848
  %v4868 = vadd.f32 %v4801, %v4848
  %v4869 = vadd.f32 %v4802, %v4848
  %v4870 = vadd.f32 %v4803, %v4848
  %v4871 = vadd.f32 %v4804, %v4848
  %v4872 = vadd.f32 %v4805, %v4848
  %v4873 = vadd.f32 %v4806, %v4848
  %v4874 = vadd.f32 %v4807, %v4848
  %v4875 = vadd.f32 %v4808, %v4848
  %v4876 = vadd.f32 %v4809, %v4848
  %v4877 = vadd.f32 %v4810, %v4848
  %v4878 = vadd.f32 %v4811, %v4848
  %v4879 = vadd.f32 %v4812, %v4848
  %v4880 = vadd.f32 %v4813, %v4848
  %v4881 = vadd.f32 %v4814, %v4848
  %v4882 = vadd.f32 %v4815, %v4848
  %v4883 = vadd.f32 %v4816, %v4848
  %v4884 = vadd.f32 %v4817, %v4848
  %v4885 = vadd.f32 %v4818, %v4848
  %v4886 = vadd.f32 %v4819, %v4848
  %v4887 = vadd.f32 %v4820, %v4848
  %v4888 = vadd.f32 %v4821, %v4848
  %v4889 = vadd.f32 %v4822, %v4848
  %v4890 = vadd.f32 %v4823, %v4848
  %v4891 = vadd.f32 %v4824, %v4848
  %v4892 = vadd.f32 %v4825, %v4848
  %v4893 = vadd.f32 %v4826, %v4848
  %v4894 = vadd.f32 %v4827, %v4848
  %v4895 = vadd.f32 %v4828, %v4848
  %v4896 = vadd.f32 %v4829, %v4848
  %v4897 = vadd.f32 %v4830, %v4848
  %v4898 = vadd.f32 %v4831, %v4848
  %v4899 = vadd.f32 %v4832, %v4848
  %v4900 = vadd.f32 %v4833, %v4848
  %v4901 = vadd.f32 %v4834, %v4848
  %v4902 = vadd.f32 %v4835, %v4848
  %v4903 = vadd.f32 %v4836, %v4848
  %v4904 = vadd.f32 %v4837, %v4848
  %v4905 = vadd.f32 %v4838, %v4848
  %v4906 = vadd.f32 %v4839, %v4848
  %v4907 = vadd.f32 %v4840, %v4848
  %v4908 = vadd.f32 %v4841, %v4848
  %v4909 = vadd.f32 %v4842, %v4848
  %v4910 = vadd.f32 %v4843, %v4848
  %v4911 = vadd.f32 %v4844, %v4848
  %v4912 = vmax.f32 %v4849, 0.0
  %v4913 = vmax.f32 %v4850, 0.0
  %v4914 = vmax.f32 %v4851, 0.0
  %v4915 = vmax.f32 %v4852, 0.0
  %v4916 = vmax.f32 %v4853, 0.0
  %v4917 = vmax.f32 %v4854, 0.0
  %v4918 = vmax.f32 %v4855, 0.0
  %v4919 = vmax.f32 %v4856, 0.0
  %v4920 = vmax.f32 %v4857, 0.0
  %v4921 = vmax.f32 %v4858, 0.0
  %v4922 = vmax.f32 %v4859, 0.0
  %v4923 = vmax.f32 %v4860, 0.0
  %v4924 = vmax.f32 %v4861, 0.0
  %v4925 = vmax.f32 %v4862, 0.0
  %v4926 = vmax.f32 %v4863, 0.0
  %v4927 = vmax.f32 %v4864, 0.0
  %v4928 = vmax.f32 %v4865, 0.0
  %v4929 = vmax.f32 %v4866, 0.0
  %v4930 = vmax.f32 %v4867, 0.0
  %v4931 = vmax.f32 %v4868, 0.0
  %v4932 = vmax.f32 %v4869, 0.0
  %v4933 = vmax.f32 %v4870, 0.0
  %v4934 = vmax.f32 %v4871, 0.0
  %v4935 = vmax.f32 %v4872, 0.0
  %v4936 = vmax.f32 %v4873, 0.0
  %v4937 = vmax.f32 %v4874, 0.0
  %v4938 = vmax.f32 %v4875, 0.0
  %v4939 = vmax.f32 %v4876, 0.0
  %v4940 = vmax.f32 %v4877, 0.0
  %v4941 = vmax.f32 %v4878, 0.0
  %v4942 = vmax.f32 %v4879, 0.0
  %v4943 = vmax.f32 %v4880, 0.0
  %v4944 = vmax.f32 %v4881, 0.0
  %v4945 = vmax.f32 %v4882, 0.0
  %v4946 = vmax.f32 %v4883, 0.0
  %v4947 = vmax.f32 %v4884, 0.0
  %v4948 = vmax.f32 %v4885, 0.0
  %v4949 = vmax.f32 %v4886, 0.0
  %v4950 = vmax.f32 %v4887, 0.0
  %v4951 = vmax.f32 %v4888, 0.0
  %v4952 = vmax.f32 %v4889, 0.0
  %v4953 = vmax.f32 %v4890, 0.0
  %v4954 = vmax.f32 %v4891, 0.0
  %v4955 = vmax.f32 %v4892, 0.0
  %v4956 = vmax.f32 %v4893, 0.0
  %v4957 = vmax.f32 %v4894, 0.0
  %v4958 = vmax.f32 %v4895, 0.0
  %v4959 = vmax.f32 %v4896, 0.0
  %v4960 = vmax.f32 %v4897, 0.0
  %v4961 = vmax.f32 %v4898, 0.0
  %v4962 = vmax.f32 %v4899, 0.0
  %v4963 = vmax.f32 %v4900, 0.0
  %v4964 = vmax.f32 %v4901, 0.0
  %v4965 = vmax.f32 %v4902, 0.0
  %v4966 = vmax.f32 %v4903, 0.0
  %v4967 = vmax.f32 %v4904, 0.0
  %v4968 = vmax.f32 %v4905, 0.0
  %v4969 = vmax.f32 %v4906, 0.0
  %v4970 = vmax.f32 %v4907, 0.0
  %v4971 = vmax.f32 %v4908, 0.0
  %v4972 = vmax.f32 %v4909, 0.0
  %v4973 = vmax.f32 %v4910, 0.0
  %v4974 = vmax.f32 %v4911, 0.0
  %vm4975 = vcmp.gt.f32.partialorder %v148, 20.0
  %vm4976 = vcmp.gt.f32.partialorder %v149, 20.0
  %vm4977 = vcmp.gt.f32.partialorder %v150, 20.0
  %vm4978 = vcmp.gt.f32.partialorder %v151, 20.0
  %vm4979 = vcmp.gt.f32.partialorder %v152, 20.0
  %vm4980 = vcmp.gt.f32.partialorder %v153, 20.0
  %vm4981 = vcmp.gt.f32.partialorder %v154, 20.0
  %vm4982 = vcmp.gt.f32.partialorder %v155, 20.0
  %vm4983 = vcmp.gt.f32.partialorder %v156, 20.0
  %vm4984 = vcmp.gt.f32.partialorder %v157, 20.0
  %vm4985 = vcmp.gt.f32.partialorder %v158, 20.0
  %vm4986 = vcmp.gt.f32.partialorder %v159, 20.0
  %vm4987 = vcmp.gt.f32.partialorder %v160, 20.0
  %vm4988 = vcmp.gt.f32.partialorder %v161, 20.0
  %vm4989 = vcmp.gt.f32.partialorder %v162, 20.0
  %vm4990 = vcmp.gt.f32.partialorder %v163, 20.0
  %vm4991 = vcmp.gt.f32.partialorder %v164, 20.0
  %vm4992 = vcmp.gt.f32.partialorder %v165, 20.0
  %vm4993 = vcmp.gt.f32.partialorder %v166, 20.0
  %vm4994 = vcmp.gt.f32.partialorder %v167, 20.0
  %vm4995 = vcmp.gt.f32.partialorder %v168, 20.0
  %vm4996 = vcmp.gt.f32.partialorder %v169, 20.0
  %vm4997 = vcmp.gt.f32.partialorder %v170, 20.0
  %vm4998 = vcmp.gt.f32.partialorder %v171, 20.0
  %vm4999 = vcmp.gt.f32.partialorder %v172, 20.0
  %vm5000 = vcmp.gt.f32.partialorder %v173, 20.0
  %vm5001 = vcmp.gt.f32.partialorder %v174, 20.0
  %vm5002 = vcmp.gt.f32.partialorder %v175, 20.0
  %vm5003 = vcmp.gt.f32.partialorder %v176, 20.0
  %vm5004 = vcmp.gt.f32.partialorder %v177, 20.0
  %vm5005 = vcmp.gt.f32.partialorder %v178, 20.0
  %vm5006 = vcmp.gt.f32.partialorder %v179, 20.0
  %vm5007 = vcmp.gt.f32.partialorder %v180, 20.0
  %vm5008 = vcmp.gt.f32.partialorder %v181, 20.0
  %vm5009 = vcmp.gt.f32.partialorder %v182, 20.0
  %vm5010 = vcmp.gt.f32.partialorder %v183, 20.0
  %vm5011 = vcmp.gt.f32.partialorder %v184, 20.0
  %vm5012 = vcmp.gt.f32.partialorder %v185, 20.0
  %vm5013 = vcmp.gt.f32.partialorder %v186, 20.0
  %vm5014 = vcmp.gt.f32.partialorder %v187, 20.0
  %vm5015 = vcmp.gt.f32.partialorder %v188, 20.0
  %vm5016 = vcmp.gt.f32.partialorder %v189, 20.0
  %vm5017 = vcmp.gt.f32.partialorder %v190, 20.0
  %vm5018 = vcmp.gt.f32.partialorder %v191, 20.0
  %vm5019 = vcmp.gt.f32.partialorder %v192, 20.0
  %vm5020 = vcmp.gt.f32.partialorder %v193, 20.0
  %vm5021 = vcmp.gt.f32.partialorder %v194, 20.0
  %vm5022 = vcmp.gt.f32.partialorder %v195, 20.0
  %vm5023 = vcmp.gt.f32.partialorder %v196, 20.0
  %vm5024 = vcmp.gt.f32.partialorder %v197, 20.0
  %vm5025 = vcmp.gt.f32.partialorder %v198, 20.0
  %vm5026 = vcmp.gt.f32.partialorder %v199, 20.0
  %vm5027 = vcmp.gt.f32.partialorder %v200, 20.0
  %vm5028 = vcmp.gt.f32.partialorder %v201, 20.0
  %vm5029 = vcmp.gt.f32.partialorder %v202, 20.0
  %vm5030 = vcmp.gt.f32.partialorder %v203, 20.0
  %vm5031 = vcmp.gt.f32.partialorder %v204, 20.0
  %vm5032 = vcmp.gt.f32.partialorder %v205, 20.0
  %vm5033 = vcmp.gt.f32.partialorder %v206, 20.0
  %vm5034 = vcmp.gt.f32.partialorder %v207, 20.0
  %vm5035 = vcmp.gt.f32.partialorder %v208, 20.0
  %vm5036 = vcmp.gt.f32.partialorder %v209, 20.0
  %vm5037 = vcmp.gt.f32.partialorder %v210, 20.0
  %v5038 = vmin.f32 %v148, 20.0
  %v5039 = vmin.f32 %v149, 20.0
  %v5040 = vmin.f32 %v150, 20.0
  %v5041 = vmin.f32 %v151, 20.0
  %v5042 = vmin.f32 %v152, 20.0
  %v5043 = vmin.f32 %v153, 20.0
  %v5044 = vmin.f32 %v154, 20.0
  %v5045 = vmin.f32 %v155, 20.0
  %v5046 = vmin.f32 %v156, 20.0
  %v5047 = vmin.f32 %v157, 20.0
  %v5048 = vmin.f32 %v158, 20.0
  %v5049 = vmin.f32 %v159, 20.0
  %v5050 = vmin.f32 %v160, 20.0
  %v5051 = vmin.f32 %v161, 20.0
  %v5052 = vmin.f32 %v162, 20.0
  %v5053 = vmin.f32 %v163, 20.0
  %v5054 = vmin.f32 %v164, 20.0
  %v5055 = vmin.f32 %v165, 20.0
  %v5056 = vmin.f32 %v166, 20.0
  %v5057 = vmin.f32 %v167, 20.0
  %v5058 = vmin.f32 %v168, 20.0
  %v5059 = vmin.f32 %v169, 20.0
  %v5060 = vmin.f32 %v170, 20.0
  %v5061 = vmin.f32 %v171, 20.0
  %v5062 = vmin.f32 %v172, 20.0
  %v5063 = vmin.f32 %v173, 20.0
  %v5064 = vmin.f32 %v174, 20.0
  %v5065 = vmin.f32 %v175, 20.0
  %v5066 = vmin.f32 %v176, 20.0
  %v5067 = vmin.f32 %v177, 20.0
  %v5068 = vmin.f32 %v178, 20.0
  %v5069 = vmin.f32 %v179, 20.0
  %v5070 = vmin.f32 %v180, 20.0
  %v5071 = vmin.f32 %v181, 20.0
  %v5072 = vmin.f32 %v182, 20.0
  %v5073 = vmin.f32 %v183, 20.0
  %v5074 = vmin.f32 %v184, 20.0
  %v5075 = vmin.f32 %v185, 20.0
  %v5076 = vmin.f32 %v186, 20.0
  %v5077 = vmin.f32 %v187, 20.0
  %v5078 = vmin.f32 %v188, 20.0
  %v5079 = vmin.f32 %v189, 20.0
  %v5080 = vmin.f32 %v190, 20.0
  %v5081 = vmin.f32 %v191, 20.0
  %v5082 = vmin.f32 %v192, 20.0
  %v5083 = vmin.f32 %v193, 20.0
  %v5084 = vmin.f32 %v194, 20.0
  %v5085 = vmin.f32 %v195, 20.0
  %v5086 = vmin.f32 %v196, 20.0
  %v5087 = vmin.f32 %v197, 20.0
  %v5088 = vmin.f32 %v198, 20.0
  %v5089 = vmin.f32 %v199, 20.0
  %v5090 = vmin.f32 %v200, 20.0
  %v5091 = vmin.f32 %v201, 20.0
  %v5092 = vmin.f32 %v202, 20.0
  %v5093 = vmin.f32 %v203, 20.0
  %v5094 = vmin.f32 %v204, 20.0
  %v5095 = vmin.f32 %v205, 20.0
  %v5096 = vmin.f32 %v206, 20.0
  %v5097 = vmin.f32 %v207, 20.0
  %v5098 = vmin.f32 %v208, 20.0
  %v5099 = vmin.f32 %v209, 20.0
  %v5100 = vmin.f32 %v210, 20.0
  %v5101 = vmul.f32 %v5038, 1.442695
  %v5102 = vpow.pop %v5101
  %v5103 = vmul.f32 %v5039, 1.442695
  %v5104 = vpow.pop %v5103
  %v5105 = vmul.f32 %v5040, 1.442695
  %v5106 = vpow.pop %v5105
  %v5107 = vmul.f32 %v5041, 1.442695
  %v5108 = vpow.pop %v5107
  %v5109 = vmul.f32 %v5042, 1.442695
  %v5110 = vpow.pop %v5109
  %v5111 = vmul.f32 %v5043, 1.442695
  %v5112 = vpow.pop %v5111
  %v5113 = vmul.f32 %v5044, 1.442695
  %v5114 = vpow.pop %v5113
  %v5115 = vmul.f32 %v5045, 1.442695
  %v5116 = vpow.pop %v5115
  %v5117 = vmul.f32 %v5046, 1.442695
  %v5118 = vpow.pop %v5117
  %v5119 = vmul.f32 %v5047, 1.442695
  %v5120 = vpow.pop %v5119
  %v5121 = vmul.f32 %v5048, 1.442695
  %v5122 = vpow.pop %v5121
  %v5123 = vmul.f32 %v5049, 1.442695
  %v5124 = vpow.pop %v5123
  %v5125 = vmul.f32 %v5050, 1.442695
  %v5126 = vpow.pop %v5125
  %v5127 = vmul.f32 %v5051, 1.442695
  %v5128 = vpow.pop %v5127
  %v5129 = vmul.f32 %v5052, 1.442695
  %v5130 = vpow.pop %v5129
  %v5131 = vmul.f32 %v5053, 1.442695
  %v5132 = vpow.pop %v5131
  %v5133 = vmul.f32 %v5054, 1.442695
  %v5134 = vpow.pop %v5133
  %v5135 = vmul.f32 %v5055, 1.442695
  %v5136 = vpow.pop %v5135
  %v5137 = vmul.f32 %v5056, 1.442695
  %v5138 = vpow.pop %v5137
  %v5139 = vmul.f32 %v5057, 1.442695
  %v5140 = vpow.pop %v5139
  %v5141 = vmul.f32 %v5058, 1.442695
  %v5142 = vpow.pop %v5141
  %v5143 = vmul.f32 %v5059, 1.442695
  %v5144 = vpow.pop %v5143
  %v5145 = vmul.f32 %v5060, 1.442695
  %v5146 = vpow.pop %v5145
  %v5147 = vmul.f32 %v5061, 1.442695
  %v5148 = vpow.pop %v5147
  %v5149 = vmul.f32 %v5062, 1.442695
  %v5150 = vpow.pop %v5149
  %v5151 = vmul.f32 %v5063, 1.442695
  %v5152 = vpow.pop %v5151
  %v5153 = vmul.f32 %v5064, 1.442695
  %v5154 = vpow.pop %v5153
  %v5155 = vmul.f32 %v5065, 1.442695
  %v5156 = vpow.pop %v5155
  %v5157 = vmul.f32 %v5066, 1.442695
  %v5158 = vpow.pop %v5157
  %v5159 = vmul.f32 %v5067, 1.442695
  %v5160 = vpow.pop %v5159
  %v5161 = vmul.f32 %v5068, 1.442695
  %v5162 = vpow.pop %v5161
  %v5163 = vmul.f32 %v5069, 1.442695
  %v5164 = vpow.pop %v5163
  %v5165 = vmul.f32 %v5070, 1.442695
  %v5166 = vpow.pop %v5165
  %v5167 = vmul.f32 %v5071, 1.442695
  %v5168 = vpow.pop %v5167
  %v5169 = vmul.f32 %v5072, 1.442695
  %v5170 = vpow.pop %v5169
  %v5171 = vmul.f32 %v5073, 1.442695
  %v5172 = vpow.pop %v5171
  %v5173 = vmul.f32 %v5074, 1.442695
  %v5174 = vpow.pop %v5173
  %v5175 = vmul.f32 %v5075, 1.442695
  %v5176 = vpow.pop %v5175
  %v5177 = vmul.f32 %v5076, 1.442695
  %v5178 = vpow.pop %v5177
  %v5179 = vmul.f32 %v5077, 1.442695
  %v5180 = vpow.pop %v5179
  %v5181 = vmul.f32 %v5078, 1.442695
  %v5182 = vpow.pop %v5181
  %v5183 = vmul.f32 %v5079, 1.442695
  %v5184 = vpow.pop %v5183
  %v5185 = vmul.f32 %v5080, 1.442695
  %v5186 = vpow.pop %v5185
  %v5187 = vmul.f32 %v5081, 1.442695
  %v5188 = vpow.pop %v5187
  %v5189 = vmul.f32 %v5082, 1.442695
  %v5190 = vpow.pop %v5189
  %v5191 = vmul.f32 %v5083, 1.442695
  %v5192 = vpow.pop %v5191
  %v5193 = vmul.f32 %v5084, 1.442695
  %v5194 = vpow.pop %v5193
  %v5195 = vmul.f32 %v5085, 1.442695
  %v5196 = vpow.pop %v5195
  %v5197 = vmul.f32 %v5086, 1.442695
  %v5198 = vpow.pop %v5197
  %v5199 = vmul.f32 %v5087, 1.442695
  %v5200 = vpow.pop %v5199
  %v5201 = vmul.f32 %v5088, 1.442695
  %v5202 = vpow.pop %v5201
  %v5203 = vmul.f32 %v5089, 1.442695
  %v5204 = vpow.pop %v5203
  %v5205 = vmul.f32 %v5090, 1.442695
  %v5206 = vpow.pop %v5205
  %v5207 = vmul.f32 %v5091, 1.442695
  %v5208 = vpow.pop %v5207
  %v5209 = vmul.f32 %v5092, 1.442695
  %v5210 = vpow.pop %v5209
  %v5211 = vmul.f32 %v5093, 1.442695
  %v5212 = vpow.pop %v5211
  %v5213 = vmul.f32 %v5094, 1.442695
  %v5214 = vpow.pop %v5213
  %v5215 = vmul.f32 %v5095, 1.442695
  %v5216 = vpow.pop %v5215
  %v5217 = vmul.f32 %v5096, 1.442695
  %v5218 = vpow.pop %v5217
  %v5219 = vmul.f32 %v5097, 1.442695
  %v5220 = vpow.pop %v5219
  %v5221 = vmul.f32 %v5098, 1.442695
  %v5222 = vpow.pop %v5221
  %v5223 = vmul.f32 %v5099, 1.442695
  %v5224 = vpow.pop %v5223
  %v5225 = vmul.f32 %v5100, 1.442695
  %v5226 = vpow.pop %v5225
  %v5227 = vadd.f32 %v5102, 1.0
  %v5228 = vlog2.pop %v5227
  %v5229 = vmul.f32 %v5228, 0.6931472
  %v5230 = vmul.f32 -0.5, %v5102
  %v5231 = vadd.f32 %v5230, 1.0
  %v5232 = vmul.f32 %v5231, %v5102
  %v5233 = vand.u32 2147483647, %v5102
  %vm5234 = vcmp.lt.f32.partialorder %v5233, 0.0004427343
  %v5235 = vsel %vm5234, %v5232, %v5229
  %v5236 = vadd.f32 %v5104, 1.0
  %v5237 = vlog2.pop %v5236
  %v5238 = vmul.f32 %v5237, 0.6931472
  %v5239 = vmul.f32 -0.5, %v5104
  %v5240 = vadd.f32 %v5239, 1.0
  %v5241 = vmul.f32 %v5240, %v5104
  %v5242 = vand.u32 2147483647, %v5104
  %vm5243 = vcmp.lt.f32.partialorder %v5242, 0.0004427343
  %v5244 = vsel %vm5243, %v5241, %v5238
  %v5245 = vadd.f32 %v5106, 1.0
  %v5246 = vlog2.pop %v5245
  %v5247 = vmul.f32 %v5246, 0.6931472
  %v5248 = vmul.f32 -0.5, %v5106
  %v5249 = vadd.f32 %v5248, 1.0
  %v5250 = vmul.f32 %v5249, %v5106
  %v5251 = vand.u32 2147483647, %v5106
  %vm5252 = vcmp.lt.f32.partialorder %v5251, 0.0004427343
  %v5253 = vsel %vm5252, %v5250, %v5247
  %v5254 = vadd.f32 %v5108, 1.0
  %v5255 = vlog2.pop %v5254
  %v5256 = vmul.f32 %v5255, 0.6931472
  %v5257 = vmul.f32 -0.5, %v5108
  %v5258 = vadd.f32 %v5257, 1.0
  %v5259 = vmul.f32 %v5258, %v5108
  %v5260 = vand.u32 2147483647, %v5108
  %vm5261 = vcmp.lt.f32.partialorder %v5260, 0.0004427343
  %v5262 = vsel %vm5261, %v5259, %v5256
  %v5263 = vadd.f32 %v5110, 1.0
  %v5264 = vlog2.pop %v5263
  %v5265 = vmul.f32 %v5264, 0.6931472
  %v5266 = vmul.f32 -0.5, %v5110
  %v5267 = vadd.f32 %v5266, 1.0
  %v5268 = vmul.f32 %v5267, %v5110
  %v5269 = vand.u32 2147483647, %v5110
  %vm5270 = vcmp.lt.f32.partialorder %v5269, 0.0004427343
  %v5271 = vsel %vm5270, %v5268, %v5265
  %v5272 = vadd.f32 %v5112, 1.0
  %v5273 = vlog2.pop %v5272
  %v5274 = vmul.f32 %v5273, 0.6931472
  %v5275 = vmul.f32 -0.5, %v5112
  %v5276 = vadd.f32 %v5275, 1.0
  %v5277 = vmul.f32 %v5276, %v5112
  %v5278 = vand.u32 2147483647, %v5112
  %vm5279 = vcmp.lt.f32.partialorder %v5278, 0.0004427343
  %v5280 = vsel %vm5279, %v5277, %v5274
  %v5281 = vadd.f32 %v5114, 1.0
  %v5282 = vlog2.pop %v5281
  %v5283 = vmul.f32 %v5282, 0.6931472
  %v5284 = vmul.f32 -0.5, %v5114
  %v5285 = vadd.f32 %v5284, 1.0
  %v5286 = vmul.f32 %v5285, %v5114
  %v5287 = vand.u32 2147483647, %v5114
  %vm5288 = vcmp.lt.f32.partialorder %v5287, 0.0004427343
  %v5289 = vsel %vm5288, %v5286, %v5283
  %v5290 = vadd.f32 %v5116, 1.0
  %v5291 = vlog2.pop %v5290
  %v5292 = vmul.f32 %v5291, 0.6931472
  %v5293 = vmul.f32 -0.5, %v5116
  %v5294 = vadd.f32 %v5293, 1.0
  %v5295 = vmul.f32 %v5294, %v5116
  %v5296 = vand.u32 2147483647, %v5116
  %vm5297 = vcmp.lt.f32.partialorder %v5296, 0.0004427343
  %v5298 = vsel %vm5297, %v5295, %v5292
  %v5299 = vadd.f32 %v5118, 1.0
  %v5300 = vlog2.pop %v5299
  %v5301 = vmul.f32 %v5300, 0.6931472
  %v5302 = vmul.f32 -0.5, %v5118
  %v5303 = vadd.f32 %v5302, 1.0
  %v5304 = vmul.f32 %v5303, %v5118
  %v5305 = vand.u32 2147483647, %v5118
  %vm5306 = vcmp.lt.f32.partialorder %v5305, 0.0004427343
  %v5307 = vsel %vm5306, %v5304, %v5301
  %v5308 = vadd.f32 %v5120, 1.0
  %v5309 = vlog2.pop %v5308
  %v5310 = vmul.f32 %v5309, 0.6931472
  %v5311 = vmul.f32 -0.5, %v5120
  %v5312 = vadd.f32 %v5311, 1.0
  %v5313 = vmul.f32 %v5312, %v5120
  %v5314 = vand.u32 2147483647, %v5120
  %vm5315 = vcmp.lt.f32.partialorder %v5314, 0.0004427343
  %v5316 = vsel %vm5315, %v5313, %v5310
  %v5317 = vadd.f32 %v5122, 1.0
  %v5318 = vlog2.pop %v5317
  %v5319 = vmul.f32 %v5318, 0.6931472
  %v5320 = vmul.f32 -0.5, %v5122
  %v5321 = vadd.f32 %v5320, 1.0
  %v5322 = vmul.f32 %v5321, %v5122
  %v5323 = vand.u32 2147483647, %v5122
  %vm5324 = vcmp.lt.f32.partialorder %v5323, 0.0004427343
  %v5325 = vsel %vm5324, %v5322, %v5319
  %v5326 = vadd.f32 %v5124, 1.0
  %v5327 = vlog2.pop %v5326
  %v5328 = vmul.f32 %v5327, 0.6931472
  %v5329 = vmul.f32 -0.5, %v5124
  %v5330 = vadd.f32 %v5329, 1.0
  %v5331 = vmul.f32 %v5330, %v5124
  %v5332 = vand.u32 2147483647, %v5124
  %vm5333 = vcmp.lt.f32.partialorder %v5332, 0.0004427343
  %v5334 = vsel %vm5333, %v5331, %v5328
  %v5335 = vadd.f32 %v5126, 1.0
  %v5336 = vlog2.pop %v5335
  %v5337 = vmul.f32 %v5336, 0.6931472
  %v5338 = vmul.f32 -0.5, %v5126
  %v5339 = vadd.f32 %v5338, 1.0
  %v5340 = vmul.f32 %v5339, %v5126
  %v5341 = vand.u32 2147483647, %v5126
  %vm5342 = vcmp.lt.f32.partialorder %v5341, 0.0004427343
  %v5343 = vsel %vm5342, %v5340, %v5337
  %v5344 = vadd.f32 %v5128, 1.0
  %v5345 = vlog2.pop %v5344
  %v5346 = vmul.f32 %v5345, 0.6931472
  %v5347 = vmul.f32 -0.5, %v5128
  %v5348 = vadd.f32 %v5347, 1.0
  %v5349 = vmul.f32 %v5348, %v5128
  %v5350 = vand.u32 2147483647, %v5128
  %vm5351 = vcmp.lt.f32.partialorder %v5350, 0.0004427343
  %v5352 = vsel %vm5351, %v5349, %v5346
  %v5353 = vadd.f32 %v5130, 1.0
  %v5354 = vlog2.pop %v5353
  %v5355 = vmul.f32 %v5354, 0.6931472
  %v5356 = vmul.f32 -0.5, %v5130
  %v5357 = vadd.f32 %v5356, 1.0
  %v5358 = vmul.f32 %v5357, %v5130
  %v5359 = vand.u32 2147483647, %v5130
  %vm5360 = vcmp.lt.f32.partialorder %v5359, 0.0004427343
  %v5361 = vsel %vm5360, %v5358, %v5355
  %v5362 = vadd.f32 %v5132, 1.0
  %v5363 = vlog2.pop %v5362
  %v5364 = vmul.f32 %v5363, 0.6931472
  %v5365 = vmul.f32 -0.5, %v5132
  %v5366 = vadd.f32 %v5365, 1.0
  %v5367 = vmul.f32 %v5366, %v5132
  %v5368 = vand.u32 2147483647, %v5132
  %vm5369 = vcmp.lt.f32.partialorder %v5368, 0.0004427343
  %v5370 = vsel %vm5369, %v5367, %v5364
  %v5371 = vadd.f32 %v5134, 1.0
  %v5372 = vlog2.pop %v5371
  %v5373 = vmul.f32 %v5372, 0.6931472
  %v5374 = vmul.f32 -0.5, %v5134
  %v5375 = vadd.f32 %v5374, 1.0
  %v5376 = vmul.f32 %v5375, %v5134
  %v5377 = vand.u32 2147483647, %v5134
  %vm5378 = vcmp.lt.f32.partialorder %v5377, 0.0004427343
  %v5379 = vsel %vm5378, %v5376, %v5373
  %v5380 = vadd.f32 %v5136, 1.0
  %v5381 = vlog2.pop %v5380
  %v5382 = vmul.f32 %v5381, 0.6931472
  %v5383 = vmul.f32 -0.5, %v5136
  %v5384 = vadd.f32 %v5383, 1.0
  %v5385 = vmul.f32 %v5384, %v5136
  %v5386 = vand.u32 2147483647, %v5136
  %vm5387 = vcmp.lt.f32.partialorder %v5386, 0.0004427343
  %v5388 = vsel %vm5387, %v5385, %v5382
  %v5389 = vadd.f32 %v5138, 1.0
  %v5390 = vlog2.pop %v5389
  %v5391 = vmul.f32 %v5390, 0.6931472
  %v5392 = vmul.f32 -0.5, %v5138
  %v5393 = vadd.f32 %v5392, 1.0
  %v5394 = vmul.f32 %v5393, %v5138
  %v5395 = vand.u32 2147483647, %v5138
  %vm5396 = vcmp.lt.f32.partialorder %v5395, 0.0004427343
  %v5397 = vsel %vm5396, %v5394, %v5391
  %v5398 = vadd.f32 %v5140, 1.0
  %v5399 = vlog2.pop %v5398
  %v5400 = vmul.f32 %v5399, 0.6931472
  %v5401 = vmul.f32 -0.5, %v5140
  %v5402 = vadd.f32 %v5401, 1.0
  %v5403 = vmul.f32 %v5402, %v5140
  %v5404 = vand.u32 2147483647, %v5140
  %vm5405 = vcmp.lt.f32.partialorder %v5404, 0.0004427343
  %v5406 = vsel %vm5405, %v5403, %v5400
  %v5407 = vadd.f32 %v5142, 1.0
  %v5408 = vlog2.pop %v5407
  %v5409 = vmul.f32 %v5408, 0.6931472
  %v5410 = vmul.f32 -0.5, %v5142
  %v5411 = vadd.f32 %v5410, 1.0
  %v5412 = vmul.f32 %v5411, %v5142
  %v5413 = vand.u32 2147483647, %v5142
  %vm5414 = vcmp.lt.f32.partialorder %v5413, 0.0004427343
  %v5415 = vsel %vm5414, %v5412, %v5409
  %v5416 = vadd.f32 %v5144, 1.0
  %v5417 = vlog2.pop %v5416
  %v5418 = vmul.f32 %v5417, 0.6931472
  %v5419 = vmul.f32 -0.5, %v5144
  %v5420 = vadd.f32 %v5419, 1.0
  %v5421 = vmul.f32 %v5420, %v5144
  %v5422 = vand.u32 2147483647, %v5144
  %vm5423 = vcmp.lt.f32.partialorder %v5422, 0.0004427343
  %v5424 = vsel %vm5423, %v5421, %v5418
  %v5425 = vadd.f32 %v5146, 1.0
  %v5426 = vlog2.pop %v5425
  %v5427 = vmul.f32 %v5426, 0.6931472
  %v5428 = vmul.f32 -0.5, %v5146
  %v5429 = vadd.f32 %v5428, 1.0
  %v5430 = vmul.f32 %v5429, %v5146
  %v5431 = vand.u32 2147483647, %v5146
  %vm5432 = vcmp.lt.f32.partialorder %v5431, 0.0004427343
  %v5433 = vsel %vm5432, %v5430, %v5427
  %v5434 = vadd.f32 %v5148, 1.0
  %v5435 = vlog2.pop %v5434
  %v5436 = vmul.f32 %v5435, 0.6931472
  %v5437 = vmul.f32 -0.5, %v5148
  %v5438 = vadd.f32 %v5437, 1.0
  %v5439 = vmul.f32 %v5438, %v5148
  %v5440 = vand.u32 2147483647, %v5148
  %vm5441 = vcmp.lt.f32.partialorder %v5440, 0.0004427343
  %v5442 = vsel %vm5441, %v5439, %v5436
  %v5443 = vadd.f32 %v5150, 1.0
  %v5444 = vlog2.pop %v5443
  %v5445 = vmul.f32 %v5444, 0.6931472
  %v5446 = vmul.f32 -0.5, %v5150
  %v5447 = vadd.f32 %v5446, 1.0
  %v5448 = vmul.f32 %v5447, %v5150
  %v5449 = vand.u32 2147483647, %v5150
  %vm5450 = vcmp.lt.f32.partialorder %v5449, 0.0004427343
  %v5451 = vsel %vm5450, %v5448, %v5445
  %v5452 = vadd.f32 %v5152, 1.0
  %v5453 = vlog2.pop %v5452
  %v5454 = vmul.f32 %v5453, 0.6931472
  %v5455 = vmul.f32 -0.5, %v5152
  %v5456 = vadd.f32 %v5455, 1.0
  %v5457 = vmul.f32 %v5456, %v5152
  %v5458 = vand.u32 2147483647, %v5152
  %vm5459 = vcmp.lt.f32.partialorder %v5458, 0.0004427343
  %v5460 = vsel %vm5459, %v5457, %v5454
  %v5461 = vadd.f32 %v5154, 1.0
  %v5462 = vlog2.pop %v5461
  %v5463 = vmul.f32 %v5462, 0.6931472
  %v5464 = vmul.f32 -0.5, %v5154
  %v5465 = vadd.f32 %v5464, 1.0
  %v5466 = vmul.f32 %v5465, %v5154
  %v5467 = vand.u32 2147483647, %v5154
  %vm5468 = vcmp.lt.f32.partialorder %v5467, 0.0004427343
  %v5469 = vsel %vm5468, %v5466, %v5463
  %v5470 = vadd.f32 %v5156, 1.0
  %v5471 = vlog2.pop %v5470
  %v5472 = vmul.f32 %v5471, 0.6931472
  %v5473 = vmul.f32 -0.5, %v5156
  %v5474 = vadd.f32 %v5473, 1.0
  %v5475 = vmul.f32 %v5474, %v5156
  %v5476 = vand.u32 2147483647, %v5156
  %vm5477 = vcmp.lt.f32.partialorder %v5476, 0.0004427343
  %v5478 = vsel %vm5477, %v5475, %v5472
  %v5479 = vadd.f32 %v5158, 1.0
  %v5480 = vlog2.pop %v5479
  %v5481 = vmul.f32 %v5480, 0.6931472
  %v5482 = vmul.f32 -0.5, %v5158
  %v5483 = vadd.f32 %v5482, 1.0
  %v5484 = vmul.f32 %v5483, %v5158
  %v5485 = vand.u32 2147483647, %v5158
  %vm5486 = vcmp.lt.f32.partialorder %v5485, 0.0004427343
  %v5487 = vsel %vm5486, %v5484, %v5481
  %v5488 = vadd.f32 %v5160, 1.0
  %v5489 = vlog2.pop %v5488
  %v5490 = vmul.f32 %v5489, 0.6931472
  %v5491 = vmul.f32 -0.5, %v5160
  %v5492 = vadd.f32 %v5491, 1.0
  %v5493 = vmul.f32 %v5492, %v5160
  %v5494 = vand.u32 2147483647, %v5160
  %vm5495 = vcmp.lt.f32.partialorder %v5494, 0.0004427343
  %v5496 = vsel %vm5495, %v5493, %v5490
  %v5497 = vadd.f32 %v5162, 1.0
  %v5498 = vlog2.pop %v5497
  %v5499 = vmul.f32 %v5498, 0.6931472
  %v5500 = vmul.f32 -0.5, %v5162
  %v5501 = vadd.f32 %v5500, 1.0
  %v5502 = vmul.f32 %v5501, %v5162
  %v5503 = vand.u32 2147483647, %v5162
  %vm5504 = vcmp.lt.f32.partialorder %v5503, 0.0004427343
  %v5505 = vsel %vm5504, %v5502, %v5499
  %v5506 = vadd.f32 %v5164, 1.0
  %v5507 = vlog2.pop %v5506
  %v5508 = vmul.f32 %v5507, 0.6931472
  %v5509 = vmul.f32 -0.5, %v5164
  %v5510 = vadd.f32 %v5509, 1.0
  %v5511 = vmul.f32 %v5510, %v5164
  %v5512 = vand.u32 2147483647, %v5164
  %vm5513 = vcmp.lt.f32.partialorder %v5512, 0.0004427343
  %v5514 = vsel %vm5513, %v5511, %v5508
  %v5515 = vadd.f32 %v5166, 1.0
  %v5516 = vlog2.pop %v5515
  %v5517 = vmul.f32 %v5516, 0.6931472
  %v5518 = vmul.f32 -0.5, %v5166
  %v5519 = vadd.f32 %v5518, 1.0
  %v5520 = vmul.f32 %v5519, %v5166
  %v5521 = vand.u32 2147483647, %v5166
  %vm5522 = vcmp.lt.f32.partialorder %v5521, 0.0004427343
  %v5523 = vsel %vm5522, %v5520, %v5517
  %v5524 = vadd.f32 %v5168, 1.0
  %v5525 = vlog2.pop %v5524
  %v5526 = vmul.f32 %v5525, 0.6931472
  %v5527 = vmul.f32 -0.5, %v5168
  %v5528 = vadd.f32 %v5527, 1.0
  %v5529 = vmul.f32 %v5528, %v5168
  %v5530 = vand.u32 2147483647, %v5168
  %vm5531 = vcmp.lt.f32.partialorder %v5530, 0.0004427343
  %v5532 = vsel %vm5531, %v5529, %v5526
  %v5533 = vadd.f32 %v5170, 1.0
  %v5534 = vlog2.pop %v5533
  %v5535 = vmul.f32 %v5534, 0.6931472
  %v5536 = vmul.f32 -0.5, %v5170
  %v5537 = vadd.f32 %v5536, 1.0
  %v5538 = vmul.f32 %v5537, %v5170
  %v5539 = vand.u32 2147483647, %v5170
  %vm5540 = vcmp.lt.f32.partialorder %v5539, 0.0004427343
  %v5541 = vsel %vm5540, %v5538, %v5535
  %v5542 = vadd.f32 %v5172, 1.0
  %v5543 = vlog2.pop %v5542
  %v5544 = vmul.f32 %v5543, 0.6931472
  %v5545 = vmul.f32 -0.5, %v5172
  %v5546 = vadd.f32 %v5545, 1.0
  %v5547 = vmul.f32 %v5546, %v5172
  %v5548 = vand.u32 2147483647, %v5172
  %vm5549 = vcmp.lt.f32.partialorder %v5548, 0.0004427343
  %v5550 = vsel %vm5549, %v5547, %v5544
  %v5551 = vadd.f32 %v5174, 1.0
  %v5552 = vlog2.pop %v5551
  %v5553 = vmul.f32 %v5552, 0.6931472
  %v5554 = vmul.f32 -0.5, %v5174
  %v5555 = vadd.f32 %v5554, 1.0
  %v5556 = vmul.f32 %v5555, %v5174
  %v5557 = vand.u32 2147483647, %v5174
  %vm5558 = vcmp.lt.f32.partialorder %v5557, 0.0004427343
  %v5559 = vsel %vm5558, %v5556, %v5553
  %v5560 = vadd.f32 %v5176, 1.0
  %v5561 = vlog2.pop %v5560
  %v5562 = vmul.f32 %v5561, 0.6931472
  %v5563 = vmul.f32 -0.5, %v5176
  %v5564 = vadd.f32 %v5563, 1.0
  %v5565 = vmul.f32 %v5564, %v5176
  %v5566 = vand.u32 2147483647, %v5176
  %vm5567 = vcmp.lt.f32.partialorder %v5566, 0.0004427343
  %v5568 = vsel %vm5567, %v5565, %v5562
  %v5569 = vadd.f32 %v5178, 1.0
  %v5570 = vlog2.pop %v5569
  %v5571 = vmul.f32 %v5570, 0.6931472
  %v5572 = vmul.f32 -0.5, %v5178
  %v5573 = vadd.f32 %v5572, 1.0
  %v5574 = vmul.f32 %v5573, %v5178
  %v5575 = vand.u32 2147483647, %v5178
  %vm5576 = vcmp.lt.f32.partialorder %v5575, 0.0004427343
  %v5577 = vsel %vm5576, %v5574, %v5571
  %v5578 = vadd.f32 %v5180, 1.0
  %v5579 = vlog2.pop %v5578
  %v5580 = vmul.f32 %v5579, 0.6931472
  %v5581 = vmul.f32 -0.5, %v5180
  %v5582 = vadd.f32 %v5581, 1.0
  %v5583 = vmul.f32 %v5582, %v5180
  %v5584 = vand.u32 2147483647, %v5180
  %vm5585 = vcmp.lt.f32.partialorder %v5584, 0.0004427343
  %v5586 = vsel %vm5585, %v5583, %v5580
  %v5587 = vadd.f32 %v5182, 1.0
  %v5588 = vlog2.pop %v5587
  %v5589 = vmul.f32 %v5588, 0.6931472
  %v5590 = vmul.f32 -0.5, %v5182
  %v5591 = vadd.f32 %v5590, 1.0
  %v5592 = vmul.f32 %v5591, %v5182
  %v5593 = vand.u32 2147483647, %v5182
  %vm5594 = vcmp.lt.f32.partialorder %v5593, 0.0004427343
  %v5595 = vsel %vm5594, %v5592, %v5589
  %v5596 = vadd.f32 %v5184, 1.0
  %v5597 = vlog2.pop %v5596
  %v5598 = vmul.f32 %v5597, 0.6931472
  %v5599 = vmul.f32 -0.5, %v5184
  %v5600 = vadd.f32 %v5599, 1.0
  %v5601 = vmul.f32 %v5600, %v5184
  %v5602 = vand.u32 2147483647, %v5184
  %vm5603 = vcmp.lt.f32.partialorder %v5602, 0.0004427343
  %v5604 = vsel %vm5603, %v5601, %v5598
  %v5605 = vadd.f32 %v5186, 1.0
  %v5606 = vlog2.pop %v5605
  %v5607 = vmul.f32 %v5606, 0.6931472
  %v5608 = vmul.f32 -0.5, %v5186
  %v5609 = vadd.f32 %v5608, 1.0
  %v5610 = vmul.f32 %v5609, %v5186
  %v5611 = vand.u32 2147483647, %v5186
  %vm5612 = vcmp.lt.f32.partialorder %v5611, 0.0004427343
  %v5613 = vsel %vm5612, %v5610, %v5607
  %v5614 = vadd.f32 %v5188, 1.0
  %v5615 = vlog2.pop %v5614
  %v5616 = vmul.f32 %v5615, 0.6931472
  %v5617 = vmul.f32 -0.5, %v5188
  %v5618 = vadd.f32 %v5617, 1.0
  %v5619 = vmul.f32 %v5618, %v5188
  %v5620 = vand.u32 2147483647, %v5188
  %vm5621 = vcmp.lt.f32.partialorder %v5620, 0.0004427343
  %v5622 = vsel %vm5621, %v5619, %v5616
  %v5623 = vadd.f32 %v5190, 1.0
  %v5624 = vlog2.pop %v5623
  %v5625 = vmul.f32 %v5624, 0.6931472
  %v5626 = vmul.f32 -0.5, %v5190
  %v5627 = vadd.f32 %v5626, 1.0
  %v5628 = vmul.f32 %v5627, %v5190
  %v5629 = vand.u32 2147483647, %v5190
  %vm5630 = vcmp.lt.f32.partialorder %v5629, 0.0004427343
  %v5631 = vsel %vm5630, %v5628, %v5625
  %v5632 = vadd.f32 %v5192, 1.0
  %v5633 = vlog2.pop %v5632
  %v5634 = vmul.f32 %v5633, 0.6931472
  %v5635 = vmul.f32 -0.5, %v5192
  %v5636 = vadd.f32 %v5635, 1.0
  %v5637 = vmul.f32 %v5636, %v5192
  %v5638 = vand.u32 2147483647, %v5192
  %vm5639 = vcmp.lt.f32.partialorder %v5638, 0.0004427343
  %v5640 = vsel %vm5639, %v5637, %v5634
  %v5641 = vadd.f32 %v5194, 1.0
  %v5642 = vlog2.pop %v5641
  %v5643 = vmul.f32 %v5642, 0.6931472
  %v5644 = vmul.f32 -0.5, %v5194
  %v5645 = vadd.f32 %v5644, 1.0
  %v5646 = vmul.f32 %v5645, %v5194
  %v5647 = vand.u32 2147483647, %v5194
  %vm5648 = vcmp.lt.f32.partialorder %v5647, 0.0004427343
  %v5649 = vsel %vm5648, %v5646, %v5643
  %v5650 = vadd.f32 %v5196, 1.0
  %v5651 = vlog2.pop %v5650
  %v5652 = vmul.f32 %v5651, 0.6931472
  %v5653 = vmul.f32 -0.5, %v5196
  %v5654 = vadd.f32 %v5653, 1.0
  %v5655 = vmul.f32 %v5654, %v5196
  %v5656 = vand.u32 2147483647, %v5196
  %vm5657 = vcmp.lt.f32.partialorder %v5656, 0.0004427343
  %v5658 = vsel %vm5657, %v5655, %v5652
  %v5659 = vadd.f32 %v5198, 1.0
  %v5660 = vlog2.pop %v5659
  %v5661 = vmul.f32 %v5660, 0.6931472
  %v5662 = vmul.f32 -0.5, %v5198
  %v5663 = vadd.f32 %v5662, 1.0
  %v5664 = vmul.f32 %v5663, %v5198
  %v5665 = vand.u32 2147483647, %v5198
  %vm5666 = vcmp.lt.f32.partialorder %v5665, 0.0004427343
  %v5667 = vsel %vm5666, %v5664, %v5661
  %v5668 = vadd.f32 %v5200, 1.0
  %v5669 = vlog2.pop %v5668
  %v5670 = vmul.f32 %v5669, 0.6931472
  %v5671 = vmul.f32 -0.5, %v5200
  %v5672 = vadd.f32 %v5671, 1.0
  %v5673 = vmul.f32 %v5672, %v5200
  %v5674 = vand.u32 2147483647, %v5200
  %vm5675 = vcmp.lt.f32.partialorder %v5674, 0.0004427343
  %v5676 = vsel %vm5675, %v5673, %v5670
  %v5677 = vadd.f32 %v5202, 1.0
  %v5678 = vlog2.pop %v5677
  %v5679 = vmul.f32 %v5678, 0.6931472
  %v5680 = vmul.f32 -0.5, %v5202
  %v5681 = vadd.f32 %v5680, 1.0
  %v5682 = vmul.f32 %v5681, %v5202
  %v5683 = vand.u32 2147483647, %v5202
  %vm5684 = vcmp.lt.f32.partialorder %v5683, 0.0004427343
  %v5685 = vsel %vm5684, %v5682, %v5679
  %v5686 = vadd.f32 %v5204, 1.0
  %v5687 = vlog2.pop %v5686
  %v5688 = vmul.f32 %v5687, 0.6931472
  %v5689 = vmul.f32 -0.5, %v5204
  %v5690 = vadd.f32 %v5689, 1.0
  %v5691 = vmul.f32 %v5690, %v5204
  %v5692 = vand.u32 2147483647, %v5204
  %vm5693 = vcmp.lt.f32.partialorder %v5692, 0.0004427343
  %v5694 = vsel %vm5693, %v5691, %v5688
  %v5695 = vadd.f32 %v5206, 1.0
  %v5696 = vlog2.pop %v5695
  %v5697 = vmul.f32 %v5696, 0.6931472
  %v5698 = vmul.f32 -0.5, %v5206
  %v5699 = vadd.f32 %v5698, 1.0
  %v5700 = vmul.f32 %v5699, %v5206
  %v5701 = vand.u32 2147483647, %v5206
  %vm5702 = vcmp.lt.f32.partialorder %v5701, 0.0004427343
  %v5703 = vsel %vm5702, %v5700, %v5697
  %v5704 = vadd.f32 %v5208, 1.0
  %v5705 = vlog2.pop %v5704
  %v5706 = vmul.f32 %v5705, 0.6931472
  %v5707 = vmul.f32 -0.5, %v5208
  %v5708 = vadd.f32 %v5707, 1.0
  %v5709 = vmul.f32 %v5708, %v5208
  %v5710 = vand.u32 2147483647, %v5208
  %vm5711 = vcmp.lt.f32.partialorder %v5710, 0.0004427343
  %v5712 = vsel %vm5711, %v5709, %v5706
  %v5713 = vadd.f32 %v5210, 1.0
  %v5714 = vlog2.pop %v5713
  %v5715 = vmul.f32 %v5714, 0.6931472
  %v5716 = vmul.f32 -0.5, %v5210
  %v5717 = vadd.f32 %v5716, 1.0
  %v5718 = vmul.f32 %v5717, %v5210
  %v5719 = vand.u32 2147483647, %v5210
  %vm5720 = vcmp.lt.f32.partialorder %v5719, 0.0004427343
  %v5721 = vsel %vm5720, %v5718, %v5715
  %v5722 = vadd.f32 %v5212, 1.0
  %v5723 = vlog2.pop %v5722
  %v5724 = vmul.f32 %v5723, 0.6931472
  %v5725 = vmul.f32 -0.5, %v5212
  %v5726 = vadd.f32 %v5725, 1.0
  %v5727 = vmul.f32 %v5726, %v5212
  %v5728 = vand.u32 2147483647, %v5212
  %vm5729 = vcmp.lt.f32.partialorder %v5728, 0.0004427343
  %v5730 = vsel %vm5729, %v5727, %v5724
  %v5731 = vadd.f32 %v5214, 1.0
  %v5732 = vlog2.pop %v5731
  %v5733 = vmul.f32 %v5732, 0.6931472
  %v5734 = vmul.f32 -0.5, %v5214
  %v5735 = vadd.f32 %v5734, 1.0
  %v5736 = vmul.f32 %v5735, %v5214
  %v5737 = vand.u32 2147483647, %v5214
  %vm5738 = vcmp.lt.f32.partialorder %v5737, 0.0004427343
  %v5739 = vsel %vm5738, %v5736, %v5733
  %v5740 = vadd.f32 %v5216, 1.0
  %v5741 = vlog2.pop %v5740
  %v5742 = vmul.f32 %v5741, 0.6931472
  %v5743 = vmul.f32 -0.5, %v5216
  %v5744 = vadd.f32 %v5743, 1.0
  %v5745 = vmul.f32 %v5744, %v5216
  %v5746 = vand.u32 2147483647, %v5216
  %vm5747 = vcmp.lt.f32.partialorder %v5746, 0.0004427343
  %v5748 = vsel %vm5747, %v5745, %v5742
  %v5749 = vadd.f32 %v5218, 1.0
  %v5750 = vlog2.pop %v5749
  %v5751 = vmul.f32 %v5750, 0.6931472
  %v5752 = vmul.f32 -0.5, %v5218
  %v5753 = vadd.f32 %v5752, 1.0
  %v5754 = vmul.f32 %v5753, %v5218
  %v5755 = vand.u32 2147483647, %v5218
  %vm5756 = vcmp.lt.f32.partialorder %v5755, 0.0004427343
  %v5757 = vsel %vm5756, %v5754, %v5751
  %v5758 = vadd.f32 %v5220, 1.0
  %v5759 = vlog2.pop %v5758
  %v5760 = vmul.f32 %v5759, 0.6931472
  %v5761 = vmul.f32 -0.5, %v5220
  %v5762 = vadd.f32 %v5761, 1.0
  %v5763 = vmul.f32 %v5762, %v5220
  %v5764 = vand.u32 2147483647, %v5220
  %vm5765 = vcmp.lt.f32.partialorder %v5764, 0.0004427343
  %v5766 = vsel %vm5765, %v5763, %v5760
  %v5767 = vadd.f32 %v5222, 1.0
  %v5768 = vlog2.pop %v5767
  %v5769 = vmul.f32 %v5768, 0.6931472
  %v5770 = vmul.f32 -0.5, %v5222
  %v5771 = vadd.f32 %v5770, 1.0
  %v5772 = vmul.f32 %v5771, %v5222
  %v5773 = vand.u32 2147483647, %v5222
  %vm5774 = vcmp.lt.f32.partialorder %v5773, 0.0004427343
  %v5775 = vsel %vm5774, %v5772, %v5769
  %v5776 = vadd.f32 %v5224, 1.0
  %v5777 = vlog2.pop %v5776
  %v5778 = vmul.f32 %v5777, 0.6931472
  %v5779 = vmul.f32 -0.5, %v5224
  %v5780 = vadd.f32 %v5779, 1.0
  %v5781 = vmul.f32 %v5780, %v5224
  %v5782 = vand.u32 2147483647, %v5224
  %vm5783 = vcmp.lt.f32.partialorder %v5782, 0.0004427343
  %v5784 = vsel %vm5783, %v5781, %v5778
  %v5785 = vadd.f32 %v5226, 1.0
  %v5786 = vlog2.pop %v5785
  %v5787 = vmul.f32 %v5786, 0.6931472
  %v5788 = vmul.f32 -0.5, %v5226
  %v5789 = vadd.f32 %v5788, 1.0
  %v5790 = vmul.f32 %v5789, %v5226
  %v5791 = vand.u32 2147483647, %v5226
  %vm5792 = vcmp.lt.f32.partialorder %v5791, 0.0004427343
  %v5793 = vsel %vm5792, %v5790, %v5787
  %v5794 = vsel %vm4975, %v148, %v5235
  %v5795 = vsel %vm4976, %v149, %v5244
  %v5796 = vsel %vm4977, %v150, %v5253
  %v5797 = vsel %vm4978, %v151, %v5262
  %v5798 = vsel %vm4979, %v152, %v5271
  %v5799 = vsel %vm4980, %v153, %v5280
  %v5800 = vsel %vm4981, %v154, %v5289
  %v5801 = vsel %vm4982, %v155, %v5298
  %v5802 = vsel %vm4983, %v156, %v5307
  %v5803 = vsel %vm4984, %v157, %v5316
  %v5804 = vsel %vm4985, %v158, %v5325
  %v5805 = vsel %vm4986, %v159, %v5334
  %v5806 = vsel %vm4987, %v160, %v5343
  %v5807 = vsel %vm4988, %v161, %v5352
  %v5808 = vsel %vm4989, %v162, %v5361
  %v5809 = vsel %vm4990, %v163, %v5370
  %v5810 = vsel %vm4991, %v164, %v5379
  %v5811 = vsel %vm4992, %v165, %v5388
  %v5812 = vsel %vm4993, %v166, %v5397
  %v5813 = vsel %vm4994, %v167, %v5406
  %v5814 = vsel %vm4995, %v168, %v5415
  %v5815 = vsel %vm4996, %v169, %v5424
  %v5816 = vsel %vm4997, %v170, %v5433
  %v5817 = vsel %vm4998, %v171, %v5442
  %v5818 = vsel %vm4999, %v172, %v5451
  %v5819 = vsel %vm5000, %v173, %v5460
  %v5820 = vsel %vm5001, %v174, %v5469
  %v5821 = vsel %vm5002, %v175, %v5478
  %v5822 = vsel %vm5003, %v176, %v5487
  %v5823 = vsel %vm5004, %v177, %v5496
  %v5824 = vsel %vm5005, %v178, %v5505
  %v5825 = vsel %vm5006, %v179, %v5514
  %v5826 = vsel %vm5007, %v180, %v5523
  %v5827 = vsel %vm5008, %v181, %v5532
  %v5828 = vsel %vm5009, %v182, %v5541
  %v5829 = vsel %vm5010, %v183, %v5550
  %v5830 = vsel %vm5011, %v184, %v5559
  %v5831 = vsel %vm5012, %v185, %v5568
  %v5832 = vsel %vm5013, %v186, %v5577
  %v5833 = vsel %vm5014, %v187, %v5586
  %v5834 = vsel %vm5015, %v188, %v5595
  %v5835 = vsel %vm5016, %v189, %v5604
  %v5836 = vsel %vm5017, %v190, %v5613
  %v5837 = vsel %vm5018, %v191, %v5622
  %v5838 = vsel %vm5019, %v192, %v5631
  %v5839 = vsel %vm5020, %v193, %v5640
  %v5840 = vsel %vm5021, %v194, %v5649
  %v5841 = vsel %vm5022, %v195, %v5658
  %v5842 = vsel %vm5023, %v196, %v5667
  %v5843 = vsel %vm5024, %v197, %v5676
  %v5844 = vsel %vm5025, %v198, %v5685
  %v5845 = vsel %vm5026, %v199, %v5694
  %v5846 = vsel %vm5027, %v200, %v5703
  %v5847 = vsel %vm5028, %v201, %v5712
  %v5848 = vsel %vm5029, %v202, %v5721
  %v5849 = vsel %vm5030, %v203, %v5730
  %v5850 = vsel %vm5031, %v204, %v5739
  %v5851 = vsel %vm5032, %v205, %v5748
  %v5852 = vsel %vm5033, %v206, %v5757
  %v5853 = vsel %vm5034, %v207, %v5766
  %v5854 = vsel %vm5035, %v208, %v5775
  %v5855 = vsel %vm5036, %v209, %v5784
  %v5856 = vsel %vm5037, %v210, %v5793
  %v5857 = vtanh.pop %v5794
  %v5858 = vtanh.pop %v5795
  %v5859 = vtanh.pop %v5796
  %v5860 = vtanh.pop %v5797
  %v5861 = vtanh.pop %v5798
  %v5862 = vtanh.pop %v5799
  %v5863 = vtanh.pop %v5800
  %v5864 = vtanh.pop %v5801
  %v5865 = vtanh.pop %v5802
  %v5866 = vtanh.pop %v5803
  %v5867 = vtanh.pop %v5804
  %v5868 = vtanh.pop %v5805
  %v5869 = vtanh.pop %v5806
  %v5870 = vtanh.pop %v5807
  %v5871 = vtanh.pop %v5808
  %v5872 = vtanh.pop %v5809
  %v5873 = vtanh.pop %v5810
  %v5874 = vtanh.pop %v5811
  %v5875 = vtanh.pop %v5812
  %v5876 = vtanh.pop %v5813
  %v5877 = vtanh.pop %v5814
  %v5878 = vtanh.pop %v5815
  %v5879 = vtanh.pop %v5816
  %v5880 = vtanh.pop %v5817
  %v5881 = vtanh.pop %v5818
  %v5882 = vtanh.pop %v5819
  %v5883 = vtanh.pop %v5820
  %v5884 = vtanh.pop %v5821
  %v5885 = vtanh.pop %v5822
  %v5886 = vtanh.pop %v5823
  %v5887 = vtanh.pop %v5824
  %v5888 = vtanh.pop %v5825
  %v5889 = vtanh.pop %v5826
  %v5890 = vtanh.pop %v5827
  %v5891 = vtanh.pop %v5828
  %v5892 = vtanh.pop %v5829
  %v5893 = vtanh.pop %v5830
  %v5894 = vtanh.pop %v5831
  %v5895 = vtanh.pop %v5832
  %v5896 = vtanh.pop %v5833
  %v5897 = vtanh.pop %v5834
  %v5898 = vtanh.pop %v5835
  %v5899 = vtanh.pop %v5836
  %v5900 = vtanh.pop %v5837
  %v5901 = vtanh.pop %v5838
  %v5902 = vtanh.pop %v5839
  %v5903 = vtanh.pop %v5840
  %v5904 = vtanh.pop %v5841
  %v5905 = vtanh.pop %v5842
  %v5906 = vtanh.pop %v5843
  %v5907 = vtanh.pop %v5844
  %v5908 = vtanh.pop %v5845
  %v5909 = vtanh.pop %v5846
  %v5910 = vtanh.pop %v5847
  %v5911 = vtanh.pop %v5848
  %v5912 = vtanh.pop %v5849
  %v5913 = vtanh.pop %v5850
  %v5914 = vtanh.pop %v5851
  %v5915 = vtanh.pop %v5852
  %v5916 = vtanh.pop %v5853
  %v5917 = vtanh.pop %v5854
  %v5918 = vtanh.pop %v5855
  %v5919 = vtanh.pop %v5856
  %v5920 = vmul.f32 %v148, %v5857
  %v5921 = vmul.f32 %v149, %v5858
  %v5922 = vmul.f32 %v150, %v5859
  %v5923 = vmul.f32 %v151, %v5860
  %v5924 = vmul.f32 %v152, %v5861
  %v5925 = vmul.f32 %v153, %v5862
  %v5926 = vmul.f32 %v154, %v5863
  %v5927 = vmul.f32 %v155, %v5864
  %v5928 = vmul.f32 %v156, %v5865
  %v5929 = vmul.f32 %v157, %v5866
  %v5930 = vmul.f32 %v158, %v5867
  %v5931 = vmul.f32 %v159, %v5868
  %v5932 = vmul.f32 %v160, %v5869
  %v5933 = vmul.f32 %v161, %v5870
  %v5934 = vmul.f32 %v162, %v5871
  %v5935 = vmul.f32 %v163, %v5872
  %v5936 = vmul.f32 %v164, %v5873
  %v5937 = vmul.f32 %v165, %v5874
  %v5938 = vmul.f32 %v166, %v5875
  %v5939 = vmul.f32 %v167, %v5876
  %v5940 = vmul.f32 %v168, %v5877
  %v5941 = vmul.f32 %v169, %v5878
  %v5942 = vmul.f32 %v170, %v5879
  %v5943 = vmul.f32 %v171, %v5880
  %v5944 = vmul.f32 %v172, %v5881
  %v5945 = vmul.f32 %v173, %v5882
  %v5946 = vmul.f32 %v174, %v5883
  %v5947 = vmul.f32 %v175, %v5884
  %v5948 = vmul.f32 %v176, %v5885
  %v5949 = vmul.f32 %v177, %v5886
  %v5950 = vmul.f32 %v178, %v5887
  %v5951 = vmul.f32 %v179, %v5888
  %v5952 = vmul.f32 %v180, %v5889
  %v5953 = vmul.f32 %v181, %v5890
  %v5954 = vmul.f32 %v182, %v5891
  %v5955 = vmul.f32 %v183, %v5892
  %v5956 = vmul.f32 %v184, %v5893
  %v5957 = vmul.f32 %v185, %v5894
  %v5958 = vmul.f32 %v186, %v5895
  %v5959 = vmul.f32 %v187, %v5896
  %v5960 = vmul.f32 %v188, %v5897
  %v5961 = vmul.f32 %v189, %v5898
  %v5962 = vmul.f32 %v190, %v5899
  %v5963 = vmul.f32 %v191, %v5900
  %v5964 = vmul.f32 %v192, %v5901
  %v5965 = vmul.f32 %v193, %v5902
  %v5966 = vmul.f32 %v194, %v5903
  %v5967 = vmul.f32 %v195, %v5904
  %v5968 = vmul.f32 %v196, %v5905
  %v5969 = vmul.f32 %v197, %v5906
  %v5970 = vmul.f32 %v198, %v5907
  %v5971 = vmul.f32 %v199, %v5908
  %v5972 = vmul.f32 %v200, %v5909
  %v5973 = vmul.f32 %v201, %v5910
  %v5974 = vmul.f32 %v202, %v5911
  %v5975 = vmul.f32 %v203, %v5912
  %v5976 = vmul.f32 %v204, %v5913
  %v5977 = vmul.f32 %v205, %v5914
  %v5978 = vmul.f32 %v206, %v5915
  %v5979 = vmul.f32 %v207, %v5916
  %v5980 = vmul.f32 %v208, %v5917
  %v5981 = vmul.f32 %v209, %v5918
  %v5982 = vmul.f32 %v210, %v5919
  %v5983 = vpack.c.bf16 %v5921, %v5920
  %v5984 = vpack.c.bf16 %v5923, %v5922
  %v5985 = vpack.c.bf16 %v5925, %v5924
  %v5986 = vpack.c.bf16 %v5927, %v5926
  %v5987 = vpack.c.bf16 %v5929, %v5928
  %v5988 = vpack.c.bf16 %v5931, %v5930
  %v5989 = vpack.c.bf16 %v5933, %v5932
  %v5990 = vpack.c.bf16 %v5935, %v5934
  %v5991 = vpack.c.bf16 %v5937, %v5936
  %v5992 = vpack.c.bf16 %v5939, %v5938
  %v5993 = vpack.c.bf16 %v5941, %v5940
  %v5994 = vpack.c.bf16 %v5943, %v5942
  %v5995 = vpack.c.bf16 %v5945, %v5944
  %v5996 = vpack.c.bf16 %v5947, %v5946
  %v5997 = vpack.c.bf16 %v5949, %v5948
  %v5998 = vpack.c.bf16 %v5951, %v5950
  %v5999 = vpack.c.bf16 %v5953, %v5952
  %v6000 = vpack.c.bf16 %v5955, %v5954
  %v6001 = vpack.c.bf16 %v5957, %v5956
  %v6002 = vpack.c.bf16 %v5959, %v5958
  %v6003 = vpack.c.bf16 %v5961, %v5960
  %v6004 = vpack.c.bf16 %v5963, %v5962
  %v6005 = vpack.c.bf16 %v5965, %v5964
  %v6006 = vpack.c.bf16 %v5967, %v5966
  %v6007 = vpack.c.bf16 %v5969, %v5968
  %v6008 = vpack.c.bf16 %v5971, %v5970
  %v6009 = vpack.c.bf16 %v5973, %v5972
  %v6010 = vpack.c.bf16 %v5975, %v5974
  %v6011 = vpack.c.bf16 %v5977, %v5976
  %v6012 = vpack.c.bf16 %v5979, %v5978
  %v6013 = vpack.c.bf16 %v5981, %v5980
  %v6014 = vpack.c.bf16 %v5982, %v5982
  %v6015 = vlaneseq
  %v6016 = vshrl.u32 %v6015, 7
  %v6017 = vsub.s32 0, %v6016
  %v6018 = vrot.slane %v43, %v6017
  %vm6019 = vcmask 64512
  %v6021 = vsel %vm6019, %v5983, 0
  %v6024 = vsel %vm6019, %v5984, 0
  %v6027 = vsel %vm6019, %v5985, 0
  %v6030 = vsel %vm6019, %v5986, 0
  %v6033 = vsel %vm6019, %v5987, 0
  %v6036 = vsel %vm6019, %v5988, 0
  %v6039 = vsel %vm6019, %v5989, 0
  %v6042 = vsel %vm6019, %v5990, 0
  %v6045 = vsel %vm6019, %v5991, 0
  %v6048 = vsel %vm6019, %v5992, 0
  %v6051 = vsel %vm6019, %v5993, 0
  %v6054 = vsel %vm6019, %v5994, 0
  %v6057 = vsel %vm6019, %v5995, 0
  %v6060 = vsel %vm6019, %v5996, 0
  %v6063 = vsel %vm6019, %v5997, 0
  %v6066 = vsel %vm6019, %v5998, 0
  %v6069 = vsel %vm6019, %v5999, 0
  %v6072 = vsel %vm6019, %v6000, 0
  %v6075 = vsel %vm6019, %v6001, 0
  %v6078 = vsel %vm6019, %v6002, 0
  %v6081 = vsel %vm6019, %v6003, 0
  %v6084 = vsel %vm6019, %v6004, 0
  %v6087 = vsel %vm6019, %v6005, 0
  %v6090 = vsel %vm6019, %v6006, 0
  %v6093 = vsel %vm6019, %v6007, 0
  %v6096 = vsel %vm6019, %v6008, 0
  %v6099 = vsel %vm6019, %v6009, 0
  %v6102 = vsel %vm6019, %v6010, 0
  %v6105 = vsel %vm6019, %v6011, 0
  %v6108 = vsel %vm6019, %v6012, 0
  %v6111 = vsel %vm6019, %v6013, 0
  %v6114 = vsel %vm6019, %v6014, 0
  %vm6116 = vcmask 1043456
  %v6118 = vsel %vm6116, %v28, 0
  %6120 = vmatprep.subr.bf16.mxu0 0
  %6121 = vmatpush1.bf16.msra.mxu0 0
  %6122 = vmatprep.subr.bf16.mxu0 0
  %6123 = vmatpush1.bf16.msra.mxu0 0
  %6124 = vmatprep.subr.bf16.mxu0 0
  %6125 = vmatpush1.bf16.msra.mxu0 0
  %6126 = vmatprep.subr.bf16.mxu0 0
  %6127 = vmatpush1.bf16.msra.mxu0 0
  %6128 = vmatprep.subr.bf16.mxu0 0
  %6129 = vmatpush1.bf16.msra.mxu0 0
  %6130 = vmatprep.subr.bf16.mxu0 0
  %6131 = vmatpush1.bf16.msra.mxu0 0
  %6132 = vmatprep.subr.bf16.mxu0 0
  %6133 = vmatpush1.bf16.msra.mxu0 0
  %6134 = vmatprep.subr.bf16.mxu0 0
  %6135 = vmatpush1.bf16.msra.mxu0 %v6118
  %6136 = vmatprep.subr.bf16.mxu0 0
  %6137 = vmatpush2.bf16.msra.mxu0 0
  %6138 = vmatprep.subr.bf16.mxu0 0
  %6139 = vmatpush2.bf16.msra.mxu0 0
  %6140 = vmatprep.subr.bf16.mxu0 0
  %6141 = vmatpush2.bf16.msra.mxu0 0
  %6142 = vmatprep.subr.bf16.mxu0 0
  %6143 = vmatpush2.bf16.msra.mxu0 0
  %6144 = vmatprep.subr.bf16.mxu0 0
  %6145 = vmatpush2.bf16.msra.mxu0 0
  %6146 = vmatprep.subr.bf16.mxu0 0
  %6147 = vmatpush2.bf16.msra.mxu0 0
  %6148 = vmatprep.subr.bf16.mxu0 0
  %6149 = vmatpush2.bf16.msra.mxu0 0
  %6150 = vmatprep.subr.bf16.mxu0 0
  %6151 = vmatpush2.bf16.msra.mxu0 0
  %6152 = vmatprep.mubr.bf16.mxu0 0
  %6153 = vmatmul.mubr.bf16.gmra.mxu0 %v6021
  %v6154 = vpop.f32.mrf.mxu0
  %v6155 = vadd.f32 %v6018, %v6154
  %v6156 = vpop.f32.mrf.mxu0
  %v6157 = vpop.f32.mrf.mxu0
  %v6158 = vadd.f32 %v6018, %v6157
  %v6159 = vpop.f32.mrf.mxu0
  %6160 = vmatprep.mubr.bf16.mxu0 0
  %6161 = vmatmul.mubr.bf16.gmra.mxu0 %v6024
  %v6162 = vpop.f32.mrf.mxu0
  %v6163 = vadd.f32 %v6018, %v6162
  %v6164 = vpop.f32.mrf.mxu0
  %v6165 = vpop.f32.mrf.mxu0
  %v6166 = vadd.f32 %v6018, %v6165
  %v6167 = vpop.f32.mrf.mxu0
  %6168 = vmatprep.mubr.bf16.mxu0 0
  %6169 = vmatmul.mubr.bf16.gmra.mxu0 %v6027
  %v6170 = vpop.f32.mrf.mxu0
  %v6171 = vadd.f32 %v6018, %v6170
  %v6172 = vpop.f32.mrf.mxu0
  %v6173 = vpop.f32.mrf.mxu0
  %v6174 = vadd.f32 %v6018, %v6173
  %v6175 = vpop.f32.mrf.mxu0
  %6176 = vmatprep.mubr.bf16.mxu0 0
  %6177 = vmatmul.mubr.bf16.gmra.mxu0 %v6030
  %v6178 = vpop.f32.mrf.mxu0
  %v6179 = vadd.f32 %v6018, %v6178
  %v6180 = vpop.f32.mrf.mxu0
  %v6181 = vpop.f32.mrf.mxu0
  %v6182 = vadd.f32 %v6018, %v6181
  %v6183 = vpop.f32.mrf.mxu0
  %6184 = vmatprep.mubr.bf16.mxu0 0
  %6185 = vmatmul.mubr.bf16.gmra.mxu0 %v6033
  %v6186 = vpop.f32.mrf.mxu0
  %v6187 = vadd.f32 %v6018, %v6186
  %v6188 = vpop.f32.mrf.mxu0
  %v6189 = vpop.f32.mrf.mxu0
  %v6190 = vadd.f32 %v6018, %v6189
  %v6191 = vpop.f32.mrf.mxu0
  %6192 = vmatprep.mubr.bf16.mxu0 0
  %6193 = vmatmul.mubr.bf16.gmra.mxu0 %v6036
  %v6194 = vpop.f32.mrf.mxu0
  %v6195 = vadd.f32 %v6018, %v6194
  %v6196 = vpop.f32.mrf.mxu0
  %v6197 = vpop.f32.mrf.mxu0
  %v6198 = vadd.f32 %v6018, %v6197
  %v6199 = vpop.f32.mrf.mxu0
  %6200 = vmatprep.mubr.bf16.mxu0 0
  %6201 = vmatmul.mubr.bf16.gmra.mxu0 %v6039
  %v6202 = vpop.f32.mrf.mxu0
  %v6203 = vadd.f32 %v6018, %v6202
  %v6204 = vpop.f32.mrf.mxu0
  %v6205 = vpop.f32.mrf.mxu0
  %v6206 = vadd.f32 %v6018, %v6205
  %v6207 = vpop.f32.mrf.mxu0
  %6208 = vmatprep.mubr.bf16.mxu0 0
  %6209 = vmatmul.mubr.bf16.gmra.mxu0 %v6042
  %v6210 = vpop.f32.mrf.mxu0
  %v6211 = vadd.f32 %v6018, %v6210
  %v6212 = vpop.f32.mrf.mxu0
  %v6213 = vpop.f32.mrf.mxu0
  %v6214 = vadd.f32 %v6018, %v6213
  %v6215 = vpop.f32.mrf.mxu0
  %6216 = vmatprep.mubr.bf16.mxu0 0
  %6217 = vmatmul.mubr.bf16.gmra.mxu0 %v6045
  %v6218 = vpop.f32.mrf.mxu0
  %v6219 = vadd.f32 %v6018, %v6218
  %v6220 = vpop.f32.mrf.mxu0
  %v6221 = vpop.f32.mrf.mxu0
  %v6222 = vadd.f32 %v6018, %v6221
  %v6223 = vpop.f32.mrf.mxu0
  %6224 = vmatprep.mubr.bf16.mxu0 0
  %6225 = vmatmul.mubr.bf16.gmra.mxu0 %v6048
  %v6226 = vpop.f32.mrf.mxu0
  %v6227 = vadd.f32 %v6018, %v6226
  %v6228 = vpop.f32.mrf.mxu0
  %v6229 = vpop.f32.mrf.mxu0
  %v6230 = vadd.f32 %v6018, %v6229
  %v6231 = vpop.f32.mrf.mxu0
  %6232 = vmatprep.mubr.bf16.mxu0 0
  %6233 = vmatmul.mubr.bf16.gmra.mxu0 %v6051
  %v6234 = vpop.f32.mrf.mxu0
  %v6235 = vadd.f32 %v6018, %v6234
  %v6236 = vpop.f32.mrf.mxu0
  %v6237 = vpop.f32.mrf.mxu0
  %v6238 = vadd.f32 %v6018, %v6237
  %v6239 = vpop.f32.mrf.mxu0
  %6240 = vmatprep.mubr.bf16.mxu0 0
  %6241 = vmatmul.mubr.bf16.gmra.mxu0 %v6054
  %v6242 = vpop.f32.mrf.mxu0
  %v6243 = vadd.f32 %v6018, %v6242
  %v6244 = vpop.f32.mrf.mxu0
  %v6245 = vpop.f32.mrf.mxu0
  %v6246 = vadd.f32 %v6018, %v6245
  %v6247 = vpop.f32.mrf.mxu0
  %6248 = vmatprep.mubr.bf16.mxu0 0
  %6249 = vmatmul.mubr.bf16.gmra.mxu0 %v6057
  %v6250 = vpop.f32.mrf.mxu0
  %v6251 = vadd.f32 %v6018, %v6250
  %v6252 = vpop.f32.mrf.mxu0
  %v6253 = vpop.f32.mrf.mxu0
  %v6254 = vadd.f32 %v6018, %v6253
  %v6255 = vpop.f32.mrf.mxu0
  %6256 = vmatprep.mubr.bf16.mxu0 0
  %6257 = vmatmul.mubr.bf16.gmra.mxu0 %v6060
  %v6258 = vpop.f32.mrf.mxu0
  %v6259 = vadd.f32 %v6018, %v6258
  %v6260 = vpop.f32.mrf.mxu0
  %v6261 = vpop.f32.mrf.mxu0
  %v6262 = vadd.f32 %v6018, %v6261
  %v6263 = vpop.f32.mrf.mxu0
  %6264 = vmatprep.mubr.bf16.mxu0 0
  %6265 = vmatmul.mubr.bf16.gmra.mxu0 %v6063
  %v6266 = vpop.f32.mrf.mxu0
  %v6267 = vadd.f32 %v6018, %v6266
  %v6268 = vpop.f32.mrf.mxu0
  %v6269 = vpop.f32.mrf.mxu0
  %v6270 = vadd.f32 %v6018, %v6269
  %v6271 = vpop.f32.mrf.mxu0
  %6272 = vmatprep.mubr.bf16.mxu0 0
  %6273 = vmatmul.mubr.bf16.gmra.mxu0 %v6066
  %v6274 = vpop.f32.mrf.mxu0
  %v6275 = vadd.f32 %v6018, %v6274
  %v6276 = vpop.f32.mrf.mxu0
  %v6277 = vpop.f32.mrf.mxu0
  %v6278 = vadd.f32 %v6018, %v6277
  %v6279 = vpop.f32.mrf.mxu0
  %6280 = vmatprep.mubr.bf16.mxu0 0
  %6281 = vmatmul.mubr.bf16.gmra.mxu0 %v6069
  %v6282 = vpop.f32.mrf.mxu0
  %v6283 = vadd.f32 %v6018, %v6282
  %v6284 = vpop.f32.mrf.mxu0
  %v6285 = vpop.f32.mrf.mxu0
  %v6286 = vadd.f32 %v6018, %v6285
  %v6287 = vpop.f32.mrf.mxu0
  %6288 = vmatprep.mubr.bf16.mxu0 0
  %6289 = vmatmul.mubr.bf16.gmra.mxu0 %v6072
  %v6290 = vpop.f32.mrf.mxu0
  %v6291 = vadd.f32 %v6018, %v6290
  %v6292 = vpop.f32.mrf.mxu0
  %v6293 = vpop.f32.mrf.mxu0
  %v6294 = vadd.f32 %v6018, %v6293
  %v6295 = vpop.f32.mrf.mxu0
  %6296 = vmatprep.mubr.bf16.mxu0 0
  %6297 = vmatmul.mubr.bf16.gmra.mxu0 %v6075
  %v6298 = vpop.f32.mrf.mxu0
  %v6299 = vadd.f32 %v6018, %v6298
  %v6300 = vpop.f32.mrf.mxu0
  %v6301 = vpop.f32.mrf.mxu0
  %v6302 = vadd.f32 %v6018, %v6301
  %v6303 = vpop.f32.mrf.mxu0
  %6304 = vmatprep.mubr.bf16.mxu0 0
  %6305 = vmatmul.mubr.bf16.gmra.mxu0 %v6078
  %v6306 = vpop.f32.mrf.mxu0
  %v6307 = vadd.f32 %v6018, %v6306
  %v6308 = vpop.f32.mrf.mxu0
  %v6309 = vpop.f32.mrf.mxu0
  %v6310 = vadd.f32 %v6018, %v6309
  %v6311 = vpop.f32.mrf.mxu0
  %6312 = vmatprep.mubr.bf16.mxu0 0
  %6313 = vmatmul.mubr.bf16.gmra.mxu0 %v6081
  %v6314 = vpop.f32.mrf.mxu0
  %v6315 = vadd.f32 %v6018, %v6314
  %v6316 = vpop.f32.mrf.mxu0
  %v6317 = vpop.f32.mrf.mxu0
  %v6318 = vadd.f32 %v6018, %v6317
  %v6319 = vpop.f32.mrf.mxu0
  %6320 = vmatprep.mubr.bf16.mxu0 0
  %6321 = vmatmul.mubr.bf16.gmra.mxu0 %v6084
  %v6322 = vpop.f32.mrf.mxu0
  %v6323 = vadd.f32 %v6018, %v6322
  %v6324 = vpop.f32.mrf.mxu0
  %v6325 = vpop.f32.mrf.mxu0
  %v6326 = vadd.f32 %v6018, %v6325
  %v6327 = vpop.f32.mrf.mxu0
  %6328 = vmatprep.mubr.bf16.mxu0 0
  %6329 = vmatmul.mubr.bf16.gmra.mxu0 %v6087
  %v6330 = vpop.f32.mrf.mxu0
  %v6331 = vadd.f32 %v6018, %v6330
  %v6332 = vpop.f32.mrf.mxu0
  %v6333 = vpop.f32.mrf.mxu0
  %v6334 = vadd.f32 %v6018, %v6333
  %v6335 = vpop.f32.mrf.mxu0
  %6336 = vmatprep.mubr.bf16.mxu0 0
  %6337 = vmatmul.mubr.bf16.gmra.mxu0 %v6090
  %v6338 = vpop.f32.mrf.mxu0
  %v6339 = vadd.f32 %v6018, %v6338
  %v6340 = vpop.f32.mrf.mxu0
  %v6341 = vpop.f32.mrf.mxu0
  %v6342 = vadd.f32 %v6018, %v6341
  %v6343 = vpop.f32.mrf.mxu0
  %6344 = vmatprep.mubr.bf16.mxu0 0
  %6345 = vmatmul.mubr.bf16.gmra.mxu0 %v6093
  %v6346 = vpop.f32.mrf.mxu0
  %v6347 = vadd.f32 %v6018, %v6346
  %v6348 = vpop.f32.mrf.mxu0
  %v6349 = vpop.f32.mrf.mxu0
  %v6350 = vadd.f32 %v6018, %v6349
  %v6351 = vpop.f32.mrf.mxu0
  %6352 = vmatprep.mubr.bf16.mxu0 0
  %6353 = vmatmul.mubr.bf16.gmra.mxu0 %v6096
  %v6354 = vpop.f32.mrf.mxu0
  %v6355 = vadd.f32 %v6018, %v6354
  %v6356 = vpop.f32.mrf.mxu0
  %v6357 = vpop.f32.mrf.mxu0
  %v6358 = vadd.f32 %v6018, %v6357
  %v6359 = vpop.f32.mrf.mxu0
  %6360 = vmatprep.mubr.bf16.mxu0 0
  %6361 = vmatmul.mubr.bf16.gmra.mxu0 %v6099
  %v6362 = vpop.f32.mrf.mxu0
  %v6363 = vadd.f32 %v6018, %v6362
  %v6364 = vpop.f32.mrf.mxu0
  %v6365 = vpop.f32.mrf.mxu0
  %v6366 = vadd.f32 %v6018, %v6365
  %v6367 = vpop.f32.mrf.mxu0
  %6368 = vmatprep.mubr.bf16.mxu0 0
  %6369 = vmatmul.mubr.bf16.gmra.mxu0 %v6102
  %v6370 = vpop.f32.mrf.mxu0
  %v6371 = vadd.f32 %v6018, %v6370
  %v6372 = vpop.f32.mrf.mxu0
  %v6373 = vpop.f32.mrf.mxu0
  %v6374 = vadd.f32 %v6018, %v6373
  %v6375 = vpop.f32.mrf.mxu0
  %6376 = vmatprep.mubr.bf16.mxu0 0
  %6377 = vmatmul.mubr.bf16.gmra.mxu0 %v6105
  %v6378 = vpop.f32.mrf.mxu0
  %v6379 = vadd.f32 %v6018, %v6378
  %v6380 = vpop.f32.mrf.mxu0
  %v6381 = vpop.f32.mrf.mxu0
  %v6382 = vadd.f32 %v6018, %v6381
  %v6383 = vpop.f32.mrf.mxu0
  %6384 = vmatprep.mubr.bf16.mxu0 0
  %6385 = vmatmul.mubr.bf16.gmra.mxu0 %v6108
  %v6386 = vpop.f32.mrf.mxu0
  %v6387 = vadd.f32 %v6018, %v6386
  %v6388 = vpop.f32.mrf.mxu0
  %v6389 = vpop.f32.mrf.mxu0
  %v6390 = vadd.f32 %v6018, %v6389
  %v6391 = vpop.f32.mrf.mxu0
  %6392 = vmatprep.mubr.bf16.mxu0 0
  %6393 = vmatmul.mubr.bf16.gmra.mxu0 %v6111
  %v6394 = vpop.f32.mrf.mxu0
  %v6395 = vadd.f32 %v6018, %v6394
  %v6396 = vpop.f32.mrf.mxu0
  %v6397 = vpop.f32.mrf.mxu0
  %v6398 = vadd.f32 %v6018, %v6397
  %v6399 = vpop.f32.mrf.mxu0
  %6400 = vmatprep.mubr.bf16.mxu0 0
  %6401 = vmatmul.mubr.bf16.gmra.mxu0 %v6114
  %v6402 = vpop.f32.mrf.mxu0
  %v6403 = vadd.f32 %v6018, %v6402
  %v6404 = vpop.f32.mrf.mxu0
  %v6405 = vpop.f32.mrf.mxu0
  %v6406 = vpop.f32.mrf.mxu0
  %6407 = vdwg.mxu0
  %v6408 = vmul.f32 %v6155, %v4912
  %v6409 = vmul.f32 %v6158, %v4913
  %v6410 = vmul.f32 %v6163, %v4914
  %v6411 = vmul.f32 %v6166, %v4915
  %v6412 = vmul.f32 %v6171, %v4916
  %v6413 = vmul.f32 %v6174, %v4917
  %v6414 = vmul.f32 %v6179, %v4918
  %v6415 = vmul.f32 %v6182, %v4919
  %v6416 = vmul.f32 %v6187, %v4920
  %v6417 = vmul.f32 %v6190, %v4921
  %v6418 = vmul.f32 %v6195, %v4922
  %v6419 = vmul.f32 %v6198, %v4923
  %v6420 = vmul.f32 %v6203, %v4924
  %v6421 = vmul.f32 %v6206, %v4925
  %v6422 = vmul.f32 %v6211, %v4926
  %v6423 = vmul.f32 %v6214, %v4927
  %v6424 = vmul.f32 %v6219, %v4928
  %v6425 = vmul.f32 %v6222, %v4929
  %v6426 = vmul.f32 %v6227, %v4930
  %v6427 = vmul.f32 %v6230, %v4931
  %v6428 = vmul.f32 %v6235, %v4932
  %v6429 = vmul.f32 %v6238, %v4933
  %v6430 = vmul.f32 %v6243, %v4934
  %v6431 = vmul.f32 %v6246, %v4935
  %v6432 = vmul.f32 %v6251, %v4936
  %v6433 = vmul.f32 %v6254, %v4937
  %v6434 = vmul.f32 %v6259, %v4938
  %v6435 = vmul.f32 %v6262, %v4939
  %v6436 = vmul.f32 %v6267, %v4940
  %v6437 = vmul.f32 %v6270, %v4941
  %v6438 = vmul.f32 %v6275, %v4942
  %v6439 = vmul.f32 %v6278, %v4943
  %v6440 = vmul.f32 %v6283, %v4944
  %v6441 = vmul.f32 %v6286, %v4945
  %v6442 = vmul.f32 %v6291, %v4946
  %v6443 = vmul.f32 %v6294, %v4947
  %v6444 = vmul.f32 %v6299, %v4948
  %v6445 = vmul.f32 %v6302, %v4949
  %v6446 = vmul.f32 %v6307, %v4950
  %v6447 = vmul.f32 %v6310, %v4951
  %v6448 = vmul.f32 %v6315, %v4952
  %v6449 = vmul.f32 %v6318, %v4953
  %v6450 = vmul.f32 %v6323, %v4954
  %v6451 = vmul.f32 %v6326, %v4955
  %v6452 = vmul.f32 %v6331, %v4956
  %v6453 = vmul.f32 %v6334, %v4957
  %v6454 = vmul.f32 %v6339, %v4958
  %v6455 = vmul.f32 %v6342, %v4959
  %v6456 = vmul.f32 %v6347, %v4960
  %v6457 = vmul.f32 %v6350, %v4961
  %v6458 = vmul.f32 %v6355, %v4962
  %v6459 = vmul.f32 %v6358, %v4963
  %v6460 = vmul.f32 %v6363, %v4964
  %v6461 = vmul.f32 %v6366, %v4965
  %v6462 = vmul.f32 %v6371, %v4966
  %v6463 = vmul.f32 %v6374, %v4967
  %v6464 = vmul.f32 %v6379, %v4968
  %v6465 = vmul.f32 %v6382, %v4969
  %v6466 = vmul.f32 %v6387, %v4970
  %v6467 = vmul.f32 %v6390, %v4971
  %v6468 = vmul.f32 %v6395, %v4972
  %v6469 = vmul.f32 %v6398, %v4973
  %v6470 = vmul.f32 %v6403, %v4974
  %6534 = vrot.lane.b32.xlu0 %v6155, 96
  %v6535 = vpop.permute.xlu0 %6534
  %6536 = vrot.lane.b32.xlu0 %v6158, 96
  %v6537 = vpop.permute.xlu0 %6536
  %6538 = vrot.lane.b32.xlu0 %v6163, 96
  %v6539 = vpop.permute.xlu0 %6538
  %6540 = vrot.lane.b32.xlu0 %v6166, 96
  %v6541 = vpop.permute.xlu0 %6540
  %6542 = vrot.lane.b32.xlu0 %v6171, 96
  %v6543 = vpop.permute.xlu0 %6542
  %6544 = vrot.lane.b32.xlu0 %v6174, 96
  %v6545 = vpop.permute.xlu0 %6544
  %6546 = vrot.lane.b32.xlu0 %v6179, 96
  %v6547 = vpop.permute.xlu0 %6546
  %6548 = vrot.lane.b32.xlu0 %v6182, 96
  %v6549 = vpop.permute.xlu0 %6548
  %6550 = vrot.lane.b32.xlu0 %v6187, 96
  %v6551 = vpop.permute.xlu0 %6550
  %6552 = vrot.lane.b32.xlu0 %v6190, 96
  %v6553 = vpop.permute.xlu0 %6552
  %6554 = vrot.lane.b32.xlu0 %v6195, 96
  %v6555 = vpop.permute.xlu0 %6554
  %6556 = vrot.lane.b32.xlu0 %v6198, 96
  %v6557 = vpop.permute.xlu0 %6556
  %6558 = vrot.lane.b32.xlu0 %v6203, 96
  %v6559 = vpop.permute.xlu0 %6558
  %6560 = vrot.lane.b32.xlu0 %v6206, 96
  %v6561 = vpop.permute.xlu0 %6560
  %6562 = vrot.lane.b32.xlu0 %v6211, 96
  %v6563 = vpop.permute.xlu0 %6562
  %6564 = vrot.lane.b32.xlu0 %v6214, 96
  %v6565 = vpop.permute.xlu0 %6564
  %6566 = vrot.lane.b32.xlu0 %v6219, 96
  %v6567 = vpop.permute.xlu0 %6566
  %6568 = vrot.lane.b32.xlu0 %v6222, 96
  %v6569 = vpop.permute.xlu0 %6568
  %6570 = vrot.lane.b32.xlu0 %v6227, 96
  %v6571 = vpop.permute.xlu0 %6570
  %6572 = vrot.lane.b32.xlu0 %v6230, 96
  %v6573 = vpop.permute.xlu0 %6572
  %6574 = vrot.lane.b32.xlu0 %v6235, 96
  %v6575 = vpop.permute.xlu0 %6574
  %6576 = vrot.lane.b32.xlu0 %v6238, 96
  %v6577 = vpop.permute.xlu0 %6576
  %6578 = vrot.lane.b32.xlu0 %v6243, 96
  %v6579 = vpop.permute.xlu0 %6578
  %6580 = vrot.lane.b32.xlu0 %v6246, 96
  %v6581 = vpop.permute.xlu0 %6580
  %6582 = vrot.lane.b32.xlu0 %v6251, 96
  %v6583 = vpop.permute.xlu0 %6582
  %6584 = vrot.lane.b32.xlu0 %v6254, 96
  %v6585 = vpop.permute.xlu0 %6584
  %6586 = vrot.lane.b32.xlu0 %v6259, 96
  %v6587 = vpop.permute.xlu0 %6586
  %6588 = vrot.lane.b32.xlu0 %v6262, 96
  %v6589 = vpop.permute.xlu0 %6588
  %6590 = vrot.lane.b32.xlu0 %v6267, 96
  %v6591 = vpop.permute.xlu0 %6590
  %6592 = vrot.lane.b32.xlu0 %v6270, 96
  %v6593 = vpop.permute.xlu0 %6592
  %6594 = vrot.lane.b32.xlu0 %v6275, 96
  %v6595 = vpop.permute.xlu0 %6594
  %6596 = vrot.lane.b32.xlu0 %v6278, 96
  %v6597 = vpop.permute.xlu0 %6596
  %6598 = vrot.lane.b32.xlu0 %v6283, 96
  %v6599 = vpop.permute.xlu0 %6598
  %6600 = vrot.lane.b32.xlu0 %v6286, 96
  %v6601 = vpop.permute.xlu0 %6600
  %6602 = vrot.lane.b32.xlu0 %v6291, 96
  %v6603 = vpop.permute.xlu0 %6602
  %6604 = vrot.lane.b32.xlu0 %v6294, 96
  %v6605 = vpop.permute.xlu0 %6604
  %6606 = vrot.lane.b32.xlu0 %v6299, 96
  %v6607 = vpop.permute.xlu0 %6606
  %6608 = vrot.lane.b32.xlu0 %v6302, 96
  %v6609 = vpop.permute.xlu0 %6608
  %6610 = vrot.lane.b32.xlu0 %v6307, 96
  %v6611 = vpop.permute.xlu0 %6610
  %6612 = vrot.lane.b32.xlu0 %v6310, 96
  %v6613 = vpop.permute.xlu0 %6612
  %6614 = vrot.lane.b32.xlu0 %v6315, 96
  %v6615 = vpop.permute.xlu0 %6614
  %6616 = vrot.lane.b32.xlu0 %v6318, 96
  %v6617 = vpop.permute.xlu0 %6616
  %6618 = vrot.lane.b32.xlu0 %v6323, 96
  %v6619 = vpop.permute.xlu0 %6618
  %6620 = vrot.lane.b32.xlu0 %v6326, 96
  %v6621 = vpop.permute.xlu0 %6620
  %6622 = vrot.lane.b32.xlu0 %v6331, 96
  %v6623 = vpop.permute.xlu0 %6622
  %6624 = vrot.lane.b32.xlu0 %v6334, 96
  %v6625 = vpop.permute.xlu0 %6624
  %6626 = vrot.lane.b32.xlu0 %v6339, 96
  %v6627 = vpop.permute.xlu0 %6626
  %6628 = vrot.lane.b32.xlu0 %v6342, 96
  %v6629 = vpop.permute.xlu0 %6628
  %6630 = vrot.lane.b32.xlu0 %v6347, 96
  %v6631 = vpop.permute.xlu0 %6630
  %6632 = vrot.lane.b32.xlu0 %v6350, 96
  %v6633 = vpop.permute.xlu0 %6632
  %6634 = vrot.lane.b32.xlu0 %v6355, 96
  %v6635 = vpop.permute.xlu0 %6634
  %6636 = vrot.lane.b32.xlu0 %v6358, 96
  %v6637 = vpop.permute.xlu0 %6636
  %6638 = vrot.lane.b32.xlu0 %v6363, 96
  %v6639 = vpop.permute.xlu0 %6638
  %6640 = vrot.lane.b32.xlu0 %v6366, 96
  %v6641 = vpop.permute.xlu0 %6640
  %6642 = vrot.lane.b32.xlu0 %v6371, 96
  %v6643 = vpop.permute.xlu0 %6642
  %6644 = vrot.lane.b32.xlu0 %v6374, 96
  %v6645 = vpop.permute.xlu0 %6644
  %6646 = vrot.lane.b32.xlu0 %v6379, 96
  %v6647 = vpop.permute.xlu0 %6646
  %6648 = vrot.lane.b32.xlu0 %v6382, 96
  %v6649 = vpop.permute.xlu0 %6648
  %6650 = vrot.lane.b32.xlu0 %v6387, 96
  %v6651 = vpop.permute.xlu0 %6650
  %6652 = vrot.lane.b32.xlu0 %v6390, 96
  %v6653 = vpop.permute.xlu0 %6652
  %6654 = vrot.lane.b32.xlu0 %v6395, 96
  %v6655 = vpop.permute.xlu0 %6654
  %6656 = vrot.lane.b32.xlu0 %v6398, 96
  %v6657 = vpop.permute.xlu0 %6656
  %6658 = vrot.lane.b32.xlu0 %v6403, 96
  %v6659 = vpop.permute.xlu0 %6658
  %v6723 = vadd.f32 %v6408, %v6535
  %v6724 = vadd.f32 %v6409, %v6537
  %v6725 = vadd.f32 %v6410, %v6539
  %v6726 = vadd.f32 %v6411, %v6541
  %v6727 = vadd.f32 %v6412, %v6543
  %v6728 = vadd.f32 %v6413, %v6545
  %v6729 = vadd.f32 %v6414, %v6547
  %v6730 = vadd.f32 %v6415, %v6549
  %v6731 = vadd.f32 %v6416, %v6551
  %v6732 = vadd.f32 %v6417, %v6553
  %v6733 = vadd.f32 %v6418, %v6555
  %v6734 = vadd.f32 %v6419, %v6557
  %v6735 = vadd.f32 %v6420, %v6559
  %v6736 = vadd.f32 %v6421, %v6561
  %v6737 = vadd.f32 %v6422, %v6563
  %v6738 = vadd.f32 %v6423, %v6565
  %v6739 = vadd.f32 %v6424, %v6567
  %v6740 = vadd.f32 %v6425, %v6569
  %v6741 = vadd.f32 %v6426, %v6571
  %v6742 = vadd.f32 %v6427, %v6573
  %v6743 = vadd.f32 %v6428, %v6575
  %v6744 = vadd.f32 %v6429, %v6577
  %v6745 = vadd.f32 %v6430, %v6579
  %v6746 = vadd.f32 %v6431, %v6581
  %v6747 = vadd.f32 %v6432, %v6583
  %v6748 = vadd.f32 %v6433, %v6585
  %v6749 = vadd.f32 %v6434, %v6587
  %v6750 = vadd.f32 %v6435, %v6589
  %v6751 = vadd.f32 %v6436, %v6591
  %v6752 = vadd.f32 %v6437, %v6593
  %v6753 = vadd.f32 %v6438, %v6595
  %v6754 = vadd.f32 %v6439, %v6597
  %v6755 = vadd.f32 %v6440, %v6599
  %v6756 = vadd.f32 %v6441, %v6601
  %v6757 = vadd.f32 %v6442, %v6603
  %v6758 = vadd.f32 %v6443, %v6605
  %v6759 = vadd.f32 %v6444, %v6607
  %v6760 = vadd.f32 %v6445, %v6609
  %v6761 = vadd.f32 %v6446, %v6611
  %v6762 = vadd.f32 %v6447, %v6613
  %v6763 = vadd.f32 %v6448, %v6615
  %v6764 = vadd.f32 %v6449, %v6617
  %v6765 = vadd.f32 %v6450, %v6619
  %v6766 = vadd.f32 %v6451, %v6621
  %v6767 = vadd.f32 %v6452, %v6623
  %v6768 = vadd.f32 %v6453, %v6625
  %v6769 = vadd.f32 %v6454, %v6627
  %v6770 = vadd.f32 %v6455, %v6629
  %v6771 = vadd.f32 %v6456, %v6631
  %v6772 = vadd.f32 %v6457, %v6633
  %v6773 = vadd.f32 %v6458, %v6635
  %v6774 = vadd.f32 %v6459, %v6637
  %v6775 = vadd.f32 %v6460, %v6639
  %v6776 = vadd.f32 %v6461, %v6641
  %v6777 = vadd.f32 %v6462, %v6643
  %v6778 = vadd.f32 %v6463, %v6645
  %v6779 = vadd.f32 %v6464, %v6647
  %v6780 = vadd.f32 %v6465, %v6649
  %v6781 = vadd.f32 %v6466, %v6651
  %v6782 = vadd.f32 %v6467, %v6653
  %v6783 = vadd.f32 %v6468, %v6655
  %v6784 = vadd.f32 %v6469, %v6657
  %v6785 = vadd.f32 %v6470, %v6659
  %v6786 = vpack.c.bf16 %v6724, %v6723
  %v6787 = vpack.c.bf16 %v6726, %v6725
  %v6788 = vpack.c.bf16 %v6728, %v6727
  %v6789 = vpack.c.bf16 %v6730, %v6729
  %v6790 = vpack.c.bf16 %v6732, %v6731
  %v6791 = vpack.c.bf16 %v6734, %v6733
  %v6792 = vpack.c.bf16 %v6736, %v6735
  %v6793 = vpack.c.bf16 %v6738, %v6737
  %v6794 = vpack.c.bf16 %v6740, %v6739
  %v6795 = vpack.c.bf16 %v6742, %v6741
  %v6796 = vpack.c.bf16 %v6744, %v6743
  %v6797 = vpack.c.bf16 %v6746, %v6745
  %v6798 = vpack.c.bf16 %v6748, %v6747
  %v6799 = vpack.c.bf16 %v6750, %v6749
  %v6800 = vpack.c.bf16 %v6752, %v6751
  %v6801 = vpack.c.bf16 %v6754, %v6753
  %v6802 = vpack.c.bf16 %v6756, %v6755
  %v6803 = vpack.c.bf16 %v6758, %v6757
  %v6804 = vpack.c.bf16 %v6760, %v6759
  %v6805 = vpack.c.bf16 %v6762, %v6761
  %v6806 = vpack.c.bf16 %v6764, %v6763
  %v6807 = vpack.c.bf16 %v6766, %v6765
  %v6808 = vpack.c.bf16 %v6768, %v6767
  %v6809 = vpack.c.bf16 %v6770, %v6769
  %v6810 = vpack.c.bf16 %v6772, %v6771
  %v6811 = vpack.c.bf16 %v6774, %v6773
  %v6812 = vpack.c.bf16 %v6776, %v6775
  %v6813 = vpack.c.bf16 %v6778, %v6777
  %v6814 = vpack.c.bf16 %v6780, %v6779
  %v6815 = vpack.c.bf16 %v6782, %v6781
  %v6816 = vpack.c.bf16 %v6784, %v6783
  %v6817 = vpack.c.bf16 %v6785, %v6785
  %v6818 = vlaneseq
  %v6819 = vshrl.u32 %v6818, 7
  %v6820 = vsub.s32 0, %v6819
  %v6821 = vrot.slane %v44, %v6820
  %v6826 = vunpack.c.l.b16 %v29
  %v6827 = vunpack.c.l.b16 %v30
  %v6828 = vunpack.c.l.b16 %v31
  %v6829 = vunpack.c.l.b16 %v32
  %v6830 = vpack.c.b16 %v6827, %v6826
  %v6831 = vpack.c.b16 %v6829, %v6828
  %vm6834 = vcmask 261120
  %v6836 = vsel %vm6834, %v6786, 0
  %v6839 = vsel %vm6834, %v6787, 0
  %v6842 = vsel %vm6834, %v6788, 0
  %v6845 = vsel %vm6834, %v6789, 0
  %v6848 = vsel %vm6834, %v6790, 0
  %v6851 = vsel %vm6834, %v6791, 0
  %v6854 = vsel %vm6834, %v6792, 0
  %v6857 = vsel %vm6834, %v6793, 0
  %v6860 = vsel %vm6834, %v6794, 0
  %v6863 = vsel %vm6834, %v6795, 0
  %v6866 = vsel %vm6834, %v6796, 0
  %v6869 = vsel %vm6834, %v6797, 0
  %v6872 = vsel %vm6834, %v6798, 0
  %v6875 = vsel %vm6834, %v6799, 0
  %v6878 = vsel %vm6834, %v6800, 0
  %v6881 = vsel %vm6834, %v6801, 0
  %v6884 = vsel %vm6834, %v6802, 0
  %v6887 = vsel %vm6834, %v6803, 0
  %v6890 = vsel %vm6834, %v6804, 0
  %v6893 = vsel %vm6834, %v6805, 0
  %v6896 = vsel %vm6834, %v6806, 0
  %v6899 = vsel %vm6834, %v6807, 0
  %v6902 = vsel %vm6834, %v6808, 0
  %v6905 = vsel %vm6834, %v6809, 0
  %v6908 = vsel %vm6834, %v6810, 0
  %v6911 = vsel %vm6834, %v6811, 0
  %v6914 = vsel %vm6834, %v6812, 0
  %v6917 = vsel %vm6834, %v6813, 0
  %v6920 = vsel %vm6834, %v6814, 0
  %v6923 = vsel %vm6834, %v6815, 0
  %v6926 = vsel %vm6834, %v6816, 0
  %v6929 = vsel %vm6834, %v6817, 0
  %6931 = vmatprep.subr.bf16.mxu0 0
  %6932 = vmatpush1.bf16.msra.mxu0 0
  %6933 = vmatprep.subr.bf16.mxu0 0
  %6934 = vmatpush1.bf16.msra.mxu0 0
  %6935 = vmatprep.subr.bf16.mxu0 0
  %6936 = vmatpush1.bf16.msra.mxu0 0
  %6937 = vmatprep.subr.bf16.mxu0 0
  %6938 = vmatpush1.bf16.msra.mxu0 0
  %6939 = vmatprep.subr.bf16.mxu0 0
  %6940 = vmatpush1.bf16.msra.mxu0 0
  %6941 = vmatprep.subr.bf16.mxu0 0
  %6942 = vmatpush1.bf16.msra.mxu0 0
  %6943 = vmatprep.subr.bf16.mxu0 0
  %6944 = vmatpush1.bf16.msra.mxu0 %v6831
  %6945 = vmatprep.subr.bf16.mxu0 0
  %6946 = vmatpush1.bf16.msra.mxu0 %v6830
  %6947 = vmatprep.subr.bf16.mxu0 0
  %6948 = vmatpush2.bf16.msra.mxu0 0
  %6949 = vmatprep.subr.bf16.mxu0 0
  %6950 = vmatpush2.bf16.msra.mxu0 0
  %6951 = vmatprep.subr.bf16.mxu0 0
  %6952 = vmatpush2.bf16.msra.mxu0 0
  %6953 = vmatprep.subr.bf16.mxu0 0
  %6954 = vmatpush2.bf16.msra.mxu0 0
  %6955 = vmatprep.subr.bf16.mxu0 0
  %6956 = vmatpush2.bf16.msra.mxu0 0
  %6957 = vmatprep.subr.bf16.mxu0 0
  %6958 = vmatpush2.bf16.msra.mxu0 0
  %6959 = vmatprep.subr.bf16.mxu0 0
  %6960 = vmatpush2.bf16.msra.mxu0 0
  %6961 = vmatprep.subr.bf16.mxu0 0
  %6962 = vmatpush2.bf16.msra.mxu0 0
  %6963 = vmatprep.mubr.bf16.mxu0 0
  %6964 = vmatmul.mubr.bf16.gmra.mxu0 %v6836
  %v6965 = vpop.f32.mrf.mxu0
  %v6966 = vadd.f32 %v6821, %v6965
  %v6967 = vpop.f32.mrf.mxu0
  %v6968 = vpop.f32.mrf.mxu0
  %v6969 = vadd.f32 %v6821, %v6968
  %v6970 = vpop.f32.mrf.mxu0
  %6971 = vmatprep.mubr.bf16.mxu0 0
  %6972 = vmatmul.mubr.bf16.gmra.mxu0 %v6839
  %v6973 = vpop.f32.mrf.mxu0
  %v6974 = vadd.f32 %v6821, %v6973
  %v6975 = vpop.f32.mrf.mxu0
  %v6976 = vpop.f32.mrf.mxu0
  %v6977 = vadd.f32 %v6821, %v6976
  %v6978 = vpop.f32.mrf.mxu0
  %6979 = vmatprep.mubr.bf16.mxu0 0
  %6980 = vmatmul.mubr.bf16.gmra.mxu0 %v6842
  %v6981 = vpop.f32.mrf.mxu0
  %v6982 = vadd.f32 %v6821, %v6981
  %v6983 = vpop.f32.mrf.mxu0
  %v6984 = vpop.f32.mrf.mxu0
  %v6985 = vadd.f32 %v6821, %v6984
  %v6986 = vpop.f32.mrf.mxu0
  %6987 = vmatprep.mubr.bf16.mxu0 0
  %6988 = vmatmul.mubr.bf16.gmra.mxu0 %v6845
  %v6989 = vpop.f32.mrf.mxu0
  %v6990 = vadd.f32 %v6821, %v6989
  %v6991 = vpop.f32.mrf.mxu0
  %v6992 = vpop.f32.mrf.mxu0
  %v6993 = vadd.f32 %v6821, %v6992
  %v6994 = vpop.f32.mrf.mxu0
  %6995 = vmatprep.mubr.bf16.mxu0 0
  %6996 = vmatmul.mubr.bf16.gmra.mxu0 %v6848
  %v6997 = vpop.f32.mrf.mxu0
  %v6998 = vadd.f32 %v6821, %v6997
  %v6999 = vpop.f32.mrf.mxu0
  %v7000 = vpop.f32.mrf.mxu0
  %v7001 = vadd.f32 %v6821, %v7000
  %v7002 = vpop.f32.mrf.mxu0
  %7003 = vmatprep.mubr.bf16.mxu0 0
  %7004 = vmatmul.mubr.bf16.gmra.mxu0 %v6851
  %v7005 = vpop.f32.mrf.mxu0
  %v7006 = vadd.f32 %v6821, %v7005
  %v7007 = vpop.f32.mrf.mxu0
  %v7008 = vpop.f32.mrf.mxu0
  %v7009 = vadd.f32 %v6821, %v7008
  %v7010 = vpop.f32.mrf.mxu0
  %7011 = vmatprep.mubr.bf16.mxu0 0
  %7012 = vmatmul.mubr.bf16.gmra.mxu0 %v6854
  %v7013 = vpop.f32.mrf.mxu0
  %v7014 = vadd.f32 %v6821, %v7013
  %v7015 = vpop.f32.mrf.mxu0
  %v7016 = vpop.f32.mrf.mxu0
  %v7017 = vadd.f32 %v6821, %v7016
  %v7018 = vpop.f32.mrf.mxu0
  %7019 = vmatprep.mubr.bf16.mxu0 0
  %7020 = vmatmul.mubr.bf16.gmra.mxu0 %v6857
  %v7021 = vpop.f32.mrf.mxu0
  %v7022 = vadd.f32 %v6821, %v7021
  %v7023 = vpop.f32.mrf.mxu0
  %v7024 = vpop.f32.mrf.mxu0
  %v7025 = vadd.f32 %v6821, %v7024
  %v7026 = vpop.f32.mrf.mxu0
  %7027 = vmatprep.mubr.bf16.mxu0 0
  %7028 = vmatmul.mubr.bf16.gmra.mxu0 %v6860
  %v7029 = vpop.f32.mrf.mxu0
  %v7030 = vadd.f32 %v6821, %v7029
  %v7031 = vpop.f32.mrf.mxu0
  %v7032 = vpop.f32.mrf.mxu0
  %v7033 = vadd.f32 %v6821, %v7032
  %v7034 = vpop.f32.mrf.mxu0
  %7035 = vmatprep.mubr.bf16.mxu0 0
  %7036 = vmatmul.mubr.bf16.gmra.mxu0 %v6863
  %v7037 = vpop.f32.mrf.mxu0
  %v7038 = vadd.f32 %v6821, %v7037
  %v7039 = vpop.f32.mrf.mxu0
  %v7040 = vpop.f32.mrf.mxu0
  %v7041 = vadd.f32 %v6821, %v7040
  %v7042 = vpop.f32.mrf.mxu0
  %7043 = vmatprep.mubr.bf16.mxu0 0
  %7044 = vmatmul.mubr.bf16.gmra.mxu0 %v6866
  %v7045 = vpop.f32.mrf.mxu0
  %v7046 = vadd.f32 %v6821, %v7045
  %v7047 = vpop.f32.mrf.mxu0
  %v7048 = vpop.f32.mrf.mxu0
  %v7049 = vadd.f32 %v6821, %v7048
  %v7050 = vpop.f32.mrf.mxu0
  %7051 = vmatprep.mubr.bf16.mxu0 0
  %7052 = vmatmul.mubr.bf16.gmra.mxu0 %v6869
  %v7053 = vpop.f32.mrf.mxu0
  %v7054 = vadd.f32 %v6821, %v7053
  %v7055 = vpop.f32.mrf.mxu0
  %v7056 = vpop.f32.mrf.mxu0
  %v7057 = vadd.f32 %v6821, %v7056
  %v7058 = vpop.f32.mrf.mxu0
  %7059 = vmatprep.mubr.bf16.mxu0 0
  %7060 = vmatmul.mubr.bf16.gmra.mxu0 %v6872
  %v7061 = vpop.f32.mrf.mxu0
  %v7062 = vadd.f32 %v6821, %v7061
  %v7063 = vpop.f32.mrf.mxu0
  %v7064 = vpop.f32.mrf.mxu0
  %v7065 = vadd.f32 %v6821, %v7064
  %v7066 = vpop.f32.mrf.mxu0
  %7067 = vmatprep.mubr.bf16.mxu0 0
  %7068 = vmatmul.mubr.bf16.gmra.mxu0 %v6875
  %v7069 = vpop.f32.mrf.mxu0
  %v7070 = vadd.f32 %v6821, %v7069
  %v7071 = vpop.f32.mrf.mxu0
  %v7072 = vpop.f32.mrf.mxu0
  %v7073 = vadd.f32 %v6821, %v7072
  %v7074 = vpop.f32.mrf.mxu0
  %7075 = vmatprep.mubr.bf16.mxu0 0
  %7076 = vmatmul.mubr.bf16.gmra.mxu0 %v6878
  %v7077 = vpop.f32.mrf.mxu0
  %v7078 = vadd.f32 %v6821, %v7077
  %v7079 = vpop.f32.mrf.mxu0
  %v7080 = vpop.f32.mrf.mxu0
  %v7081 = vadd.f32 %v6821, %v7080
  %v7082 = vpop.f32.mrf.mxu0
  %7083 = vmatprep.mubr.bf16.mxu0 0
  %7084 = vmatmul.mubr.bf16.gmra.mxu0 %v6881
  %v7085 = vpop.f32.mrf.mxu0
  %v7086 = vadd.f32 %v6821, %v7085
  %v7087 = vpop.f32.mrf.mxu0
  %v7088 = vpop.f32.mrf.mxu0
  %v7089 = vadd.f32 %v6821, %v7088
  %v7090 = vpop.f32.mrf.mxu0
  %7091 = vmatprep.mubr.bf16.mxu0 0
  %7092 = vmatmul.mubr.bf16.gmra.mxu0 %v6884
  %v7093 = vpop.f32.mrf.mxu0
  %v7094 = vadd.f32 %v6821, %v7093
  %v7095 = vpop.f32.mrf.mxu0
  %v7096 = vpop.f32.mrf.mxu0
  %v7097 = vadd.f32 %v6821, %v7096
  %v7098 = vpop.f32.mrf.mxu0
  %7099 = vmatprep.mubr.bf16.mxu0 0
  %7100 = vmatmul.mubr.bf16.gmra.mxu0 %v6887
  %v7101 = vpop.f32.mrf.mxu0
  %v7102 = vadd.f32 %v6821, %v7101
  %v7103 = vpop.f32.mrf.mxu0
  %v7104 = vpop.f32.mrf.mxu0
  %v7105 = vadd.f32 %v6821, %v7104
  %v7106 = vpop.f32.mrf.mxu0
  %7107 = vmatprep.mubr.bf16.mxu0 0
  %7108 = vmatmul.mubr.bf16.gmra.mxu0 %v6890
  %v7109 = vpop.f32.mrf.mxu0
  %v7110 = vadd.f32 %v6821, %v7109
  %v7111 = vpop.f32.mrf.mxu0
  %v7112 = vpop.f32.mrf.mxu0
  %v7113 = vadd.f32 %v6821, %v7112
  %v7114 = vpop.f32.mrf.mxu0
  %7115 = vmatprep.mubr.bf16.mxu0 0
  %7116 = vmatmul.mubr.bf16.gmra.mxu0 %v6893
  %v7117 = vpop.f32.mrf.mxu0
  %v7118 = vadd.f32 %v6821, %v7117
  %v7119 = vpop.f32.mrf.mxu0
  %v7120 = vpop.f32.mrf.mxu0
  %v7121 = vadd.f32 %v6821, %v7120
  %v7122 = vpop.f32.mrf.mxu0
  %7123 = vmatprep.mubr.bf16.mxu0 0
  %7124 = vmatmul.mubr.bf16.gmra.mxu0 %v6896
  %v7125 = vpop.f32.mrf.mxu0
  %v7126 = vadd.f32 %v6821, %v7125
  %v7127 = vpop.f32.mrf.mxu0
  %v7128 = vpop.f32.mrf.mxu0
  %v7129 = vadd.f32 %v6821, %v7128
  %v7130 = vpop.f32.mrf.mxu0
  %7131 = vmatprep.mubr.bf16.mxu0 0
  %7132 = vmatmul.mubr.bf16.gmra.mxu0 %v6899
  %v7133 = vpop.f32.mrf.mxu0
  %v7134 = vadd.f32 %v6821, %v7133
  %v7135 = vpop.f32.mrf.mxu0
  %v7136 = vpop.f32.mrf.mxu0
  %v7137 = vadd.f32 %v6821, %v7136
  %v7138 = vpop.f32.mrf.mxu0
  %7139 = vmatprep.mubr.bf16.mxu0 0
  %7140 = vmatmul.mubr.bf16.gmra.mxu0 %v6902
  %v7141 = vpop.f32.mrf.mxu0
  %v7142 = vadd.f32 %v6821, %v7141
  %v7143 = vpop.f32.mrf.mxu0
  %v7144 = vpop.f32.mrf.mxu0
  %v7145 = vadd.f32 %v6821, %v7144
  %v7146 = vpop.f32.mrf.mxu0
  %7147 = vmatprep.mubr.bf16.mxu0 0
  %7148 = vmatmul.mubr.bf16.gmra.mxu0 %v6905
  %v7149 = vpop.f32.mrf.mxu0
  %v7150 = vadd.f32 %v6821, %v7149
  %v7151 = vpop.f32.mrf.mxu0
  %v7152 = vpop.f32.mrf.mxu0
  %v7153 = vadd.f32 %v6821, %v7152
  %v7154 = vpop.f32.mrf.mxu0
  %7155 = vmatprep.mubr.bf16.mxu0 0
  %7156 = vmatmul.mubr.bf16.gmra.mxu0 %v6908
  %v7157 = vpop.f32.mrf.mxu0
  %v7158 = vadd.f32 %v6821, %v7157
  %v7159 = vpop.f32.mrf.mxu0
  %v7160 = vpop.f32.mrf.mxu0
  %v7161 = vadd.f32 %v6821, %v7160
  %v7162 = vpop.f32.mrf.mxu0
  %7163 = vmatprep.mubr.bf16.mxu0 0
  %7164 = vmatmul.mubr.bf16.gmra.mxu0 %v6911
  %v7165 = vpop.f32.mrf.mxu0
  %v7166 = vadd.f32 %v6821, %v7165
  %v7167 = vpop.f32.mrf.mxu0
  %v7168 = vpop.f32.mrf.mxu0
  %v7169 = vadd.f32 %v6821, %v7168
  %v7170 = vpop.f32.mrf.mxu0
  %7171 = vmatprep.mubr.bf16.mxu0 0
  %7172 = vmatmul.mubr.bf16.gmra.mxu0 %v6914
  %v7173 = vpop.f32.mrf.mxu0
  %v7174 = vadd.f32 %v6821, %v7173
  %v7175 = vpop.f32.mrf.mxu0
  %v7176 = vpop.f32.mrf.mxu0
  %v7177 = vadd.f32 %v6821, %v7176
  %v7178 = vpop.f32.mrf.mxu0
  %7179 = vmatprep.mubr.bf16.mxu0 0
  %7180 = vmatmul.mubr.bf16.gmra.mxu0 %v6917
  %v7181 = vpop.f32.mrf.mxu0
  %v7182 = vadd.f32 %v6821, %v7181
  %v7183 = vpop.f32.mrf.mxu0
  %v7184 = vpop.f32.mrf.mxu0
  %v7185 = vadd.f32 %v6821, %v7184
  %v7186 = vpop.f32.mrf.mxu0
  %7187 = vmatprep.mubr.bf16.mxu0 0
  %7188 = vmatmul.mubr.bf16.gmra.mxu0 %v6920
  %v7189 = vpop.f32.mrf.mxu0
  %v7190 = vadd.f32 %v6821, %v7189
  %v7191 = vpop.f32.mrf.mxu0
  %v7192 = vpop.f32.mrf.mxu0
  %v7193 = vadd.f32 %v6821, %v7192
  %v7194 = vpop.f32.mrf.mxu0
  %7195 = vmatprep.mubr.bf16.mxu0 0
  %7196 = vmatmul.mubr.bf16.gmra.mxu0 %v6923
  %v7197 = vpop.f32.mrf.mxu0
  %v7198 = vadd.f32 %v6821, %v7197
  %v7199 = vpop.f32.mrf.mxu0
  %v7200 = vpop.f32.mrf.mxu0
  %v7201 = vadd.f32 %v6821, %v7200
  %v7202 = vpop.f32.mrf.mxu0
  %7203 = vmatprep.mubr.bf16.mxu0 0
  %7204 = vmatmul.mubr.bf16.gmra.mxu0 %v6926
  %v7205 = vpop.f32.mrf.mxu0
  %v7206 = vadd.f32 %v6821, %v7205
  %v7207 = vpop.f32.mrf.mxu0
  %v7208 = vpop.f32.mrf.mxu0
  %v7209 = vadd.f32 %v6821, %v7208
  %v7210 = vpop.f32.mrf.mxu0
  %7211 = vmatprep.mubr.bf16.mxu0 0
  %7212 = vmatmul.mubr.bf16.gmra.mxu0 %v6929
  %v7213 = vpop.f32.mrf.mxu0
  %v7214 = vadd.f32 %v6821, %v7213
  %v7215 = vpop.f32.mrf.mxu0
  %v7216 = vpop.f32.mrf.mxu0
  %v7217 = vpop.f32.mrf.mxu0
  %7218 = vdwg.mxu0
  %v7219 = vsel %vm6834, %v6966, 0.0
  %7220 = vadd.xlane.f32.xlu0 %v7219
  %v7221 = vpop.xlane.xlu0 %7220
  %v7222 = vsel %vm6834, %v6969, 0.0
  %7223 = vadd.xlane.f32.xlu0 %v7222
  %v7224 = vpop.xlane.xlu0 %7223
  %v7225 = vsel %vm6834, %v6974, 0.0
  %7226 = vadd.xlane.f32.xlu0 %v7225
  %v7227 = vpop.xlane.xlu0 %7226
  %v7228 = vsel %vm6834, %v6977, 0.0
  %7229 = vadd.xlane.f32.xlu0 %v7228
  %v7230 = vpop.xlane.xlu0 %7229
  %v7231 = vsel %vm6834, %v6982, 0.0
  %7232 = vadd.xlane.f32.xlu0 %v7231
  %v7233 = vpop.xlane.xlu0 %7232
  %v7234 = vsel %vm6834, %v6985, 0.0
  %7235 = vadd.xlane.f32.xlu0 %v7234
  %v7236 = vpop.xlane.xlu0 %7235
  %v7237 = vsel %vm6834, %v6990, 0.0
  %7238 = vadd.xlane.f32.xlu0 %v7237
  %v7239 = vpop.xlane.xlu0 %7238
  %v7240 = vsel %vm6834, %v6993, 0.0
  %7241 = vadd.xlane.f32.xlu0 %v7240
  %v7242 = vpop.xlane.xlu0 %7241
  %v7243 = vsel %vm6834, %v6998, 0.0
  %7244 = vadd.xlane.f32.xlu0 %v7243
  %v7245 = vpop.xlane.xlu0 %7244
  %v7246 = vsel %vm6834, %v7001, 0.0
  %7247 = vadd.xlane.f32.xlu0 %v7246
  %v7248 = vpop.xlane.xlu0 %7247
  %v7249 = vsel %vm6834, %v7006, 0.0
  %7250 = vadd.xlane.f32.xlu0 %v7249
  %v7251 = vpop.xlane.xlu0 %7250
  %v7252 = vsel %vm6834, %v7009, 0.0
  %7253 = vadd.xlane.f32.xlu0 %v7252
  %v7254 = vpop.xlane.xlu0 %7253
  %v7255 = vsel %vm6834, %v7014, 0.0
  %7256 = vadd.xlane.f32.xlu0 %v7255
  %v7257 = vpop.xlane.xlu0 %7256
  %v7258 = vsel %vm6834, %v7017, 0.0
  %7259 = vadd.xlane.f32.xlu0 %v7258
  %v7260 = vpop.xlane.xlu0 %7259
  %v7261 = vsel %vm6834, %v7022, 0.0
  %7262 = vadd.xlane.f32.xlu0 %v7261
  %v7263 = vpop.xlane.xlu0 %7262
  %v7264 = vsel %vm6834, %v7025, 0.0
  %7265 = vadd.xlane.f32.xlu0 %v7264
  %v7266 = vpop.xlane.xlu0 %7265
  %v7267 = vsel %vm6834, %v7030, 0.0
  %7268 = vadd.xlane.f32.xlu0 %v7267
  %v7269 = vpop.xlane.xlu0 %7268
  %v7270 = vsel %vm6834, %v7033, 0.0
  %7271 = vadd.xlane.f32.xlu0 %v7270
  %v7272 = vpop.xlane.xlu0 %7271
  %v7273 = vsel %vm6834, %v7038, 0.0
  %7274 = vadd.xlane.f32.xlu0 %v7273
  %v7275 = vpop.xlane.xlu0 %7274
  %v7276 = vsel %vm6834, %v7041, 0.0
  %7277 = vadd.xlane.f32.xlu0 %v7276
  %v7278 = vpop.xlane.xlu0 %7277
  %v7279 = vsel %vm6834, %v7046, 0.0
  %7280 = vadd.xlane.f32.xlu0 %v7279
  %v7281 = vpop.xlane.xlu0 %7280
  %v7282 = vsel %vm6834, %v7049, 0.0
  %7283 = vadd.xlane.f32.xlu0 %v7282
  %v7284 = vpop.xlane.xlu0 %7283
  %v7285 = vsel %vm6834, %v7054, 0.0
  %7286 = vadd.xlane.f32.xlu0 %v7285
  %v7287 = vpop.xlane.xlu0 %7286
  %v7288 = vsel %vm6834, %v7057, 0.0
  %7289 = vadd.xlane.f32.xlu0 %v7288
  %v7290 = vpop.xlane.xlu0 %7289
  %v7291 = vsel %vm6834, %v7062, 0.0
  %7292 = vadd.xlane.f32.xlu0 %v7291
  %v7293 = vpop.xlane.xlu0 %7292
  %v7294 = vsel %vm6834, %v7065, 0.0
  %7295 = vadd.xlane.f32.xlu0 %v7294
  %v7296 = vpop.xlane.xlu0 %7295
  %v7297 = vsel %vm6834, %v7070, 0.0
  %7298 = vadd.xlane.f32.xlu0 %v7297
  %v7299 = vpop.xlane.xlu0 %7298
  %v7300 = vsel %vm6834, %v7073, 0.0
  %7301 = vadd.xlane.f32.xlu0 %v7300
  %v7302 = vpop.xlane.xlu0 %7301
  %v7303 = vsel %vm6834, %v7078, 0.0
  %7304 = vadd.xlane.f32.xlu0 %v7303
  %v7305 = vpop.xlane.xlu0 %7304
  %v7306 = vsel %vm6834, %v7081, 0.0
  %7307 = vadd.xlane.f32.xlu0 %v7306
  %v7308 = vpop.xlane.xlu0 %7307
  %v7309 = vsel %vm6834, %v7086, 0.0
  %7310 = vadd.xlane.f32.xlu0 %v7309
  %v7311 = vpop.xlane.xlu0 %7310
  %v7312 = vsel %vm6834, %v7089, 0.0
  %7313 = vadd.xlane.f32.xlu0 %v7312
  %v7314 = vpop.xlane.xlu0 %7313
  %v7315 = vsel %vm6834, %v7094, 0.0
  %7316 = vadd.xlane.f32.xlu0 %v7315
  %v7317 = vpop.xlane.xlu0 %7316
  %v7318 = vsel %vm6834, %v7097, 0.0
  %7319 = vadd.xlane.f32.xlu0 %v7318
  %v7320 = vpop.xlane.xlu0 %7319
  %v7321 = vsel %vm6834, %v7102, 0.0
  %7322 = vadd.xlane.f32.xlu0 %v7321
  %v7323 = vpop.xlane.xlu0 %7322
  %v7324 = vsel %vm6834, %v7105, 0.0
  %7325 = vadd.xlane.f32.xlu0 %v7324
  %v7326 = vpop.xlane.xlu0 %7325
  %v7327 = vsel %vm6834, %v7110, 0.0
  %7328 = vadd.xlane.f32.xlu0 %v7327
  %v7329 = vpop.xlane.xlu0 %7328
  %v7330 = vsel %vm6834, %v7113, 0.0
  %7331 = vadd.xlane.f32.xlu0 %v7330
  %v7332 = vpop.xlane.xlu0 %7331
  %v7333 = vsel %vm6834, %v7118, 0.0
  %7334 = vadd.xlane.f32.xlu0 %v7333
  %v7335 = vpop.xlane.xlu0 %7334
  %v7336 = vsel %vm6834, %v7121, 0.0
  %7337 = vadd.xlane.f32.xlu0 %v7336
  %v7338 = vpop.xlane.xlu0 %7337
  %v7339 = vsel %vm6834, %v7126, 0.0
  %7340 = vadd.xlane.f32.xlu0 %v7339
  %v7341 = vpop.xlane.xlu0 %7340
  %v7342 = vsel %vm6834, %v7129, 0.0
  %7343 = vadd.xlane.f32.xlu0 %v7342
  %v7344 = vpop.xlane.xlu0 %7343
  %v7345 = vsel %vm6834, %v7134, 0.0
  %7346 = vadd.xlane.f32.xlu0 %v7345
  %v7347 = vpop.xlane.xlu0 %7346
  %v7348 = vsel %vm6834, %v7137, 0.0
  %7349 = vadd.xlane.f32.xlu0 %v7348
  %v7350 = vpop.xlane.xlu0 %7349
  %v7351 = vsel %vm6834, %v7142, 0.0
  %7352 = vadd.xlane.f32.xlu0 %v7351
  %v7353 = vpop.xlane.xlu0 %7352
  %v7354 = vsel %vm6834, %v7145, 0.0
  %7355 = vadd.xlane.f32.xlu0 %v7354
  %v7356 = vpop.xlane.xlu0 %7355
  %v7357 = vsel %vm6834, %v7150, 0.0
  %7358 = vadd.xlane.f32.xlu0 %v7357
  %v7359 = vpop.xlane.xlu0 %7358
  %v7360 = vsel %vm6834, %v7153, 0.0
  %7361 = vadd.xlane.f32.xlu0 %v7360
  %v7362 = vpop.xlane.xlu0 %7361
  %v7363 = vsel %vm6834, %v7158, 0.0
  %7364 = vadd.xlane.f32.xlu0 %v7363
  %v7365 = vpop.xlane.xlu0 %7364
  %v7366 = vsel %vm6834, %v7161, 0.0
  %7367 = vadd.xlane.f32.xlu0 %v7366
  %v7368 = vpop.xlane.xlu0 %7367
  %v7369 = vsel %vm6834, %v7166, 0.0
  %7370 = vadd.xlane.f32.xlu0 %v7369
  %v7371 = vpop.xlane.xlu0 %7370
  %v7372 = vsel %vm6834, %v7169, 0.0
  %7373 = vadd.xlane.f32.xlu0 %v7372
  %v7374 = vpop.xlane.xlu0 %7373
  %v7375 = vsel %vm6834, %v7174, 0.0
  %7376 = vadd.xlane.f32.xlu0 %v7375
  %v7377 = vpop.xlane.xlu0 %7376
  %v7378 = vsel %vm6834, %v7177, 0.0
  %7379 = vadd.xlane.f32.xlu0 %v7378
  %v7380 = vpop.xlane.xlu0 %7379
  %v7381 = vsel %vm6834, %v7182, 0.0
  %7382 = vadd.xlane.f32.xlu0 %v7381
  %v7383 = vpop.xlane.xlu0 %7382
  %v7384 = vsel %vm6834, %v7185, 0.0
  %7385 = vadd.xlane.f32.xlu0 %v7384
  %v7386 = vpop.xlane.xlu0 %7385
  %v7387 = vsel %vm6834, %v7190, 0.0
  %7388 = vadd.xlane.f32.xlu0 %v7387
  %v7389 = vpop.xlane.xlu0 %7388
  %v7390 = vsel %vm6834, %v7193, 0.0
  %7391 = vadd.xlane.f32.xlu0 %v7390
  %v7392 = vpop.xlane.xlu0 %7391
  %v7393 = vsel %vm6834, %v7198, 0.0
  %7394 = vadd.xlane.f32.xlu0 %v7393
  %v7395 = vpop.xlane.xlu0 %7394
  %v7396 = vsel %vm6834, %v7201, 0.0
  %7397 = vadd.xlane.f32.xlu0 %v7396
  %v7398 = vpop.xlane.xlu0 %7397
  %v7399 = vsel %vm6834, %v7206, 0.0
  %7400 = vadd.xlane.f32.xlu0 %v7399
  %v7401 = vpop.xlane.xlu0 %7400
  %v7402 = vsel %vm6834, %v7209, 0.0
  %7403 = vadd.xlane.f32.xlu0 %v7402
  %v7404 = vpop.xlane.xlu0 %7403
  %v7405 = vsel %vm6834, %v7214, 0.0
  %7406 = vadd.xlane.f32.xlu0 %v7405
  %v7407 = vpop.xlane.xlu0 %7406
  %v7408 = vrcp.pop 32.0
  %v7409 = vmul.f32 %v7221, %v7408
  %v7410 = vmul.f32 %v7224, %v7408
  %v7411 = vmul.f32 %v7227, %v7408
  %v7412 = vmul.f32 %v7230, %v7408
  %v7413 = vmul.f32 %v7233, %v7408
  %v7414 = vmul.f32 %v7236, %v7408
  %v7415 = vmul.f32 %v7239, %v7408
  %v7416 = vmul.f32 %v7242, %v7408
  %v7417 = vmul.f32 %v7245, %v7408
  %v7418 = vmul.f32 %v7248, %v7408
  %v7419 = vmul.f32 %v7251, %v7408
  %v7420 = vmul.f32 %v7254, %v7408
  %v7421 = vmul.f32 %v7257, %v7408
  %v7422 = vmul.f32 %v7260, %v7408
  %v7423 = vmul.f32 %v7263, %v7408
  %v7424 = vmul.f32 %v7266, %v7408
  %v7425 = vmul.f32 %v7269, %v7408
  %v7426 = vmul.f32 %v7272, %v7408
  %v7427 = vmul.f32 %v7275, %v7408
  %v7428 = vmul.f32 %v7278, %v7408
  %v7429 = vmul.f32 %v7281, %v7408
  %v7430 = vmul.f32 %v7284, %v7408
  %v7431 = vmul.f32 %v7287, %v7408
  %v7432 = vmul.f32 %v7290, %v7408
  %v7433 = vmul.f32 %v7293, %v7408
  %v7434 = vmul.f32 %v7296, %v7408
  %v7435 = vmul.f32 %v7299, %v7408
  %v7436 = vmul.f32 %v7302, %v7408
  %v7437 = vmul.f32 %v7305, %v7408
  %v7438 = vmul.f32 %v7308, %v7408
  %v7439 = vmul.f32 %v7311, %v7408
  %v7440 = vmul.f32 %v7314, %v7408
  %v7441 = vmul.f32 %v7317, %v7408
  %v7442 = vmul.f32 %v7320, %v7408
  %v7443 = vmul.f32 %v7323, %v7408
  %v7444 = vmul.f32 %v7326, %v7408
  %v7445 = vmul.f32 %v7329, %v7408
  %v7446 = vmul.f32 %v7332, %v7408
  %v7447 = vmul.f32 %v7335, %v7408
  %v7448 = vmul.f32 %v7338, %v7408
  %v7449 = vmul.f32 %v7341, %v7408
  %v7450 = vmul.f32 %v7344, %v7408
  %v7451 = vmul.f32 %v7347, %v7408
  %v7452 = vmul.f32 %v7350, %v7408
  %v7453 = vmul.f32 %v7353, %v7408
  %v7454 = vmul.f32 %v7356, %v7408
  %v7455 = vmul.f32 %v7359, %v7408
  %v7456 = vmul.f32 %v7362, %v7408
  %v7457 = vmul.f32 %v7365, %v7408
  %v7458 = vmul.f32 %v7368, %v7408
  %v7459 = vmul.f32 %v7371, %v7408
  %v7460 = vmul.f32 %v7374, %v7408
  %v7461 = vmul.f32 %v7377, %v7408
  %v7462 = vmul.f32 %v7380, %v7408
  %v7463 = vmul.f32 %v7383, %v7408
  %v7464 = vmul.f32 %v7386, %v7408
  %v7465 = vmul.f32 %v7389, %v7408
  %v7466 = vmul.f32 %v7392, %v7408
  %v7467 = vmul.f32 %v7395, %v7408
  %v7468 = vmul.f32 %v7398, %v7408
  %v7469 = vmul.f32 %v7401, %v7408
  %v7470 = vmul.f32 %v7404, %v7408
  %v7471 = vmul.f32 %v7407, %v7408
  %v7472 = vsub.f32 %v6966, %v7409
  %v7473 = vsub.f32 %v6969, %v7410
  %v7474 = vsub.f32 %v6974, %v7411
  %v7475 = vsub.f32 %v6977, %v7412
  %v7476 = vsub.f32 %v6982, %v7413
  %v7477 = vsub.f32 %v6985, %v7414
  %v7478 = vsub.f32 %v6990, %v7415
  %v7479 = vsub.f32 %v6993, %v7416
  %v7480 = vsub.f32 %v6998, %v7417
  %v7481 = vsub.f32 %v7001, %v7418
  %v7482 = vsub.f32 %v7006, %v7419
  %v7483 = vsub.f32 %v7009, %v7420
  %v7484 = vsub.f32 %v7014, %v7421
  %v7485 = vsub.f32 %v7017, %v7422
  %v7486 = vsub.f32 %v7022, %v7423
  %v7487 = vsub.f32 %v7025, %v7424
  %v7488 = vsub.f32 %v7030, %v7425
  %v7489 = vsub.f32 %v7033, %v7426
  %v7490 = vsub.f32 %v7038, %v7427
  %v7491 = vsub.f32 %v7041, %v7428
  %v7492 = vsub.f32 %v7046, %v7429
  %v7493 = vsub.f32 %v7049, %v7430
  %v7494 = vsub.f32 %v7054, %v7431
  %v7495 = vsub.f32 %v7057, %v7432
  %v7496 = vsub.f32 %v7062, %v7433
  %v7497 = vsub.f32 %v7065, %v7434
  %v7498 = vsub.f32 %v7070, %v7435
  %v7499 = vsub.f32 %v7073, %v7436
  %v7500 = vsub.f32 %v7078, %v7437
  %v7501 = vsub.f32 %v7081, %v7438
  %v7502 = vsub.f32 %v7086, %v7439
  %v7503 = vsub.f32 %v7089, %v7440
  %v7504 = vsub.f32 %v7094, %v7441
  %v7505 = vsub.f32 %v7097, %v7442
  %v7506 = vsub.f32 %v7102, %v7443
  %v7507 = vsub.f32 %v7105, %v7444
  %v7508 = vsub.f32 %v7110, %v7445
  %v7509 = vsub.f32 %v7113, %v7446
  %v7510 = vsub.f32 %v7118, %v7447
  %v7511 = vsub.f32 %v7121, %v7448
  %v7512 = vsub.f32 %v7126, %v7449
  %v7513 = vsub.f32 %v7129, %v7450
  %v7514 = vsub.f32 %v7134, %v7451
  %v7515 = vsub.f32 %v7137, %v7452
  %v7516 = vsub.f32 %v7142, %v7453
  %v7517 = vsub.f32 %v7145, %v7454
  %v7518 = vsub.f32 %v7150, %v7455
  %v7519 = vsub.f32 %v7153, %v7456
  %v7520 = vsub.f32 %v7158, %v7457
  %v7521 = vsub.f32 %v7161, %v7458
  %v7522 = vsub.f32 %v7166, %v7459
  %v7523 = vsub.f32 %v7169, %v7460
  %v7524 = vsub.f32 %v7174, %v7461
  %v7525 = vsub.f32 %v7177, %v7462
  %v7526 = vsub.f32 %v7182, %v7463
  %v7527 = vsub.f32 %v7185, %v7464
  %v7528 = vsub.f32 %v7190, %v7465
  %v7529 = vsub.f32 %v7193, %v7466
  %v7530 = vsub.f32 %v7198, %v7467
  %v7531 = vsub.f32 %v7201, %v7468
  %v7532 = vsub.f32 %v7206, %v7469
  %v7533 = vsub.f32 %v7209, %v7470
  %v7534 = vsub.f32 %v7214, %v7471
  %v7535 = vmul.f32 %v7472, %v7472
  %v7536 = vmul.f32 %v7473, %v7473
  %v7537 = vmul.f32 %v7474, %v7474
  %v7538 = vmul.f32 %v7475, %v7475
  %v7539 = vmul.f32 %v7476, %v7476
  %v7540 = vmul.f32 %v7477, %v7477
  %v7541 = vmul.f32 %v7478, %v7478
  %v7542 = vmul.f32 %v7479, %v7479
  %v7543 = vmul.f32 %v7480, %v7480
  %v7544 = vmul.f32 %v7481, %v7481
  %v7545 = vmul.f32 %v7482, %v7482
  %v7546 = vmul.f32 %v7483, %v7483
  %v7547 = vmul.f32 %v7484, %v7484
  %v7548 = vmul.f32 %v7485, %v7485
  %v7549 = vmul.f32 %v7486, %v7486
  %v7550 = vmul.f32 %v7487, %v7487
  %v7551 = vmul.f32 %v7488, %v7488
  %v7552 = vmul.f32 %v7489, %v7489
  %v7553 = vmul.f32 %v7490, %v7490
  %v7554 = vmul.f32 %v7491, %v7491
  %v7555 = vmul.f32 %v7492, %v7492
  %v7556 = vmul.f32 %v7493, %v7493
  %v7557 = vmul.f32 %v7494, %v7494
  %v7558 = vmul.f32 %v7495, %v7495
  %v7559 = vmul.f32 %v7496, %v7496
  %v7560 = vmul.f32 %v7497, %v7497
  %v7561 = vmul.f32 %v7498, %v7498
  %v7562 = vmul.f32 %v7499, %v7499
  %v7563 = vmul.f32 %v7500, %v7500
  %v7564 = vmul.f32 %v7501, %v7501
  %v7565 = vmul.f32 %v7502, %v7502
  %v7566 = vmul.f32 %v7503, %v7503
  %v7567 = vmul.f32 %v7504, %v7504
  %v7568 = vmul.f32 %v7505, %v7505
  %v7569 = vmul.f32 %v7506, %v7506
  %v7570 = vmul.f32 %v7507, %v7507
  %v7571 = vmul.f32 %v7508, %v7508
  %v7572 = vmul.f32 %v7509, %v7509
  %v7573 = vmul.f32 %v7510, %v7510
  %v7574 = vmul.f32 %v7511, %v7511
  %v7575 = vmul.f32 %v7512, %v7512
  %v7576 = vmul.f32 %v7513, %v7513
  %v7577 = vmul.f32 %v7514, %v7514
  %v7578 = vmul.f32 %v7515, %v7515
  %v7579 = vmul.f32 %v7516, %v7516
  %v7580 = vmul.f32 %v7517, %v7517
  %v7581 = vmul.f32 %v7518, %v7518
  %v7582 = vmul.f32 %v7519, %v7519
  %v7583 = vmul.f32 %v7520, %v7520
  %v7584 = vmul.f32 %v7521, %v7521
  %v7585 = vmul.f32 %v7522, %v7522
  %v7586 = vmul.f32 %v7523, %v7523
  %v7587 = vmul.f32 %v7524, %v7524
  %v7588 = vmul.f32 %v7525, %v7525
  %v7589 = vmul.f32 %v7526, %v7526
  %v7590 = vmul.f32 %v7527, %v7527
  %v7591 = vmul.f32 %v7528, %v7528
  %v7592 = vmul.f32 %v7529, %v7529
  %v7593 = vmul.f32 %v7530, %v7530
  %v7594 = vmul.f32 %v7531, %v7531
  %v7595 = vmul.f32 %v7532, %v7532
  %v7596 = vmul.f32 %v7533, %v7533
  %v7597 = vmul.f32 %v7534, %v7534
  %v7598 = vsel %vm6834, %v7535, 0.0
  %7599 = vadd.xlane.f32.xlu0 %v7598
  %v7600 = vpop.xlane.xlu0 %7599
  %v7601 = vsel %vm6834, %v7536, 0.0
  %7602 = vadd.xlane.f32.xlu0 %v7601
  %v7603 = vpop.xlane.xlu0 %7602
  %v7604 = vsel %vm6834, %v7537, 0.0
  %7605 = vadd.xlane.f32.xlu0 %v7604
  %v7606 = vpop.xlane.xlu0 %7605
  %v7607 = vsel %vm6834, %v7538, 0.0
  %7608 = vadd.xlane.f32.xlu0 %v7607
  %v7609 = vpop.xlane.xlu0 %7608
  %v7610 = vsel %vm6834, %v7539, 0.0
  %7611 = vadd.xlane.f32.xlu0 %v7610
  %v7612 = vpop.xlane.xlu0 %7611
  %v7613 = vsel %vm6834, %v7540, 0.0
  %7614 = vadd.xlane.f32.xlu0 %v7613
  %v7615 = vpop.xlane.xlu0 %7614
  %v7616 = vsel %vm6834, %v7541, 0.0
  %7617 = vadd.xlane.f32.xlu0 %v7616
  %v7618 = vpop.xlane.xlu0 %7617
  %v7619 = vsel %vm6834, %v7542, 0.0
  %7620 = vadd.xlane.f32.xlu0 %v7619
  %v7621 = vpop.xlane.xlu0 %7620
  %v7622 = vsel %vm6834, %v7543, 0.0
  %7623 = vadd.xlane.f32.xlu0 %v7622
  %v7624 = vpop.xlane.xlu0 %7623
  %v7625 = vsel %vm6834, %v7544, 0.0
  %7626 = vadd.xlane.f32.xlu0 %v7625
  %v7627 = vpop.xlane.xlu0 %7626
  %v7628 = vsel %vm6834, %v7545, 0.0
  %7629 = vadd.xlane.f32.xlu0 %v7628
  %v7630 = vpop.xlane.xlu0 %7629
  %v7631 = vsel %vm6834, %v7546, 0.0
  %7632 = vadd.xlane.f32.xlu0 %v7631
  %v7633 = vpop.xlane.xlu0 %7632
  %v7634 = vsel %vm6834, %v7547, 0.0
  %7635 = vadd.xlane.f32.xlu0 %v7634
  %v7636 = vpop.xlane.xlu0 %7635
  %v7637 = vsel %vm6834, %v7548, 0.0
  %7638 = vadd.xlane.f32.xlu0 %v7637
  %v7639 = vpop.xlane.xlu0 %7638
  %v7640 = vsel %vm6834, %v7549, 0.0
  %7641 = vadd.xlane.f32.xlu0 %v7640
  %v7642 = vpop.xlane.xlu0 %7641
  %v7643 = vsel %vm6834, %v7550, 0.0
  %7644 = vadd.xlane.f32.xlu0 %v7643
  %v7645 = vpop.xlane.xlu0 %7644
  %v7646 = vsel %vm6834, %v7551, 0.0
  %7647 = vadd.xlane.f32.xlu0 %v7646
  %v7648 = vpop.xlane.xlu0 %7647
  %v7649 = vsel %vm6834, %v7552, 0.0
  %7650 = vadd.xlane.f32.xlu0 %v7649
  %v7651 = vpop.xlane.xlu0 %7650
  %v7652 = vsel %vm6834, %v7553, 0.0
  %7653 = vadd.xlane.f32.xlu0 %v7652
  %v7654 = vpop.xlane.xlu0 %7653
  %v7655 = vsel %vm6834, %v7554, 0.0
  %7656 = vadd.xlane.f32.xlu0 %v7655
  %v7657 = vpop.xlane.xlu0 %7656
  %v7658 = vsel %vm6834, %v7555, 0.0
  %7659 = vadd.xlane.f32.xlu0 %v7658
  %v7660 = vpop.xlane.xlu0 %7659
  %v7661 = vsel %vm6834, %v7556, 0.0
  %7662 = vadd.xlane.f32.xlu0 %v7661
  %v7663 = vpop.xlane.xlu0 %7662
  %v7664 = vsel %vm6834, %v7557, 0.0
  %7665 = vadd.xlane.f32.xlu0 %v7664
  %v7666 = vpop.xlane.xlu0 %7665
  %v7667 = vsel %vm6834, %v7558, 0.0
  %7668 = vadd.xlane.f32.xlu0 %v7667
  %v7669 = vpop.xlane.xlu0 %7668
  %v7670 = vsel %vm6834, %v7559, 0.0
  %7671 = vadd.xlane.f32.xlu0 %v7670
  %v7672 = vpop.xlane.xlu0 %7671
  %v7673 = vsel %vm6834, %v7560, 0.0
  %7674 = vadd.xlane.f32.xlu0 %v7673
  %v7675 = vpop.xlane.xlu0 %7674
  %v7676 = vsel %vm6834, %v7561, 0.0
  %7677 = vadd.xlane.f32.xlu0 %v7676
  %v7678 = vpop.xlane.xlu0 %7677
  %v7679 = vsel %vm6834, %v7562, 0.0
  %7680 = vadd.xlane.f32.xlu0 %v7679
  %v7681 = vpop.xlane.xlu0 %7680
  %v7682 = vsel %vm6834, %v7563, 0.0
  %7683 = vadd.xlane.f32.xlu0 %v7682
  %v7684 = vpop.xlane.xlu0 %7683
  %v7685 = vsel %vm6834, %v7564, 0.0
  %7686 = vadd.xlane.f32.xlu0 %v7685
  %v7687 = vpop.xlane.xlu0 %7686
  %v7688 = vsel %vm6834, %v7565, 0.0
  %7689 = vadd.xlane.f32.xlu0 %v7688
  %v7690 = vpop.xlane.xlu0 %7689
  %v7691 = vsel %vm6834, %v7566, 0.0
  %7692 = vadd.xlane.f32.xlu0 %v7691
  %v7693 = vpop.xlane.xlu0 %7692
  %v7694 = vsel %vm6834, %v7567, 0.0
  %7695 = vadd.xlane.f32.xlu0 %v7694
  %v7696 = vpop.xlane.xlu0 %7695
  %v7697 = vsel %vm6834, %v7568, 0.0
  %7698 = vadd.xlane.f32.xlu0 %v7697
  %v7699 = vpop.xlane.xlu0 %7698
  %v7700 = vsel %vm6834, %v7569, 0.0
  %7701 = vadd.xlane.f32.xlu0 %v7700
  %v7702 = vpop.xlane.xlu0 %7701
  %v7703 = vsel %vm6834, %v7570, 0.0
  %7704 = vadd.xlane.f32.xlu0 %v7703
  %v7705 = vpop.xlane.xlu0 %7704
  %v7706 = vsel %vm6834, %v7571, 0.0
  %7707 = vadd.xlane.f32.xlu0 %v7706
  %v7708 = vpop.xlane.xlu0 %7707
  %v7709 = vsel %vm6834, %v7572, 0.0
  %7710 = vadd.xlane.f32.xlu0 %v7709
  %v7711 = vpop.xlane.xlu0 %7710
  %v7712 = vsel %vm6834, %v7573, 0.0
  %7713 = vadd.xlane.f32.xlu0 %v7712
  %v7714 = vpop.xlane.xlu0 %7713
  %v7715 = vsel %vm6834, %v7574, 0.0
  %7716 = vadd.xlane.f32.xlu0 %v7715
  %v7717 = vpop.xlane.xlu0 %7716
  %v7718 = vsel %vm6834, %v7575, 0.0
  %7719 = vadd.xlane.f32.xlu0 %v7718
  %v7720 = vpop.xlane.xlu0 %7719
  %v7721 = vsel %vm6834, %v7576, 0.0
  %7722 = vadd.xlane.f32.xlu0 %v7721
  %v7723 = vpop.xlane.xlu0 %7722
  %v7724 = vsel %vm6834, %v7577, 0.0
  %7725 = vadd.xlane.f32.xlu0 %v7724
  %v7726 = vpop.xlane.xlu0 %7725
  %v7727 = vsel %vm6834, %v7578, 0.0
  %7728 = vadd.xlane.f32.xlu0 %v7727
  %v7729 = vpop.xlane.xlu0 %7728
  %v7730 = vsel %vm6834, %v7579, 0.0
  %7731 = vadd.xlane.f32.xlu0 %v7730
  %v7732 = vpop.xlane.xlu0 %7731
  %v7733 = vsel %vm6834, %v7580, 0.0
  %7734 = vadd.xlane.f32.xlu0 %v7733
  %v7735 = vpop.xlane.xlu0 %7734
  %v7736 = vsel %vm6834, %v7581, 0.0
  %7737 = vadd.xlane.f32.xlu0 %v7736
  %v7738 = vpop.xlane.xlu0 %7737
  %v7739 = vsel %vm6834, %v7582, 0.0
  %7740 = vadd.xlane.f32.xlu0 %v7739
  %v7741 = vpop.xlane.xlu0 %7740
  %v7742 = vsel %vm6834, %v7583, 0.0
  %7743 = vadd.xlane.f32.xlu0 %v7742
  %v7744 = vpop.xlane.xlu0 %7743
  %v7745 = vsel %vm6834, %v7584, 0.0
  %7746 = vadd.xlane.f32.xlu0 %v7745
  %v7747 = vpop.xlane.xlu0 %7746
  %v7748 = vsel %vm6834, %v7585, 0.0
  %7749 = vadd.xlane.f32.xlu0 %v7748
  %v7750 = vpop.xlane.xlu0 %7749
  %v7751 = vsel %vm6834, %v7586, 0.0
  %7752 = vadd.xlane.f32.xlu0 %v7751
  %v7753 = vpop.xlane.xlu0 %7752
  %v7754 = vsel %vm6834, %v7587, 0.0
  %7755 = vadd.xlane.f32.xlu0 %v7754
  %v7756 = vpop.xlane.xlu0 %7755
  %v7757 = vsel %vm6834, %v7588, 0.0
  %7758 = vadd.xlane.f32.xlu0 %v7757
  %v7759 = vpop.xlane.xlu0 %7758
  %v7760 = vsel %vm6834, %v7589, 0.0
  %7761 = vadd.xlane.f32.xlu0 %v7760
  %v7762 = vpop.xlane.xlu0 %7761
  %v7763 = vsel %vm6834, %v7590, 0.0
  %7764 = vadd.xlane.f32.xlu0 %v7763
  %v7765 = vpop.xlane.xlu0 %7764
  %v7766 = vsel %vm6834, %v7591, 0.0
  %7767 = vadd.xlane.f32.xlu0 %v7766
  %v7768 = vpop.xlane.xlu0 %7767
  %v7769 = vsel %vm6834, %v7592, 0.0
  %7770 = vadd.xlane.f32.xlu0 %v7769
  %v7771 = vpop.xlane.xlu0 %7770
  %v7772 = vsel %vm6834, %v7593, 0.0
  %7773 = vadd.xlane.f32.xlu0 %v7772
  %v7774 = vpop.xlane.xlu0 %7773
  %v7775 = vsel %vm6834, %v7594, 0.0
  %7776 = vadd.xlane.f32.xlu0 %v7775
  %v7777 = vpop.xlane.xlu0 %7776
  %v7778 = vsel %vm6834, %v7595, 0.0
  %7779 = vadd.xlane.f32.xlu0 %v7778
  %v7780 = vpop.xlane.xlu0 %7779
  %v7781 = vsel %vm6834, %v7596, 0.0
  %7782 = vadd.xlane.f32.xlu0 %v7781
  %v7783 = vpop.xlane.xlu0 %7782
  %v7784 = vsel %vm6834, %v7597, 0.0
  %7785 = vadd.xlane.f32.xlu0 %v7784
  %v7786 = vpop.xlane.xlu0 %7785
  %v7787 = vmul.f32 %v7600, %v7408
  %v7788 = vmul.f32 %v7603, %v7408
  %v7789 = vmul.f32 %v7606, %v7408
  %v7790 = vmul.f32 %v7609, %v7408
  %v7791 = vmul.f32 %v7612, %v7408
  %v7792 = vmul.f32 %v7615, %v7408
  %v7793 = vmul.f32 %v7618, %v7408
  %v7794 = vmul.f32 %v7621, %v7408
  %v7795 = vmul.f32 %v7624, %v7408
  %v7796 = vmul.f32 %v7627, %v7408
  %v7797 = vmul.f32 %v7630, %v7408
  %v7798 = vmul.f32 %v7633, %v7408
  %v7799 = vmul.f32 %v7636, %v7408
  %v7800 = vmul.f32 %v7639, %v7408
  %v7801 = vmul.f32 %v7642, %v7408
  %v7802 = vmul.f32 %v7645, %v7408
  %v7803 = vmul.f32 %v7648, %v7408
  %v7804 = vmul.f32 %v7651, %v7408
  %v7805 = vmul.f32 %v7654, %v7408
  %v7806 = vmul.f32 %v7657, %v7408
  %v7807 = vmul.f32 %v7660, %v7408
  %v7808 = vmul.f32 %v7663, %v7408
  %v7809 = vmul.f32 %v7666, %v7408
  %v7810 = vmul.f32 %v7669, %v7408
  %v7811 = vmul.f32 %v7672, %v7408
  %v7812 = vmul.f32 %v7675, %v7408
  %v7813 = vmul.f32 %v7678, %v7408
  %v7814 = vmul.f32 %v7681, %v7408
  %v7815 = vmul.f32 %v7684, %v7408
  %v7816 = vmul.f32 %v7687, %v7408
  %v7817 = vmul.f32 %v7690, %v7408
  %v7818 = vmul.f32 %v7693, %v7408
  %v7819 = vmul.f32 %v7696, %v7408
  %v7820 = vmul.f32 %v7699, %v7408
  %v7821 = vmul.f32 %v7702, %v7408
  %v7822 = vmul.f32 %v7705, %v7408
  %v7823 = vmul.f32 %v7708, %v7408
  %v7824 = vmul.f32 %v7711, %v7408
  %v7825 = vmul.f32 %v7714, %v7408
  %v7826 = vmul.f32 %v7717, %v7408
  %v7827 = vmul.f32 %v7720, %v7408
  %v7828 = vmul.f32 %v7723, %v7408
  %v7829 = vmul.f32 %v7726, %v7408
  %v7830 = vmul.f32 %v7729, %v7408
  %v7831 = vmul.f32 %v7732, %v7408
  %v7832 = vmul.f32 %v7735, %v7408
  %v7833 = vmul.f32 %v7738, %v7408
  %v7834 = vmul.f32 %v7741, %v7408
  %v7835 = vmul.f32 %v7744, %v7408
  %v7836 = vmul.f32 %v7747, %v7408
  %v7837 = vmul.f32 %v7750, %v7408
  %v7838 = vmul.f32 %v7753, %v7408
  %v7839 = vmul.f32 %v7756, %v7408
  %v7840 = vmul.f32 %v7759, %v7408
  %v7841 = vmul.f32 %v7762, %v7408
  %v7842 = vmul.f32 %v7765, %v7408
  %v7843 = vmul.f32 %v7768, %v7408
  %v7844 = vmul.f32 %v7771, %v7408
  %v7845 = vmul.f32 %v7774, %v7408
  %v7846 = vmul.f32 %v7777, %v7408
  %v7847 = vmul.f32 %v7780, %v7408
  %v7848 = vmul.f32 %v7783, %v7408
  %v7849 = vmul.f32 %v7786, %v7408
  %v7850 = vadd.f32 %v7787, 1e-05
  %v7851 = vadd.f32 %v7788, 1e-05
  %v7852 = vadd.f32 %v7789, 1e-05
  %v7853 = vadd.f32 %v7790, 1e-05
  %v7854 = vadd.f32 %v7791, 1e-05
  %v7855 = vadd.f32 %v7792, 1e-05
  %v7856 = vadd.f32 %v7793, 1e-05
  %v7857 = vadd.f32 %v7794, 1e-05
  %v7858 = vadd.f32 %v7795, 1e-05
  %v7859 = vadd.f32 %v7796, 1e-05
  %v7860 = vadd.f32 %v7797, 1e-05
  %v7861 = vadd.f32 %v7798, 1e-05
  %v7862 = vadd.f32 %v7799, 1e-05
  %v7863 = vadd.f32 %v7800, 1e-05
  %v7864 = vadd.f32 %v7801, 1e-05
  %v7865 = vadd.f32 %v7802, 1e-05
  %v7866 = vadd.f32 %v7803, 1e-05
  %v7867 = vadd.f32 %v7804, 1e-05
  %v7868 = vadd.f32 %v7805, 1e-05
  %v7869 = vadd.f32 %v7806, 1e-05
  %v7870 = vadd.f32 %v7807, 1e-05
  %v7871 = vadd.f32 %v7808, 1e-05
  %v7872 = vadd.f32 %v7809, 1e-05
  %v7873 = vadd.f32 %v7810, 1e-05
  %v7874 = vadd.f32 %v7811, 1e-05
  %v7875 = vadd.f32 %v7812, 1e-05
  %v7876 = vadd.f32 %v7813, 1e-05
  %v7877 = vadd.f32 %v7814, 1e-05
  %v7878 = vadd.f32 %v7815, 1e-05
  %v7879 = vadd.f32 %v7816, 1e-05
  %v7880 = vadd.f32 %v7817, 1e-05
  %v7881 = vadd.f32 %v7818, 1e-05
  %v7882 = vadd.f32 %v7819, 1e-05
  %v7883 = vadd.f32 %v7820, 1e-05
  %v7884 = vadd.f32 %v7821, 1e-05
  %v7885 = vadd.f32 %v7822, 1e-05
  %v7886 = vadd.f32 %v7823, 1e-05
  %v7887 = vadd.f32 %v7824, 1e-05
  %v7888 = vadd.f32 %v7825, 1e-05
  %v7889 = vadd.f32 %v7826, 1e-05
  %v7890 = vadd.f32 %v7827, 1e-05
  %v7891 = vadd.f32 %v7828, 1e-05
  %v7892 = vadd.f32 %v7829, 1e-05
  %v7893 = vadd.f32 %v7830, 1e-05
  %v7894 = vadd.f32 %v7831, 1e-05
  %v7895 = vadd.f32 %v7832, 1e-05
  %v7896 = vadd.f32 %v7833, 1e-05
  %v7897 = vadd.f32 %v7834, 1e-05
  %v7898 = vadd.f32 %v7835, 1e-05
  %v7899 = vadd.f32 %v7836, 1e-05
  %v7900 = vadd.f32 %v7837, 1e-05
  %v7901 = vadd.f32 %v7838, 1e-05
  %v7902 = vadd.f32 %v7839, 1e-05
  %v7903 = vadd.f32 %v7840, 1e-05
  %v7904 = vadd.f32 %v7841, 1e-05
  %v7905 = vadd.f32 %v7842, 1e-05
  %v7906 = vadd.f32 %v7843, 1e-05
  %v7907 = vadd.f32 %v7844, 1e-05
  %v7908 = vadd.f32 %v7845, 1e-05
  %v7909 = vadd.f32 %v7846, 1e-05
  %v7910 = vadd.f32 %v7847, 1e-05
  %v7911 = vadd.f32 %v7848, 1e-05
  %v7912 = vadd.f32 %v7849, 1e-05
  %v7913 = vrsqrt.pop %v7850
  %v7914 = vrsqrt.pop %v7851
  %v7915 = vrsqrt.pop %v7852
  %v7916 = vrsqrt.pop %v7853
  %v7917 = vrsqrt.pop %v7854
  %v7918 = vrsqrt.pop %v7855
  %v7919 = vrsqrt.pop %v7856
  %v7920 = vrsqrt.pop %v7857
  %v7921 = vrsqrt.pop %v7858
  %v7922 = vrsqrt.pop %v7859
  %v7923 = vrsqrt.pop %v7860
  %v7924 = vrsqrt.pop %v7861
  %v7925 = vrsqrt.pop %v7862
  %v7926 = vrsqrt.pop %v7863
  %v7927 = vrsqrt.pop %v7864
  %v7928 = vrsqrt.pop %v7865
  %v7929 = vrsqrt.pop %v7866
  %v7930 = vrsqrt.pop %v7867
  %v7931 = vrsqrt.pop %v7868
  %v7932 = vrsqrt.pop %v7869
  %v7933 = vrsqrt.pop %v7870
  %v7934 = vrsqrt.pop %v7871
  %v7935 = vrsqrt.pop %v7872
  %v7936 = vrsqrt.pop %v7873
  %v7937 = vrsqrt.pop %v7874
  %v7938 = vrsqrt.pop %v7875
  %v7939 = vrsqrt.pop %v7876
  %v7940 = vrsqrt.pop %v7877
  %v7941 = vrsqrt.pop %v7878
  %v7942 = vrsqrt.pop %v7879
  %v7943 = vrsqrt.pop %v7880
  %v7944 = vrsqrt.pop %v7881
  %v7945 = vrsqrt.pop %v7882
  %v7946 = vrsqrt.pop %v7883
  %v7947 = vrsqrt.pop %v7884
  %v7948 = vrsqrt.pop %v7885
  %v7949 = vrsqrt.pop %v7886
  %v7950 = vrsqrt.pop %v7887
  %v7951 = vrsqrt.pop %v7888
  %v7952 = vrsqrt.pop %v7889
  %v7953 = vrsqrt.pop %v7890
  %v7954 = vrsqrt.pop %v7891
  %v7955 = vrsqrt.pop %v7892
  %v7956 = vrsqrt.pop %v7893
  %v7957 = vrsqrt.pop %v7894
  %v7958 = vrsqrt.pop %v7895
  %v7959 = vrsqrt.pop %v7896
  %v7960 = vrsqrt.pop %v7897
  %v7961 = vrsqrt.pop %v7898
  %v7962 = vrsqrt.pop %v7899
  %v7963 = vrsqrt.pop %v7900
  %v7964 = vrsqrt.pop %v7901
  %v7965 = vrsqrt.pop %v7902
  %v7966 = vrsqrt.pop %v7903
  %v7967 = vrsqrt.pop %v7904
  %v7968 = vrsqrt.pop %v7905
  %v7969 = vrsqrt.pop %v7906
  %v7970 = vrsqrt.pop %v7907
  %v7971 = vrsqrt.pop %v7908
  %v7972 = vrsqrt.pop %v7909
  %v7973 = vrsqrt.pop %v7910
  %v7974 = vrsqrt.pop %v7911
  %v7975 = vrsqrt.pop %v7912
  %v7976 = vmul.f32 %v7472, %v7913
  %v7977 = vmul.f32 %v7473, %v7914
  %v7978 = vmul.f32 %v7474, %v7915
  %v7979 = vmul.f32 %v7475, %v7916
  %v7980 = vmul.f32 %v7476, %v7917
  %v7981 = vmul.f32 %v7477, %v7918
  %v7982 = vmul.f32 %v7478, %v7919
  %v7983 = vmul.f32 %v7479, %v7920
  %v7984 = vmul.f32 %v7480, %v7921
  %v7985 = vmul.f32 %v7481, %v7922
  %v7986 = vmul.f32 %v7482, %v7923
  %v7987 = vmul.f32 %v7483, %v7924
  %v7988 = vmul.f32 %v7484, %v7925
  %v7989 = vmul.f32 %v7485, %v7926
  %v7990 = vmul.f32 %v7486, %v7927
  %v7991 = vmul.f32 %v7487, %v7928
  %v7992 = vmul.f32 %v7488, %v7929
  %v7993 = vmul.f32 %v7489, %v7930
  %v7994 = vmul.f32 %v7490, %v7931
  %v7995 = vmul.f32 %v7491, %v7932
  %v7996 = vmul.f32 %v7492, %v7933
  %v7997 = vmul.f32 %v7493, %v7934
  %v7998 = vmul.f32 %v7494, %v7935
  %v7999 = vmul.f32 %v7495, %v7936
  %v8000 = vmul.f32 %v7496, %v7937
  %v8001 = vmul.f32 %v7497, %v7938
  %v8002 = vmul.f32 %v7498, %v7939
  %v8003 = vmul.f32 %v7499, %v7940
  %v8004 = vmul.f32 %v7500, %v7941
  %v8005 = vmul.f32 %v7501, %v7942
  %v8006 = vmul.f32 %v7502, %v7943
  %v8007 = vmul.f32 %v7503, %v7944
  %v8008 = vmul.f32 %v7504, %v7945
  %v8009 = vmul.f32 %v7505, %v7946
  %v8010 = vmul.f32 %v7506, %v7947
  %v8011 = vmul.f32 %v7507, %v7948
  %v8012 = vmul.f32 %v7508, %v7949
  %v8013 = vmul.f32 %v7509, %v7950
  %v8014 = vmul.f32 %v7510, %v7951
  %v8015 = vmul.f32 %v7511, %v7952
  %v8016 = vmul.f32 %v7512, %v7953
  %v8017 = vmul.f32 %v7513, %v7954
  %v8018 = vmul.f32 %v7514, %v7955
  %v8019 = vmul.f32 %v7515, %v7956
  %v8020 = vmul.f32 %v7516, %v7957
  %v8021 = vmul.f32 %v7517, %v7958
  %v8022 = vmul.f32 %v7518, %v7959
  %v8023 = vmul.f32 %v7519, %v7960
  %v8024 = vmul.f32 %v7520, %v7961
  %v8025 = vmul.f32 %v7521, %v7962
  %v8026 = vmul.f32 %v7522, %v7963
  %v8027 = vmul.f32 %v7523, %v7964
  %v8028 = vmul.f32 %v7524, %v7965
  %v8029 = vmul.f32 %v7525, %v7966
  %v8030 = vmul.f32 %v7526, %v7967
  %v8031 = vmul.f32 %v7527, %v7968
  %v8032 = vmul.f32 %v7528, %v7969
  %v8033 = vmul.f32 %v7529, %v7970
  %v8034 = vmul.f32 %v7530, %v7971
  %v8035 = vmul.f32 %v7531, %v7972
  %v8036 = vmul.f32 %v7532, %v7973
  %v8037 = vmul.f32 %v7533, %v7974
  %v8038 = vmul.f32 %v7534, %v7975
  %v8039 = vlaneseq
  %v8040 = vshrl.u32 %v8039, 7
  %v8041 = vsub.s32 0, %v8040
  %v8042 = vrot.slane %v45, %v8041
  %v8043 = vmul.f32 %v7976, %v8042
  %v8044 = vmul.f32 %v7977, %v8042
  %v8045 = vmul.f32 %v7978, %v8042
  %v8046 = vmul.f32 %v7979, %v8042
  %v8047 = vmul.f32 %v7980, %v8042
  %v8048 = vmul.f32 %v7981, %v8042
  %v8049 = vmul.f32 %v7982, %v8042
  %v8050 = vmul.f32 %v7983, %v8042
  %v8051 = vmul.f32 %v7984, %v8042
  %v8052 = vmul.f32 %v7985, %v8042
  %v8053 = vmul.f32 %v7986, %v8042
  %v8054 = vmul.f32 %v7987, %v8042
  %v8055 = vmul.f32 %v7988, %v8042
  %v8056 = vmul.f32 %v7989, %v8042
  %v8057 = vmul.f32 %v7990, %v8042
  %v8058 = vmul.f32 %v7991, %v8042
  %v8059 = vmul.f32 %v7992, %v8042
  %v8060 = vmul.f32 %v7993, %v8042
  %v8061 = vmul.f32 %v7994, %v8042
  %v8062 = vmul.f32 %v7995, %v8042
  %v8063 = vmul.f32 %v7996, %v8042
  %v8064 = vmul.f32 %v7997, %v8042
  %v8065 = vmul.f32 %v7998, %v8042
  %v8066 = vmul.f32 %v7999, %v8042
  %v8067 = vmul.f32 %v8000, %v8042
  %v8068 = vmul.f32 %v8001, %v8042
  %v8069 = vmul.f32 %v8002, %v8042
  %v8070 = vmul.f32 %v8003, %v8042
  %v8071 = vmul.f32 %v8004, %v8042
  %v8072 = vmul.f32 %v8005, %v8042
  %v8073 = vmul.f32 %v8006, %v8042
  %v8074 = vmul.f32 %v8007, %v8042
  %v8075 = vmul.f32 %v8008, %v8042
  %v8076 = vmul.f32 %v8009, %v8042
  %v8077 = vmul.f32 %v8010, %v8042
  %v8078 = vmul.f32 %v8011, %v8042
  %v8079 = vmul.f32 %v8012, %v8042
  %v8080 = vmul.f32 %v8013, %v8042
  %v8081 = vmul.f32 %v8014, %v8042
  %v8082 = vmul.f32 %v8015, %v8042
  %v8083 = vmul.f32 %v8016, %v8042
  %v8084 = vmul.f32 %v8017, %v8042
  %v8085 = vmul.f32 %v8018, %v8042
  %v8086 = vmul.f32 %v8019, %v8042
  %v8087 = vmul.f32 %v8020, %v8042
  %v8088 = vmul.f32 %v8021, %v8042
  %v8089 = vmul.f32 %v8022, %v8042
  %v8090 = vmul.f32 %v8023, %v8042
  %v8091 = vmul.f32 %v8024, %v8042
  %v8092 = vmul.f32 %v8025, %v8042
  %v8093 = vmul.f32 %v8026, %v8042
  %v8094 = vmul.f32 %v8027, %v8042
  %v8095 = vmul.f32 %v8028, %v8042
  %v8096 = vmul.f32 %v8029, %v8042
  %v8097 = vmul.f32 %v8030, %v8042
  %v8098 = vmul.f32 %v8031, %v8042
  %v8099 = vmul.f32 %v8032, %v8042
  %v8100 = vmul.f32 %v8033, %v8042
  %v8101 = vmul.f32 %v8034, %v8042
  %v8102 = vmul.f32 %v8035, %v8042
  %v8103 = vmul.f32 %v8036, %v8042
  %v8104 = vmul.f32 %v8037, %v8042
  %v8105 = vmul.f32 %v8038, %v8042
  %v8106 = vlaneseq
  %v8107 = vshrl.u32 %v8106, 7
  %v8108 = vsub.s32 0, %v8107
  %v8109 = vrot.slane %v46, %v8108
  %v8110 = vadd.f32 %v8043, %v8109
  %v8111 = vadd.f32 %v8044, %v8109
  %v8112 = vadd.f32 %v8045, %v8109
  %v8113 = vadd.f32 %v8046, %v8109
  %v8114 = vadd.f32 %v8047, %v8109
  %v8115 = vadd.f32 %v8048, %v8109
  %v8116 = vadd.f32 %v8049, %v8109
  %v8117 = vadd.f32 %v8050, %v8109
  %v8118 = vadd.f32 %v8051, %v8109
  %v8119 = vadd.f32 %v8052, %v8109
  %v8120 = vadd.f32 %v8053, %v8109
  %v8121 = vadd.f32 %v8054, %v8109
  %v8122 = vadd.f32 %v8055, %v8109
  %v8123 = vadd.f32 %v8056, %v8109
  %v8124 = vadd.f32 %v8057, %v8109
  %v8125 = vadd.f32 %v8058, %v8109
  %v8126 = vadd.f32 %v8059, %v8109
  %v8127 = vadd.f32 %v8060, %v8109
  %v8128 = vadd.f32 %v8061, %v8109
  %v8129 = vadd.f32 %v8062, %v8109
  %v8130 = vadd.f32 %v8063, %v8109
  %v8131 = vadd.f32 %v8064, %v8109
  %v8132 = vadd.f32 %v8065, %v8109
  %v8133 = vadd.f32 %v8066, %v8109
  %v8134 = vadd.f32 %v8067, %v8109
  %v8135 = vadd.f32 %v8068, %v8109
  %v8136 = vadd.f32 %v8069, %v8109
  %v8137 = vadd.f32 %v8070, %v8109
  %v8138 = vadd.f32 %v8071, %v8109
  %v8139 = vadd.f32 %v8072, %v8109
  %v8140 = vadd.f32 %v8073, %v8109
  %v8141 = vadd.f32 %v8074, %v8109
  %v8142 = vadd.f32 %v8075, %v8109
  %v8143 = vadd.f32 %v8076, %v8109
  %v8144 = vadd.f32 %v8077, %v8109
  %v8145 = vadd.f32 %v8078, %v8109
  %v8146 = vadd.f32 %v8079, %v8109
  %v8147 = vadd.f32 %v8080, %v8109
  %v8148 = vadd.f32 %v8081, %v8109
  %v8149 = vadd.f32 %v8082, %v8109
  %v8150 = vadd.f32 %v8083, %v8109
  %v8151 = vadd.f32 %v8084, %v8109
  %v8152 = vadd.f32 %v8085, %v8109
  %v8153 = vadd.f32 %v8086, %v8109
  %v8154 = vadd.f32 %v8087, %v8109
  %v8155 = vadd.f32 %v8088, %v8109
  %v8156 = vadd.f32 %v8089, %v8109
  %v8157 = vadd.f32 %v8090, %v8109
  %v8158 = vadd.f32 %v8091, %v8109
  %v8159 = vadd.f32 %v8092, %v8109
  %v8160 = vadd.f32 %v8093, %v8109
  %v8161 = vadd.f32 %v8094, %v8109
  %v8162 = vadd.f32 %v8095, %v8109
  %v8163 = vadd.f32 %v8096, %v8109
  %v8164 = vadd.f32 %v8097, %v8109
  %v8165 = vadd.f32 %v8098, %v8109
  %v8166 = vadd.f32 %v8099, %v8109
  %v8167 = vadd.f32 %v8100, %v8109
  %v8168 = vadd.f32 %v8101, %v8109
  %v8169 = vadd.f32 %v8102, %v8109
  %v8170 = vadd.f32 %v8103, %v8109
  %v8171 = vadd.f32 %v8104, %v8109
  %v8172 = vadd.f32 %v8105, %v8109
  %v8173 = vmax.f32 %v8110, 0.0
  %v8174 = vmax.f32 %v8111, 0.0
  %v8175 = vmax.f32 %v8112, 0.0
  %v8176 = vmax.f32 %v8113, 0.0
  %v8177 = vmax.f32 %v8114, 0.0
  %v8178 = vmax.f32 %v8115, 0.0
  %v8179 = vmax.f32 %v8116, 0.0
  %v8180 = vmax.f32 %v8117, 0.0
  %v8181 = vmax.f32 %v8118, 0.0
  %v8182 = vmax.f32 %v8119, 0.0
  %v8183 = vmax.f32 %v8120, 0.0
  %v8184 = vmax.f32 %v8121, 0.0
  %v8185 = vmax.f32 %v8122, 0.0
  %v8186 = vmax.f32 %v8123, 0.0
  %v8187 = vmax.f32 %v8124, 0.0
  %v8188 = vmax.f32 %v8125, 0.0
  %v8189 = vmax.f32 %v8126, 0.0
  %v8190 = vmax.f32 %v8127, 0.0
  %v8191 = vmax.f32 %v8128, 0.0
  %v8192 = vmax.f32 %v8129, 0.0
  %v8193 = vmax.f32 %v8130, 0.0
  %v8194 = vmax.f32 %v8131, 0.0
  %v8195 = vmax.f32 %v8132, 0.0
  %v8196 = vmax.f32 %v8133, 0.0
  %v8197 = vmax.f32 %v8134, 0.0
  %v8198 = vmax.f32 %v8135, 0.0
  %v8199 = vmax.f32 %v8136, 0.0
  %v8200 = vmax.f32 %v8137, 0.0
  %v8201 = vmax.f32 %v8138, 0.0
  %v8202 = vmax.f32 %v8139, 0.0
  %v8203 = vmax.f32 %v8140, 0.0
  %v8204 = vmax.f32 %v8141, 0.0
  %v8205 = vmax.f32 %v8142, 0.0
  %v8206 = vmax.f32 %v8143, 0.0
  %v8207 = vmax.f32 %v8144, 0.0
  %v8208 = vmax.f32 %v8145, 0.0
  %v8209 = vmax.f32 %v8146, 0.0
  %v8210 = vmax.f32 %v8147, 0.0
  %v8211 = vmax.f32 %v8148, 0.0
  %v8212 = vmax.f32 %v8149, 0.0
  %v8213 = vmax.f32 %v8150, 0.0
  %v8214 = vmax.f32 %v8151, 0.0
  %v8215 = vmax.f32 %v8152, 0.0
  %v8216 = vmax.f32 %v8153, 0.0
  %v8217 = vmax.f32 %v8154, 0.0
  %v8218 = vmax.f32 %v8155, 0.0
  %v8219 = vmax.f32 %v8156, 0.0
  %v8220 = vmax.f32 %v8157, 0.0
  %v8221 = vmax.f32 %v8158, 0.0
  %v8222 = vmax.f32 %v8159, 0.0
  %v8223 = vmax.f32 %v8160, 0.0
  %v8224 = vmax.f32 %v8161, 0.0
  %v8225 = vmax.f32 %v8162, 0.0
  %v8226 = vmax.f32 %v8163, 0.0
  %v8227 = vmax.f32 %v8164, 0.0
  %v8228 = vmax.f32 %v8165, 0.0
  %v8229 = vmax.f32 %v8166, 0.0
  %v8230 = vmax.f32 %v8167, 0.0
  %v8231 = vmax.f32 %v8168, 0.0
  %v8232 = vmax.f32 %v8169, 0.0
  %v8233 = vmax.f32 %v8170, 0.0
  %v8234 = vmax.f32 %v8171, 0.0
  %v8235 = vmax.f32 %v8172, 0.0
  %v8236 = vpack.c.bf16 %v8174, %v8173
  %v8237 = vpack.c.bf16 %v8176, %v8175
  %v8238 = vpack.c.bf16 %v8178, %v8177
  %v8239 = vpack.c.bf16 %v8180, %v8179
  %v8240 = vpack.c.bf16 %v8182, %v8181
  %v8241 = vpack.c.bf16 %v8184, %v8183
  %v8242 = vpack.c.bf16 %v8186, %v8185
  %v8243 = vpack.c.bf16 %v8188, %v8187
  %v8244 = vpack.c.bf16 %v8190, %v8189
  %v8245 = vpack.c.bf16 %v8192, %v8191
  %v8246 = vpack.c.bf16 %v8194, %v8193
  %v8247 = vpack.c.bf16 %v8196, %v8195
  %v8248 = vpack.c.bf16 %v8198, %v8197
  %v8249 = vpack.c.bf16 %v8200, %v8199
  %v8250 = vpack.c.bf16 %v8202, %v8201
  %v8251 = vpack.c.bf16 %v8204, %v8203
  %v8252 = vpack.c.bf16 %v8206, %v8205
  %v8253 = vpack.c.bf16 %v8208, %v8207
  %v8254 = vpack.c.bf16 %v8210, %v8209
  %v8255 = vpack.c.bf16 %v8212, %v8211
  %v8256 = vpack.c.bf16 %v8214, %v8213
  %v8257 = vpack.c.bf16 %v8216, %v8215
  %v8258 = vpack.c.bf16 %v8218, %v8217
  %v8259 = vpack.c.bf16 %v8220, %v8219
  %v8260 = vpack.c.bf16 %v8222, %v8221
  %v8261 = vpack.c.bf16 %v8224, %v8223
  %v8262 = vpack.c.bf16 %v8226, %v8225
  %v8263 = vpack.c.bf16 %v8228, %v8227
  %v8264 = vpack.c.bf16 %v8230, %v8229
  %v8265 = vpack.c.bf16 %v8232, %v8231
  %v8266 = vpack.c.bf16 %v8234, %v8233
  %v8267 = vpack.c.bf16 %v8235, %v8235
  %v8268 = vlaneseq
  %v8269 = vshrl.u32 %v8268, 7
  %v8270 = vsub.s32 0, %v8269
  %v8271 = vrot.slane %v47, %v8270
  %v8276 = vunpack.c.l.b16 %v33
  %v8277 = vunpack.c.l.b16 %v34
  %v8278 = vunpack.c.l.b16 %v35
  %v8279 = vunpack.c.l.b16 %v36
  %v8280 = vpack.c.b16 %v8277, %v8276
  %v8281 = vpack.c.b16 %v8279, %v8278
  %v8285 = vsel %vm6834, %v8236, 0
  %v8288 = vsel %vm6834, %v8237, 0
  %v8291 = vsel %vm6834, %v8238, 0
  %v8294 = vsel %vm6834, %v8239, 0
  %v8297 = vsel %vm6834, %v8240, 0
  %v8300 = vsel %vm6834, %v8241, 0
  %v8303 = vsel %vm6834, %v8242, 0
  %v8306 = vsel %vm6834, %v8243, 0
  %v8309 = vsel %vm6834, %v8244, 0
  %v8312 = vsel %vm6834, %v8245, 0
  %v8315 = vsel %vm6834, %v8246, 0
  %v8318 = vsel %vm6834, %v8247, 0
  %v8321 = vsel %vm6834, %v8248, 0
  %v8324 = vsel %vm6834, %v8249, 0
  %v8327 = vsel %vm6834, %v8250, 0
  %v8330 = vsel %vm6834, %v8251, 0
  %v8333 = vsel %vm6834, %v8252, 0
  %v8336 = vsel %vm6834, %v8253, 0
  %v8339 = vsel %vm6834, %v8254, 0
  %v8342 = vsel %vm6834, %v8255, 0
  %v8345 = vsel %vm6834, %v8256, 0
  %v8348 = vsel %vm6834, %v8257, 0
  %v8351 = vsel %vm6834, %v8258, 0
  %v8354 = vsel %vm6834, %v8259, 0
  %v8357 = vsel %vm6834, %v8260, 0
  %v8360 = vsel %vm6834, %v8261, 0
  %v8363 = vsel %vm6834, %v8262, 0
  %v8366 = vsel %vm6834, %v8263, 0
  %v8369 = vsel %vm6834, %v8264, 0
  %v8372 = vsel %vm6834, %v8265, 0
  %v8375 = vsel %vm6834, %v8266, 0
  %v8378 = vsel %vm6834, %v8267, 0
  %8380 = vmatprep.subr.bf16.mxu0 0
  %8381 = vmatpush1.bf16.msra.mxu0 0
  %8382 = vmatprep.subr.bf16.mxu0 0
  %8383 = vmatpush1.bf16.msra.mxu0 0
  %8384 = vmatprep.subr.bf16.mxu0 0
  %8385 = vmatpush1.bf16.msra.mxu0 0
  %8386 = vmatprep.subr.bf16.mxu0 0
  %8387 = vmatpush1.bf16.msra.mxu0 0
  %8388 = vmatprep.subr.bf16.mxu0 0
  %8389 = vmatpush1.bf16.msra.mxu0 0
  %8390 = vmatprep.subr.bf16.mxu0 0
  %8391 = vmatpush1.bf16.msra.mxu0 0
  %8392 = vmatprep.subr.bf16.mxu0 0
  %8393 = vmatpush1.bf16.msra.mxu0 %v8281
  %8394 = vmatprep.subr.bf16.mxu0 0
  %8395 = vmatpush1.bf16.msra.mxu0 %v8280
  %8396 = vmatprep.subr.bf16.mxu0 0
  %8397 = vmatpush2.bf16.msra.mxu0 0
  %8398 = vmatprep.subr.bf16.mxu0 0
  %8399 = vmatpush2.bf16.msra.mxu0 0
  %8400 = vmatprep.subr.bf16.mxu0 0
  %8401 = vmatpush2.bf16.msra.mxu0 0
  %8402 = vmatprep.subr.bf16.mxu0 0
  %8403 = vmatpush2.bf16.msra.mxu0 0
  %8404 = vmatprep.subr.bf16.mxu0 0
  %8405 = vmatpush2.bf16.msra.mxu0 0
  %8406 = vmatprep.subr.bf16.mxu0 0
  %8407 = vmatpush2.bf16.msra.mxu0 0
  %8408 = vmatprep.subr.bf16.mxu0 0
  %8409 = vmatpush2.bf16.msra.mxu0 0
  %8410 = vmatprep.subr.bf16.mxu0 0
  %8411 = vmatpush2.bf16.msra.mxu0 0
  %8412 = vmatprep.mubr.bf16.mxu0 0
  %8413 = vmatmul.mubr.bf16.gmra.mxu0 %v8285
  %v8414 = vpop.f32.mrf.mxu0
  %v8415 = vadd.f32 %v8271, %v8414
  %v8416 = vpop.f32.mrf.mxu0
  %v8417 = vpop.f32.mrf.mxu0
  %v8418 = vadd.f32 %v8271, %v8417
  %v8419 = vpop.f32.mrf.mxu0
  %8420 = vmatprep.mubr.bf16.mxu0 0
  %8421 = vmatmul.mubr.bf16.gmra.mxu0 %v8288
  %v8422 = vpop.f32.mrf.mxu0
  %v8423 = vadd.f32 %v8271, %v8422
  %v8424 = vpop.f32.mrf.mxu0
  %v8425 = vpop.f32.mrf.mxu0
  %v8426 = vadd.f32 %v8271, %v8425
  %v8427 = vpop.f32.mrf.mxu0
  %8428 = vmatprep.mubr.bf16.mxu0 0
  %8429 = vmatmul.mubr.bf16.gmra.mxu0 %v8291
  %v8430 = vpop.f32.mrf.mxu0
  %v8431 = vadd.f32 %v8271, %v8430
  %v8432 = vpop.f32.mrf.mxu0
  %v8433 = vpop.f32.mrf.mxu0
  %v8434 = vadd.f32 %v8271, %v8433
  %v8435 = vpop.f32.mrf.mxu0
  %8436 = vmatprep.mubr.bf16.mxu0 0
  %8437 = vmatmul.mubr.bf16.gmra.mxu0 %v8294
  %v8438 = vpop.f32.mrf.mxu0
  %v8439 = vadd.f32 %v8271, %v8438
  %v8440 = vpop.f32.mrf.mxu0
  %v8441 = vpop.f32.mrf.mxu0
  %v8442 = vadd.f32 %v8271, %v8441
  %v8443 = vpop.f32.mrf.mxu0
  %8444 = vmatprep.mubr.bf16.mxu0 0
  %8445 = vmatmul.mubr.bf16.gmra.mxu0 %v8297
  %v8446 = vpop.f32.mrf.mxu0
  %v8447 = vadd.f32 %v8271, %v8446
  %v8448 = vpop.f32.mrf.mxu0
  %v8449 = vpop.f32.mrf.mxu0
  %v8450 = vadd.f32 %v8271, %v8449
  %v8451 = vpop.f32.mrf.mxu0
  %8452 = vmatprep.mubr.bf16.mxu0 0
  %8453 = vmatmul.mubr.bf16.gmra.mxu0 %v8300
  %v8454 = vpop.f32.mrf.mxu0
  %v8455 = vadd.f32 %v8271, %v8454
  %v8456 = vpop.f32.mrf.mxu0
  %v8457 = vpop.f32.mrf.mxu0
  %v8458 = vadd.f32 %v8271, %v8457
  %v8459 = vpop.f32.mrf.mxu0
  %8460 = vmatprep.mubr.bf16.mxu0 0
  %8461 = vmatmul.mubr.bf16.gmra.mxu0 %v8303
  %v8462 = vpop.f32.mrf.mxu0
  %v8463 = vadd.f32 %v8271, %v8462
  %v8464 = vpop.f32.mrf.mxu0
  %v8465 = vpop.f32.mrf.mxu0
  %v8466 = vadd.f32 %v8271, %v8465
  %v8467 = vpop.f32.mrf.mxu0
  %8468 = vmatprep.mubr.bf16.mxu0 0
  %8469 = vmatmul.mubr.bf16.gmra.mxu0 %v8306
  %v8470 = vpop.f32.mrf.mxu0
  %v8471 = vadd.f32 %v8271, %v8470
  %v8472 = vpop.f32.mrf.mxu0
  %v8473 = vpop.f32.mrf.mxu0
  %v8474 = vadd.f32 %v8271, %v8473
  %v8475 = vpop.f32.mrf.mxu0
  %8476 = vmatprep.mubr.bf16.mxu0 0
  %8477 = vmatmul.mubr.bf16.gmra.mxu0 %v8309
  %v8478 = vpop.f32.mrf.mxu0
  %v8479 = vadd.f32 %v8271, %v8478
  %v8480 = vpop.f32.mrf.mxu0
  %v8481 = vpop.f32.mrf.mxu0
  %v8482 = vadd.f32 %v8271, %v8481
  %v8483 = vpop.f32.mrf.mxu0
  %8484 = vmatprep.mubr.bf16.mxu0 0
  %8485 = vmatmul.mubr.bf16.gmra.mxu0 %v8312
  %v8486 = vpop.f32.mrf.mxu0
  %v8487 = vadd.f32 %v8271, %v8486
  %v8488 = vpop.f32.mrf.mxu0
  %v8489 = vpop.f32.mrf.mxu0
  %v8490 = vadd.f32 %v8271, %v8489
  %v8491 = vpop.f32.mrf.mxu0
  %8492 = vmatprep.mubr.bf16.mxu0 0
  %8493 = vmatmul.mubr.bf16.gmra.mxu0 %v8315
  %v8494 = vpop.f32.mrf.mxu0
  %v8495 = vadd.f32 %v8271, %v8494
  %v8496 = vpop.f32.mrf.mxu0
  %v8497 = vpop.f32.mrf.mxu0
  %v8498 = vadd.f32 %v8271, %v8497
  %v8499 = vpop.f32.mrf.mxu0
  %8500 = vmatprep.mubr.bf16.mxu0 0
  %8501 = vmatmul.mubr.bf16.gmra.mxu0 %v8318
  %v8502 = vpop.f32.mrf.mxu0
  %v8503 = vadd.f32 %v8271, %v8502
  %v8504 = vpop.f32.mrf.mxu0
  %v8505 = vpop.f32.mrf.mxu0
  %v8506 = vadd.f32 %v8271, %v8505
  %v8507 = vpop.f32.mrf.mxu0
  %8508 = vmatprep.mubr.bf16.mxu0 0
  %8509 = vmatmul.mubr.bf16.gmra.mxu0 %v8321
  %v8510 = vpop.f32.mrf.mxu0
  %v8511 = vadd.f32 %v8271, %v8510
  %v8512 = vpop.f32.mrf.mxu0
  %v8513 = vpop.f32.mrf.mxu0
  %v8514 = vadd.f32 %v8271, %v8513
  %v8515 = vpop.f32.mrf.mxu0
  %8516 = vmatprep.mubr.bf16.mxu0 0
  %8517 = vmatmul.mubr.bf16.gmra.mxu0 %v8324
  %v8518 = vpop.f32.mrf.mxu0
  %v8519 = vadd.f32 %v8271, %v8518
  %v8520 = vpop.f32.mrf.mxu0
  %v8521 = vpop.f32.mrf.mxu0
  %v8522 = vadd.f32 %v8271, %v8521
  %v8523 = vpop.f32.mrf.mxu0
  %8524 = vmatprep.mubr.bf16.mxu0 0
  %8525 = vmatmul.mubr.bf16.gmra.mxu0 %v8327
  %v8526 = vpop.f32.mrf.mxu0
  %v8527 = vadd.f32 %v8271, %v8526
  %v8528 = vpop.f32.mrf.mxu0
  %v8529 = vpop.f32.mrf.mxu0
  %v8530 = vadd.f32 %v8271, %v8529
  %v8531 = vpop.f32.mrf.mxu0
  %8532 = vmatprep.mubr.bf16.mxu0 0
  %8533 = vmatmul.mubr.bf16.gmra.mxu0 %v8330
  %v8534 = vpop.f32.mrf.mxu0
  %v8535 = vadd.f32 %v8271, %v8534
  %v8536 = vpop.f32.mrf.mxu0
  %v8537 = vpop.f32.mrf.mxu0
  %v8538 = vadd.f32 %v8271, %v8537
  %v8539 = vpop.f32.mrf.mxu0
  %8540 = vmatprep.mubr.bf16.mxu0 0
  %8541 = vmatmul.mubr.bf16.gmra.mxu0 %v8333
  %v8542 = vpop.f32.mrf.mxu0
  %v8543 = vadd.f32 %v8271, %v8542
  %v8544 = vpop.f32.mrf.mxu0
  %v8545 = vpop.f32.mrf.mxu0
  %v8546 = vadd.f32 %v8271, %v8545
  %v8547 = vpop.f32.mrf.mxu0
  %8548 = vmatprep.mubr.bf16.mxu0 0
  %8549 = vmatmul.mubr.bf16.gmra.mxu0 %v8336
  %v8550 = vpop.f32.mrf.mxu0
  %v8551 = vadd.f32 %v8271, %v8550
  %v8552 = vpop.f32.mrf.mxu0
  %v8553 = vpop.f32.mrf.mxu0
  %v8554 = vadd.f32 %v8271, %v8553
  %v8555 = vpop.f32.mrf.mxu0
  %8556 = vmatprep.mubr.bf16.mxu0 0
  %8557 = vmatmul.mubr.bf16.gmra.mxu0 %v8339
  %v8558 = vpop.f32.mrf.mxu0
  %v8559 = vadd.f32 %v8271, %v8558
  %v8560 = vpop.f32.mrf.mxu0
  %v8561 = vpop.f32.mrf.mxu0
  %v8562 = vadd.f32 %v8271, %v8561
  %v8563 = vpop.f32.mrf.mxu0
  %8564 = vmatprep.mubr.bf16.mxu0 0
  %8565 = vmatmul.mubr.bf16.gmra.mxu0 %v8342
  %v8566 = vpop.f32.mrf.mxu0
  %v8567 = vadd.f32 %v8271, %v8566
  %v8568 = vpop.f32.mrf.mxu0
  %v8569 = vpop.f32.mrf.mxu0
  %v8570 = vadd.f32 %v8271, %v8569
  %v8571 = vpop.f32.mrf.mxu0
  %8572 = vmatprep.mubr.bf16.mxu0 0
  %8573 = vmatmul.mubr.bf16.gmra.mxu0 %v8345
  %v8574 = vpop.f32.mrf.mxu0
  %v8575 = vadd.f32 %v8271, %v8574
  %v8576 = vpop.f32.mrf.mxu0
  %v8577 = vpop.f32.mrf.mxu0
  %v8578 = vadd.f32 %v8271, %v8577
  %v8579 = vpop.f32.mrf.mxu0
  %8580 = vmatprep.mubr.bf16.mxu0 0
  %8581 = vmatmul.mubr.bf16.gmra.mxu0 %v8348
  %v8582 = vpop.f32.mrf.mxu0
  %v8583 = vadd.f32 %v8271, %v8582
  %v8584 = vpop.f32.mrf.mxu0
  %v8585 = vpop.f32.mrf.mxu0
  %v8586 = vadd.f32 %v8271, %v8585
  %v8587 = vpop.f32.mrf.mxu0
  %8588 = vmatprep.mubr.bf16.mxu0 0
  %8589 = vmatmul.mubr.bf16.gmra.mxu0 %v8351
  %v8590 = vpop.f32.mrf.mxu0
  %v8591 = vadd.f32 %v8271, %v8590
  %v8592 = vpop.f32.mrf.mxu0
  %v8593 = vpop.f32.mrf.mxu0
  %v8594 = vadd.f32 %v8271, %v8593
  %v8595 = vpop.f32.mrf.mxu0
  %8596 = vmatprep.mubr.bf16.mxu0 0
  %8597 = vmatmul.mubr.bf16.gmra.mxu0 %v8354
  %v8598 = vpop.f32.mrf.mxu0
  %v8599 = vadd.f32 %v8271, %v8598
  %v8600 = vpop.f32.mrf.mxu0
  %v8601 = vpop.f32.mrf.mxu0
  %v8602 = vadd.f32 %v8271, %v8601
  %v8603 = vpop.f32.mrf.mxu0
  %8604 = vmatprep.mubr.bf16.mxu0 0
  %8605 = vmatmul.mubr.bf16.gmra.mxu0 %v8357
  %v8606 = vpop.f32.mrf.mxu0
  %v8607 = vadd.f32 %v8271, %v8606
  %v8608 = vpop.f32.mrf.mxu0
  %v8609 = vpop.f32.mrf.mxu0
  %v8610 = vadd.f32 %v8271, %v8609
  %v8611 = vpop.f32.mrf.mxu0
  %8612 = vmatprep.mubr.bf16.mxu0 0
  %8613 = vmatmul.mubr.bf16.gmra.mxu0 %v8360
  %v8614 = vpop.f32.mrf.mxu0
  %v8615 = vadd.f32 %v8271, %v8614
  %v8616 = vpop.f32.mrf.mxu0
  %v8617 = vpop.f32.mrf.mxu0
  %v8618 = vadd.f32 %v8271, %v8617
  %v8619 = vpop.f32.mrf.mxu0
  %8620 = vmatprep.mubr.bf16.mxu0 0
  %8621 = vmatmul.mubr.bf16.gmra.mxu0 %v8363
  %v8622 = vpop.f32.mrf.mxu0
  %v8623 = vadd.f32 %v8271, %v8622
  %v8624 = vpop.f32.mrf.mxu0
  %v8625 = vpop.f32.mrf.mxu0
  %v8626 = vadd.f32 %v8271, %v8625
  %v8627 = vpop.f32.mrf.mxu0
  %8628 = vmatprep.mubr.bf16.mxu0 0
  %8629 = vmatmul.mubr.bf16.gmra.mxu0 %v8366
  %v8630 = vpop.f32.mrf.mxu0
  %v8631 = vadd.f32 %v8271, %v8630
  %v8632 = vpop.f32.mrf.mxu0
  %v8633 = vpop.f32.mrf.mxu0
  %v8634 = vadd.f32 %v8271, %v8633
  %v8635 = vpop.f32.mrf.mxu0
  %8636 = vmatprep.mubr.bf16.mxu0 0
  %8637 = vmatmul.mubr.bf16.gmra.mxu0 %v8369
  %v8638 = vpop.f32.mrf.mxu0
  %v8639 = vadd.f32 %v8271, %v8638
  %v8640 = vpop.f32.mrf.mxu0
  %v8641 = vpop.f32.mrf.mxu0
  %v8642 = vadd.f32 %v8271, %v8641
  %v8643 = vpop.f32.mrf.mxu0
  %8644 = vmatprep.mubr.bf16.mxu0 0
  %8645 = vmatmul.mubr.bf16.gmra.mxu0 %v8372
  %v8646 = vpop.f32.mrf.mxu0
  %v8647 = vadd.f32 %v8271, %v8646
  %v8648 = vpop.f32.mrf.mxu0
  %v8649 = vpop.f32.mrf.mxu0
  %v8650 = vadd.f32 %v8271, %v8649
  %v8651 = vpop.f32.mrf.mxu0
  %8652 = vmatprep.mubr.bf16.mxu0 0
  %8653 = vmatmul.mubr.bf16.gmra.mxu0 %v8375
  %v8654 = vpop.f32.mrf.mxu0
  %v8655 = vadd.f32 %v8271, %v8654
  %v8656 = vpop.f32.mrf.mxu0
  %v8657 = vpop.f32.mrf.mxu0
  %v8658 = vadd.f32 %v8271, %v8657
  %v8659 = vpop.f32.mrf.mxu0
  %8660 = vmatprep.mubr.bf16.mxu0 0
  %8661 = vmatmul.mubr.bf16.gmra.mxu0 %v8378
  %v8662 = vpop.f32.mrf.mxu0
  %v8663 = vadd.f32 %v8271, %v8662
  %v8664 = vpop.f32.mrf.mxu0
  %v8665 = vpop.f32.mrf.mxu0
  %v8666 = vpop.f32.mrf.mxu0
  %8667 = vdwg.mxu0
  %v8668 = vsel %vm6834, %v8415, 0.0
  %8669 = vadd.xlane.f32.xlu0 %v8668
  %v8670 = vpop.xlane.xlu0 %8669
  %v8671 = vsel %vm6834, %v8418, 0.0
  %8672 = vadd.xlane.f32.xlu0 %v8671
  %v8673 = vpop.xlane.xlu0 %8672
  %v8674 = vsel %vm6834, %v8423, 0.0
  %8675 = vadd.xlane.f32.xlu0 %v8674
  %v8676 = vpop.xlane.xlu0 %8675
  %v8677 = vsel %vm6834, %v8426, 0.0
  %8678 = vadd.xlane.f32.xlu0 %v8677
  %v8679 = vpop.xlane.xlu0 %8678
  %v8680 = vsel %vm6834, %v8431, 0.0
  %8681 = vadd.xlane.f32.xlu0 %v8680
  %v8682 = vpop.xlane.xlu0 %8681
  %v8683 = vsel %vm6834, %v8434, 0.0
  %8684 = vadd.xlane.f32.xlu0 %v8683
  %v8685 = vpop.xlane.xlu0 %8684
  %v8686 = vsel %vm6834, %v8439, 0.0
  %8687 = vadd.xlane.f32.xlu0 %v8686
  %v8688 = vpop.xlane.xlu0 %8687
  %v8689 = vsel %vm6834, %v8442, 0.0
  %8690 = vadd.xlane.f32.xlu0 %v8689
  %v8691 = vpop.xlane.xlu0 %8690
  %v8692 = vsel %vm6834, %v8447, 0.0
  %8693 = vadd.xlane.f32.xlu0 %v8692
  %v8694 = vpop.xlane.xlu0 %8693
  %v8695 = vsel %vm6834, %v8450, 0.0
  %8696 = vadd.xlane.f32.xlu0 %v8695
  %v8697 = vpop.xlane.xlu0 %8696
  %v8698 = vsel %vm6834, %v8455, 0.0
  %8699 = vadd.xlane.f32.xlu0 %v8698
  %v8700 = vpop.xlane.xlu0 %8699
  %v8701 = vsel %vm6834, %v8458, 0.0
  %8702 = vadd.xlane.f32.xlu0 %v8701
  %v8703 = vpop.xlane.xlu0 %8702
  %v8704 = vsel %vm6834, %v8463, 0.0
  %8705 = vadd.xlane.f32.xlu0 %v8704
  %v8706 = vpop.xlane.xlu0 %8705
  %v8707 = vsel %vm6834, %v8466, 0.0
  %8708 = vadd.xlane.f32.xlu0 %v8707
  %v8709 = vpop.xlane.xlu0 %8708
  %v8710 = vsel %vm6834, %v8471, 0.0
  %8711 = vadd.xlane.f32.xlu0 %v8710
  %v8712 = vpop.xlane.xlu0 %8711
  %v8713 = vsel %vm6834, %v8474, 0.0
  %8714 = vadd.xlane.f32.xlu0 %v8713
  %v8715 = vpop.xlane.xlu0 %8714
  %v8716 = vsel %vm6834, %v8479, 0.0
  %8717 = vadd.xlane.f32.xlu0 %v8716
  %v8718 = vpop.xlane.xlu0 %8717
  %v8719 = vsel %vm6834, %v8482, 0.0
  %8720 = vadd.xlane.f32.xlu0 %v8719
  %v8721 = vpop.xlane.xlu0 %8720
  %v8722 = vsel %vm6834, %v8487, 0.0
  %8723 = vadd.xlane.f32.xlu0 %v8722
  %v8724 = vpop.xlane.xlu0 %8723
  %v8725 = vsel %vm6834, %v8490, 0.0
  %8726 = vadd.xlane.f32.xlu0 %v8725
  %v8727 = vpop.xlane.xlu0 %8726
  %v8728 = vsel %vm6834, %v8495, 0.0
  %8729 = vadd.xlane.f32.xlu0 %v8728
  %v8730 = vpop.xlane.xlu0 %8729
  %v8731 = vsel %vm6834, %v8498, 0.0
  %8732 = vadd.xlane.f32.xlu0 %v8731
  %v8733 = vpop.xlane.xlu0 %8732
  %v8734 = vsel %vm6834, %v8503, 0.0
  %8735 = vadd.xlane.f32.xlu0 %v8734
  %v8736 = vpop.xlane.xlu0 %8735
  %v8737 = vsel %vm6834, %v8506, 0.0
  %8738 = vadd.xlane.f32.xlu0 %v8737
  %v8739 = vpop.xlane.xlu0 %8738
  %v8740 = vsel %vm6834, %v8511, 0.0
  %8741 = vadd.xlane.f32.xlu0 %v8740
  %v8742 = vpop.xlane.xlu0 %8741
  %v8743 = vsel %vm6834, %v8514, 0.0
  %8744 = vadd.xlane.f32.xlu0 %v8743
  %v8745 = vpop.xlane.xlu0 %8744
  %v8746 = vsel %vm6834, %v8519, 0.0
  %8747 = vadd.xlane.f32.xlu0 %v8746
  %v8748 = vpop.xlane.xlu0 %8747
  %v8749 = vsel %vm6834, %v8522, 0.0
  %8750 = vadd.xlane.f32.xlu0 %v8749
  %v8751 = vpop.xlane.xlu0 %8750
  %v8752 = vsel %vm6834, %v8527, 0.0
  %8753 = vadd.xlane.f32.xlu0 %v8752
  %v8754 = vpop.xlane.xlu0 %8753
  %v8755 = vsel %vm6834, %v8530, 0.0
  %8756 = vadd.xlane.f32.xlu0 %v8755
  %v8757 = vpop.xlane.xlu0 %8756
  %v8758 = vsel %vm6834, %v8535, 0.0
  %8759 = vadd.xlane.f32.xlu0 %v8758
  %v8760 = vpop.xlane.xlu0 %8759
  %v8761 = vsel %vm6834, %v8538, 0.0
  %8762 = vadd.xlane.f32.xlu0 %v8761
  %v8763 = vpop.xlane.xlu0 %8762
  %v8764 = vsel %vm6834, %v8543, 0.0
  %8765 = vadd.xlane.f32.xlu0 %v8764
  %v8766 = vpop.xlane.xlu0 %8765
  %v8767 = vsel %vm6834, %v8546, 0.0
  %8768 = vadd.xlane.f32.xlu0 %v8767
  %v8769 = vpop.xlane.xlu0 %8768
  %v8770 = vsel %vm6834, %v8551, 0.0
  %8771 = vadd.xlane.f32.xlu0 %v8770
  %v8772 = vpop.xlane.xlu0 %8771
  %v8773 = vsel %vm6834, %v8554, 0.0
  %8774 = vadd.xlane.f32.xlu0 %v8773
  %v8775 = vpop.xlane.xlu0 %8774
  %v8776 = vsel %vm6834, %v8559, 0.0
  %8777 = vadd.xlane.f32.xlu0 %v8776
  %v8778 = vpop.xlane.xlu0 %8777
  %v8779 = vsel %vm6834, %v8562, 0.0
  %8780 = vadd.xlane.f32.xlu0 %v8779
  %v8781 = vpop.xlane.xlu0 %8780
  %v8782 = vsel %vm6834, %v8567, 0.0
  %8783 = vadd.xlane.f32.xlu0 %v8782
  %v8784 = vpop.xlane.xlu0 %8783
  %v8785 = vsel %vm6834, %v8570, 0.0
  %8786 = vadd.xlane.f32.xlu0 %v8785
  %v8787 = vpop.xlane.xlu0 %8786
  %v8788 = vsel %vm6834, %v8575, 0.0
  %8789 = vadd.xlane.f32.xlu0 %v8788
  %v8790 = vpop.xlane.xlu0 %8789
  %v8791 = vsel %vm6834, %v8578, 0.0
  %8792 = vadd.xlane.f32.xlu0 %v8791
  %v8793 = vpop.xlane.xlu0 %8792
  %v8794 = vsel %vm6834, %v8583, 0.0
  %8795 = vadd.xlane.f32.xlu0 %v8794
  %v8796 = vpop.xlane.xlu0 %8795
  %v8797 = vsel %vm6834, %v8586, 0.0
  %8798 = vadd.xlane.f32.xlu0 %v8797
  %v8799 = vpop.xlane.xlu0 %8798
  %v8800 = vsel %vm6834, %v8591, 0.0
  %8801 = vadd.xlane.f32.xlu0 %v8800
  %v8802 = vpop.xlane.xlu0 %8801
  %v8803 = vsel %vm6834, %v8594, 0.0
  %8804 = vadd.xlane.f32.xlu0 %v8803
  %v8805 = vpop.xlane.xlu0 %8804
  %v8806 = vsel %vm6834, %v8599, 0.0
  %8807 = vadd.xlane.f32.xlu0 %v8806
  %v8808 = vpop.xlane.xlu0 %8807
  %v8809 = vsel %vm6834, %v8602, 0.0
  %8810 = vadd.xlane.f32.xlu0 %v8809
  %v8811 = vpop.xlane.xlu0 %8810
  %v8812 = vsel %vm6834, %v8607, 0.0
  %8813 = vadd.xlane.f32.xlu0 %v8812
  %v8814 = vpop.xlane.xlu0 %8813
  %v8815 = vsel %vm6834, %v8610, 0.0
  %8816 = vadd.xlane.f32.xlu0 %v8815
  %v8817 = vpop.xlane.xlu0 %8816
  %v8818 = vsel %vm6834, %v8615, 0.0
  %8819 = vadd.xlane.f32.xlu0 %v8818
  %v8820 = vpop.xlane.xlu0 %8819
  %v8821 = vsel %vm6834, %v8618, 0.0
  %8822 = vadd.xlane.f32.xlu0 %v8821
  %v8823 = vpop.xlane.xlu0 %8822
  %v8824 = vsel %vm6834, %v8623, 0.0
  %8825 = vadd.xlane.f32.xlu0 %v8824
  %v8826 = vpop.xlane.xlu0 %8825
  %v8827 = vsel %vm6834, %v8626, 0.0
  %8828 = vadd.xlane.f32.xlu0 %v8827
  %v8829 = vpop.xlane.xlu0 %8828
  %v8830 = vsel %vm6834, %v8631, 0.0
  %8831 = vadd.xlane.f32.xlu0 %v8830
  %v8832 = vpop.xlane.xlu0 %8831
  %v8833 = vsel %vm6834, %v8634, 0.0
  %8834 = vadd.xlane.f32.xlu0 %v8833
  %v8835 = vpop.xlane.xlu0 %8834
  %v8836 = vsel %vm6834, %v8639, 0.0
  %8837 = vadd.xlane.f32.xlu0 %v8836
  %v8838 = vpop.xlane.xlu0 %8837
  %v8839 = vsel %vm6834, %v8642, 0.0
  %8840 = vadd.xlane.f32.xlu0 %v8839
  %v8841 = vpop.xlane.xlu0 %8840
  %v8842 = vsel %vm6834, %v8647, 0.0
  %8843 = vadd.xlane.f32.xlu0 %v8842
  %v8844 = vpop.xlane.xlu0 %8843
  %v8845 = vsel %vm6834, %v8650, 0.0
  %8846 = vadd.xlane.f32.xlu0 %v8845
  %v8847 = vpop.xlane.xlu0 %8846
  %v8848 = vsel %vm6834, %v8655, 0.0
  %8849 = vadd.xlane.f32.xlu0 %v8848
  %v8850 = vpop.xlane.xlu0 %8849
  %v8851 = vsel %vm6834, %v8658, 0.0
  %8852 = vadd.xlane.f32.xlu0 %v8851
  %v8853 = vpop.xlane.xlu0 %8852
  %v8854 = vsel %vm6834, %v8663, 0.0
  %8855 = vadd.xlane.f32.xlu0 %v8854
  %v8856 = vpop.xlane.xlu0 %8855
  %v8857 = vmul.f32 %v8670, %v7408
  %v8858 = vmul.f32 %v8673, %v7408
  %v8859 = vmul.f32 %v8676, %v7408
  %v8860 = vmul.f32 %v8679, %v7408
  %v8861 = vmul.f32 %v8682, %v7408
  %v8862 = vmul.f32 %v8685, %v7408
  %v8863 = vmul.f32 %v8688, %v7408
  %v8864 = vmul.f32 %v8691, %v7408
  %v8865 = vmul.f32 %v8694, %v7408
  %v8866 = vmul.f32 %v8697, %v7408
  %v8867 = vmul.f32 %v8700, %v7408
  %v8868 = vmul.f32 %v8703, %v7408
  %v8869 = vmul.f32 %v8706, %v7408
  %v8870 = vmul.f32 %v8709, %v7408
  %v8871 = vmul.f32 %v8712, %v7408
  %v8872 = vmul.f32 %v8715, %v7408
  %v8873 = vmul.f32 %v8718, %v7408
  %v8874 = vmul.f32 %v8721, %v7408
  %v8875 = vmul.f32 %v8724, %v7408
  %v8876 = vmul.f32 %v8727, %v7408
  %v8877 = vmul.f32 %v8730, %v7408
  %v8878 = vmul.f32 %v8733, %v7408
  %v8879 = vmul.f32 %v8736, %v7408
  %v8880 = vmul.f32 %v8739, %v7408
  %v8881 = vmul.f32 %v8742, %v7408
  %v8882 = vmul.f32 %v8745, %v7408
  %v8883 = vmul.f32 %v8748, %v7408
  %v8884 = vmul.f32 %v8751, %v7408
  %v8885 = vmul.f32 %v8754, %v7408
  %v8886 = vmul.f32 %v8757, %v7408
  %v8887 = vmul.f32 %v8760, %v7408
  %v8888 = vmul.f32 %v8763, %v7408
  %v8889 = vmul.f32 %v8766, %v7408
  %v8890 = vmul.f32 %v8769, %v7408
  %v8891 = vmul.f32 %v8772, %v7408
  %v8892 = vmul.f32 %v8775, %v7408
  %v8893 = vmul.f32 %v8778, %v7408
  %v8894 = vmul.f32 %v8781, %v7408
  %v8895 = vmul.f32 %v8784, %v7408
  %v8896 = vmul.f32 %v8787, %v7408
  %v8897 = vmul.f32 %v8790, %v7408
  %v8898 = vmul.f32 %v8793, %v7408
  %v8899 = vmul.f32 %v8796, %v7408
  %v8900 = vmul.f32 %v8799, %v7408
  %v8901 = vmul.f32 %v8802, %v7408
  %v8902 = vmul.f32 %v8805, %v7408
  %v8903 = vmul.f32 %v8808, %v7408
  %v8904 = vmul.f32 %v8811, %v7408
  %v8905 = vmul.f32 %v8814, %v7408
  %v8906 = vmul.f32 %v8817, %v7408
  %v8907 = vmul.f32 %v8820, %v7408
  %v8908 = vmul.f32 %v8823, %v7408
  %v8909 = vmul.f32 %v8826, %v7408
  %v8910 = vmul.f32 %v8829, %v7408
  %v8911 = vmul.f32 %v8832, %v7408
  %v8912 = vmul.f32 %v8835, %v7408
  %v8913 = vmul.f32 %v8838, %v7408
  %v8914 = vmul.f32 %v8841, %v7408
  %v8915 = vmul.f32 %v8844, %v7408
  %v8916 = vmul.f32 %v8847, %v7408
  %v8917 = vmul.f32 %v8850, %v7408
  %v8918 = vmul.f32 %v8853, %v7408
  %v8919 = vmul.f32 %v8856, %v7408
  %v8920 = vsub.f32 %v8415, %v8857
  %v8921 = vsub.f32 %v8418, %v8858
  %v8922 = vsub.f32 %v8423, %v8859
  %v8923 = vsub.f32 %v8426, %v8860
  %v8924 = vsub.f32 %v8431, %v8861
  %v8925 = vsub.f32 %v8434, %v8862
  %v8926 = vsub.f32 %v8439, %v8863
  %v8927 = vsub.f32 %v8442, %v8864
  %v8928 = vsub.f32 %v8447, %v8865
  %v8929 = vsub.f32 %v8450, %v8866
  %v8930 = vsub.f32 %v8455, %v8867
  %v8931 = vsub.f32 %v8458, %v8868
  %v8932 = vsub.f32 %v8463, %v8869
  %v8933 = vsub.f32 %v8466, %v8870
  %v8934 = vsub.f32 %v8471, %v8871
  %v8935 = vsub.f32 %v8474, %v8872
  %v8936 = vsub.f32 %v8479, %v8873
  %v8937 = vsub.f32 %v8482, %v8874
  %v8938 = vsub.f32 %v8487, %v8875
  %v8939 = vsub.f32 %v8490, %v8876
  %v8940 = vsub.f32 %v8495, %v8877
  %v8941 = vsub.f32 %v8498, %v8878
  %v8942 = vsub.f32 %v8503, %v8879
  %v8943 = vsub.f32 %v8506, %v8880
  %v8944 = vsub.f32 %v8511, %v8881
  %v8945 = vsub.f32 %v8514, %v8882
  %v8946 = vsub.f32 %v8519, %v8883
  %v8947 = vsub.f32 %v8522, %v8884
  %v8948 = vsub.f32 %v8527, %v8885
  %v8949 = vsub.f32 %v8530, %v8886
  %v8950 = vsub.f32 %v8535, %v8887
  %v8951 = vsub.f32 %v8538, %v8888
  %v8952 = vsub.f32 %v8543, %v8889
  %v8953 = vsub.f32 %v8546, %v8890
  %v8954 = vsub.f32 %v8551, %v8891
  %v8955 = vsub.f32 %v8554, %v8892
  %v8956 = vsub.f32 %v8559, %v8893
  %v8957 = vsub.f32 %v8562, %v8894
  %v8958 = vsub.f32 %v8567, %v8895
  %v8959 = vsub.f32 %v8570, %v8896
  %v8960 = vsub.f32 %v8575, %v8897
  %v8961 = vsub.f32 %v8578, %v8898
  %v8962 = vsub.f32 %v8583, %v8899
  %v8963 = vsub.f32 %v8586, %v8900
  %v8964 = vsub.f32 %v8591, %v8901
  %v8965 = vsub.f32 %v8594, %v8902
  %v8966 = vsub.f32 %v8599, %v8903
  %v8967 = vsub.f32 %v8602, %v8904
  %v8968 = vsub.f32 %v8607, %v8905
  %v8969 = vsub.f32 %v8610, %v8906
  %v8970 = vsub.f32 %v8615, %v8907
  %v8971 = vsub.f32 %v8618, %v8908
  %v8972 = vsub.f32 %v8623, %v8909
  %v8973 = vsub.f32 %v8626, %v8910
  %v8974 = vsub.f32 %v8631, %v8911
  %v8975 = vsub.f32 %v8634, %v8912
  %v8976 = vsub.f32 %v8639, %v8913
  %v8977 = vsub.f32 %v8642, %v8914
  %v8978 = vsub.f32 %v8647, %v8915
  %v8979 = vsub.f32 %v8650, %v8916
  %v8980 = vsub.f32 %v8655, %v8917
  %v8981 = vsub.f32 %v8658, %v8918
  %v8982 = vsub.f32 %v8663, %v8919
  %v8983 = vmul.f32 %v8920, %v8920
  %v8984 = vmul.f32 %v8921, %v8921
  %v8985 = vmul.f32 %v8922, %v8922
  %v8986 = vmul.f32 %v8923, %v8923
  %v8987 = vmul.f32 %v8924, %v8924
  %v8988 = vmul.f32 %v8925, %v8925
  %v8989 = vmul.f32 %v8926, %v8926
  %v8990 = vmul.f32 %v8927, %v8927
  %v8991 = vmul.f32 %v8928, %v8928
  %v8992 = vmul.f32 %v8929, %v8929
  %v8993 = vmul.f32 %v8930, %v8930
  %v8994 = vmul.f32 %v8931, %v8931
  %v8995 = vmul.f32 %v8932, %v8932
  %v8996 = vmul.f32 %v8933, %v8933
  %v8997 = vmul.f32 %v8934, %v8934
  %v8998 = vmul.f32 %v8935, %v8935
  %v8999 = vmul.f32 %v8936, %v8936
  %v9000 = vmul.f32 %v8937, %v8937
  %v9001 = vmul.f32 %v8938, %v8938
  %v9002 = vmul.f32 %v8939, %v8939
  %v9003 = vmul.f32 %v8940, %v8940
  %v9004 = vmul.f32 %v8941, %v8941
  %v9005 = vmul.f32 %v8942, %v8942
  %v9006 = vmul.f32 %v8943, %v8943
  %v9007 = vmul.f32 %v8944, %v8944
  %v9008 = vmul.f32 %v8945, %v8945
  %v9009 = vmul.f32 %v8946, %v8946
  %v9010 = vmul.f32 %v8947, %v8947
  %v9011 = vmul.f32 %v8948, %v8948
  %v9012 = vmul.f32 %v8949, %v8949
  %v9013 = vmul.f32 %v8950, %v8950
  %v9014 = vmul.f32 %v8951, %v8951
  %v9015 = vmul.f32 %v8952, %v8952
  %v9016 = vmul.f32 %v8953, %v8953
  %v9017 = vmul.f32 %v8954, %v8954
  %v9018 = vmul.f32 %v8955, %v8955
  %v9019 = vmul.f32 %v8956, %v8956
  %v9020 = vmul.f32 %v8957, %v8957
  %v9021 = vmul.f32 %v8958, %v8958
  %v9022 = vmul.f32 %v8959, %v8959
  %v9023 = vmul.f32 %v8960, %v8960
  %v9024 = vmul.f32 %v8961, %v8961
  %v9025 = vmul.f32 %v8962, %v8962
  %v9026 = vmul.f32 %v8963, %v8963
  %v9027 = vmul.f32 %v8964, %v8964
  %v9028 = vmul.f32 %v8965, %v8965
  %v9029 = vmul.f32 %v8966, %v8966
  %v9030 = vmul.f32 %v8967, %v8967
  %v9031 = vmul.f32 %v8968, %v8968
  %v9032 = vmul.f32 %v8969, %v8969
  %v9033 = vmul.f32 %v8970, %v8970
  %v9034 = vmul.f32 %v8971, %v8971
  %v9035 = vmul.f32 %v8972, %v8972
  %v9036 = vmul.f32 %v8973, %v8973
  %v9037 = vmul.f32 %v8974, %v8974
  %v9038 = vmul.f32 %v8975, %v8975
  %v9039 = vmul.f32 %v8976, %v8976
  %v9040 = vmul.f32 %v8977, %v8977
  %v9041 = vmul.f32 %v8978, %v8978
  %v9042 = vmul.f32 %v8979, %v8979
  %v9043 = vmul.f32 %v8980, %v8980
  %v9044 = vmul.f32 %v8981, %v8981
  %v9045 = vmul.f32 %v8982, %v8982
  %v9046 = vsel %vm6834, %v8983, 0.0
  %9047 = vadd.xlane.f32.xlu0 %v9046
  %v9048 = vpop.xlane.xlu0 %9047
  %v9049 = vsel %vm6834, %v8984, 0.0
  %9050 = vadd.xlane.f32.xlu0 %v9049
  %v9051 = vpop.xlane.xlu0 %9050
  %v9052 = vsel %vm6834, %v8985, 0.0
  %9053 = vadd.xlane.f32.xlu0 %v9052
  %v9054 = vpop.xlane.xlu0 %9053
  %v9055 = vsel %vm6834, %v8986, 0.0
  %9056 = vadd.xlane.f32.xlu0 %v9055
  %v9057 = vpop.xlane.xlu0 %9056
  %v9058 = vsel %vm6834, %v8987, 0.0
  %9059 = vadd.xlane.f32.xlu0 %v9058
  %v9060 = vpop.xlane.xlu0 %9059
  %v9061 = vsel %vm6834, %v8988, 0.0
  %9062 = vadd.xlane.f32.xlu0 %v9061
  %v9063 = vpop.xlane.xlu0 %9062
  %v9064 = vsel %vm6834, %v8989, 0.0
  %9065 = vadd.xlane.f32.xlu0 %v9064
  %v9066 = vpop.xlane.xlu0 %9065
  %v9067 = vsel %vm6834, %v8990, 0.0
  %9068 = vadd.xlane.f32.xlu0 %v9067
  %v9069 = vpop.xlane.xlu0 %9068
  %v9070 = vsel %vm6834, %v8991, 0.0
  %9071 = vadd.xlane.f32.xlu0 %v9070
  %v9072 = vpop.xlane.xlu0 %9071
  %v9073 = vsel %vm6834, %v8992, 0.0
  %9074 = vadd.xlane.f32.xlu0 %v9073
  %v9075 = vpop.xlane.xlu0 %9074
  %v9076 = vsel %vm6834, %v8993, 0.0
  %9077 = vadd.xlane.f32.xlu0 %v9076
  %v9078 = vpop.xlane.xlu0 %9077
  %v9079 = vsel %vm6834, %v8994, 0.0
  %9080 = vadd.xlane.f32.xlu0 %v9079
  %v9081 = vpop.xlane.xlu0 %9080
  %v9082 = vsel %vm6834, %v8995, 0.0
  %9083 = vadd.xlane.f32.xlu0 %v9082
  %v9084 = vpop.xlane.xlu0 %9083
  %v9085 = vsel %vm6834, %v8996, 0.0
  %9086 = vadd.xlane.f32.xlu0 %v9085
  %v9087 = vpop.xlane.xlu0 %9086
  %v9088 = vsel %vm6834, %v8997, 0.0
  %9089 = vadd.xlane.f32.xlu0 %v9088
  %v9090 = vpop.xlane.xlu0 %9089
  %v9091 = vsel %vm6834, %v8998, 0.0
  %9092 = vadd.xlane.f32.xlu0 %v9091
  %v9093 = vpop.xlane.xlu0 %9092
  %v9094 = vsel %vm6834, %v8999, 0.0
  %9095 = vadd.xlane.f32.xlu0 %v9094
  %v9096 = vpop.xlane.xlu0 %9095
  %v9097 = vsel %vm6834, %v9000, 0.0
  %9098 = vadd.xlane.f32.xlu0 %v9097
  %v9099 = vpop.xlane.xlu0 %9098
  %v9100 = vsel %vm6834, %v9001, 0.0
  %9101 = vadd.xlane.f32.xlu0 %v9100
  %v9102 = vpop.xlane.xlu0 %9101
  %v9103 = vsel %vm6834, %v9002, 0.0
  %9104 = vadd.xlane.f32.xlu0 %v9103
  %v9105 = vpop.xlane.xlu0 %9104
  %v9106 = vsel %vm6834, %v9003, 0.0
  %9107 = vadd.xlane.f32.xlu0 %v9106
  %v9108 = vpop.xlane.xlu0 %9107
  %v9109 = vsel %vm6834, %v9004, 0.0
  %9110 = vadd.xlane.f32.xlu0 %v9109
  %v9111 = vpop.xlane.xlu0 %9110
  %v9112 = vsel %vm6834, %v9005, 0.0
  %9113 = vadd.xlane.f32.xlu0 %v9112
  %v9114 = vpop.xlane.xlu0 %9113
  %v9115 = vsel %vm6834, %v9006, 0.0
  %9116 = vadd.xlane.f32.xlu0 %v9115
  %v9117 = vpop.xlane.xlu0 %9116
  %v9118 = vsel %vm6834, %v9007, 0.0
  %9119 = vadd.xlane.f32.xlu0 %v9118
  %v9120 = vpop.xlane.xlu0 %9119
  %v9121 = vsel %vm6834, %v9008, 0.0
  %9122 = vadd.xlane.f32.xlu0 %v9121
  %v9123 = vpop.xlane.xlu0 %9122
  %v9124 = vsel %vm6834, %v9009, 0.0
  %9125 = vadd.xlane.f32.xlu0 %v9124
  %v9126 = vpop.xlane.xlu0 %9125
  %v9127 = vsel %vm6834, %v9010, 0.0
  %9128 = vadd.xlane.f32.xlu0 %v9127
  %v9129 = vpop.xlane.xlu0 %9128
  %v9130 = vsel %vm6834, %v9011, 0.0
  %9131 = vadd.xlane.f32.xlu0 %v9130
  %v9132 = vpop.xlane.xlu0 %9131
  %v9133 = vsel %vm6834, %v9012, 0.0
  %9134 = vadd.xlane.f32.xlu0 %v9133
  %v9135 = vpop.xlane.xlu0 %9134
  %v9136 = vsel %vm6834, %v9013, 0.0
  %9137 = vadd.xlane.f32.xlu0 %v9136
  %v9138 = vpop.xlane.xlu0 %9137
  %v9139 = vsel %vm6834, %v9014, 0.0
  %9140 = vadd.xlane.f32.xlu0 %v9139
  %v9141 = vpop.xlane.xlu0 %9140
  %v9142 = vsel %vm6834, %v9015, 0.0
  %9143 = vadd.xlane.f32.xlu0 %v9142
  %v9144 = vpop.xlane.xlu0 %9143
  %v9145 = vsel %vm6834, %v9016, 0.0
  %9146 = vadd.xlane.f32.xlu0 %v9145
  %v9147 = vpop.xlane.xlu0 %9146
  %v9148 = vsel %vm6834, %v9017, 0.0
  %9149 = vadd.xlane.f32.xlu0 %v9148
  %v9150 = vpop.xlane.xlu0 %9149
  %v9151 = vsel %vm6834, %v9018, 0.0
  %9152 = vadd.xlane.f32.xlu0 %v9151
  %v9153 = vpop.xlane.xlu0 %9152
  %v9154 = vsel %vm6834, %v9019, 0.0
  %9155 = vadd.xlane.f32.xlu0 %v9154
  %v9156 = vpop.xlane.xlu0 %9155
  %v9157 = vsel %vm6834, %v9020, 0.0
  %9158 = vadd.xlane.f32.xlu0 %v9157
  %v9159 = vpop.xlane.xlu0 %9158
  %v9160 = vsel %vm6834, %v9021, 0.0
  %9161 = vadd.xlane.f32.xlu0 %v9160
  %v9162 = vpop.xlane.xlu0 %9161
  %v9163 = vsel %vm6834, %v9022, 0.0
  %9164 = vadd.xlane.f32.xlu0 %v9163
  %v9165 = vpop.xlane.xlu0 %9164
  %v9166 = vsel %vm6834, %v9023, 0.0
  %9167 = vadd.xlane.f32.xlu0 %v9166
  %v9168 = vpop.xlane.xlu0 %9167
  %v9169 = vsel %vm6834, %v9024, 0.0
  %9170 = vadd.xlane.f32.xlu0 %v9169
  %v9171 = vpop.xlane.xlu0 %9170
  %v9172 = vsel %vm6834, %v9025, 0.0
  %9173 = vadd.xlane.f32.xlu0 %v9172
  %v9174 = vpop.xlane.xlu0 %9173
  %v9175 = vsel %vm6834, %v9026, 0.0
  %9176 = vadd.xlane.f32.xlu0 %v9175
  %v9177 = vpop.xlane.xlu0 %9176
  %v9178 = vsel %vm6834, %v9027, 0.0
  %9179 = vadd.xlane.f32.xlu0 %v9178
  %v9180 = vpop.xlane.xlu0 %9179
  %v9181 = vsel %vm6834, %v9028, 0.0
  %9182 = vadd.xlane.f32.xlu0 %v9181
  %v9183 = vpop.xlane.xlu0 %9182
  %v9184 = vsel %vm6834, %v9029, 0.0
  %9185 = vadd.xlane.f32.xlu0 %v9184
  %v9186 = vpop.xlane.xlu0 %9185
  %v9187 = vsel %vm6834, %v9030, 0.0
  %9188 = vadd.xlane.f32.xlu0 %v9187
  %v9189 = vpop.xlane.xlu0 %9188
  %v9190 = vsel %vm6834, %v9031, 0.0
  %9191 = vadd.xlane.f32.xlu0 %v9190
  %v9192 = vpop.xlane.xlu0 %9191
  %v9193 = vsel %vm6834, %v9032, 0.0
  %9194 = vadd.xlane.f32.xlu0 %v9193
  %v9195 = vpop.xlane.xlu0 %9194
  %v9196 = vsel %vm6834, %v9033, 0.0
  %9197 = vadd.xlane.f32.xlu0 %v9196
  %v9198 = vpop.xlane.xlu0 %9197
  %v9199 = vsel %vm6834, %v9034, 0.0
  %9200 = vadd.xlane.f32.xlu0 %v9199
  %v9201 = vpop.xlane.xlu0 %9200
  %v9202 = vsel %vm6834, %v9035, 0.0
  %9203 = vadd.xlane.f32.xlu0 %v9202
  %v9204 = vpop.xlane.xlu0 %9203
  %v9205 = vsel %vm6834, %v9036, 0.0
  %9206 = vadd.xlane.f32.xlu0 %v9205
  %v9207 = vpop.xlane.xlu0 %9206
  %v9208 = vsel %vm6834, %v9037, 0.0
  %9209 = vadd.xlane.f32.xlu0 %v9208
  %v9210 = vpop.xlane.xlu0 %9209
  %v9211 = vsel %vm6834, %v9038, 0.0
  %9212 = vadd.xlane.f32.xlu0 %v9211
  %v9213 = vpop.xlane.xlu0 %9212
  %v9214 = vsel %vm6834, %v9039, 0.0
  %9215 = vadd.xlane.f32.xlu0 %v9214
  %v9216 = vpop.xlane.xlu0 %9215
  %v9217 = vsel %vm6834, %v9040, 0.0
  %9218 = vadd.xlane.f32.xlu0 %v9217
  %v9219 = vpop.xlane.xlu0 %9218
  %v9220 = vsel %vm6834, %v9041, 0.0
  %9221 = vadd.xlane.f32.xlu0 %v9220
  %v9222 = vpop.xlane.xlu0 %9221
  %v9223 = vsel %vm6834, %v9042, 0.0
  %9224 = vadd.xlane.f32.xlu0 %v9223
  %v9225 = vpop.xlane.xlu0 %9224
  %v9226 = vsel %vm6834, %v9043, 0.0
  %9227 = vadd.xlane.f32.xlu0 %v9226
  %v9228 = vpop.xlane.xlu0 %9227
  %v9229 = vsel %vm6834, %v9044, 0.0
  %9230 = vadd.xlane.f32.xlu0 %v9229
  %v9231 = vpop.xlane.xlu0 %9230
  %v9232 = vsel %vm6834, %v9045, 0.0
  %9233 = vadd.xlane.f32.xlu0 %v9232
  %v9234 = vpop.xlane.xlu0 %9233
  %v9235 = vmul.f32 %v9048, %v7408
  %v9236 = vmul.f32 %v9051, %v7408
  %v9237 = vmul.f32 %v9054, %v7408
  %v9238 = vmul.f32 %v9057, %v7408
  %v9239 = vmul.f32 %v9060, %v7408
  %v9240 = vmul.f32 %v9063, %v7408
  %v9241 = vmul.f32 %v9066, %v7408
  %v9242 = vmul.f32 %v9069, %v7408
  %v9243 = vmul.f32 %v9072, %v7408
  %v9244 = vmul.f32 %v9075, %v7408
  %v9245 = vmul.f32 %v9078, %v7408
  %v9246 = vmul.f32 %v9081, %v7408
  %v9247 = vmul.f32 %v9084, %v7408
  %v9248 = vmul.f32 %v9087, %v7408
  %v9249 = vmul.f32 %v9090, %v7408
  %v9250 = vmul.f32 %v9093, %v7408
  %v9251 = vmul.f32 %v9096, %v7408
  %v9252 = vmul.f32 %v9099, %v7408
  %v9253 = vmul.f32 %v9102, %v7408
  %v9254 = vmul.f32 %v9105, %v7408
  %v9255 = vmul.f32 %v9108, %v7408
  %v9256 = vmul.f32 %v9111, %v7408
  %v9257 = vmul.f32 %v9114, %v7408
  %v9258 = vmul.f32 %v9117, %v7408
  %v9259 = vmul.f32 %v9120, %v7408
  %v9260 = vmul.f32 %v9123, %v7408
  %v9261 = vmul.f32 %v9126, %v7408
  %v9262 = vmul.f32 %v9129, %v7408
  %v9263 = vmul.f32 %v9132, %v7408
  %v9264 = vmul.f32 %v9135, %v7408
  %v9265 = vmul.f32 %v9138, %v7408
  %v9266 = vmul.f32 %v9141, %v7408
  %v9267 = vmul.f32 %v9144, %v7408
  %v9268 = vmul.f32 %v9147, %v7408
  %v9269 = vmul.f32 %v9150, %v7408
  %v9270 = vmul.f32 %v9153, %v7408
  %v9271 = vmul.f32 %v9156, %v7408
  %v9272 = vmul.f32 %v9159, %v7408
  %v9273 = vmul.f32 %v9162, %v7408
  %v9274 = vmul.f32 %v9165, %v7408
  %v9275 = vmul.f32 %v9168, %v7408
  %v9276 = vmul.f32 %v9171, %v7408
  %v9277 = vmul.f32 %v9174, %v7408
  %v9278 = vmul.f32 %v9177, %v7408
  %v9279 = vmul.f32 %v9180, %v7408
  %v9280 = vmul.f32 %v9183, %v7408
  %v9281 = vmul.f32 %v9186, %v7408
  %v9282 = vmul.f32 %v9189, %v7408
  %v9283 = vmul.f32 %v9192, %v7408
  %v9284 = vmul.f32 %v9195, %v7408
  %v9285 = vmul.f32 %v9198, %v7408
  %v9286 = vmul.f32 %v9201, %v7408
  %v9287 = vmul.f32 %v9204, %v7408
  %v9288 = vmul.f32 %v9207, %v7408
  %v9289 = vmul.f32 %v9210, %v7408
  %v9290 = vmul.f32 %v9213, %v7408
  %v9291 = vmul.f32 %v9216, %v7408
  %v9292 = vmul.f32 %v9219, %v7408
  %v9293 = vmul.f32 %v9222, %v7408
  %v9294 = vmul.f32 %v9225, %v7408
  %v9295 = vmul.f32 %v9228, %v7408
  %v9296 = vmul.f32 %v9231, %v7408
  %v9297 = vmul.f32 %v9234, %v7408
  %v9298 = vadd.f32 %v9235, 1e-05
  %v9299 = vadd.f32 %v9236, 1e-05
  %v9300 = vadd.f32 %v9237, 1e-05
  %v9301 = vadd.f32 %v9238, 1e-05
  %v9302 = vadd.f32 %v9239, 1e-05
  %v9303 = vadd.f32 %v9240, 1e-05
  %v9304 = vadd.f32 %v9241, 1e-05
  %v9305 = vadd.f32 %v9242, 1e-05
  %v9306 = vadd.f32 %v9243, 1e-05
  %v9307 = vadd.f32 %v9244, 1e-05
  %v9308 = vadd.f32 %v9245, 1e-05
  %v9309 = vadd.f32 %v9246, 1e-05
  %v9310 = vadd.f32 %v9247, 1e-05
  %v9311 = vadd.f32 %v9248, 1e-05
  %v9312 = vadd.f32 %v9249, 1e-05
  %v9313 = vadd.f32 %v9250, 1e-05
  %v9314 = vadd.f32 %v9251, 1e-05
  %v9315 = vadd.f32 %v9252, 1e-05
  %v9316 = vadd.f32 %v9253, 1e-05
  %v9317 = vadd.f32 %v9254, 1e-05
  %v9318 = vadd.f32 %v9255, 1e-05
  %v9319 = vadd.f32 %v9256, 1e-05
  %v9320 = vadd.f32 %v9257, 1e-05
  %v9321 = vadd.f32 %v9258, 1e-05
  %v9322 = vadd.f32 %v9259, 1e-05
  %v9323 = vadd.f32 %v9260, 1e-05
  %v9324 = vadd.f32 %v9261, 1e-05
  %v9325 = vadd.f32 %v9262, 1e-05
  %v9326 = vadd.f32 %v9263, 1e-05
  %v9327 = vadd.f32 %v9264, 1e-05
  %v9328 = vadd.f32 %v9265, 1e-05
  %v9329 = vadd.f32 %v9266, 1e-05
  %v9330 = vadd.f32 %v9267, 1e-05
  %v9331 = vadd.f32 %v9268, 1e-05
  %v9332 = vadd.f32 %v9269, 1e-05
  %v9333 = vadd.f32 %v9270, 1e-05
  %v9334 = vadd.f32 %v9271, 1e-05
  %v9335 = vadd.f32 %v9272, 1e-05
  %v9336 = vadd.f32 %v9273, 1e-05
  %v9337 = vadd.f32 %v9274, 1e-05
  %v9338 = vadd.f32 %v9275, 1e-05
  %v9339 = vadd.f32 %v9276, 1e-05
  %v9340 = vadd.f32 %v9277, 1e-05
  %v9341 = vadd.f32 %v9278, 1e-05
  %v9342 = vadd.f32 %v9279, 1e-05
  %v9343 = vadd.f32 %v9280, 1e-05
  %v9344 = vadd.f32 %v9281, 1e-05
  %v9345 = vadd.f32 %v9282, 1e-05
  %v9346 = vadd.f32 %v9283, 1e-05
  %v9347 = vadd.f32 %v9284, 1e-05
  %v9348 = vadd.f32 %v9285, 1e-05
  %v9349 = vadd.f32 %v9286, 1e-05
  %v9350 = vadd.f32 %v9287, 1e-05
  %v9351 = vadd.f32 %v9288, 1e-05
  %v9352 = vadd.f32 %v9289, 1e-05
  %v9353 = vadd.f32 %v9290, 1e-05
  %v9354 = vadd.f32 %v9291, 1e-05
  %v9355 = vadd.f32 %v9292, 1e-05
  %v9356 = vadd.f32 %v9293, 1e-05
  %v9357 = vadd.f32 %v9294, 1e-05
  %v9358 = vadd.f32 %v9295, 1e-05
  %v9359 = vadd.f32 %v9296, 1e-05
  %v9360 = vadd.f32 %v9297, 1e-05
  %v9361 = vrsqrt.pop %v9298
  %v9362 = vrsqrt.pop %v9299
  %v9363 = vrsqrt.pop %v9300
  %v9364 = vrsqrt.pop %v9301
  %v9365 = vrsqrt.pop %v9302
  %v9366 = vrsqrt.pop %v9303
  %v9367 = vrsqrt.pop %v9304
  %v9368 = vrsqrt.pop %v9305
  %v9369 = vrsqrt.pop %v9306
  %v9370 = vrsqrt.pop %v9307
  %v9371 = vrsqrt.pop %v9308
  %v9372 = vrsqrt.pop %v9309
  %v9373 = vrsqrt.pop %v9310
  %v9374 = vrsqrt.pop %v9311
  %v9375 = vrsqrt.pop %v9312
  %v9376 = vrsqrt.pop %v9313
  %v9377 = vrsqrt.pop %v9314
  %v9378 = vrsqrt.pop %v9315
  %v9379 = vrsqrt.pop %v9316
  %v9380 = vrsqrt.pop %v9317
  %v9381 = vrsqrt.pop %v9318
  %v9382 = vrsqrt.pop %v9319
  %v9383 = vrsqrt.pop %v9320
  %v9384 = vrsqrt.pop %v9321
  %v9385 = vrsqrt.pop %v9322
  %v9386 = vrsqrt.pop %v9323
  %v9387 = vrsqrt.pop %v9324
  %v9388 = vrsqrt.pop %v9325
  %v9389 = vrsqrt.pop %v9326
  %v9390 = vrsqrt.pop %v9327
  %v9391 = vrsqrt.pop %v9328
  %v9392 = vrsqrt.pop %v9329
  %v9393 = vrsqrt.pop %v9330
  %v9394 = vrsqrt.pop %v9331
  %v9395 = vrsqrt.pop %v9332
  %v9396 = vrsqrt.pop %v9333
  %v9397 = vrsqrt.pop %v9334
  %v9398 = vrsqrt.pop %v9335
  %v9399 = vrsqrt.pop %v9336
  %v9400 = vrsqrt.pop %v9337
  %v9401 = vrsqrt.pop %v9338
  %v9402 = vrsqrt.pop %v9339
  %v9403 = vrsqrt.pop %v9340
  %v9404 = vrsqrt.pop %v9341
  %v9405 = vrsqrt.pop %v9342
  %v9406 = vrsqrt.pop %v9343
  %v9407 = vrsqrt.pop %v9344
  %v9408 = vrsqrt.pop %v9345
  %v9409 = vrsqrt.pop %v9346
  %v9410 = vrsqrt.pop %v9347
  %v9411 = vrsqrt.pop %v9348
  %v9412 = vrsqrt.pop %v9349
  %v9413 = vrsqrt.pop %v9350
  %v9414 = vrsqrt.pop %v9351
  %v9415 = vrsqrt.pop %v9352
  %v9416 = vrsqrt.pop %v9353
  %v9417 = vrsqrt.pop %v9354
  %v9418 = vrsqrt.pop %v9355
  %v9419 = vrsqrt.pop %v9356
  %v9420 = vrsqrt.pop %v9357
  %v9421 = vrsqrt.pop %v9358
  %v9422 = vrsqrt.pop %v9359
  %v9423 = vrsqrt.pop %v9360
  %v9424 = vmul.f32 %v8920, %v9361
  %v9425 = vmul.f32 %v8921, %v9362
  %v9426 = vmul.f32 %v8922, %v9363
  %v9427 = vmul.f32 %v8923, %v9364
  %v9428 = vmul.f32 %v8924, %v9365
  %v9429 = vmul.f32 %v8925, %v9366
  %v9430 = vmul.f32 %v8926, %v9367
  %v9431 = vmul.f32 %v8927, %v9368
  %v9432 = vmul.f32 %v8928, %v9369
  %v9433 = vmul.f32 %v8929, %v9370
  %v9434 = vmul.f32 %v8930, %v9371
  %v9435 = vmul.f32 %v8931, %v9372
  %v9436 = vmul.f32 %v8932, %v9373
  %v9437 = vmul.f32 %v8933, %v9374
  %v9438 = vmul.f32 %v8934, %v9375
  %v9439 = vmul.f32 %v8935, %v9376
  %v9440 = vmul.f32 %v8936, %v9377
  %v9441 = vmul.f32 %v8937, %v9378
  %v9442 = vmul.f32 %v8938, %v9379
  %v9443 = vmul.f32 %v8939, %v9380
  %v9444 = vmul.f32 %v8940, %v9381
  %v9445 = vmul.f32 %v8941, %v9382
  %v9446 = vmul.f32 %v8942, %v9383
  %v9447 = vmul.f32 %v8943, %v9384
  %v9448 = vmul.f32 %v8944, %v9385
  %v9449 = vmul.f32 %v8945, %v9386
  %v9450 = vmul.f32 %v8946, %v9387
  %v9451 = vmul.f32 %v8947, %v9388
  %v9452 = vmul.f32 %v8948, %v9389
  %v9453 = vmul.f32 %v8949, %v9390
  %v9454 = vmul.f32 %v8950, %v9391
  %v9455 = vmul.f32 %v8951, %v9392
  %v9456 = vmul.f32 %v8952, %v9393
  %v9457 = vmul.f32 %v8953, %v9394
  %v9458 = vmul.f32 %v8954, %v9395
  %v9459 = vmul.f32 %v8955, %v9396
  %v9460 = vmul.f32 %v8956, %v9397
  %v9461 = vmul.f32 %v8957, %v9398
  %v9462 = vmul.f32 %v8958, %v9399
  %v9463 = vmul.f32 %v8959, %v9400
  %v9464 = vmul.f32 %v8960, %v9401
  %v9465 = vmul.f32 %v8961, %v9402
  %v9466 = vmul.f32 %v8962, %v9403
  %v9467 = vmul.f32 %v8963, %v9404
  %v9468 = vmul.f32 %v8964, %v9405
  %v9469 = vmul.f32 %v8965, %v9406
  %v9470 = vmul.f32 %v8966, %v9407
  %v9471 = vmul.f32 %v8967, %v9408
  %v9472 = vmul.f32 %v8968, %v9409
  %v9473 = vmul.f32 %v8969, %v9410
  %v9474 = vmul.f32 %v8970, %v9411
  %v9475 = vmul.f32 %v8971, %v9412
  %v9476 = vmul.f32 %v8972, %v9413
  %v9477 = vmul.f32 %v8973, %v9414
  %v9478 = vmul.f32 %v8974, %v9415
  %v9479 = vmul.f32 %v8975, %v9416
  %v9480 = vmul.f32 %v8976, %v9417
  %v9481 = vmul.f32 %v8977, %v9418
  %v9482 = vmul.f32 %v8978, %v9419
  %v9483 = vmul.f32 %v8979, %v9420
  %v9484 = vmul.f32 %v8980, %v9421
  %v9485 = vmul.f32 %v8981, %v9422
  %v9486 = vmul.f32 %v8982, %v9423
  %v9487 = vlaneseq
  %v9488 = vshrl.u32 %v9487, 7
  %v9489 = vsub.s32 0, %v9488
  %v9490 = vrot.slane %v48, %v9489
  %v9491 = vmul.f32 %v9424, %v9490
  %v9492 = vmul.f32 %v9425, %v9490
  %v9493 = vmul.f32 %v9426, %v9490
  %v9494 = vmul.f32 %v9427, %v9490
  %v9495 = vmul.f32 %v9428, %v9490
  %v9496 = vmul.f32 %v9429, %v9490
  %v9497 = vmul.f32 %v9430, %v9490
  %v9498 = vmul.f32 %v9431, %v9490
  %v9499 = vmul.f32 %v9432, %v9490
  %v9500 = vmul.f32 %v9433, %v9490
  %v9501 = vmul.f32 %v9434, %v9490
  %v9502 = vmul.f32 %v9435, %v9490
  %v9503 = vmul.f32 %v9436, %v9490
  %v9504 = vmul.f32 %v9437, %v9490
  %v9505 = vmul.f32 %v9438, %v9490
  %v9506 = vmul.f32 %v9439, %v9490
  %v9507 = vmul.f32 %v9440, %v9490
  %v9508 = vmul.f32 %v9441, %v9490
  %v9509 = vmul.f32 %v9442, %v9490
  %v9510 = vmul.f32 %v9443, %v9490
  %v9511 = vmul.f32 %v9444, %v9490
  %v9512 = vmul.f32 %v9445, %v9490
  %v9513 = vmul.f32 %v9446, %v9490
  %v9514 = vmul.f32 %v9447, %v9490
  %v9515 = vmul.f32 %v9448, %v9490
  %v9516 = vmul.f32 %v9449, %v9490
  %v9517 = vmul.f32 %v9450, %v9490
  %v9518 = vmul.f32 %v9451, %v9490
  %v9519 = vmul.f32 %v9452, %v9490
  %v9520 = vmul.f32 %v9453, %v9490
  %v9521 = vmul.f32 %v9454, %v9490
  %v9522 = vmul.f32 %v9455, %v9490
  %v9523 = vmul.f32 %v9456, %v9490
  %v9524 = vmul.f32 %v9457, %v9490
  %v9525 = vmul.f32 %v9458, %v9490
  %v9526 = vmul.f32 %v9459, %v9490
  %v9527 = vmul.f32 %v9460, %v9490
  %v9528 = vmul.f32 %v9461, %v9490
  %v9529 = vmul.f32 %v9462, %v9490
  %v9530 = vmul.f32 %v9463, %v9490
  %v9531 = vmul.f32 %v9464, %v9490
  %v9532 = vmul.f32 %v9465, %v9490
  %v9533 = vmul.f32 %v9466, %v9490
  %v9534 = vmul.f32 %v9467, %v9490
  %v9535 = vmul.f32 %v9468, %v9490
  %v9536 = vmul.f32 %v9469, %v9490
  %v9537 = vmul.f32 %v9470, %v9490
  %v9538 = vmul.f32 %v9471, %v9490
  %v9539 = vmul.f32 %v9472, %v9490
  %v9540 = vmul.f32 %v9473, %v9490
  %v9541 = vmul.f32 %v9474, %v9490
  %v9542 = vmul.f32 %v9475, %v9490
  %v9543 = vmul.f32 %v9476, %v9490
  %v9544 = vmul.f32 %v9477, %v9490
  %v9545 = vmul.f32 %v9478, %v9490
  %v9546 = vmul.f32 %v9479, %v9490
  %v9547 = vmul.f32 %v9480, %v9490
  %v9548 = vmul.f32 %v9481, %v9490
  %v9549 = vmul.f32 %v9482, %v9490
  %v9550 = vmul.f32 %v9483, %v9490
  %v9551 = vmul.f32 %v9484, %v9490
  %v9552 = vmul.f32 %v9485, %v9490
  %v9553 = vmul.f32 %v9486, %v9490
  %v9554 = vlaneseq
  %v9555 = vshrl.u32 %v9554, 7
  %v9556 = vsub.s32 0, %v9555
  %v9557 = vrot.slane %v49, %v9556
  %v9558 = vadd.f32 %v9491, %v9557
  %v9559 = vadd.f32 %v9492, %v9557
  %v9560 = vadd.f32 %v9493, %v9557
  %v9561 = vadd.f32 %v9494, %v9557
  %v9562 = vadd.f32 %v9495, %v9557
  %v9563 = vadd.f32 %v9496, %v9557
  %v9564 = vadd.f32 %v9497, %v9557
  %v9565 = vadd.f32 %v9498, %v9557
  %v9566 = vadd.f32 %v9499, %v9557
  %v9567 = vadd.f32 %v9500, %v9557
  %v9568 = vadd.f32 %v9501, %v9557
  %v9569 = vadd.f32 %v9502, %v9557
  %v9570 = vadd.f32 %v9503, %v9557
  %v9571 = vadd.f32 %v9504, %v9557
  %v9572 = vadd.f32 %v9505, %v9557
  %v9573 = vadd.f32 %v9506, %v9557
  %v9574 = vadd.f32 %v9507, %v9557
  %v9575 = vadd.f32 %v9508, %v9557
  %v9576 = vadd.f32 %v9509, %v9557
  %v9577 = vadd.f32 %v9510, %v9557
  %v9578 = vadd.f32 %v9511, %v9557
  %v9579 = vadd.f32 %v9512, %v9557
  %v9580 = vadd.f32 %v9513, %v9557
  %v9581 = vadd.f32 %v9514, %v9557
  %v9582 = vadd.f32 %v9515, %v9557
  %v9583 = vadd.f32 %v9516, %v9557
  %v9584 = vadd.f32 %v9517, %v9557
  %v9585 = vadd.f32 %v9518, %v9557
  %v9586 = vadd.f32 %v9519, %v9557
  %v9587 = vadd.f32 %v9520, %v9557
  %v9588 = vadd.f32 %v9521, %v9557
  %v9589 = vadd.f32 %v9522, %v9557
  %v9590 = vadd.f32 %v9523, %v9557
  %v9591 = vadd.f32 %v9524, %v9557
  %v9592 = vadd.f32 %v9525, %v9557
  %v9593 = vadd.f32 %v9526, %v9557
  %v9594 = vadd.f32 %v9527, %v9557
  %v9595 = vadd.f32 %v9528, %v9557
  %v9596 = vadd.f32 %v9529, %v9557
  %v9597 = vadd.f32 %v9530, %v9557
  %v9598 = vadd.f32 %v9531, %v9557
  %v9599 = vadd.f32 %v9532, %v9557
  %v9600 = vadd.f32 %v9533, %v9557
  %v9601 = vadd.f32 %v9534, %v9557
  %v9602 = vadd.f32 %v9535, %v9557
  %v9603 = vadd.f32 %v9536, %v9557
  %v9604 = vadd.f32 %v9537, %v9557
  %v9605 = vadd.f32 %v9538, %v9557
  %v9606 = vadd.f32 %v9539, %v9557
  %v9607 = vadd.f32 %v9540, %v9557
  %v9608 = vadd.f32 %v9541, %v9557
  %v9609 = vadd.f32 %v9542, %v9557
  %v9610 = vadd.f32 %v9543, %v9557
  %v9611 = vadd.f32 %v9544, %v9557
  %v9612 = vadd.f32 %v9545, %v9557
  %v9613 = vadd.f32 %v9546, %v9557
  %v9614 = vadd.f32 %v9547, %v9557
  %v9615 = vadd.f32 %v9548, %v9557
  %v9616 = vadd.f32 %v9549, %v9557
  %v9617 = vadd.f32 %v9550, %v9557
  %v9618 = vadd.f32 %v9551, %v9557
  %v9619 = vadd.f32 %v9552, %v9557
  %v9620 = vadd.f32 %v9553, %v9557
  %v9621 = vmax.f32 %v9558, 0.0
  %v9622 = vmax.f32 %v9559, 0.0
  %v9623 = vmax.f32 %v9560, 0.0
  %v9624 = vmax.f32 %v9561, 0.0
  %v9625 = vmax.f32 %v9562, 0.0
  %v9626 = vmax.f32 %v9563, 0.0
  %v9627 = vmax.f32 %v9564, 0.0
  %v9628 = vmax.f32 %v9565, 0.0
  %v9629 = vmax.f32 %v9566, 0.0
  %v9630 = vmax.f32 %v9567, 0.0
  %v9631 = vmax.f32 %v9568, 0.0
  %v9632 = vmax.f32 %v9569, 0.0
  %v9633 = vmax.f32 %v9570, 0.0
  %v9634 = vmax.f32 %v9571, 0.0
  %v9635 = vmax.f32 %v9572, 0.0
  %v9636 = vmax.f32 %v9573, 0.0
  %v9637 = vmax.f32 %v9574, 0.0
  %v9638 = vmax.f32 %v9575, 0.0
  %v9639 = vmax.f32 %v9576, 0.0
  %v9640 = vmax.f32 %v9577, 0.0
  %v9641 = vmax.f32 %v9578, 0.0
  %v9642 = vmax.f32 %v9579, 0.0
  %v9643 = vmax.f32 %v9580, 0.0
  %v9644 = vmax.f32 %v9581, 0.0
  %v9645 = vmax.f32 %v9582, 0.0
  %v9646 = vmax.f32 %v9583, 0.0
  %v9647 = vmax.f32 %v9584, 0.0
  %v9648 = vmax.f32 %v9585, 0.0
  %v9649 = vmax.f32 %v9586, 0.0
  %v9650 = vmax.f32 %v9587, 0.0
  %v9651 = vmax.f32 %v9588, 0.0
  %v9652 = vmax.f32 %v9589, 0.0
  %v9653 = vmax.f32 %v9590, 0.0
  %v9654 = vmax.f32 %v9591, 0.0
  %v9655 = vmax.f32 %v9592, 0.0
  %v9656 = vmax.f32 %v9593, 0.0
  %v9657 = vmax.f32 %v9594, 0.0
  %v9658 = vmax.f32 %v9595, 0.0
  %v9659 = vmax.f32 %v9596, 0.0
  %v9660 = vmax.f32 %v9597, 0.0
  %v9661 = vmax.f32 %v9598, 0.0
  %v9662 = vmax.f32 %v9599, 0.0
  %v9663 = vmax.f32 %v9600, 0.0
  %v9664 = vmax.f32 %v9601, 0.0
  %v9665 = vmax.f32 %v9602, 0.0
  %v9666 = vmax.f32 %v9603, 0.0
  %v9667 = vmax.f32 %v9604, 0.0
  %v9668 = vmax.f32 %v9605, 0.0
  %v9669 = vmax.f32 %v9606, 0.0
  %v9670 = vmax.f32 %v9607, 0.0
  %v9671 = vmax.f32 %v9608, 0.0
  %v9672 = vmax.f32 %v9609, 0.0
  %v9673 = vmax.f32 %v9610, 0.0
  %v9674 = vmax.f32 %v9611, 0.0
  %v9675 = vmax.f32 %v9612, 0.0
  %v9676 = vmax.f32 %v9613, 0.0
  %v9677 = vmax.f32 %v9614, 0.0
  %v9678 = vmax.f32 %v9615, 0.0
  %v9679 = vmax.f32 %v9616, 0.0
  %v9680 = vmax.f32 %v9617, 0.0
  %v9681 = vmax.f32 %v9618, 0.0
  %v9682 = vmax.f32 %v9619, 0.0
  %v9683 = vmax.f32 %v9620, 0.0
  %9747 = vrot.lane.b32.xlu0 %v4849, 96
  %v9748 = vpop.permute.xlu0 %9747
  %9749 = vrot.lane.b32.xlu0 %v4850, 96
  %v9750 = vpop.permute.xlu0 %9749
  %9751 = vrot.lane.b32.xlu0 %v4851, 96
  %v9752 = vpop.permute.xlu0 %9751
  %9753 = vrot.lane.b32.xlu0 %v4852, 96
  %v9754 = vpop.permute.xlu0 %9753
  %9755 = vrot.lane.b32.xlu0 %v4853, 96
  %v9756 = vpop.permute.xlu0 %9755
  %9757 = vrot.lane.b32.xlu0 %v4854, 96
  %v9758 = vpop.permute.xlu0 %9757
  %9759 = vrot.lane.b32.xlu0 %v4855, 96
  %v9760 = vpop.permute.xlu0 %9759
  %9761 = vrot.lane.b32.xlu0 %v4856, 96
  %v9762 = vpop.permute.xlu0 %9761
  %9763 = vrot.lane.b32.xlu0 %v4857, 96
  %v9764 = vpop.permute.xlu0 %9763
  %9765 = vrot.lane.b32.xlu0 %v4858, 96
  %v9766 = vpop.permute.xlu0 %9765
  %9767 = vrot.lane.b32.xlu0 %v4859, 96
  %v9768 = vpop.permute.xlu0 %9767
  %9769 = vrot.lane.b32.xlu0 %v4860, 96
  %v9770 = vpop.permute.xlu0 %9769
  %9771 = vrot.lane.b32.xlu0 %v4861, 96
  %v9772 = vpop.permute.xlu0 %9771
  %9773 = vrot.lane.b32.xlu0 %v4862, 96
  %v9774 = vpop.permute.xlu0 %9773
  %9775 = vrot.lane.b32.xlu0 %v4863, 96
  %v9776 = vpop.permute.xlu0 %9775
  %9777 = vrot.lane.b32.xlu0 %v4864, 96
  %v9778 = vpop.permute.xlu0 %9777
  %9779 = vrot.lane.b32.xlu0 %v4865, 96
  %v9780 = vpop.permute.xlu0 %9779
  %9781 = vrot.lane.b32.xlu0 %v4866, 96
  %v9782 = vpop.permute.xlu0 %9781
  %9783 = vrot.lane.b32.xlu0 %v4867, 96
  %v9784 = vpop.permute.xlu0 %9783
  %9785 = vrot.lane.b32.xlu0 %v4868, 96
  %v9786 = vpop.permute.xlu0 %9785
  %9787 = vrot.lane.b32.xlu0 %v4869, 96
  %v9788 = vpop.permute.xlu0 %9787
  %9789 = vrot.lane.b32.xlu0 %v4870, 96
  %v9790 = vpop.permute.xlu0 %9789
  %9791 = vrot.lane.b32.xlu0 %v4871, 96
  %v9792 = vpop.permute.xlu0 %9791
  %9793 = vrot.lane.b32.xlu0 %v4872, 96
  %v9794 = vpop.permute.xlu0 %9793
  %9795 = vrot.lane.b32.xlu0 %v4873, 96
  %v9796 = vpop.permute.xlu0 %9795
  %9797 = vrot.lane.b32.xlu0 %v4874, 96
  %v9798 = vpop.permute.xlu0 %9797
  %9799 = vrot.lane.b32.xlu0 %v4875, 96
  %v9800 = vpop.permute.xlu0 %9799
  %9801 = vrot.lane.b32.xlu0 %v4876, 96
  %v9802 = vpop.permute.xlu0 %9801
  %9803 = vrot.lane.b32.xlu0 %v4877, 96
  %v9804 = vpop.permute.xlu0 %9803
  %9805 = vrot.lane.b32.xlu0 %v4878, 96
  %v9806 = vpop.permute.xlu0 %9805
  %9807 = vrot.lane.b32.xlu0 %v4879, 96
  %v9808 = vpop.permute.xlu0 %9807
  %9809 = vrot.lane.b32.xlu0 %v4880, 96
  %v9810 = vpop.permute.xlu0 %9809
  %9811 = vrot.lane.b32.xlu0 %v4881, 96
  %v9812 = vpop.permute.xlu0 %9811
  %9813 = vrot.lane.b32.xlu0 %v4882, 96
  %v9814 = vpop.permute.xlu0 %9813
  %9815 = vrot.lane.b32.xlu0 %v4883, 96
  %v9816 = vpop.permute.xlu0 %9815
  %9817 = vrot.lane.b32.xlu0 %v4884, 96
  %v9818 = vpop.permute.xlu0 %9817
  %9819 = vrot.lane.b32.xlu0 %v4885, 96
  %v9820 = vpop.permute.xlu0 %9819
  %9821 = vrot.lane.b32.xlu0 %v4886, 96
  %v9822 = vpop.permute.xlu0 %9821
  %9823 = vrot.lane.b32.xlu0 %v4887, 96
  %v9824 = vpop.permute.xlu0 %9823
  %9825 = vrot.lane.b32.xlu0 %v4888, 96
  %v9826 = vpop.permute.xlu0 %9825
  %9827 = vrot.lane.b32.xlu0 %v4889, 96
  %v9828 = vpop.permute.xlu0 %9827
  %9829 = vrot.lane.b32.xlu0 %v4890, 96
  %v9830 = vpop.permute.xlu0 %9829
  %9831 = vrot.lane.b32.xlu0 %v4891, 96
  %v9832 = vpop.permute.xlu0 %9831
  %9833 = vrot.lane.b32.xlu0 %v4892, 96
  %v9834 = vpop.permute.xlu0 %9833
  %9835 = vrot.lane.b32.xlu0 %v4893, 96
  %v9836 = vpop.permute.xlu0 %9835
  %9837 = vrot.lane.b32.xlu0 %v4894, 96
  %v9838 = vpop.permute.xlu0 %9837
  %9839 = vrot.lane.b32.xlu0 %v4895, 96
  %v9840 = vpop.permute.xlu0 %9839
  %9841 = vrot.lane.b32.xlu0 %v4896, 96
  %v9842 = vpop.permute.xlu0 %9841
  %9843 = vrot.lane.b32.xlu0 %v4897, 96
  %v9844 = vpop.permute.xlu0 %9843
  %9845 = vrot.lane.b32.xlu0 %v4898, 96
  %v9846 = vpop.permute.xlu0 %9845
  %9847 = vrot.lane.b32.xlu0 %v4899, 96
  %v9848 = vpop.permute.xlu0 %9847
  %9849 = vrot.lane.b32.xlu0 %v4900, 96
  %v9850 = vpop.permute.xlu0 %9849
  %9851 = vrot.lane.b32.xlu0 %v4901, 96
  %v9852 = vpop.permute.xlu0 %9851
  %9853 = vrot.lane.b32.xlu0 %v4902, 96
  %v9854 = vpop.permute.xlu0 %9853
  %9855 = vrot.lane.b32.xlu0 %v4903, 96
  %v9856 = vpop.permute.xlu0 %9855
  %9857 = vrot.lane.b32.xlu0 %v4904, 96
  %v9858 = vpop.permute.xlu0 %9857
  %9859 = vrot.lane.b32.xlu0 %v4905, 96
  %v9860 = vpop.permute.xlu0 %9859
  %9861 = vrot.lane.b32.xlu0 %v4906, 96
  %v9862 = vpop.permute.xlu0 %9861
  %9863 = vrot.lane.b32.xlu0 %v4907, 96
  %v9864 = vpop.permute.xlu0 %9863
  %9865 = vrot.lane.b32.xlu0 %v4908, 96
  %v9866 = vpop.permute.xlu0 %9865
  %9867 = vrot.lane.b32.xlu0 %v4909, 96
  %v9868 = vpop.permute.xlu0 %9867
  %9869 = vrot.lane.b32.xlu0 %v4910, 96
  %v9870 = vpop.permute.xlu0 %9869
  %9871 = vrot.lane.b32.xlu0 %v4911, 96
  %v9872 = vpop.permute.xlu0 %9871
  %v9936 = vadd.f32 %v9621, %v9748
  %v9937 = vadd.f32 %v9622, %v9750
  %v9938 = vadd.f32 %v9623, %v9752
  %v9939 = vadd.f32 %v9624, %v9754
  %v9940 = vadd.f32 %v9625, %v9756
  %v9941 = vadd.f32 %v9626, %v9758
  %v9942 = vadd.f32 %v9627, %v9760
  %v9943 = vadd.f32 %v9628, %v9762
  %v9944 = vadd.f32 %v9629, %v9764
  %v9945 = vadd.f32 %v9630, %v9766
  %v9946 = vadd.f32 %v9631, %v9768
  %v9947 = vadd.f32 %v9632, %v9770
  %v9948 = vadd.f32 %v9633, %v9772
  %v9949 = vadd.f32 %v9634, %v9774
  %v9950 = vadd.f32 %v9635, %v9776
  %v9951 = vadd.f32 %v9636, %v9778
  %v9952 = vadd.f32 %v9637, %v9780
  %v9953 = vadd.f32 %v9638, %v9782
  %v9954 = vadd.f32 %v9639, %v9784
  %v9955 = vadd.f32 %v9640, %v9786
  %v9956 = vadd.f32 %v9641, %v9788
  %v9957 = vadd.f32 %v9642, %v9790
  %v9958 = vadd.f32 %v9643, %v9792
  %v9959 = vadd.f32 %v9644, %v9794
  %v9960 = vadd.f32 %v9645, %v9796
  %v9961 = vadd.f32 %v9646, %v9798
  %v9962 = vadd.f32 %v9647, %v9800
  %v9963 = vadd.f32 %v9648, %v9802
  %v9964 = vadd.f32 %v9649, %v9804
  %v9965 = vadd.f32 %v9650, %v9806
  %v9966 = vadd.f32 %v9651, %v9808
  %v9967 = vadd.f32 %v9652, %v9810
  %v9968 = vadd.f32 %v9653, %v9812
  %v9969 = vadd.f32 %v9654, %v9814
  %v9970 = vadd.f32 %v9655, %v9816
  %v9971 = vadd.f32 %v9656, %v9818
  %v9972 = vadd.f32 %v9657, %v9820
  %v9973 = vadd.f32 %v9658, %v9822
  %v9974 = vadd.f32 %v9659, %v9824
  %v9975 = vadd.f32 %v9660, %v9826
  %v9976 = vadd.f32 %v9661, %v9828
  %v9977 = vadd.f32 %v9662, %v9830
  %v9978 = vadd.f32 %v9663, %v9832
  %v9979 = vadd.f32 %v9664, %v9834
  %v9980 = vadd.f32 %v9665, %v9836
  %v9981 = vadd.f32 %v9666, %v9838
  %v9982 = vadd.f32 %v9667, %v9840
  %v9983 = vadd.f32 %v9668, %v9842
  %v9984 = vadd.f32 %v9669, %v9844
  %v9985 = vadd.f32 %v9670, %v9846
  %v9986 = vadd.f32 %v9671, %v9848
  %v9987 = vadd.f32 %v9672, %v9850
  %v9988 = vadd.f32 %v9673, %v9852
  %v9989 = vadd.f32 %v9674, %v9854
  %v9990 = vadd.f32 %v9675, %v9856
  %v9991 = vadd.f32 %v9676, %v9858
  %v9992 = vadd.f32 %v9677, %v9860
  %v9993 = vadd.f32 %v9678, %v9862
  %v9994 = vadd.f32 %v9679, %v9864
  %v9995 = vadd.f32 %v9680, %v9866
  %v9996 = vadd.f32 %v9681, %v9868
  %v9997 = vadd.f32 %v9682, %v9870
  %v9998 = vadd.f32 %v9683, %v9872
  %9999 = vst.msk [vmem:[%s4] sm:$0xff] %vm6834, %v9936
  %10000 = vst.msk [vmem:[%s4 + $0x8] sm:$0xff] %vm6834, %v9937
  %10001 = vst.msk [vmem:[%s4 + $0x10] sm:$0xff] %vm6834, %v9938
  %10002 = vst.msk [vmem:[%s4 + $0x18] sm:$0xff] %vm6834, %v9939
  %10003 = vst.msk [vmem:[%s4 + $0x20] sm:$0xff] %vm6834, %v9940
  %10004 = vst.msk [vmem:[%s4 + $0x28] sm:$0xff] %vm6834, %v9941
  %10005 = vst.msk [vmem:[%s4 + $0x30] sm:$0xff] %vm6834, %v9942
  %10006 = vst.msk [vmem:[%s4 + $0x38] sm:$0xff] %vm6834, %v9943
  %10007 = vst.msk [vmem:[%s4 + $0x40] sm:$0xff] %vm6834, %v9944
  %10008 = vst.msk [vmem:[%s4 + $0x48] sm:$0xff] %vm6834, %v9945
  %10009 = vst.msk [vmem:[%s4 + $0x50] sm:$0xff] %vm6834, %v9946
  %10010 = vst.msk [vmem:[%s4 + $0x58] sm:$0xff] %vm6834, %v9947
  %10011 = vst.msk [vmem:[%s4 + $0x60] sm:$0xff] %vm6834, %v9948
  %10012 = vst.msk [vmem:[%s4 + $0x68] sm:$0xff] %vm6834, %v9949
  %10013 = vst.msk [vmem:[%s4 + $0x70] sm:$0xff] %vm6834, %v9950
  %10014 = vst.msk [vmem:[%s4 + $0x78] sm:$0xff] %vm6834, %v9951
  %10015 = vst.msk [vmem:[%s4 + $0x80] sm:$0xff] %vm6834, %v9952
  %10016 = vst.msk [vmem:[%s4 + $0x88] sm:$0xff] %vm6834, %v9953
  %10017 = vst.msk [vmem:[%s4 + $0x90] sm:$0xff] %vm6834, %v9954
  %10018 = vst.msk [vmem:[%s4 + $0x98] sm:$0xff] %vm6834, %v9955
  %10019 = vst.msk [vmem:[%s4 + $0xa0] sm:$0xff] %vm6834, %v9956
  %10020 = vst.msk [vmem:[%s4 + $0xa8] sm:$0xff] %vm6834, %v9957
  %10021 = vst.msk [vmem:[%s4 + $0xb0] sm:$0xff] %vm6834, %v9958
  %10022 = vst.msk [vmem:[%s4 + $0xb8] sm:$0xff] %vm6834, %v9959
  %10023 = vst.msk [vmem:[%s4 + $0xc0] sm:$0xff] %vm6834, %v9960
  %10024 = vst.msk [vmem:[%s4 + $0xc8] sm:$0xff] %vm6834, %v9961
  %10025 = vst.msk [vmem:[%s4 + $0xd0] sm:$0xff] %vm6834, %v9962
  %10026 = vst.msk [vmem:[%s4 + $0xd8] sm:$0xff] %vm6834, %v9963
  %10027 = vst.msk [vmem:[%s4 + $0xe0] sm:$0xff] %vm6834, %v9964
  %10028 = vst.msk [vmem:[%s4 + $0xe8] sm:$0xff] %vm6834, %v9965
  %10029 = vst.msk [vmem:[%s4 + $0xf0] sm:$0xff] %vm6834, %v9966
  %10030 = vst.msk [vmem:[%s4 + $0xf8] sm:$0xff] %vm6834, %v9967
  %10031 = vst.msk [vmem:[%s4 + $0x100] sm:$0xff] %vm6834, %v9968
  %10032 = vst.msk [vmem:[%s4 + $0x108] sm:$0xff] %vm6834, %v9969
  %10033 = vst.msk [vmem:[%s4 + $0x110] sm:$0xff] %vm6834, %v9970
  %10034 = vst.msk [vmem:[%s4 + $0x118] sm:$0xff] %vm6834, %v9971
  %10035 = vst.msk [vmem:[%s4 + $0x120] sm:$0xff] %vm6834, %v9972
  %10036 = vst.msk [vmem:[%s4 + $0x128] sm:$0xff] %vm6834, %v9973
  %10037 = vst.msk [vmem:[%s4 + $0x130] sm:$0xff] %vm6834, %v9974
  %10038 = vst.msk [vmem:[%s4 + $0x138] sm:$0xff] %vm6834, %v9975
  %10039 = vst.msk [vmem:[%s4 + $0x140] sm:$0xff] %vm6834, %v9976
  %10040 = vst.msk [vmem:[%s4 + $0x148] sm:$0xff] %vm6834, %v9977
  %10041 = vst.msk [vmem:[%s4 + $0x150] sm:$0xff] %vm6834, %v9978
  %10042 = vst.msk [vmem:[%s4 + $0x158] sm:$0xff] %vm6834, %v9979
  %10043 = vst.msk [vmem:[%s4 + $0x160] sm:$0xff] %vm6834, %v9980
  %10044 = vst.msk [vmem:[%s4 + $0x168] sm:$0xff] %vm6834, %v9981
  %10045 = vst.msk [vmem:[%s4 + $0x170] sm:$0xff] %vm6834, %v9982
  %10046 = vst.msk [vmem:[%s4 + $0x178] sm:$0xff] %vm6834, %v9983
  %10047 = vst.msk [vmem:[%s4 + $0x180] sm:$0xff] %vm6834, %v9984
  %10048 = vst.msk [vmem:[%s4 + $0x188] sm:$0xff] %vm6834, %v9985
  %10049 = vst.msk [vmem:[%s4 + $0x190] sm:$0xff] %vm6834, %v9986
  %10050 = vst.msk [vmem:[%s4 + $0x198] sm:$0xff] %vm6834, %v9987
  %10051 = vst.msk [vmem:[%s4 + $0x1a0] sm:$0xff] %vm6834, %v9988
  %10052 = vst.msk [vmem:[%s4 + $0x1a8] sm:$0xff] %vm6834, %v9989
  %10053 = vst.msk [vmem:[%s4 + $0x1b0] sm:$0xff] %vm6834, %v9990
  %10054 = vst.msk [vmem:[%s4 + $0x1b8] sm:$0xff] %vm6834, %v9991
  %10055 = vst.msk [vmem:[%s4 + $0x1c0] sm:$0xff] %vm6834, %v9992
  %10056 = vst.msk [vmem:[%s4 + $0x1c8] sm:$0xff] %vm6834, %v9993
  %10057 = vst.msk [vmem:[%s4 + $0x1d0] sm:$0xff] %vm6834, %v9994
  %10058 = vst.msk [vmem:[%s4 + $0x1d8] sm:$0xff] %vm6834, %v9995
  %10059 = vst.msk [vmem:[%s4 + $0x1e0] sm:$0xff] %vm6834, %v9996
  %10060 = vst.msk [vmem:[%s4 + $0x1e8] sm:$0xff] %vm6834, %v9997
  %10061 = vst.msk [vmem:[%s4 + $0x1f0] sm:$0xff] %vm6834, %v9998
  // Predicated region
  $region18: #{tpu_custom_call.1} parent=0 // pred_check
    _
  $region19: #{tpu_custom_call.1} parent=0 // pred_check_branch
    %10063 = sbr.rel (0) target = $region21
  $region20: #{tpu_custom_call.1} parent=0 // pred_region
    _
  $region21: #{tpu_custom_call.1} parent=0 // pred_fallthru
    _
  // Predicated region
  $region22: #{tpu_custom_call.1} parent=0 // pred_check
    _
  $region23: #{tpu_custom_call.1} parent=0 // pred_check_branch
    %10065 = sbr.rel (0) target = $region25
  $region24: #{tpu_custom_call.1} parent=0 // pred_region
    _
  $region25: #{tpu_custom_call.1} parent=0 // pred_fallthru
    _

</llo_original>
